<compile_context>
chip_gen: v7x
topology: tpu7x:2x2x1
jax: 0.10.0
libtpu: 0.0.40
codegen_flags: <defaults>
</compile_context>

<pallas_src>
import functools

import jax
import jax.numpy as jnp
from jax import lax
from jax.experimental import pallas as pl
from jax.experimental.pallas import tpu as pltpu


# -----------------------------------------------------------------------------
# Plain-JAX glue: trilinear (align_corners=True) resize, like F.interpolate.
# -----------------------------------------------------------------------------
def _interp_axis_align_corners(x, axis, n_out):
    n_in = x.shape[axis]
    if n_in == n_out:
        return x
    if n_out == 1 or n_in == 1:
        pos = jnp.zeros((n_out,), jnp.float32)
    else:
        pos = jnp.arange(n_out, dtype=jnp.float32) * ((n_in - 1) / (n_out - 1))
    lo = jnp.floor(pos).astype(jnp.int32)
    hi = jnp.minimum(lo + 1, n_in - 1)
    frac = pos - lo.astype(jnp.float32)
    xlo = jnp.take(x, lo, axis=axis)
    xhi = jnp.take(x, hi, axis=axis)
    bshape = [1] * x.ndim
    bshape[axis] = n_out
    frac = frac.reshape(bshape)
    return xlo * (1.0 - frac) + xhi * frac


def trilinear_resize_align_corners(x, size):
    # x: [B, C, D, H, W] -> [B, C, *size]
    for ax, n_out in zip((2, 3, 4), size):
        x = _interp_axis_align_corners(x, ax, n_out)
    return x


# -----------------------------------------------------------------------------
# Deterministic parameter init (shapes from MultiscaleFusion._build_attention).
# -----------------------------------------------------------------------------
def init_attention_params(C, key):
    mid = max(4, C // 2)
    k1, k2, k3, k4 = jax.random.split(key, 4)
    w1 = jax.random.normal(k1, (mid, C, 3, 3, 3), jnp.float32) * 0.2   # Conv3d(C, mid, 3, pad=1)
    b1 = jax.random.normal(k2, (mid,), jnp.float32) * 0.1
    w2 = jax.random.normal(k3, (3, mid), jnp.float32) * 0.2            # Conv3d(mid, 3, 1)
    b2 = jax.random.normal(k4, (3,), jnp.float32) * 0.1
    return dict(w1=w1, b1=b1, w2=w2, b2=b2)


# -----------------------------------------------------------------------------
# Pallas kernel: one batch block (Bblk elements) per grid step.
# Lane layout of the main operands is batch-major:  j = b*N + (td*H + h)*W + w,
# with N = T*D*H*W per batch element; channels live on the sublane axis.
# -----------------------------------------------------------------------------
def _fusion_kernel(att_ref, w1_ref, b1_ref, w2_ref, b2_ref, mask_ref, out_ref,
                   apad_ref, *, C, T, D, H, W, Bblk, ch_p, mxu_dtype):
    HW = H * W
    DHW = D * HW
    N = T * DHW
    BN = Bblk * N

    # --- channel-padded f32 working copy; only padded rows need re-zeroing ---
    if ch_p > C:
        apad_ref[C:ch_p, :] = jnp.zeros((ch_p - C, BN), jnp.float32)
    apad_ref[0:C, :] = att_ref[...].astype(jnp.float32)
    a = apad_ref[...]                                       # (ch_p, BN) f32

    # --- Conv3d(C -> mid, 3, pad=1) as 27 accumulated MXU matmuls ------------
    # For tap (di, dj, dk) the needed slab is slab[c, j] = a[c, j + s] with
    # s = di*HW + dj*W + dk; out-of-range / cross-batch wrap positions are
    # exactly the positions the host-precomputed mask rows zero out.
    acc = None
    o = 0
    for di in (-1, 0, 1):
        for dj in (-1, 0, 1):
            for dk in (-1, 0, 1):
                s = di * HW + dj * W + dk
                if s == 0:                                  # centre tap: no shift, no mask
                    slab = a
                else:
                    slab = pltpu.roll(a, (-s) % BN, axis=1)       # XLU lane rotate
                    slab = slab * mask_ref[o:o + 1, :]            # mask in f32
                contrib = jnp.dot(w1_ref[o], slab.astype(mxu_dtype),
                                  preferred_element_type=jnp.float32)
                acc = contrib if acc is None else acc + contrib
                o += 1
    # acc: (mid_p, BN) f32; padded output rows are exactly zero (zero weights).

    b1 = b1_ref[...]                                        # (mid_p, 1) f32
    w2 = w2_ref[...]                                        # (8, mid_p) f32
    b2 = b2_ref[...]                                        # (3, 1) f32

    # --- per-batch-element epilogue (static 128-aligned lane segments) -------
    for b in range(Bblk):
        lo = b * N
        feat = acc[:, lo:lo + N] + b1                       # (mid_p, N)

        # InstanceNorm3d (affine=False, eps=1e-5) over all T*D*H*W, then ReLU.
        mu = jnp.mean(feat, axis=1, keepdims=True)
        fc = feat - mu
        var = jnp.mean(fc * fc, axis=1, keepdims=True)
        feat = jnp.maximum(fc * lax.rsqrt(var + 1e-5), 0.0)  # padded rows stay 0

        # Conv3d(mid -> 3, 1) + softmax over the 3 attention maps.
        logits = jnp.dot(w2, feat, preferred_element_type=jnp.float32)[:3, :] + b2
        mx = jnp.max(logits, axis=0, keepdims=True)
        e = jnp.exp(logits - mx)
        den = jnp.sum(e, axis=0, keepdims=True)
        inv = pl.reciprocal(den, approx=True)               # EUP seed ...
        inv = inv * (2.0 - den * inv)                       # ... + 1 Newton step
        wts = e * inv                                        # (3, N)

        # fused = sum_t stacked[t] * weights[t]; tier t is the static,
        # 128-aligned lane segment [t*DHW, (t+1)*DHW) of both `a` and `wts`.
        fused = None
        for t in range(T):
            seg = a[0:C, lo + t * DHW:lo + (t + 1) * DHW] * wts[:, t * DHW:(t + 1) * DHW]
            fused = seg if fused is None else fused + seg    # C-vs-3 bcast (C in {1,3})
        out_ref[:, b * DHW:(b + 1) * DHW] = fused.astype(out_ref.dtype)


def _pick_batch_block(B, N, cap=8):
    # Largest batch block <= cap that divides B and keeps the lane width a
    # multiple of 128 (or equal to the full array extent).
    for bb in range(min(B, cap), 0, -1):
        if B % bb == 0 and (bb == B or (bb * N) % 128 == 0):
            return bb
    return B


def _build_tap_masks(T, D, H, W, Bblk):
    """(27, Bblk*T*D*H*W) f32 validity masks for the 27 conv taps (host-side)."""
    TD = T * D
    td = jnp.arange(TD).reshape(TD, 1, 1)
    hh = jnp.arange(H).reshape(1, H, 1)
    ww = jnp.arange(W).reshape(1, 1, W)
    rows = []
    for di in (-1, 0, 1):
        for dj in (-1, 0, 1):
            for dk in (-1, 0, 1):
                m = jnp.ones((TD, H, W), bool)
                if di == -1:
                    m = m & (td >= 1)
                elif di == 1:
                    m = m & (td <= TD - 2)
                if dj == -1:
                    m = m & (hh >= 1)
                elif dj == 1:
                    m = m & (hh <= H - 2)
                if dk == -1:
                    m = m & (ww >= 1)
                elif dk == 1:
                    m = m & (ww <= W - 2)
                rows.append(m.reshape(-1))
    mask_n = jnp.stack(rows).astype(jnp.float32)            # (27, N)
    return jnp.tile(mask_n, (1, Bblk))                      # (27, Bblk*N)


# -----------------------------------------------------------------------------
# Wrapper reproducing MultiscaleFusion.forward
# -----------------------------------------------------------------------------
def multiscale_fusion_forward(tier_features, params, target_shape=None, mxu_bf16=True):
    if not tier_features:
        raise ValueError("No tier features provided")
    available = sorted(tier_features.keys())
    if target_shape is None:
        tgt = tier_features.get(0, tier_features[available[0]])
        target_shape = tuple(tgt.shape[2:])

    aligned = {}
    for t in available:
        f = tier_features[t]
        if tuple(f.shape[2:]) != tuple(target_shape):
            aligned[t] = trilinear_resize_align_corners(f, target_shape)
        else:
            aligned[t] = f
    if len(aligned) == 1:
        return next(iter(aligned.values()))

    ref = next(iter(aligned.values()))
    B, C = ref.shape[:2]
    D, H, W = [int(d) for d in target_shape]
    dtype = ref.dtype
    T = 3
    if C not in (1, 3):
        raise ValueError(
            f"MultiscaleFusion's stacked*weights broadcast needs C in (1, 3); got C={C}")
    cout = 3
    mid = max(4, C // 2)
    mxu_dtype = jnp.bfloat16 if mxu_bf16 else jnp.float32

    all_feats = [aligned.get(t, jnp.zeros((B, C, D, H, W), dtype)) for t in range(T)]
    stacked = jnp.stack(all_feats, axis=1)                   # (B, T, C, D, H, W)

    HW, DHW = H * W, D * H * W
    N = T * DHW
    Bblk = _pick_batch_block(B, N)

    # Kernel input: channels on sublanes, (batch, t, d, h, w) batch-major on lanes.
    att_k = jnp.transpose(stacked, (2, 0, 1, 3, 4, 5)).reshape(C, B * N)

    # Weight packing (host): one (mid_p, ch_p) tile per conv tap, tap-major.
    ch_p = 8 * ((C + 7) // 8)
    mid_p = 8 * ((mid + 7) // 8)
    w1_o = jnp.transpose(params["w1"], (2, 3, 4, 0, 1)).reshape(27, mid, C)
    w1p = jnp.zeros((27, mid_p, ch_p), mxu_dtype).at[:, :mid, :C].set(
        w1_o.astype(mxu_dtype))
    b1p = jnp.zeros((mid_p, 1), jnp.float32).at[:mid, 0].set(
        params["b1"].astype(jnp.float32))
    w2p = jnp.zeros((8, mid_p), jnp.float32).at[:3, :mid].set(
        params["w2"].astype(jnp.float32))
    b2p = params["b2"].reshape(3, 1).astype(jnp.float32)

    mask_bn = _build_tap_masks(T, D, H, W, Bblk)             # (27, Bblk*N) f32

    kernel = functools.partial(
        _fusion_kernel, C=C, T=T, D=D, H=H, W=W, Bblk=Bblk, ch_p=ch_p,
        mxu_dtype=mxu_dtype)

    # Per-step VMEM: in/out blocks + (ch_p, Bblk*N) working copy + (mid_p, Bblk*N)
    # f32 accumulator + resident mask table -- tens of KiB here, no materialized
    # im2col, so the footprint stays far below v7x's 32 MiB scoped default even
    # for much larger D*H*W.
    # TODO(synk): for v7x when B (and thus the grid) is 1, add a second "parallel"
    # grid axis splitting T*D with halo-aware tiles + carried InstanceNorm stats
    # so both TensorCores get work.
    fused_flat = pl.pallas_call(
        kernel,
        out_shape=jax.ShapeDtypeStruct((cout, B * DHW), dtype),
        grid=(B // Bblk,),
        in_specs=[
            pl.BlockSpec((C, Bblk * N), lambda g: (0, g)),
            pl.BlockSpec((27, mid_p, ch_p), lambda g: (0, 0, 0)),
            pl.BlockSpec((mid_p, 1), lambda g: (0, 0)),
            pl.BlockSpec((8, mid_p), lambda g: (0, 0)),
            pl.BlockSpec((3, 1), lambda g: (0, 0)),
            pl.BlockSpec((27, Bblk * N), lambda g: (0, 0)),
        ],
        out_specs=pl.BlockSpec((cout, Bblk * DHW), lambda g: (0, g)),
        scratch_shapes=[pltpu.VMEM((ch_p, Bblk * N), jnp.float32)],
        compiler_params=pltpu.CompilerParams(
            dimension_semantics=("parallel",)),   # batch blocks independent; v7x: 2 TCs
    )(att_k, w1p, b1p, w2p, b2p, mask_bn)

    fused = fused_flat.reshape(cout, B, DHW)
    return jnp.transpose(fused, (1, 0, 2)).reshape(B, cout, D, H, W)


# -----------------------------------------------------------------------------
# Pure-JAX reference (mirrors the PyTorch forward) for validation.
# -----------------------------------------------------------------------------
def multiscale_fusion_reference(tier_features, params, target_shape=None):
    available = sorted(tier_features.keys())
    if target_shape is None:
        tgt = tier_features.get(0, tier_features[available[0]])
        target_shape = tuple(tgt.shape[2:])
    aligned = {}
    for t in available:
        f = tier_features[t]
        aligned[t] = (trilinear_resize_align_corners(f, target_shape)
                      if tuple(f.shape[2:]) != tuple(target_shape) else f)
    ref = next(iter(aligned.values()))
    B, C = ref.shape[:2]
    D, H, W = target_shape
    T = 3
    mid = max(4, C // 2)
    all_feats = [aligned.get(t, jnp.zeros((B, C, D, H, W), ref.dtype)) for t in range(T)]
    stacked = jnp.stack(all_feats, axis=1)
    att_in = jnp.transpose(stacked, (0, 2, 1, 3, 4, 5)).reshape(B, C, T * D, H, W)
    dn = ("NCDHW", "OIDHW", "NCDHW")
    h = lax.conv_general_dilated(att_in, params["w1"], (1, 1, 1),
                                 ((1, 1), (1, 1), (1, 1)), dimension_numbers=dn)
    h = h + params["b1"].reshape(1, mid, 1, 1, 1)
    mu = h.mean(axis=(2, 3, 4), keepdims=True)
    var = ((h - mu) ** 2).mean(axis=(2, 3, 4), keepdims=True)
    h = jnp.maximum((h - mu) / jnp.sqrt(var + 1e-5), 0.0)
    logits = lax.conv_general_dilated(h, params["w2"].reshape(3, mid, 1, 1, 1),
                                      (1, 1, 1), "VALID", dimension_numbers=dn)
    logits = logits + params["b2"].reshape(1, 3, 1, 1, 1)
    weights = jax.nn.softmax(logits, axis=1)
    weights = jnp.transpose(weights.reshape(B, 3, T, D, H, W), (0, 2, 1, 3, 4, 5))
    return jnp.sum(stacked * weights, axis=1)


if __name__ == "__main__":
    key = jax.random.PRNGKey(0)
    kp, k0, k1, k2 = jax.random.split(key, 4)
    # C must be 3 (or 1) for the module's stacked*weights broadcast to be valid.
    B, C, D, H, W = 2, 3, 4, 8, 8
    params = init_attention_params(C, kp)
    tier_features = {
        0: jax.random.normal(k0, (B, C, D, H, W), jnp.float32),
        1: jax.random.normal(k1, (B, C, D // 2, H // 2, W // 2), jnp.float32),  # resized in glue
        2: jax.random.normal(k2, (B, C, D, H, W), jnp.float32),
    }

    out = jax.block_until_ready(multiscale_fusion_forward(tier_features, params))
    ref = jax.block_until_ready(multiscale_fusion_reference(tier_features, params))
    assert out.shape == ref.shape == (B, 3, D, H, W), (out.shape, ref.shape)
    err = float(jnp.max(jnp.abs(out - ref)))
    # Tolerance sized to absorb bf16 MXU-input rounding in the 3x3x3 conv (per
    # the v6e/v7x review item) vs the f32 XLA conv reference; structural bugs
    # (wrong tap shift/mask/softmax mapping) produce O(0.3+) errors.
    assert err < 5e-2, f"max abs err {err}"
    print("KERNEL_OK")
</pallas_src>

<mosaic_0001>
module attributes {stable_mosaic.version = 11 : i64} {
  func.func @_fusion_kernel(%arg0: i32, %arg1: memref<3x1536xf32, #tpu.memory_space<vmem>>, %arg2: memref<27x8x8xbf16, #tpu.memory_space<vmem>>, %arg3: memref<8x1xf32, #tpu.memory_space<vmem>>, %arg4: memref<8x8xf32, #tpu.memory_space<vmem>>, %arg5: memref<3x1xf32, #tpu.memory_space<vmem>>, %arg6: memref<27x1536xf32, #tpu.memory_space<vmem>>, %arg7: memref<3x512xf32, #tpu.memory_space<vmem>>, %arg8: memref<8x1536xf32, #tpu.memory_space<vmem>>) attributes {dimension_semantics = [#tpu.dimension_semantics<parallel>], iteration_bounds = array<i64: 1>, scalar_prefetch = 0 : i64, scratch_operands = 1 : i64, tpu.core_type = #tpu.core_type<tc>, window_params = [{transform_indices = @transform_0, window_bounds = array<i64: 3, 1536>}, {pipeline_mode = #tpu.pipeline_mode<synchronous>, transform_indices = @transform_1, window_bounds = array<i64: 27, 8, 8>}, {pipeline_mode = #tpu.pipeline_mode<synchronous>, transform_indices = @transform_2, window_bounds = array<i64: 8, 1>}, {pipeline_mode = #tpu.pipeline_mode<synchronous>, transform_indices = @transform_3, window_bounds = array<i64: 8, 8>}, {pipeline_mode = #tpu.pipeline_mode<synchronous>, transform_indices = @transform_4, window_bounds = array<i64: 3, 1>}, {pipeline_mode = #tpu.pipeline_mode<synchronous>, transform_indices = @transform_5, window_bounds = array<i64: 27, 1536>}, {transform_indices = @transform_6, window_bounds = array<i64: 3, 512>}]} {
    %cst = arith.constant 0.000000e+00 : f32
    %0 = vector.broadcast %cst : f32 to vector<5x1536xf32>
    %c3 = arith.constant 3 : index
    %c0 = arith.constant 0 : index
    %1 = vector.load %arg8[%c3, %c0] : memref<8x1536xf32, #tpu.memory_space<vmem>>, vector<5x1536xf32>
    tpu.vector_store %arg8[%c3, %c0], %0 {strides = array<i32>} : memref<8x1536xf32, #tpu.memory_space<vmem>>, vector<5x1536xf32>,
    %c0_0 = arith.constant 0 : index
    %c0_1 = arith.constant 0 : index
    %2 = vector.load %arg1[%c0_0, %c0_1] : memref<3x1536xf32, #tpu.memory_space<vmem>>, vector<3x1536xf32>
    %c0_2 = arith.constant 0 : index
    %c0_3 = arith.constant 0 : index
    %3 = vector.load %arg8[%c0_2, %c0_3] : memref<8x1536xf32, #tpu.memory_space<vmem>>, vector<3x1536xf32>
    tpu.vector_store %arg8[%c0_2, %c0_3], %2 {strides = array<i32>} : memref<8x1536xf32, #tpu.memory_space<vmem>>, vector<3x1536xf32>,
    %c0_4 = arith.constant 0 : index
    %c0_5 = arith.constant 0 : index
    %4 = vector.load %arg8[%c0_4, %c0_5] : memref<8x1536xf32, #tpu.memory_space<vmem>>, vector<8x1536xf32>
    %c73_i32 = arith.constant 73 : i32
    %5 = tpu.dynamic_rotate %4 by %c73_i32 dim 1 : vector<8x1536xf32>, i32 -> vector<8x1536xf32>
    %c0_6 = arith.constant 0 : index
    %c0_7 = arith.constant 0 : index
    %6 = vector.load %arg6[%c0_6, %c0_7] : memref<27x1536xf32, #tpu.memory_space<vmem>>, vector<1x1536xf32>
    %7 = vector.broadcast %6 : vector<1x1536xf32> to vector<8x1536xf32>
    %8 = arith.mulf %5, %7 : vector<8x1536xf32>
    %c0_8 = arith.constant 0 : index
    %c0_9 = arith.constant 0 : index
    %c0_10 = arith.constant 0 : index
    %9 = vector.load %arg2[%c0_8, %c0_9, %c0_10] : memref<27x8x8xbf16, #tpu.memory_space<vmem>>, vector<1x8x8xbf16>
    %10 = vector.shape_cast %9 : vector<1x8x8xbf16> to vector<8x8xbf16>
    %11 = arith.truncf %8 : vector<8x1536xf32> to vector<8x1536xbf16>
    %cst_11 = arith.constant dense<0.000000e+00> : vector<8x1536xf32>
    %12 = tpu.matmul %10, %11, %cst_11 {dimension_numbers = #tpu.dot_dimension_numbers<[1], [0], [0], [1], [0, 0, 1, 1], [], []>} : vector<8x8xbf16>, vector<8x1536xbf16>, vector<8x1536xf32> -> vector<8x1536xf32>
    %c72_i32 = arith.constant 72 : i32
    %13 = tpu.dynamic_rotate %4 by %c72_i32 dim 1 : vector<8x1536xf32>, i32 -> vector<8x1536xf32>
    %c1 = arith.constant 1 : index
    %c0_12 = arith.constant 0 : index
    %14 = vector.load %arg6[%c1, %c0_12] : memref<27x1536xf32, #tpu.memory_space<vmem>>, vector<1x1536xf32>
    %15 = vector.broadcast %14 : vector<1x1536xf32> to vector<8x1536xf32>
    %16 = arith.mulf %13, %15 : vector<8x1536xf32>
    %c1_13 = arith.constant 1 : index
    %c0_14 = arith.constant 0 : index
    %c0_15 = arith.constant 0 : index
    %17 = vector.load %arg2[%c1_13, %c0_14, %c0_15] : memref<27x8x8xbf16, #tpu.memory_space<vmem>>, vector<1x8x8xbf16>
    %18 = vector.shape_cast %17 : vector<1x8x8xbf16> to vector<8x8xbf16>
    %19 = arith.truncf %16 : vector<8x1536xf32> to vector<8x1536xbf16>
    %cst_16 = arith.constant dense<0.000000e+00> : vector<8x1536xf32>
    %20 = tpu.matmul %18, %19, %cst_16 {dimension_numbers = #tpu.dot_dimension_numbers<[1], [0], [0], [1], [0, 0, 1, 1], [], []>} : vector<8x8xbf16>, vector<8x1536xbf16>, vector<8x1536xf32> -> vector<8x1536xf32>
    %21 = arith.addf %12, %20 : vector<8x1536xf32>
    %c71_i32 = arith.constant 71 : i32
    %22 = tpu.dynamic_rotate %4 by %c71_i32 dim 1 : vector<8x1536xf32>, i32 -> vector<8x1536xf32>
    %c2 = arith.constant 2 : index
    %c0_17 = arith.constant 0 : index
    %23 = vector.load %arg6[%c2, %c0_17] : memref<27x1536xf32, #tpu.memory_space<vmem>>, vector<1x1536xf32>
    %24 = vector.broadcast %23 : vector<1x1536xf32> to vector<8x1536xf32>
    %25 = arith.mulf %22, %24 : vector<8x1536xf32>
    %c2_18 = arith.constant 2 : index
    %c0_19 = arith.constant 0 : index
    %c0_20 = arith.constant 0 : index
    %26 = vector.load %arg2[%c2_18, %c0_19, %c0_20] : memref<27x8x8xbf16, #tpu.memory_space<vmem>>, vector<1x8x8xbf16>
    %27 = vector.shape_cast %26 : vector<1x8x8xbf16> to vector<8x8xbf16>
    %28 = arith.truncf %25 : vector<8x1536xf32> to vector<8x1536xbf16>
    %cst_21 = arith.constant dense<0.000000e+00> : vector<8x1536xf32>
    %29 = tpu.matmul %27, %28, %cst_21 {dimension_numbers = #tpu.dot_dimension_numbers<[1], [0], [0], [1], [0, 0, 1, 1], [], []>} : vector<8x8xbf16>, vector<8x1536xbf16>, vector<8x1536xf32> -> vector<8x1536xf32>
    %30 = arith.addf %21, %29 : vector<8x1536xf32>
    %c65_i32 = arith.constant 65 : i32
    %31 = tpu.dynamic_rotate %4 by %c65_i32 dim 1 : vector<8x1536xf32>, i32 -> vector<8x1536xf32>
    %c3_22 = arith.constant 3 : index
    %c0_23 = arith.constant 0 : index
    %32 = vector.load %arg6[%c3_22, %c0_23] : memref<27x1536xf32, #tpu.memory_space<vmem>>, vector<1x1536xf32>
    %33 = vector.broadcast %32 : vector<1x1536xf32> to vector<8x1536xf32>
    %34 = arith.mulf %31, %33 : vector<8x1536xf32>
    %c3_24 = arith.constant 3 : index
    %c0_25 = arith.constant 0 : index
    %c0_26 = arith.constant 0 : index
    %35 = vector.load %arg2[%c3_24, %c0_25, %c0_26] : memref<27x8x8xbf16, #tpu.memory_space<vmem>>, vector<1x8x8xbf16>
    %36 = vector.shape_cast %35 : vector<1x8x8xbf16> to vector<8x8xbf16>
    %37 = arith.truncf %34 : vector<8x1536xf32> to vector<8x1536xbf16>
    %cst_27 = arith.constant dense<0.000000e+00> : vector<8x1536xf32>
    %38 = tpu.matmul %36, %37, %cst_27 {dimension_numbers = #tpu.dot_dimension_numbers<[1], [0], [0], [1], [0, 0, 1, 1], [], []>} : vector<8x8xbf16>, vector<8x1536xbf16>, vector<8x1536xf32> -> vector<8x1536xf32>
    %39 = arith.addf %30, %38 : vector<8x1536xf32>
    %c64_i32 = arith.constant 64 : i32
    %40 = tpu.dynamic_rotate %4 by %c64_i32 dim 1 : vector<8x1536xf32>, i32 -> vector<8x1536xf32>
    %c4 = arith.constant 4 : index
    %c0_28 = arith.constant 0 : index
    %41 = vector.load %arg6[%c4, %c0_28] : memref<27x1536xf32, #tpu.memory_space<vmem>>, vector<1x1536xf32>
    %42 = vector.broadcast %41 : vector<1x1536xf32> to vector<8x1536xf32>
    %43 = arith.mulf %40, %42 : vector<8x1536xf32>
    %c4_29 = arith.constant 4 : index
    %c0_30 = arith.constant 0 : index
    %c0_31 = arith.constant 0 : index
    %44 = vector.load %arg2[%c4_29, %c0_30, %c0_31] : memref<27x8x8xbf16, #tpu.memory_space<vmem>>, vector<1x8x8xbf16>
    %45 = vector.shape_cast %44 : vector<1x8x8xbf16> to vector<8x8xbf16>
    %46 = arith.truncf %43 : vector<8x1536xf32> to vector<8x1536xbf16>
    %cst_32 = arith.constant dense<0.000000e+00> : vector<8x1536xf32>
    %47 = tpu.matmul %45, %46, %cst_32 {dimension_numbers = #tpu.dot_dimension_numbers<[1], [0], [0], [1], [0, 0, 1, 1], [], []>} : vector<8x8xbf16>, vector<8x1536xbf16>, vector<8x1536xf32> -> vector<8x1536xf32>
    %48 = arith.addf %39, %47 : vector<8x1536xf32>
    %c63_i32 = arith.constant 63 : i32
    %49 = tpu.dynamic_rotate %4 by %c63_i32 dim 1 : vector<8x1536xf32>, i32 -> vector<8x1536xf32>
    %c5 = arith.constant 5 : index
    %c0_33 = arith.constant 0 : index
    %50 = vector.load %arg6[%c5, %c0_33] : memref<27x1536xf32, #tpu.memory_space<vmem>>, vector<1x1536xf32>
    %51 = vector.broadcast %50 : vector<1x1536xf32> to vector<8x1536xf32>
    %52 = arith.mulf %49, %51 : vector<8x1536xf32>
    %c5_34 = arith.constant 5 : index
    %c0_35 = arith.constant 0 : index
    %c0_36 = arith.constant 0 : index
    %53 = vector.load %arg2[%c5_34, %c0_35, %c0_36] : memref<27x8x8xbf16, #tpu.memory_space<vmem>>, vector<1x8x8xbf16>
    %54 = vector.shape_cast %53 : vector<1x8x8xbf16> to vector<8x8xbf16>
    %55 = arith.truncf %52 : vector<8x1536xf32> to vector<8x1536xbf16>
    %cst_37 = arith.constant dense<0.000000e+00> : vector<8x1536xf32>
    %56 = tpu.matmul %54, %55, %cst_37 {dimension_numbers = #tpu.dot_dimension_numbers<[1], [0], [0], [1], [0, 0, 1, 1], [], []>} : vector<8x8xbf16>, vector<8x1536xbf16>, vector<8x1536xf32> -> vector<8x1536xf32>
    %57 = arith.addf %48, %56 : vector<8x1536xf32>
    %c57_i32 = arith.constant 57 : i32
    %58 = tpu.dynamic_rotate %4 by %c57_i32 dim 1 : vector<8x1536xf32>, i32 -> vector<8x1536xf32>
    %c6 = arith.constant 6 : index
    %c0_38 = arith.constant 0 : index
    %59 = vector.load %arg6[%c6, %c0_38] : memref<27x1536xf32, #tpu.memory_space<vmem>>, vector<1x1536xf32>
    %60 = vector.broadcast %59 : vector<1x1536xf32> to vector<8x1536xf32>
    %61 = arith.mulf %58, %60 : vector<8x1536xf32>
    %c6_39 = arith.constant 6 : index
    %c0_40 = arith.constant 0 : index
    %c0_41 = arith.constant 0 : index
    %62 = vector.load %arg2[%c6_39, %c0_40, %c0_41] : memref<27x8x8xbf16, #tpu.memory_space<vmem>>, vector<1x8x8xbf16>
    %63 = vector.shape_cast %62 : vector<1x8x8xbf16> to vector<8x8xbf16>
    %64 = arith.truncf %61 : vector<8x1536xf32> to vector<8x1536xbf16>
    %cst_42 = arith.constant dense<0.000000e+00> : vector<8x1536xf32>
    %65 = tpu.matmul %63, %64, %cst_42 {dimension_numbers = #tpu.dot_dimension_numbers<[1], [0], [0], [1], [0, 0, 1, 1], [], []>} : vector<8x8xbf16>, vector<8x1536xbf16>, vector<8x1536xf32> -> vector<8x1536xf32>
    %66 = arith.addf %57, %65 : vector<8x1536xf32>
    %c56_i32 = arith.constant 56 : i32
    %67 = tpu.dynamic_rotate %4 by %c56_i32 dim 1 : vector<8x1536xf32>, i32 -> vector<8x1536xf32>
    %c7 = arith.constant 7 : index
    %c0_43 = arith.constant 0 : index
    %68 = vector.load %arg6[%c7, %c0_43] : memref<27x1536xf32, #tpu.memory_space<vmem>>, vector<1x1536xf32>
    %69 = vector.broadcast %68 : vector<1x1536xf32> to vector<8x1536xf32>
    %70 = arith.mulf %67, %69 : vector<8x1536xf32>
    %c7_44 = arith.constant 7 : index
    %c0_45 = arith.constant 0 : index
    %c0_46 = arith.constant 0 : index
    %71 = vector.load %arg2[%c7_44, %c0_45, %c0_46] : memref<27x8x8xbf16, #tpu.memory_space<vmem>>, vector<1x8x8xbf16>
    %72 = vector.shape_cast %71 : vector<1x8x8xbf16> to vector<8x8xbf16>
    %73 = arith.truncf %70 : vector<8x1536xf32> to vector<8x1536xbf16>
    %cst_47 = arith.constant dense<0.000000e+00> : vector<8x1536xf32>
    %74 = tpu.matmul %72, %73, %cst_47 {dimension_numbers = #tpu.dot_dimension_numbers<[1], [0], [0], [1], [0, 0, 1, 1], [], []>} : vector<8x8xbf16>, vector<8x1536xbf16>, vector<8x1536xf32> -> vector<8x1536xf32>
    %75 = arith.addf %66, %74 : vector<8x1536xf32>
    %c55_i32 = arith.constant 55 : i32
    %76 = tpu.dynamic_rotate %4 by %c55_i32 dim 1 : vector<8x1536xf32>, i32 -> vector<8x1536xf32>
    %c8 = arith.constant 8 : index
    %c0_48 = arith.constant 0 : index
    %77 = vector.load %arg6[%c8, %c0_48] : memref<27x1536xf32, #tpu.memory_space<vmem>>, vector<1x1536xf32>
    %78 = vector.broadcast %77 : vector<1x1536xf32> to vector<8x1536xf32>
    %79 = arith.mulf %76, %78 : vector<8x1536xf32>
    %c8_49 = arith.constant 8 : index
    %c0_50 = arith.constant 0 : index
    %c0_51 = arith.constant 0 : index
    %80 = vector.load %arg2[%c8_49, %c0_50, %c0_51] : memref<27x8x8xbf16, #tpu.memory_space<vmem>>, vector<1x8x8xbf16>
    %81 = vector.shape_cast %80 : vector<1x8x8xbf16> to vector<8x8xbf16>
    %82 = arith.truncf %79 : vector<8x1536xf32> to vector<8x1536xbf16>
    %cst_52 = arith.constant dense<0.000000e+00> : vector<8x1536xf32>
    %83 = tpu.matmul %81, %82, %cst_52 {dimension_numbers = #tpu.dot_dimension_numbers<[1], [0], [0], [1], [0, 0, 1, 1], [], []>} : vector<8x8xbf16>, vector<8x1536xbf16>, vector<8x1536xf32> -> vector<8x1536xf32>
    %84 = arith.addf %75, %83 : vector<8x1536xf32>
    %c9_i32 = arith.constant 9 : i32
    %85 = tpu.dynamic_rotate %4 by %c9_i32 dim 1 : vector<8x1536xf32>, i32 -> vector<8x1536xf32>
    %c9 = arith.constant 9 : index
    %c0_53 = arith.constant 0 : index
    %86 = vector.load %arg6[%c9, %c0_53] : memref<27x1536xf32, #tpu.memory_space<vmem>>, vector<1x1536xf32>
    %87 = vector.broadcast %86 : vector<1x1536xf32> to vector<8x1536xf32>
    %88 = arith.mulf %85, %87 : vector<8x1536xf32>
    %c9_54 = arith.constant 9 : index
    %c0_55 = arith.constant 0 : index
    %c0_56 = arith.constant 0 : index
    %89 = vector.load %arg2[%c9_54, %c0_55, %c0_56] : memref<27x8x8xbf16, #tpu.memory_space<vmem>>, vector<1x8x8xbf16>
    %90 = vector.shape_cast %89 : vector<1x8x8xbf16> to vector<8x8xbf16>
    %91 = arith.truncf %88 : vector<8x1536xf32> to vector<8x1536xbf16>
    %cst_57 = arith.constant dense<0.000000e+00> : vector<8x1536xf32>
    %92 = tpu.matmul %90, %91, %cst_57 {dimension_numbers = #tpu.dot_dimension_numbers<[1], [0], [0], [1], [0, 0, 1, 1], [], []>} : vector<8x8xbf16>, vector<8x1536xbf16>, vector<8x1536xf32> -> vector<8x1536xf32>
    %93 = arith.addf %84, %92 : vector<8x1536xf32>
    %c8_i32 = arith.constant 8 : i32
    %94 = tpu.dynamic_rotate %4 by %c8_i32 dim 1 : vector<8x1536xf32>, i32 -> vector<8x1536xf32>
    %c10 = arith.constant 10 : index
    %c0_58 = arith.constant 0 : index
    %95 = vector.load %arg6[%c10, %c0_58] : memref<27x1536xf32, #tpu.memory_space<vmem>>, vector<1x1536xf32>
    %96 = vector.broadcast %95 : vector<1x1536xf32> to vector<8x1536xf32>
    %97 = arith.mulf %94, %96 : vector<8x1536xf32>
    %c10_59 = arith.constant 10 : index
    %c0_60 = arith.constant 0 : index
    %c0_61 = arith.constant 0 : index
    %98 = vector.load %arg2[%c10_59, %c0_60, %c0_61] : memref<27x8x8xbf16, #tpu.memory_space<vmem>>, vector<1x8x8xbf16>
    %99 = vector.shape_cast %98 : vector<1x8x8xbf16> to vector<8x8xbf16>
    %100 = arith.truncf %97 : vector<8x1536xf32> to vector<8x1536xbf16>
    %cst_62 = arith.constant dense<0.000000e+00> : vector<8x1536xf32>
    %101 = tpu.matmul %99, %100, %cst_62 {dimension_numbers = #tpu.dot_dimension_numbers<[1], [0], [0], [1], [0, 0, 1, 1], [], []>} : vector<8x8xbf16>, vector<8x1536xbf16>, vector<8x1536xf32> -> vector<8x1536xf32>
    %102 = arith.addf %93, %101 : vector<8x1536xf32>
    %c7_i32 = arith.constant 7 : i32
    %103 = tpu.dynamic_rotate %4 by %c7_i32 dim 1 : vector<8x1536xf32>, i32 -> vector<8x1536xf32>
    %c11 = arith.constant 11 : index
    %c0_63 = arith.constant 0 : index
    %104 = vector.load %arg6[%c11, %c0_63] : memref<27x1536xf32, #tpu.memory_space<vmem>>, vector<1x1536xf32>
    %105 = vector.broadcast %104 : vector<1x1536xf32> to vector<8x1536xf32>
    %106 = arith.mulf %103, %105 : vector<8x1536xf32>
    %c11_64 = arith.constant 11 : index
    %c0_65 = arith.constant 0 : index
    %c0_66 = arith.constant 0 : index
    %107 = vector.load %arg2[%c11_64, %c0_65, %c0_66] : memref<27x8x8xbf16, #tpu.memory_space<vmem>>, vector<1x8x8xbf16>
    %108 = vector.shape_cast %107 : vector<1x8x8xbf16> to vector<8x8xbf16>
    %109 = arith.truncf %106 : vector<8x1536xf32> to vector<8x1536xbf16>
    %cst_67 = arith.constant dense<0.000000e+00> : vector<8x1536xf32>
    %110 = tpu.matmul %108, %109, %cst_67 {dimension_numbers = #tpu.dot_dimension_numbers<[1], [0], [0], [1], [0, 0, 1, 1], [], []>} : vector<8x8xbf16>, vector<8x1536xbf16>, vector<8x1536xf32> -> vector<8x1536xf32>
    %111 = arith.addf %102, %110 : vector<8x1536xf32>
    %c1_i32 = arith.constant 1 : i32
    %112 = tpu.dynamic_rotate %4 by %c1_i32 dim 1 : vector<8x1536xf32>, i32 -> vector<8x1536xf32>
    %c12 = arith.constant 12 : index
    %c0_68 = arith.constant 0 : index
    %113 = vector.load %arg6[%c12, %c0_68] : memref<27x1536xf32, #tpu.memory_space<vmem>>, vector<1x1536xf32>
    %114 = vector.broadcast %113 : vector<1x1536xf32> to vector<8x1536xf32>
    %115 = arith.mulf %112, %114 : vector<8x1536xf32>
    %c12_69 = arith.constant 12 : index
    %c0_70 = arith.constant 0 : index
    %c0_71 = arith.constant 0 : index
    %116 = vector.load %arg2[%c12_69, %c0_70, %c0_71] : memref<27x8x8xbf16, #tpu.memory_space<vmem>>, vector<1x8x8xbf16>
    %117 = vector.shape_cast %116 : vector<1x8x8xbf16> to vector<8x8xbf16>
    %118 = arith.truncf %115 : vector<8x1536xf32> to vector<8x1536xbf16>
    %cst_72 = arith.constant dense<0.000000e+00> : vector<8x1536xf32>
    %119 = tpu.matmul %117, %118, %cst_72 {dimension_numbers = #tpu.dot_dimension_numbers<[1], [0], [0], [1], [0, 0, 1, 1], [], []>} : vector<8x8xbf16>, vector<8x1536xbf16>, vector<8x1536xf32> -> vector<8x1536xf32>
    %120 = arith.addf %111, %119 : vector<8x1536xf32>
    %c13 = arith.constant 13 : index
    %c0_73 = arith.constant 0 : index
    %c0_74 = arith.constant 0 : index
    %121 = vector.load %arg2[%c13, %c0_73, %c0_74] : memref<27x8x8xbf16, #tpu.memory_space<vmem>>, vector<1x8x8xbf16>
    %122 = vector.shape_cast %121 : vector<1x8x8xbf16> to vector<8x8xbf16>
    %123 = arith.truncf %4 : vector<8x1536xf32> to vector<8x1536xbf16>
    %cst_75 = arith.constant dense<0.000000e+00> : vector<8x1536xf32>
    %124 = tpu.matmul %122, %123, %cst_75 {dimension_numbers = #tpu.dot_dimension_numbers<[1], [0], [0], [1], [0, 0, 1, 1], [], []>} : vector<8x8xbf16>, vector<8x1536xbf16>, vector<8x1536xf32> -> vector<8x1536xf32>
    %125 = arith.addf %120, %124 : vector<8x1536xf32>
    %c1535_i32 = arith.constant 1535 : i32
    %126 = tpu.dynamic_rotate %4 by %c1535_i32 dim 1 : vector<8x1536xf32>, i32 -> vector<8x1536xf32>
    %c14 = arith.constant 14 : index
    %c0_76 = arith.constant 0 : index
    %127 = vector.load %arg6[%c14, %c0_76] : memref<27x1536xf32, #tpu.memory_space<vmem>>, vector<1x1536xf32>
    %128 = vector.broadcast %127 : vector<1x1536xf32> to vector<8x1536xf32>
    %129 = arith.mulf %126, %128 : vector<8x1536xf32>
    %c14_77 = arith.constant 14 : index
    %c0_78 = arith.constant 0 : index
    %c0_79 = arith.constant 0 : index
    %130 = vector.load %arg2[%c14_77, %c0_78, %c0_79] : memref<27x8x8xbf16, #tpu.memory_space<vmem>>, vector<1x8x8xbf16>
    %131 = vector.shape_cast %130 : vector<1x8x8xbf16> to vector<8x8xbf16>
    %132 = arith.truncf %129 : vector<8x1536xf32> to vector<8x1536xbf16>
    %cst_80 = arith.constant dense<0.000000e+00> : vector<8x1536xf32>
    %133 = tpu.matmul %131, %132, %cst_80 {dimension_numbers = #tpu.dot_dimension_numbers<[1], [0], [0], [1], [0, 0, 1, 1], [], []>} : vector<8x8xbf16>, vector<8x1536xbf16>, vector<8x1536xf32> -> vector<8x1536xf32>
    %134 = arith.addf %125, %133 : vector<8x1536xf32>
    %c1529_i32 = arith.constant 1529 : i32
    %135 = tpu.dynamic_rotate %4 by %c1529_i32 dim 1 : vector<8x1536xf32>, i32 -> vector<8x1536xf32>
    %c15 = arith.constant 15 : index
    %c0_81 = arith.constant 0 : index
    %136 = vector.load %arg6[%c15, %c0_81] : memref<27x1536xf32, #tpu.memory_space<vmem>>, vector<1x1536xf32>
    %137 = vector.broadcast %136 : vector<1x1536xf32> to vector<8x1536xf32>
    %138 = arith.mulf %135, %137 : vector<8x1536xf32>
    %c15_82 = arith.constant 15 : index
    %c0_83 = arith.constant 0 : index
    %c0_84 = arith.constant 0 : index
    %139 = vector.load %arg2[%c15_82, %c0_83, %c0_84] : memref<27x8x8xbf16, #tpu.memory_space<vmem>>, vector<1x8x8xbf16>
    %140 = vector.shape_cast %139 : vector<1x8x8xbf16> to vector<8x8xbf16>
    %141 = arith.truncf %138 : vector<8x1536xf32> to vector<8x1536xbf16>
    %cst_85 = arith.constant dense<0.000000e+00> : vector<8x1536xf32>
    %142 = tpu.matmul %140, %141, %cst_85 {dimension_numbers = #tpu.dot_dimension_numbers<[1], [0], [0], [1], [0, 0, 1, 1], [], []>} : vector<8x8xbf16>, vector<8x1536xbf16>, vector<8x1536xf32> -> vector<8x1536xf32>
    %143 = arith.addf %134, %142 : vector<8x1536xf32>
    %c1528_i32 = arith.constant 1528 : i32
    %144 = tpu.dynamic_rotate %4 by %c1528_i32 dim 1 : vector<8x1536xf32>, i32 -> vector<8x1536xf32>
    %c16 = arith.constant 16 : index
    %c0_86 = arith.constant 0 : index
    %145 = vector.load %arg6[%c16, %c0_86] : memref<27x1536xf32, #tpu.memory_space<vmem>>, vector<1x1536xf32>
    %146 = vector.broadcast %145 : vector<1x1536xf32> to vector<8x1536xf32>
    %147 = arith.mulf %144, %146 : vector<8x1536xf32>
    %c16_87 = arith.constant 16 : index
    %c0_88 = arith.constant 0 : index
    %c0_89 = arith.constant 0 : index
    %148 = vector.load %arg2[%c16_87, %c0_88, %c0_89] : memref<27x8x8xbf16, #tpu.memory_space<vmem>>, vector<1x8x8xbf16>
    %149 = vector.shape_cast %148 : vector<1x8x8xbf16> to vector<8x8xbf16>
    %150 = arith.truncf %147 : vector<8x1536xf32> to vector<8x1536xbf16>
    %cst_90 = arith.constant dense<0.000000e+00> : vector<8x1536xf32>
    %151 = tpu.matmul %149, %150, %cst_90 {dimension_numbers = #tpu.dot_dimension_numbers<[1], [0], [0], [1], [0, 0, 1, 1], [], []>} : vector<8x8xbf16>, vector<8x1536xbf16>, vector<8x1536xf32> -> vector<8x1536xf32>
    %152 = arith.addf %143, %151 : vector<8x1536xf32>
    %c1527_i32 = arith.constant 1527 : i32
    %153 = tpu.dynamic_rotate %4 by %c1527_i32 dim 1 : vector<8x1536xf32>, i32 -> vector<8x1536xf32>
    %c17 = arith.constant 17 : index
    %c0_91 = arith.constant 0 : index
    %154 = vector.load %arg6[%c17, %c0_91] : memref<27x1536xf32, #tpu.memory_space<vmem>>, vector<1x1536xf32>
    %155 = vector.broadcast %154 : vector<1x1536xf32> to vector<8x1536xf32>
    %156 = arith.mulf %153, %155 : vector<8x1536xf32>
    %c17_92 = arith.constant 17 : index
    %c0_93 = arith.constant 0 : index
    %c0_94 = arith.constant 0 : index
    %157 = vector.load %arg2[%c17_92, %c0_93, %c0_94] : memref<27x8x8xbf16, #tpu.memory_space<vmem>>, vector<1x8x8xbf16>
    %158 = vector.shape_cast %157 : vector<1x8x8xbf16> to vector<8x8xbf16>
    %159 = arith.truncf %156 : vector<8x1536xf32> to vector<8x1536xbf16>
    %cst_95 = arith.constant dense<0.000000e+00> : vector<8x1536xf32>
    %160 = tpu.matmul %158, %159, %cst_95 {dimension_numbers = #tpu.dot_dimension_numbers<[1], [0], [0], [1], [0, 0, 1, 1], [], []>} : vector<8x8xbf16>, vector<8x1536xbf16>, vector<8x1536xf32> -> vector<8x1536xf32>
    %161 = arith.addf %152, %160 : vector<8x1536xf32>
    %c1481_i32 = arith.constant 1481 : i32
    %162 = tpu.dynamic_rotate %4 by %c1481_i32 dim 1 : vector<8x1536xf32>, i32 -> vector<8x1536xf32>
    %c18 = arith.constant 18 : index
    %c0_96 = arith.constant 0 : index
    %163 = vector.load %arg6[%c18, %c0_96] : memref<27x1536xf32, #tpu.memory_space<vmem>>, vector<1x1536xf32>
    %164 = vector.broadcast %163 : vector<1x1536xf32> to vector<8x1536xf32>
    %165 = arith.mulf %162, %164 : vector<8x1536xf32>
    %c18_97 = arith.constant 18 : index
    %c0_98 = arith.constant 0 : index
    %c0_99 = arith.constant 0 : index
    %166 = vector.load %arg2[%c18_97, %c0_98, %c0_99] : memref<27x8x8xbf16, #tpu.memory_space<vmem>>, vector<1x8x8xbf16>
    %167 = vector.shape_cast %166 : vector<1x8x8xbf16> to vector<8x8xbf16>
    %168 = arith.truncf %165 : vector<8x1536xf32> to vector<8x1536xbf16>
    %cst_100 = arith.constant dense<0.000000e+00> : vector<8x1536xf32>
    %169 = tpu.matmul %167, %168, %cst_100 {dimension_numbers = #tpu.dot_dimension_numbers<[1], [0], [0], [1], [0, 0, 1, 1], [], []>} : vector<8x8xbf16>, vector<8x1536xbf16>, vector<8x1536xf32> -> vector<8x1536xf32>
    %170 = arith.addf %161, %169 : vector<8x1536xf32>
    %c1480_i32 = arith.constant 1480 : i32
    %171 = tpu.dynamic_rotate %4 by %c1480_i32 dim 1 : vector<8x1536xf32>, i32 -> vector<8x1536xf32>
    %c19 = arith.constant 19 : index
    %c0_101 = arith.constant 0 : index
    %172 = vector.load %arg6[%c19, %c0_101] : memref<27x1536xf32, #tpu.memory_space<vmem>>, vector<1x1536xf32>
    %173 = vector.broadcast %172 : vector<1x1536xf32> to vector<8x1536xf32>
    %174 = arith.mulf %171, %173 : vector<8x1536xf32>
    %c19_102 = arith.constant 19 : index
    %c0_103 = arith.constant 0 : index
    %c0_104 = arith.constant 0 : index
    %175 = vector.load %arg2[%c19_102, %c0_103, %c0_104] : memref<27x8x8xbf16, #tpu.memory_space<vmem>>, vector<1x8x8xbf16>
    %176 = vector.shape_cast %175 : vector<1x8x8xbf16> to vector<8x8xbf16>
    %177 = arith.truncf %174 : vector<8x1536xf32> to vector<8x1536xbf16>
    %cst_105 = arith.constant dense<0.000000e+00> : vector<8x1536xf32>
    %178 = tpu.matmul %176, %177, %cst_105 {dimension_numbers = #tpu.dot_dimension_numbers<[1], [0], [0], [1], [0, 0, 1, 1], [], []>} : vector<8x8xbf16>, vector<8x1536xbf16>, vector<8x1536xf32> -> vector<8x1536xf32>
    %179 = arith.addf %170, %178 : vector<8x1536xf32>
    %c1479_i32 = arith.constant 1479 : i32
    %180 = tpu.dynamic_rotate %4 by %c1479_i32 dim 1 : vector<8x1536xf32>, i32 -> vector<8x1536xf32>
    %c20 = arith.constant 20 : index
    %c0_106 = arith.constant 0 : index
    %181 = vector.load %arg6[%c20, %c0_106] : memref<27x1536xf32, #tpu.memory_space<vmem>>, vector<1x1536xf32>
    %182 = vector.broadcast %181 : vector<1x1536xf32> to vector<8x1536xf32>
    %183 = arith.mulf %180, %182 : vector<8x1536xf32>
    %c20_107 = arith.constant 20 : index
    %c0_108 = arith.constant 0 : index
    %c0_109 = arith.constant 0 : index
    %184 = vector.load %arg2[%c20_107, %c0_108, %c0_109] : memref<27x8x8xbf16, #tpu.memory_space<vmem>>, vector<1x8x8xbf16>
    %185 = vector.shape_cast %184 : vector<1x8x8xbf16> to vector<8x8xbf16>
    %186 = arith.truncf %183 : vector<8x1536xf32> to vector<8x1536xbf16>
    %cst_110 = arith.constant dense<0.000000e+00> : vector<8x1536xf32>
    %187 = tpu.matmul %185, %186, %cst_110 {dimension_numbers = #tpu.dot_dimension_numbers<[1], [0], [0], [1], [0, 0, 1, 1], [], []>} : vector<8x8xbf16>, vector<8x1536xbf16>, vector<8x1536xf32> -> vector<8x1536xf32>
    %188 = arith.addf %179, %187 : vector<8x1536xf32>
    %c1473_i32 = arith.constant 1473 : i32
    %189 = tpu.dynamic_rotate %4 by %c1473_i32 dim 1 : vector<8x1536xf32>, i32 -> vector<8x1536xf32>
    %c21 = arith.constant 21 : index
    %c0_111 = arith.constant 0 : index
    %190 = vector.load %arg6[%c21, %c0_111] : memref<27x1536xf32, #tpu.memory_space<vmem>>, vector<1x1536xf32>
    %191 = vector.broadcast %190 : vector<1x1536xf32> to vector<8x1536xf32>
    %192 = arith.mulf %189, %191 : vector<8x1536xf32>
    %c21_112 = arith.constant 21 : index
    %c0_113 = arith.constant 0 : index
    %c0_114 = arith.constant 0 : index
    %193 = vector.load %arg2[%c21_112, %c0_113, %c0_114] : memref<27x8x8xbf16, #tpu.memory_space<vmem>>, vector<1x8x8xbf16>
    %194 = vector.shape_cast %193 : vector<1x8x8xbf16> to vector<8x8xbf16>
    %195 = arith.truncf %192 : vector<8x1536xf32> to vector<8x1536xbf16>
    %cst_115 = arith.constant dense<0.000000e+00> : vector<8x1536xf32>
    %196 = tpu.matmul %194, %195, %cst_115 {dimension_numbers = #tpu.dot_dimension_numbers<[1], [0], [0], [1], [0, 0, 1, 1], [], []>} : vector<8x8xbf16>, vector<8x1536xbf16>, vector<8x1536xf32> -> vector<8x1536xf32>
    %197 = arith.addf %188, %196 : vector<8x1536xf32>
    %c1472_i32 = arith.constant 1472 : i32
    %198 = tpu.dynamic_rotate %4 by %c1472_i32 dim 1 : vector<8x1536xf32>, i32 -> vector<8x1536xf32>
    %c22 = arith.constant 22 : index
    %c0_116 = arith.constant 0 : index
    %199 = vector.load %arg6[%c22, %c0_116] : memref<27x1536xf32, #tpu.memory_space<vmem>>, vector<1x1536xf32>
    %200 = vector.broadcast %199 : vector<1x1536xf32> to vector<8x1536xf32>
    %201 = arith.mulf %198, %200 : vector<8x1536xf32>
    %c22_117 = arith.constant 22 : index
    %c0_118 = arith.constant 0 : index
    %c0_119 = arith.constant 0 : index
    %202 = vector.load %arg2[%c22_117, %c0_118, %c0_119] : memref<27x8x8xbf16, #tpu.memory_space<vmem>>, vector<1x8x8xbf16>
    %203 = vector.shape_cast %202 : vector<1x8x8xbf16> to vector<8x8xbf16>
    %204 = arith.truncf %201 : vector<8x1536xf32> to vector<8x1536xbf16>
    %cst_120 = arith.constant dense<0.000000e+00> : vector<8x1536xf32>
    %205 = tpu.matmul %203, %204, %cst_120 {dimension_numbers = #tpu.dot_dimension_numbers<[1], [0], [0], [1], [0, 0, 1, 1], [], []>} : vector<8x8xbf16>, vector<8x1536xbf16>, vector<8x1536xf32> -> vector<8x1536xf32>
    %206 = arith.addf %197, %205 : vector<8x1536xf32>
    %c1471_i32 = arith.constant 1471 : i32
    %207 = tpu.dynamic_rotate %4 by %c1471_i32 dim 1 : vector<8x1536xf32>, i32 -> vector<8x1536xf32>
    %c23 = arith.constant 23 : index
    %c0_121 = arith.constant 0 : index
    %208 = vector.load %arg6[%c23, %c0_121] : memref<27x1536xf32, #tpu.memory_space<vmem>>, vector<1x1536xf32>
    %209 = vector.broadcast %208 : vector<1x1536xf32> to vector<8x1536xf32>
    %210 = arith.mulf %207, %209 : vector<8x1536xf32>
    %c23_122 = arith.constant 23 : index
    %c0_123 = arith.constant 0 : index
    %c0_124 = arith.constant 0 : index
    %211 = vector.load %arg2[%c23_122, %c0_123, %c0_124] : memref<27x8x8xbf16, #tpu.memory_space<vmem>>, vector<1x8x8xbf16>
    %212 = vector.shape_cast %211 : vector<1x8x8xbf16> to vector<8x8xbf16>
    %213 = arith.truncf %210 : vector<8x1536xf32> to vector<8x1536xbf16>
    %cst_125 = arith.constant dense<0.000000e+00> : vector<8x1536xf32>
    %214 = tpu.matmul %212, %213, %cst_125 {dimension_numbers = #tpu.dot_dimension_numbers<[1], [0], [0], [1], [0, 0, 1, 1], [], []>} : vector<8x8xbf16>, vector<8x1536xbf16>, vector<8x1536xf32> -> vector<8x1536xf32>
    %215 = arith.addf %206, %214 : vector<8x1536xf32>
    %c1465_i32 = arith.constant 1465 : i32
    %216 = tpu.dynamic_rotate %4 by %c1465_i32 dim 1 : vector<8x1536xf32>, i32 -> vector<8x1536xf32>
    %c24 = arith.constant 24 : index
    %c0_126 = arith.constant 0 : index
    %217 = vector.load %arg6[%c24, %c0_126] : memref<27x1536xf32, #tpu.memory_space<vmem>>, vector<1x1536xf32>
    %218 = vector.broadcast %217 : vector<1x1536xf32> to vector<8x1536xf32>
    %219 = arith.mulf %216, %218 : vector<8x1536xf32>
    %c24_127 = arith.constant 24 : index
    %c0_128 = arith.constant 0 : index
    %c0_129 = arith.constant 0 : index
    %220 = vector.load %arg2[%c24_127, %c0_128, %c0_129] : memref<27x8x8xbf16, #tpu.memory_space<vmem>>, vector<1x8x8xbf16>
    %221 = vector.shape_cast %220 : vector<1x8x8xbf16> to vector<8x8xbf16>
    %222 = arith.truncf %219 : vector<8x1536xf32> to vector<8x1536xbf16>
    %cst_130 = arith.constant dense<0.000000e+00> : vector<8x1536xf32>
    %223 = tpu.matmul %221, %222, %cst_130 {dimension_numbers = #tpu.dot_dimension_numbers<[1], [0], [0], [1], [0, 0, 1, 1], [], []>} : vector<8x8xbf16>, vector<8x1536xbf16>, vector<8x1536xf32> -> vector<8x1536xf32>
    %224 = arith.addf %215, %223 : vector<8x1536xf32>
    %c1464_i32 = arith.constant 1464 : i32
    %225 = tpu.dynamic_rotate %4 by %c1464_i32 dim 1 : vector<8x1536xf32>, i32 -> vector<8x1536xf32>
    %c25 = arith.constant 25 : index
    %c0_131 = arith.constant 0 : index
    %226 = vector.load %arg6[%c25, %c0_131] : memref<27x1536xf32, #tpu.memory_space<vmem>>, vector<1x1536xf32>
    %227 = vector.broadcast %226 : vector<1x1536xf32> to vector<8x1536xf32>
    %228 = arith.mulf %225, %227 : vector<8x1536xf32>
    %c25_132 = arith.constant 25 : index
    %c0_133 = arith.constant 0 : index
    %c0_134 = arith.constant 0 : index
    %229 = vector.load %arg2[%c25_132, %c0_133, %c0_134] : memref<27x8x8xbf16, #tpu.memory_space<vmem>>, vector<1x8x8xbf16>
    %230 = vector.shape_cast %229 : vector<1x8x8xbf16> to vector<8x8xbf16>
    %231 = arith.truncf %228 : vector<8x1536xf32> to vector<8x1536xbf16>
    %cst_135 = arith.constant dense<0.000000e+00> : vector<8x1536xf32>
    %232 = tpu.matmul %230, %231, %cst_135 {dimension_numbers = #tpu.dot_dimension_numbers<[1], [0], [0], [1], [0, 0, 1, 1], [], []>} : vector<8x8xbf16>, vector<8x1536xbf16>, vector<8x1536xf32> -> vector<8x1536xf32>
    %233 = arith.addf %224, %232 : vector<8x1536xf32>
    %c1463_i32 = arith.constant 1463 : i32
    %234 = tpu.dynamic_rotate %4 by %c1463_i32 dim 1 : vector<8x1536xf32>, i32 -> vector<8x1536xf32>
    %c26 = arith.constant 26 : index
    %c0_136 = arith.constant 0 : index
    %235 = vector.load %arg6[%c26, %c0_136] : memref<27x1536xf32, #tpu.memory_space<vmem>>, vector<1x1536xf32>
    %236 = vector.broadcast %235 : vector<1x1536xf32> to vector<8x1536xf32>
    %237 = arith.mulf %234, %236 : vector<8x1536xf32>
    %c26_137 = arith.constant 26 : index
    %c0_138 = arith.constant 0 : index
    %c0_139 = arith.constant 0 : index
    %238 = vector.load %arg2[%c26_137, %c0_138, %c0_139] : memref<27x8x8xbf16, #tpu.memory_space<vmem>>, vector<1x8x8xbf16>
    %239 = vector.shape_cast %238 : vector<1x8x8xbf16> to vector<8x8xbf16>
    %240 = arith.truncf %237 : vector<8x1536xf32> to vector<8x1536xbf16>
    %cst_140 = arith.constant dense<0.000000e+00> : vector<8x1536xf32>
    %241 = tpu.matmul %239, %240, %cst_140 {dimension_numbers = #tpu.dot_dimension_numbers<[1], [0], [0], [1], [0, 0, 1, 1], [], []>} : vector<8x8xbf16>, vector<8x1536xbf16>, vector<8x1536xf32> -> vector<8x1536xf32>
    %242 = arith.addf %233, %241 : vector<8x1536xf32>
    %c0_141 = arith.constant 0 : index
    %c0_142 = arith.constant 0 : index
    %243 = vector.load %arg3[%c0_141, %c0_142] : memref<8x1xf32, #tpu.memory_space<vmem>>, vector<8x1xf32>
    %c0_143 = arith.constant 0 : index
    %c0_144 = arith.constant 0 : index
    %244 = vector.load %arg4[%c0_143, %c0_144] : memref<8x8xf32, #tpu.memory_space<vmem>>, vector<8x8xf32>
    %c0_145 = arith.constant 0 : index
    %c0_146 = arith.constant 0 : index
    %245 = vector.load %arg5[%c0_145, %c0_146] : memref<3x1xf32, #tpu.memory_space<vmem>>, vector<3x1xf32>
    %246 = vector.extract_strided_slice %242 {offsets = [0, 0], sizes = [8, 768], strides = [1, 1]} : vector<8x1536xf32> to vector<8x768xf32>
    %247 = vector.broadcast %243 : vector<8x1xf32> to vector<8x768xf32>
    %248 = arith.addf %246, %247 : vector<8x768xf32>
    %cst_147 = arith.constant dense<0.000000e+00> : vector<8xf32>
    %249 = vector.multi_reduction <add>, %248, %cst_147 [1] : vector<8x768xf32> to vector<8xf32>
    %250 = vector.shape_cast %249 : vector<8xf32> to vector<8x1xf32>
    %cst_148 = arith.constant 7.680000e+02 : f32
    %251 = vector.broadcast %cst_148 : f32 to vector<8x1xf32>
    %252 = arith.divf %250, %251 : vector<8x1xf32>
    %253 = vector.broadcast %252 : vector<8x1xf32> to vector<8x768xf32>
    %254 = arith.subf %248, %253 : vector<8x768xf32>
    %255 = arith.mulf %254, %254 : vector<8x768xf32>
    %cst_149 = arith.constant dense<0.000000e+00> : vector<8xf32>
    %256 = vector.multi_reduction <add>, %255, %cst_149 [1] : vector<8x768xf32> to vector<8xf32>
    %257 = vector.shape_cast %256 : vector<8xf32> to vector<8x1xf32>
    %cst_150 = arith.constant 7.680000e+02 : f32
    %258 = vector.broadcast %cst_150 : f32 to vector<8x1xf32>
    %259 = arith.divf %257, %258 : vector<8x1xf32>
    %cst_151 = arith.constant 9.99999974E-6 : f32
    %260 = vector.broadcast %cst_151 : f32 to vector<8x1xf32>
    %261 = arith.addf %259, %260 : vector<8x1xf32>
    %262 = math.rsqrt %261 : vector<8x1xf32>
    %263 = vector.broadcast %262 : vector<8x1xf32> to vector<8x768xf32>
    %264 = arith.mulf %254, %263 : vector<8x768xf32>
    %cst_152 = arith.constant 0.000000e+00 : f32
    %265 = vector.broadcast %cst_152 : f32 to vector<8x768xf32>
    %266 = arith.maximumf %264, %265 : vector<8x768xf32>
    %cst_153 = arith.constant dense<0.000000e+00> : vector<8x768xf32>
    %267 = tpu.matmul %244, %266, %cst_153 {dimension_numbers = #tpu.dot_dimension_numbers<[1], [0], [0], [1], [0, 0, 1, 1], [], []>} : vector<8x8xf32>, vector<8x768xf32>, vector<8x768xf32> -> vector<8x768xf32>
    %268 = vector.extract_strided_slice %267 {offsets = [0, 0], sizes = [3, 768], strides = [1, 1]} : vector<8x768xf32> to vector<3x768xf32>
    %269 = vector.broadcast %245 : vector<3x1xf32> to vector<3x768xf32>
    %270 = arith.addf %268, %269 : vector<3x768xf32>
    %cst_154 = arith.constant dense<0xFF800000> : vector<768xf32>
    %271 = vector.multi_reduction <maximumf>, %270, %cst_154 [0] : vector<3x768xf32> to vector<768xf32>
    %272 = vector.shape_cast %271 : vector<768xf32> to vector<1x768xf32>
    %273 = vector.broadcast %272 : vector<1x768xf32> to vector<3x768xf32>
    %274 = arith.subf %270, %273 : vector<3x768xf32>
    %275 = math.exp %274 : vector<3x768xf32>
    %cst_155 = arith.constant dense<0.000000e+00> : vector<768xf32>
    %276 = vector.multi_reduction <add>, %275, %cst_155 [0] : vector<3x768xf32> to vector<768xf32>
    %277 = vector.shape_cast %276 : vector<768xf32> to vector<1x768xf32>
    %278 = tpu.reciprocal %277 {approx = true} : vector<1x768xf32> -> vector<1x768xf32>
    %279 = arith.mulf %277, %278 : vector<1x768xf32>
    %cst_156 = arith.constant 2.000000e+00 : f32
    %280 = vector.broadcast %cst_156 : f32 to vector<1x768xf32>
    %281 = arith.subf %280, %279 : vector<1x768xf32>
    %282 = arith.mulf %278, %281 : vector<1x768xf32>
    %283 = vector.broadcast %282 : vector<1x768xf32> to vector<3x768xf32>
    %284 = arith.mulf %275, %283 : vector<3x768xf32>
    %285 = vector.extract_strided_slice %4 {offsets = [0, 0], sizes = [3, 256], strides = [1, 1]} : vector<8x1536xf32> to vector<3x256xf32>
    %286 = vector.extract_strided_slice %284 {offsets = [0, 0], sizes = [3, 256], strides = [1, 1]} : vector<3x768xf32> to vector<3x256xf32>
    %287 = arith.mulf %285, %286 : vector<3x256xf32>
    %288 = vector.extract_strided_slice %4 {offsets = [0, 256], sizes = [3, 256], strides = [1, 1]} : vector<8x1536xf32> to vector<3x256xf32>
    %289 = vector.extract_strided_slice %284 {offsets = [0, 256], sizes = [3, 256], strides = [1, 1]} : vector<3x768xf32> to vector<3x256xf32>
    %290 = arith.mulf %288, %289 : vector<3x256xf32>
    %291 = arith.addf %287, %290 : vector<3x256xf32>
    %292 = vector.extract_strided_slice %4 {offsets = [0, 512], sizes = [3, 256], strides = [1, 1]} : vector<8x1536xf32> to vector<3x256xf32>
    %293 = vector.extract_strided_slice %284 {offsets = [0, 512], sizes = [3, 256], strides = [1, 1]} : vector<3x768xf32> to vector<3x256xf32>
    %294 = arith.mulf %292, %293 : vector<3x256xf32>
    %295 = arith.addf %291, %294 : vector<3x256xf32>
    %c0_157 = arith.constant 0 : index
    %c0_158 = arith.constant 0 : index
    %296 = vector.load %arg7[%c0_157, %c0_158] : memref<3x512xf32, #tpu.memory_space<vmem>>, vector<3x256xf32>
    tpu.vector_store %arg7[%c0_157, %c0_158], %295 {strides = array<i32>} : memref<3x512xf32, #tpu.memory_space<vmem>>, vector<3x256xf32>,
    %297 = vector.extract_strided_slice %242 {offsets = [0, 768], sizes = [8, 768], strides = [1, 1]} : vector<8x1536xf32> to vector<8x768xf32>
    %298 = vector.broadcast %243 : vector<8x1xf32> to vector<8x768xf32>
    %299 = arith.addf %297, %298 : vector<8x768xf32>
    %cst_159 = arith.constant dense<0.000000e+00> : vector<8xf32>
    %300 = vector.multi_reduction <add>, %299, %cst_159 [1] : vector<8x768xf32> to vector<8xf32>
    %301 = vector.shape_cast %300 : vector<8xf32> to vector<8x1xf32>
    %cst_160 = arith.constant 7.680000e+02 : f32
    %302 = vector.broadcast %cst_160 : f32 to vector<8x1xf32>
    %303 = arith.divf %301, %302 : vector<8x1xf32>
    %304 = vector.broadcast %303 : vector<8x1xf32> to vector<8x768xf32>
    %305 = arith.subf %299, %304 : vector<8x768xf32>
    %306 = arith.mulf %305, %305 : vector<8x768xf32>
    %cst_161 = arith.constant dense<0.000000e+00> : vector<8xf32>
    %307 = vector.multi_reduction <add>, %306, %cst_161 [1] : vector<8x768xf32> to vector<8xf32>
    %308 = vector.shape_cast %307 : vector<8xf32> to vector<8x1xf32>
    %cst_162 = arith.constant 7.680000e+02 : f32
    %309 = vector.broadcast %cst_162 : f32 to vector<8x1xf32>
    %310 = arith.divf %308, %309 : vector<8x1xf32>
    %cst_163 = arith.constant 9.99999974E-6 : f32
    %311 = vector.broadcast %cst_163 : f32 to vector<8x1xf32>
    %312 = arith.addf %310, %311 : vector<8x1xf32>
    %313 = math.rsqrt %312 : vector<8x1xf32>
    %314 = vector.broadcast %313 : vector<8x1xf32> to vector<8x768xf32>
    %315 = arith.mulf %305, %314 : vector<8x768xf32>
    %cst_164 = arith.constant 0.000000e+00 : f32
    %316 = vector.broadcast %cst_164 : f32 to vector<8x768xf32>
    %317 = arith.maximumf %315, %316 : vector<8x768xf32>
    %cst_165 = arith.constant dense<0.000000e+00> : vector<8x768xf32>
    %318 = tpu.matmul %244, %317, %cst_165 {dimension_numbers = #tpu.dot_dimension_numbers<[1], [0], [0], [1], [0, 0, 1, 1], [], []>} : vector<8x8xf32>, vector<8x768xf32>, vector<8x768xf32> -> vector<8x768xf32>
    %319 = vector.extract_strided_slice %318 {offsets = [0, 0], sizes = [3, 768], strides = [1, 1]} : vector<8x768xf32> to vector<3x768xf32>
    %320 = vector.broadcast %245 : vector<3x1xf32> to vector<3x768xf32>
    %321 = arith.addf %319, %320 : vector<3x768xf32>
    %cst_166 = arith.constant dense<0xFF800000> : vector<768xf32>
    %322 = vector.multi_reduction <maximumf>, %321, %cst_166 [0] : vector<3x768xf32> to vector<768xf32>
    %323 = vector.shape_cast %322 : vector<768xf32> to vector<1x768xf32>
    %324 = vector.broadcast %323 : vector<1x768xf32> to vector<3x768xf32>
    %325 = arith.subf %321, %324 : vector<3x768xf32>
    %326 = math.exp %325 : vector<3x768xf32>
    %cst_167 = arith.constant dense<0.000000e+00> : vector<768xf32>
    %327 = vector.multi_reduction <add>, %326, %cst_167 [0] : vector<3x768xf32> to vector<768xf32>
    %328 = vector.shape_cast %327 : vector<768xf32> to vector<1x768xf32>
    %329 = tpu.reciprocal %328 {approx = true} : vector<1x768xf32> -> vector<1x768xf32>
    %330 = arith.mulf %328, %329 : vector<1x768xf32>
    %cst_168 = arith.constant 2.000000e+00 : f32
    %331 = vector.broadcast %cst_168 : f32 to vector<1x768xf32>
    %332 = arith.subf %331, %330 : vector<1x768xf32>
    %333 = arith.mulf %329, %332 : vector<1x768xf32>
    %334 = vector.broadcast %333 : vector<1x768xf32> to vector<3x768xf32>
    %335 = arith.mulf %326, %334 : vector<3x768xf32>
    %336 = vector.extract_strided_slice %4 {offsets = [0, 768], sizes = [3, 256], strides = [1, 1]} : vector<8x1536xf32> to vector<3x256xf32>
    %337 = vector.extract_strided_slice %335 {offsets = [0, 0], sizes = [3, 256], strides = [1, 1]} : vector<3x768xf32> to vector<3x256xf32>
    %338 = arith.mulf %336, %337 : vector<3x256xf32>
    %339 = vector.extract_strided_slice %4 {offsets = [0, 1024], sizes = [3, 256], strides = [1, 1]} : vector<8x1536xf32> to vector<3x256xf32>
    %340 = vector.extract_strided_slice %335 {offsets = [0, 256], sizes = [3, 256], strides = [1, 1]} : vector<3x768xf32> to vector<3x256xf32>
    %341 = arith.mulf %339, %340 : vector<3x256xf32>
    %342 = arith.addf %338, %341 : vector<3x256xf32>
    %343 = vector.extract_strided_slice %4 {offsets = [0, 1280], sizes = [3, 256], strides = [1, 1]} : vector<8x1536xf32> to vector<3x256xf32>
    %344 = vector.extract_strided_slice %335 {offsets = [0, 512], sizes = [3, 256], strides = [1, 1]} : vector<3x768xf32> to vector<3x256xf32>
    %345 = arith.mulf %343, %344 : vector<3x256xf32>
    %346 = arith.addf %342, %345 : vector<3x256xf32>
    %c0_169 = arith.constant 0 : index
    %c256 = arith.constant 256 : index
    %347 = vector.load %arg7[%c0_169, %c256] : memref<3x512xf32, #tpu.memory_space<vmem>>, vector<3x256xf32>
    tpu.vector_store %arg7[%c0_169, %c256], %346 {strides = array<i32>} : memref<3x512xf32, #tpu.memory_space<vmem>>, vector<3x256xf32>,
    return
  }
  func.func @transform_0(%arg0: i32) -> (i32, i32) {
    %c0_i32 = arith.constant 0 : i32
    %c0_i32_0 = arith.constant 0 : i32
    return %c0_i32, %arg0 : i32, i32
  }
  func.func @transform_1(%arg0: i32) -> (i32, i32, i32) {
    %c0_i32 = arith.constant 0 : i32
    %c0_i32_0 = arith.constant 0 : i32
    %c0_i32_1 = arith.constant 0 : i32
    %c0_i32_2 = arith.constant 0 : i32
    return %c0_i32, %c0_i32_0, %c0_i32_1 : i32, i32, i32
  }
  func.func @transform_2(%arg0: i32) -> (i32, i32) {
    %c0_i32 = arith.constant 0 : i32
    %c0_i32_0 = arith.constant 0 : i32
    %c0_i32_1 = arith.constant 0 : i32
    return %c0_i32, %c0_i32_0 : i32, i32
  }
  func.func @transform_3(%arg0: i32) -> (i32, i32) {
    %c0_i32 = arith.constant 0 : i32
    %c0_i32_0 = arith.constant 0 : i32
    %c0_i32_1 = arith.constant 0 : i32
    return %c0_i32, %c0_i32_0 : i32, i32
  }
  func.func @transform_4(%arg0: i32) -> (i32, i32) {
    %c0_i32 = arith.constant 0 : i32
    %c0_i32_0 = arith.constant 0 : i32
    %c0_i32_1 = arith.constant 0 : i32
    return %c0_i32, %c0_i32_0 : i32, i32
  }
  func.func @transform_5(%arg0: i32) -> (i32, i32) {
    %c0_i32 = arith.constant 0 : i32
    %c0_i32_0 = arith.constant 0 : i32
    %c0_i32_1 = arith.constant 0 : i32
    return %c0_i32, %c0_i32_0 : i32, i32
  }
  func.func @transform_6(%arg0: i32) -> (i32, i32) {
    %c0_i32 = arith.constant 0 : i32
    %c0_i32_0 = arith.constant 0 : i32
    return %c0_i32, %arg0 : i32, i32
  }
}

</mosaic_0001>

<llo_original>
// kernel: tpu_custom_call.1
$region0: #{tpu_custom_call.1}
  #allocation0 [shape = 'u32[]', space=smem, size = 0x4, offset = 0x4, fixed_abs, tag = 'smem constant byte address 0x4 - core index']
  #allocation1 [shape = 'u32[144,128]{1,0:T(1,128)}', space=vmem, size = 0x12000, scoped, tag = 'internal scratch']
  #allocation2 [shape = 'f32[8,1536]{1,0:T(8,128)}', space=vmem, size = 0xc000, scoped, tag = 'scratch operand']
  %s0 = inlined_call_operand.vmem [shape: f32[3,1536], index: 0, kind: input, shape index: {}]
  %s1 = inlined_call_operand.vmem [shape: bf16[27,8,8], index: 1, kind: input, shape index: {}]
  %s2 = inlined_call_operand.vmem [shape: f32[8,1], index: 2, kind: input, shape index: {}]
  %s3 = inlined_call_operand.vmem [shape: f32[8,8], index: 3, kind: input, shape index: {}]
  %s4 = inlined_call_operand.vmem [shape: f32[3,1], index: 4, kind: input, shape index: {}]
  %s5 = inlined_call_operand.hbm [shape: f32[27,1536], index: 5, kind: input, shape index: {}]
  %s6 = inlined_call_operand.hbm [shape: f32[3,512], index: 6, kind: output, shape index: {}]
  %s7 = sld [smem:[#allocation0]]
  $region38: #{tpu_custom_call.1} parent=0
    _
  %s9 = ssub.s32 1, %s7
  %s10 = scalar_select 0, %s9, %s7
  $region1: #{tpu_custom_call.1} parent=0
    #allocation3 [shape = 'u8[196608]{0}', space=vmem, size = 0x30000, scoped, tag = 'input window, operand 5, single buffered']
    #allocation4 [shape = 's32[1]{0}', space=sflag, size = 0x4, scoped, tag = 'scoped memory for tpu_custom_call.1']
    #allocation5 [shape = 's32[1]{0}', space=sflag, size = 0x4, scoped, tag = 'scoped memory for tpu_custom_call.1']
    #allocation6 [shape = 'u8[8192]{0}', space=vmem, size = 0x2000, scoped, tag = 'output window, operand 0, single buffered']
    %11 = vsyncpa [#allocation4], 0
    %12 = vsyncpa [#allocation5], 0
    // Predicated region
    $region2: #{tpu_custom_call.1} parent=1 // pred_check
      _
    $region3: #{tpu_custom_call.1} parent=1 // pred_check_branch
      %14 = sbr.rel (0) target = $region5
    $region4: #{tpu_custom_call.1} parent=1 // pred_region
      _
    $region5: #{tpu_custom_call.1} parent=1 // pred_fallthru
      _
    // Predicated region
    $region6: #{tpu_custom_call.1} parent=1 // pred_check
      _
    $region7: #{tpu_custom_call.1} parent=1 // pred_check_branch
      %16 = sbr.rel (0) target = $region9
    $region8: #{tpu_custom_call.1} parent=1 // pred_region
      _
    $region9: #{tpu_custom_call.1} parent=1 // pred_fallthru
      _
    // Predicated region
    $region10: #{tpu_custom_call.1} parent=1 // pred_check
      _
    $region11: #{tpu_custom_call.1} parent=1 // pred_check_branch
      %18 = sbr.rel (0) target = $region13
    $region12: #{tpu_custom_call.1} parent=1 // pred_region
      _
    $region13: #{tpu_custom_call.1} parent=1 // pred_fallthru
      _
    // Predicated region
    $region14: #{tpu_custom_call.1} parent=1 // pred_check
      _
    $region15: #{tpu_custom_call.1} parent=1 // pred_check_branch
      %20 = sbr.rel (0) target = $region17
    $region16: #{tpu_custom_call.1} parent=1 // pred_region
      _
    $region17: #{tpu_custom_call.1} parent=1 // pred_fallthru
      _
    // Predicated region
    $region18: #{tpu_custom_call.1} parent=1 // pred_check
      _
    $region19: #{tpu_custom_call.1} parent=1 // pred_check_branch
      %22 = sbr.rel (0) target = $region21
    $region20: #{tpu_custom_call.1} parent=1 // pred_region
      _
    $region21: #{tpu_custom_call.1} parent=1 // pred_fallthru
      _
    // Predicated region
    $region22: #{tpu_custom_call.1} parent=1 // pred_check
      _
    $region23: #{tpu_custom_call.1} parent=1 // pred_check_branch
      %24 = sbr.rel (0) target = $region25
    $region24: #{tpu_custom_call.1} parent=1 // pred_region
      %s26 = ssub.s32 6144, 6144
      %27 = vsyncadd [#allocation4], %s26
      %s28 = sshll.u32 [#allocation3], 4
      %s29 = int_to_ptr.vmem [resolvable:$true] %s28
      %34 = dma.hbm_to_vmem [thread:$0]  %s5, 6144, %s29, [#allocation4], 1536, 1536, 96
    $region25: #{tpu_custom_call.1} parent=1 // pred_fallthru
      _
    // Predicated region
    $region26: #{tpu_custom_call.1} parent=1 // pred_check
      _
    $region27: #{tpu_custom_call.1} parent=1 // pred_check_branch
      %36 = sbr.rel (0) target = $region29
    $region28: #{tpu_custom_call.1} parent=1 // pred_region
      %37 = dma.done [#allocation4], 6144
    $region29: #{tpu_custom_call.1} parent=1 // pred_fallthru
      _
    %39 = vst [vmem:[#allocation2] sm:$0xf8] 0.0
    %40 = vst [vmem:[#allocation2 + $0x8] sm:$0xf8] 0.0
    %41 = vst [vmem:[#allocation2 + $0x10] sm:$0xf8] 0.0
    %42 = vst [vmem:[#allocation2 + $0x18] sm:$0xf8] 0.0
    %43 = vst [vmem:[#allocation2 + $0x20] sm:$0xf8] 0.0
    %44 = vst [vmem:[#allocation2 + $0x28] sm:$0xf8] 0.0
    %45 = vst [vmem:[#allocation2 + $0x30] sm:$0xf8] 0.0
    %46 = vst [vmem:[#allocation2 + $0x38] sm:$0xf8] 0.0
    %47 = vst [vmem:[#allocation2 + $0x40] sm:$0xf8] 0.0
    %48 = vst [vmem:[#allocation2 + $0x48] sm:$0xf8] 0.0
    %49 = vst [vmem:[#allocation2 + $0x50] sm:$0xf8] 0.0
    %50 = vst [vmem:[#allocation2 + $0x58] sm:$0xf8] 0.0
    %v51 = vld [vmem:[%s0] sm:$0x77]
    %v52 = vld [vmem:[%s0 + $0x8] sm:$0x77]
    %v53 = vld [vmem:[%s0 + $0x10] sm:$0x77]
    %v54 = vld [vmem:[%s0 + $0x18] sm:$0x77]
    %v55 = vld [vmem:[%s0 + $0x20] sm:$0x77]
    %v56 = vld [vmem:[%s0 + $0x28] sm:$0x77]
    %v63 = vcombine.high %v51, %v51
    %v64 = vcombine.high %v52, %v52
    %v65 = vcombine.high %v53, %v53
    %v66 = vcombine.high %v54, %v54
    %v67 = vcombine.high %v55, %v55
    %v68 = vcombine.high %v56, %v56
    %75 = vst [vmem:[#allocation2] sm:$0x7] %v51
    %76 = vst [vmem:[#allocation2 + $0x8] sm:$0x7] %v63
    %77 = vst [vmem:[#allocation2 + $0x10] sm:$0x7] %v52
    %78 = vst [vmem:[#allocation2 + $0x18] sm:$0x7] %v64
    %79 = vst [vmem:[#allocation2 + $0x20] sm:$0x7] %v53
    %80 = vst [vmem:[#allocation2 + $0x28] sm:$0x7] %v65
    %81 = vst [vmem:[#allocation2 + $0x30] sm:$0x7] %v54
    %82 = vst [vmem:[#allocation2 + $0x38] sm:$0x7] %v66
    %83 = vst [vmem:[#allocation2 + $0x40] sm:$0x7] %v55
    %84 = vst [vmem:[#allocation2 + $0x48] sm:$0x7] %v67
    %85 = vst [vmem:[#allocation2 + $0x50] sm:$0x7] %v56
    %86 = vst [vmem:[#allocation2 + $0x58] sm:$0x7] %v68
    %v87 = vld [vmem:[#allocation2] sm:$0xff]
    %v88 = vld [vmem:[#allocation2 + $0x8] sm:$0xff]
    %v89 = vld [vmem:[#allocation2 + $0x10] sm:$0xff]
    %v90 = vld [vmem:[#allocation2 + $0x18] sm:$0xff]
    %v91 = vld [vmem:[#allocation2 + $0x20] sm:$0xff]
    %v92 = vld [vmem:[#allocation2 + $0x28] sm:$0xff]
    %v93 = vld [vmem:[#allocation2 + $0x30] sm:$0xff]
    %v94 = vld [vmem:[#allocation2 + $0x38] sm:$0xff]
    %v95 = vld [vmem:[#allocation2 + $0x40] sm:$0xff]
    %v96 = vld [vmem:[#allocation2 + $0x48] sm:$0xff]
    %v97 = vld [vmem:[#allocation2 + $0x50] sm:$0xff]
    %v98 = vld [vmem:[#allocation2 + $0x58] sm:$0xff]
    %99 = vrot.lane.b32.xlu0 %v87, 73
    %v100 = vpop.permute.xlu0 %99
    %101 = vrot.lane.b32.xlu0 %v88, 73
    %v102 = vpop.permute.xlu0 %101
    %103 = vrot.lane.b32.xlu0 %v89, 73
    %v104 = vpop.permute.xlu0 %103
    %105 = vrot.lane.b32.xlu0 %v90, 73
    %v106 = vpop.permute.xlu0 %105
    %107 = vrot.lane.b32.xlu0 %v91, 73
    %v108 = vpop.permute.xlu0 %107
    %109 = vrot.lane.b32.xlu0 %v92, 73
    %v110 = vpop.permute.xlu0 %109
    %111 = vrot.lane.b32.xlu0 %v93, 73
    %v112 = vpop.permute.xlu0 %111
    %113 = vrot.lane.b32.xlu0 %v94, 73
    %v114 = vpop.permute.xlu0 %113
    %115 = vrot.lane.b32.xlu0 %v95, 73
    %v116 = vpop.permute.xlu0 %115
    %117 = vrot.lane.b32.xlu0 %v96, 73
    %v118 = vpop.permute.xlu0 %117
    %119 = vrot.lane.b32.xlu0 %v97, 73
    %v120 = vpop.permute.xlu0 %119
    %121 = vrot.lane.b32.xlu0 %v98, 73
    %v122 = vpop.permute.xlu0 %121
    %v123 = vlaneseq
    %v124 = vand.u32 %v123, 127
    %vm125 = vcmp.lt.s32.totalorder %v124, 73
    %v126 = vsel %vm125, %v120, %v122
    %v127 = vsel %vm125, %v118, %v120
    %v128 = vsel %vm125, %v116, %v118
    %v129 = vsel %vm125, %v114, %v116
    %v130 = vsel %vm125, %v112, %v114
    %v131 = vsel %vm125, %v110, %v112
    %v132 = vsel %vm125, %v108, %v110
    %v133 = vsel %vm125, %v106, %v108
    %v134 = vsel %vm125, %v104, %v106
    %v135 = vsel %vm125, %v102, %v104
    %v136 = vsel %vm125, %v100, %v102
    %v137 = vsel %vm125, %v122, %v100
    %v138 = vld [vmem:[#allocation3] ss:$8 sm:$0xf]
    %v139 = vld [vmem:[#allocation3] ss:$8 sm:$0xf0]
    %v140 = vor.u32 %v138, %v139
    %s141 = scalar_lea.vmem [#allocation3], 64
    %v142 = vld [vmem:[%s141] ss:$8 sm:$0xf]
    %v145 = vlaneseq
    %v146 = vshrl.u32 %v145, 7
    %v147 = vsub.s32 0, %v146
    %v148 = vrot.slane %v140, %v147
    %v149 = vlaneseq
    %v150 = vshrl.u32 %v149, 7
    %v151 = vsub.s32 1, %v150
    %v152 = vrot.slane %v140, %v151
    %v153 = vlaneseq
    %v154 = vshrl.u32 %v153, 7
    %v155 = vsub.s32 2, %v154
    %v156 = vrot.slane %v140, %v155
    %v157 = vlaneseq
    %v158 = vshrl.u32 %v157, 7
    %v159 = vsub.s32 3, %v158
    %v160 = vrot.slane %v140, %v159
    %v161 = vlaneseq
    %v162 = vshrl.u32 %v161, 7
    %v163 = vsub.s32 4, %v162
    %v164 = vrot.slane %v140, %v163
    %v165 = vlaneseq
    %v166 = vshrl.u32 %v165, 7
    %v167 = vsub.s32 5, %v166
    %v168 = vrot.slane %v140, %v167
    %v169 = vlaneseq
    %v170 = vshrl.u32 %v169, 7
    %v171 = vsub.s32 6, %v170
    %v172 = vrot.slane %v140, %v171
    %v173 = vlaneseq
    %v174 = vshrl.u32 %v173, 7
    %v175 = vsub.s32 7, %v174
    %v176 = vrot.slane %v140, %v175
    %v177 = vlaneseq
    %v178 = vshrl.u32 %v177, 7
    %v179 = vsub.s32 0, %v178
    %v180 = vrot.slane %v142, %v179
    %v181 = vlaneseq
    %v182 = vshrl.u32 %v181, 7
    %v183 = vsub.s32 1, %v182
    %v184 = vrot.slane %v142, %v183
    %v185 = vlaneseq
    %v186 = vshrl.u32 %v185, 7
    %v187 = vsub.s32 2, %v186
    %v188 = vrot.slane %v142, %v187
    %v189 = vlaneseq
    %v190 = vshrl.u32 %v189, 7
    %v191 = vsub.s32 3, %v190
    %v192 = vrot.slane %v142, %v191
    %v205 = vmul.f32 %v137, %v148
    %v206 = vmul.f32 %v136, %v152
    %v207 = vmul.f32 %v135, %v156
    %v208 = vmul.f32 %v134, %v160
    %v209 = vmul.f32 %v133, %v164
    %v210 = vmul.f32 %v132, %v168
    %v211 = vmul.f32 %v131, %v172
    %v212 = vmul.f32 %v130, %v176
    %v213 = vmul.f32 %v129, %v180
    %v214 = vmul.f32 %v128, %v184
    %v215 = vmul.f32 %v127, %v188
    %v216 = vmul.f32 %v126, %v192
    %v217 = vld [vmem:[%s1] sm:$0xf]
    %v218 = vpack.c.bf16 %v205, %v205
    %v219 = vpack.c.bf16 %v206, %v206
    %v220 = vpack.c.bf16 %v207, %v207
    %v221 = vpack.c.bf16 %v208, %v208
    %v222 = vpack.c.bf16 %v209, %v209
    %v223 = vpack.c.bf16 %v210, %v210
    %v224 = vpack.c.bf16 %v211, %v211
    %v225 = vpack.c.bf16 %v212, %v212
    %v226 = vpack.c.bf16 %v213, %v213
    %v227 = vpack.c.bf16 %v214, %v214
    %v228 = vpack.c.bf16 %v215, %v215
    %v229 = vpack.c.bf16 %v216, %v216
    %230 = vrot.lane.b32.xlu0 %v87, 72
    %v231 = vpop.permute.xlu0 %230
    %232 = vrot.lane.b32.xlu0 %v88, 72
    %v233 = vpop.permute.xlu0 %232
    %234 = vrot.lane.b32.xlu0 %v89, 72
    %v235 = vpop.permute.xlu0 %234
    %236 = vrot.lane.b32.xlu0 %v90, 72
    %v237 = vpop.permute.xlu0 %236
    %238 = vrot.lane.b32.xlu0 %v91, 72
    %v239 = vpop.permute.xlu0 %238
    %240 = vrot.lane.b32.xlu0 %v92, 72
    %v241 = vpop.permute.xlu0 %240
    %242 = vrot.lane.b32.xlu0 %v93, 72
    %v243 = vpop.permute.xlu0 %242
    %244 = vrot.lane.b32.xlu0 %v94, 72
    %v245 = vpop.permute.xlu0 %244
    %246 = vrot.lane.b32.xlu0 %v95, 72
    %v247 = vpop.permute.xlu0 %246
    %248 = vrot.lane.b32.xlu0 %v96, 72
    %v249 = vpop.permute.xlu0 %248
    %250 = vrot.lane.b32.xlu0 %v97, 72
    %v251 = vpop.permute.xlu0 %250
    %252 = vrot.lane.b32.xlu0 %v98, 72
    %v253 = vpop.permute.xlu0 %252
    %vm254 = vcmp.lt.s32.totalorder %v124, 72
    %v255 = vsel %vm254, %v251, %v253
    %v256 = vsel %vm254, %v249, %v251
    %v257 = vsel %vm254, %v247, %v249
    %v258 = vsel %vm254, %v245, %v247
    %v259 = vsel %vm254, %v243, %v245
    %v260 = vsel %vm254, %v241, %v243
    %v261 = vsel %vm254, %v239, %v241
    %v262 = vsel %vm254, %v237, %v239
    %v263 = vsel %vm254, %v235, %v237
    %v264 = vsel %vm254, %v233, %v235
    %v265 = vsel %vm254, %v231, %v233
    %v266 = vsel %vm254, %v253, %v231
    %s267 = scalar_lea.vmem [#allocation3], 1
    %v268 = vld [vmem:[%s267] ss:$8 sm:$0xf]
    %v269 = vld [vmem:[%s267] ss:$8 sm:$0xf0]
    %v270 = vor.u32 %v268, %v269
    %s271 = scalar_lea.vmem [#allocation3], 65
    %v272 = vld [vmem:[%s271] ss:$8 sm:$0xf]
    %v275 = vlaneseq
    %v276 = vshrl.u32 %v275, 7
    %v277 = vsub.s32 0, %v276
    %v278 = vrot.slane %v270, %v277
    %v279 = vlaneseq
    %v280 = vshrl.u32 %v279, 7
    %v281 = vsub.s32 1, %v280
    %v282 = vrot.slane %v270, %v281
    %v283 = vlaneseq
    %v284 = vshrl.u32 %v283, 7
    %v285 = vsub.s32 2, %v284
    %v286 = vrot.slane %v270, %v285
    %v287 = vlaneseq
    %v288 = vshrl.u32 %v287, 7
    %v289 = vsub.s32 3, %v288
    %v290 = vrot.slane %v270, %v289
    %v291 = vlaneseq
    %v292 = vshrl.u32 %v291, 7
    %v293 = vsub.s32 4, %v292
    %v294 = vrot.slane %v270, %v293
    %v295 = vlaneseq
    %v296 = vshrl.u32 %v295, 7
    %v297 = vsub.s32 5, %v296
    %v298 = vrot.slane %v270, %v297
    %v299 = vlaneseq
    %v300 = vshrl.u32 %v299, 7
    %v301 = vsub.s32 6, %v300
    %v302 = vrot.slane %v270, %v301
    %v303 = vlaneseq
    %v304 = vshrl.u32 %v303, 7
    %v305 = vsub.s32 7, %v304
    %v306 = vrot.slane %v270, %v305
    %v307 = vlaneseq
    %v308 = vshrl.u32 %v307, 7
    %v309 = vsub.s32 0, %v308
    %v310 = vrot.slane %v272, %v309
    %v311 = vlaneseq
    %v312 = vshrl.u32 %v311, 7
    %v313 = vsub.s32 1, %v312
    %v314 = vrot.slane %v272, %v313
    %v315 = vlaneseq
    %v316 = vshrl.u32 %v315, 7
    %v317 = vsub.s32 2, %v316
    %v318 = vrot.slane %v272, %v317
    %v319 = vlaneseq
    %v320 = vshrl.u32 %v319, 7
    %v321 = vsub.s32 3, %v320
    %v322 = vrot.slane %v272, %v321
    %v335 = vmul.f32 %v266, %v278
    %v336 = vmul.f32 %v265, %v282
    %v337 = vmul.f32 %v264, %v286
    %v338 = vmul.f32 %v263, %v290
    %v339 = vmul.f32 %v262, %v294
    %v340 = vmul.f32 %v261, %v298
    %v341 = vmul.f32 %v260, %v302
    %v342 = vmul.f32 %v259, %v306
    %v343 = vmul.f32 %v258, %v310
    %v344 = vmul.f32 %v257, %v314
    %v345 = vmul.f32 %v256, %v318
    %v346 = vmul.f32 %v255, %v322
    %s347 = scalar_lea.vmem %s1, 4
    %v348 = vld [vmem:[%s347] sm:$0xf]
    %v349 = vpack.c.bf16 %v335, %v335
    %v350 = vpack.c.bf16 %v336, %v336
    %v351 = vpack.c.bf16 %v337, %v337
    %v352 = vpack.c.bf16 %v338, %v338
    %v353 = vpack.c.bf16 %v339, %v339
    %v354 = vpack.c.bf16 %v340, %v340
    %v355 = vpack.c.bf16 %v341, %v341
    %v356 = vpack.c.bf16 %v342, %v342
    %v357 = vpack.c.bf16 %v343, %v343
    %v358 = vpack.c.bf16 %v344, %v344
    %v359 = vpack.c.bf16 %v345, %v345
    %v360 = vpack.c.bf16 %v346, %v346
    %vm361 = vcmask 64512
    %v363 = vsel %vm361, %v348, 0
    %vm365 = vcmask 1043456
    %v367 = vsel %vm365, %v349, 0
    %v370 = vsel %vm365, %v350, 0
    %v373 = vsel %vm365, %v351, 0
    %v376 = vsel %vm365, %v352, 0
    %v379 = vsel %vm365, %v353, 0
    %v382 = vsel %vm365, %v354, 0
    %v385 = vsel %vm365, %v355, 0
    %v388 = vsel %vm365, %v356, 0
    %v391 = vsel %vm365, %v357, 0
    %v394 = vsel %vm365, %v358, 0
    %v397 = vsel %vm365, %v359, 0
    %v400 = vsel %vm365, %v360, 0
    %402 = vmatprep.subr.bf16.mxu0 %v370
    %403 = vmatpush1.bf16.msra.mxu0 %v367
    %404 = vmatprep.subr.bf16.mxu0 0
    %405 = vmatpush1.bf16.msra.mxu0 0
    %406 = vmatprep.subr.bf16.mxu0 0
    %407 = vmatpush1.bf16.msra.mxu0 0
    %408 = vmatprep.subr.bf16.mxu0 0
    %409 = vmatpush1.bf16.msra.mxu0 0
    %410 = vmatprep.subr.bf16.mxu0 0
    %411 = vmatpush1.bf16.msra.mxu0 0
    %412 = vmatprep.subr.bf16.mxu0 0
    %413 = vmatpush1.bf16.msra.mxu0 0
    %414 = vmatprep.subr.bf16.mxu0 0
    %415 = vmatpush1.bf16.msra.mxu0 0
    %416 = vmatprep.subr.bf16.mxu0 0
    %417 = vmatpush1.bf16.msra.mxu0 0
    %418 = vmatprep.subr.bf16.mxu0 0
    %419 = vmatpush1.bf16.msra.mxu0 0
    %420 = vmatprep.subr.bf16.mxu0 0
    %421 = vmatpush1.bf16.msra.mxu0 0
    %422 = vmatprep.subr.bf16.mxu0 0
    %423 = vmatpush1.bf16.msra.mxu0 0
    %424 = vmatprep.subr.bf16.mxu0 0
    %425 = vmatpush1.bf16.msra.mxu0 0
    %426 = vmatprep.subr.bf16.mxu0 0
    %427 = vmatpush1.bf16.msra.mxu0 0
    %428 = vmatprep.subr.bf16.mxu0 0
    %429 = vmatpush1.bf16.msra.mxu0 0
    %430 = vmatprep.subr.bf16.mxu0 0
    %431 = vmatpush1.bf16.msra.mxu0 0
    %432 = vmatprep.subr.bf16.mxu0 0
    %433 = vmatpush1.bf16.msra.mxu0 0
    %434 = vmatprep.mubr.bf16.mxu0 0
    %435 = vmatmul.mubr.bf16.gmra.mrb[0].mxu0 %v363
    %v436 = vpop.f32.mrb[0].mxu0
    %v437 = vadd.f32 0.0, %v436
    %v438 = vpop.f32.mrb[0].mxu0
    %v439 = vadd.f32 0.0, %v438
    %v440 = vpop.f32.mrb[0].mxu0
    %v441 = vpop.f32.mrb[0].mxu0
    %442 = vdwg.mxu0
    %443 = vmatprep.subr.bf16.mxu0 %v376
    %444 = vmatpush1.bf16.msra.mxu0 %v373
    %445 = vmatprep.subr.bf16.mxu0 0
    %446 = vmatpush1.bf16.msra.mxu0 0
    %447 = vmatprep.subr.bf16.mxu0 0
    %448 = vmatpush1.bf16.msra.mxu0 0
    %449 = vmatprep.subr.bf16.mxu0 0
    %450 = vmatpush1.bf16.msra.mxu0 0
    %451 = vmatprep.subr.bf16.mxu0 0
    %452 = vmatpush1.bf16.msra.mxu0 0
    %453 = vmatprep.subr.bf16.mxu0 0
    %454 = vmatpush1.bf16.msra.mxu0 0
    %455 = vmatprep.subr.bf16.mxu0 0
    %456 = vmatpush1.bf16.msra.mxu0 0
    %457 = vmatprep.subr.bf16.mxu0 0
    %458 = vmatpush1.bf16.msra.mxu0 0
    %459 = vmatprep.subr.bf16.mxu0 0
    %460 = vmatpush1.bf16.msra.mxu0 0
    %461 = vmatprep.subr.bf16.mxu0 0
    %462 = vmatpush1.bf16.msra.mxu0 0
    %463 = vmatprep.subr.bf16.mxu0 0
    %464 = vmatpush1.bf16.msra.mxu0 0
    %465 = vmatprep.subr.bf16.mxu0 0
    %466 = vmatpush1.bf16.msra.mxu0 0
    %467 = vmatprep.subr.bf16.mxu0 0
    %468 = vmatpush1.bf16.msra.mxu0 0
    %469 = vmatprep.subr.bf16.mxu0 0
    %470 = vmatpush1.bf16.msra.mxu0 0
    %471 = vmatprep.subr.bf16.mxu0 0
    %472 = vmatpush1.bf16.msra.mxu0 0
    %473 = vmatprep.subr.bf16.mxu0 0
    %474 = vmatpush1.bf16.msra.mxu0 0
    %475 = vmatprep.mubr.bf16.mxu0 0
    %476 = vmatmul.mubr.bf16.gmra.mrb[0].mxu0 %v363
    %v477 = vpop.f32.mrb[0].mxu0
    %v478 = vadd.f32 0.0, %v477
    %v479 = vpop.f32.mrb[0].mxu0
    %v480 = vadd.f32 0.0, %v479
    %v481 = vpop.f32.mrb[0].mxu0
    %v482 = vpop.f32.mrb[0].mxu0
    %483 = vdwg.mxu0
    %484 = vmatprep.subr.bf16.mxu0 %v382
    %485 = vmatpush1.bf16.msra.mxu0 %v379
    %486 = vmatprep.subr.bf16.mxu0 0
    %487 = vmatpush1.bf16.msra.mxu0 0
    %488 = vmatprep.subr.bf16.mxu0 0
    %489 = vmatpush1.bf16.msra.mxu0 0
    %490 = vmatprep.subr.bf16.mxu0 0
    %491 = vmatpush1.bf16.msra.mxu0 0
    %492 = vmatprep.subr.bf16.mxu0 0
    %493 = vmatpush1.bf16.msra.mxu0 0
    %494 = vmatprep.subr.bf16.mxu0 0
    %495 = vmatpush1.bf16.msra.mxu0 0
    %496 = vmatprep.subr.bf16.mxu0 0
    %497 = vmatpush1.bf16.msra.mxu0 0
    %498 = vmatprep.subr.bf16.mxu0 0
    %499 = vmatpush1.bf16.msra.mxu0 0
    %500 = vmatprep.subr.bf16.mxu0 0
    %501 = vmatpush1.bf16.msra.mxu0 0
    %502 = vmatprep.subr.bf16.mxu0 0
    %503 = vmatpush1.bf16.msra.mxu0 0
    %504 = vmatprep.subr.bf16.mxu0 0
    %505 = vmatpush1.bf16.msra.mxu0 0
    %506 = vmatprep.subr.bf16.mxu0 0
    %507 = vmatpush1.bf16.msra.mxu0 0
    %508 = vmatprep.subr.bf16.mxu0 0
    %509 = vmatpush1.bf16.msra.mxu0 0
    %510 = vmatprep.subr.bf16.mxu0 0
    %511 = vmatpush1.bf16.msra.mxu0 0
    %512 = vmatprep.subr.bf16.mxu0 0
    %513 = vmatpush1.bf16.msra.mxu0 0
    %514 = vmatprep.subr.bf16.mxu0 0
    %515 = vmatpush1.bf16.msra.mxu0 0
    %516 = vmatprep.mubr.bf16.mxu0 0
    %517 = vmatmul.mubr.bf16.gmra.mrb[0].mxu0 %v363
    %v518 = vpop.f32.mrb[0].mxu0
    %v519 = vadd.f32 0.0, %v518
    %v520 = vpop.f32.mrb[0].mxu0
    %v521 = vadd.f32 0.0, %v520
    %v522 = vpop.f32.mrb[0].mxu0
    %v523 = vpop.f32.mrb[0].mxu0
    %524 = vdwg.mxu0
    %525 = vmatprep.subr.bf16.mxu0 %v388
    %526 = vmatpush1.bf16.msra.mxu0 %v385
    %527 = vmatprep.subr.bf16.mxu0 0
    %528 = vmatpush1.bf16.msra.mxu0 0
    %529 = vmatprep.subr.bf16.mxu0 0
    %530 = vmatpush1.bf16.msra.mxu0 0
    %531 = vmatprep.subr.bf16.mxu0 0
    %532 = vmatpush1.bf16.msra.mxu0 0
    %533 = vmatprep.subr.bf16.mxu0 0
    %534 = vmatpush1.bf16.msra.mxu0 0
    %535 = vmatprep.subr.bf16.mxu0 0
    %536 = vmatpush1.bf16.msra.mxu0 0
    %537 = vmatprep.subr.bf16.mxu0 0
    %538 = vmatpush1.bf16.msra.mxu0 0
    %539 = vmatprep.subr.bf16.mxu0 0
    %540 = vmatpush1.bf16.msra.mxu0 0
    %541 = vmatprep.subr.bf16.mxu0 0
    %542 = vmatpush1.bf16.msra.mxu0 0
    %543 = vmatprep.subr.bf16.mxu0 0
    %544 = vmatpush1.bf16.msra.mxu0 0
    %545 = vmatprep.subr.bf16.mxu0 0
    %546 = vmatpush1.bf16.msra.mxu0 0
    %547 = vmatprep.subr.bf16.mxu0 0
    %548 = vmatpush1.bf16.msra.mxu0 0
    %549 = vmatprep.subr.bf16.mxu0 0
    %550 = vmatpush1.bf16.msra.mxu0 0
    %551 = vmatprep.subr.bf16.mxu0 0
    %552 = vmatpush1.bf16.msra.mxu0 0
    %553 = vmatprep.subr.bf16.mxu0 0
    %554 = vmatpush1.bf16.msra.mxu0 0
    %555 = vmatprep.subr.bf16.mxu0 0
    %556 = vmatpush1.bf16.msra.mxu0 0
    %557 = vmatprep.mubr.bf16.mxu0 0
    %558 = vmatmul.mubr.bf16.gmra.mrb[0].mxu0 %v363
    %v559 = vpop.f32.mrb[0].mxu0
    %v560 = vadd.f32 0.0, %v559
    %v561 = vpop.f32.mrb[0].mxu0
    %v562 = vadd.f32 0.0, %v561
    %v563 = vpop.f32.mrb[0].mxu0
    %v564 = vpop.f32.mrb[0].mxu0
    %565 = vdwg.mxu0
    %566 = vmatprep.subr.bf16.mxu0 %v394
    %567 = vmatpush1.bf16.msra.mxu0 %v391
    %568 = vmatprep.subr.bf16.mxu0 0
    %569 = vmatpush1.bf16.msra.mxu0 0
    %570 = vmatprep.subr.bf16.mxu0 0
    %571 = vmatpush1.bf16.msra.mxu0 0
    %572 = vmatprep.subr.bf16.mxu0 0
    %573 = vmatpush1.bf16.msra.mxu0 0
    %574 = vmatprep.subr.bf16.mxu0 0
    %575 = vmatpush1.bf16.msra.mxu0 0
    %576 = vmatprep.subr.bf16.mxu0 0
    %577 = vmatpush1.bf16.msra.mxu0 0
    %578 = vmatprep.subr.bf16.mxu0 0
    %579 = vmatpush1.bf16.msra.mxu0 0
    %580 = vmatprep.subr.bf16.mxu0 0
    %581 = vmatpush1.bf16.msra.mxu0 0
    %582 = vmatprep.subr.bf16.mxu0 0
    %583 = vmatpush1.bf16.msra.mxu0 0
    %584 = vmatprep.subr.bf16.mxu0 0
    %585 = vmatpush1.bf16.msra.mxu0 0
    %586 = vmatprep.subr.bf16.mxu0 0
    %587 = vmatpush1.bf16.msra.mxu0 0
    %588 = vmatprep.subr.bf16.mxu0 0
    %589 = vmatpush1.bf16.msra.mxu0 0
    %590 = vmatprep.subr.bf16.mxu0 0
    %591 = vmatpush1.bf16.msra.mxu0 0
    %592 = vmatprep.subr.bf16.mxu0 0
    %593 = vmatpush1.bf16.msra.mxu0 0
    %594 = vmatprep.subr.bf16.mxu0 0
    %595 = vmatpush1.bf16.msra.mxu0 0
    %596 = vmatprep.subr.bf16.mxu0 0
    %597 = vmatpush1.bf16.msra.mxu0 0
    %598 = vmatprep.mubr.bf16.mxu0 0
    %599 = vmatmul.mubr.bf16.gmra.mrb[0].mxu0 %v363
    %v600 = vpop.f32.mrb[0].mxu0
    %v601 = vadd.f32 0.0, %v600
    %v602 = vpop.f32.mrb[0].mxu0
    %v603 = vadd.f32 0.0, %v602
    %v604 = vpop.f32.mrb[0].mxu0
    %v605 = vpop.f32.mrb[0].mxu0
    %606 = vdwg.mxu0
    %607 = vmatprep.subr.bf16.mxu0 %v400
    %608 = vmatpush1.bf16.msra.mxu0 %v397
    %609 = vmatprep.subr.bf16.mxu0 0
    %610 = vmatpush1.bf16.msra.mxu0 0
    %611 = vmatprep.subr.bf16.mxu0 0
    %612 = vmatpush1.bf16.msra.mxu0 0
    %613 = vmatprep.subr.bf16.mxu0 0
    %614 = vmatpush1.bf16.msra.mxu0 0
    %615 = vmatprep.subr.bf16.mxu0 0
    %616 = vmatpush1.bf16.msra.mxu0 0
    %617 = vmatprep.subr.bf16.mxu0 0
    %618 = vmatpush1.bf16.msra.mxu0 0
    %619 = vmatprep.subr.bf16.mxu0 0
    %620 = vmatpush1.bf16.msra.mxu0 0
    %621 = vmatprep.subr.bf16.mxu0 0
    %622 = vmatpush1.bf16.msra.mxu0 0
    %623 = vmatprep.subr.bf16.mxu0 0
    %624 = vmatpush1.bf16.msra.mxu0 0
    %625 = vmatprep.subr.bf16.mxu0 0
    %626 = vmatpush1.bf16.msra.mxu0 0
    %627 = vmatprep.subr.bf16.mxu0 0
    %628 = vmatpush1.bf16.msra.mxu0 0
    %629 = vmatprep.subr.bf16.mxu0 0
    %630 = vmatpush1.bf16.msra.mxu0 0
    %631 = vmatprep.subr.bf16.mxu0 0
    %632 = vmatpush1.bf16.msra.mxu0 0
    %633 = vmatprep.subr.bf16.mxu0 0
    %634 = vmatpush1.bf16.msra.mxu0 0
    %635 = vmatprep.subr.bf16.mxu0 0
    %636 = vmatpush1.bf16.msra.mxu0 0
    %637 = vmatprep.subr.bf16.mxu0 0
    %638 = vmatpush1.bf16.msra.mxu0 0
    %639 = vmatprep.mubr.bf16.mxu0 0
    %640 = vmatmul.mubr.bf16.gmra.mrb[0].mxu0 %v363
    %v641 = vpop.f32.mrb[0].mxu0
    %v642 = vadd.f32 0.0, %v641
    %v643 = vpop.f32.mrb[0].mxu0
    %v644 = vadd.f32 0.0, %v643
    %v645 = vpop.f32.mrb[0].mxu0
    %v646 = vpop.f32.mrb[0].mxu0
    %647 = vdwg.mxu0
    %v649 = vsel %vm361, %v217, 0
    %v652 = vsel %vm365, %v218, 0
    %v655 = vsel %vm365, %v219, 0
    %v658 = vsel %vm365, %v220, 0
    %v661 = vsel %vm365, %v221, 0
    %v664 = vsel %vm365, %v222, 0
    %v667 = vsel %vm365, %v223, 0
    %v670 = vsel %vm365, %v224, 0
    %v673 = vsel %vm365, %v225, 0
    %v676 = vsel %vm365, %v226, 0
    %v679 = vsel %vm365, %v227, 0
    %v682 = vsel %vm365, %v228, 0
    %v685 = vsel %vm365, %v229, 0
    %687 = vmatprep.subr.bf16.mxu0 %v655
    %688 = vmatpush1.bf16.msra.mxu0 %v652
    %689 = vmatprep.subr.bf16.mxu0 0
    %690 = vmatpush1.bf16.msra.mxu0 0
    %691 = vmatprep.subr.bf16.mxu0 0
    %692 = vmatpush1.bf16.msra.mxu0 0
    %693 = vmatprep.subr.bf16.mxu0 0
    %694 = vmatpush1.bf16.msra.mxu0 0
    %695 = vmatprep.subr.bf16.mxu0 0
    %696 = vmatpush1.bf16.msra.mxu0 0
    %697 = vmatprep.subr.bf16.mxu0 0
    %698 = vmatpush1.bf16.msra.mxu0 0
    %699 = vmatprep.subr.bf16.mxu0 0
    %700 = vmatpush1.bf16.msra.mxu0 0
    %701 = vmatprep.subr.bf16.mxu0 0
    %702 = vmatpush1.bf16.msra.mxu0 0
    %703 = vmatprep.subr.bf16.mxu0 0
    %704 = vmatpush1.bf16.msra.mxu0 0
    %705 = vmatprep.subr.bf16.mxu0 0
    %706 = vmatpush1.bf16.msra.mxu0 0
    %707 = vmatprep.subr.bf16.mxu0 0
    %708 = vmatpush1.bf16.msra.mxu0 0
    %709 = vmatprep.subr.bf16.mxu0 0
    %710 = vmatpush1.bf16.msra.mxu0 0
    %711 = vmatprep.subr.bf16.mxu0 0
    %712 = vmatpush1.bf16.msra.mxu0 0
    %713 = vmatprep.subr.bf16.mxu0 0
    %714 = vmatpush1.bf16.msra.mxu0 0
    %715 = vmatprep.subr.bf16.mxu0 0
    %716 = vmatpush1.bf16.msra.mxu0 0
    %717 = vmatprep.subr.bf16.mxu0 0
    %718 = vmatpush1.bf16.msra.mxu0 0
    %719 = vmatprep.mubr.bf16.mxu0 0
    %720 = vmatmul.mubr.bf16.gmra.mrb[0].mxu0 %v649
    %v721 = vpop.f32.mrb[0].mxu0
    %v722 = vadd.f32 %v437, %v721
    %v723 = vpop.f32.mrb[0].mxu0
    %v724 = vadd.f32 %v439, %v723
    %v725 = vpop.f32.mrb[0].mxu0
    %v726 = vpop.f32.mrb[0].mxu0
    %727 = vdwg.mxu0
    %728 = vmatprep.subr.bf16.mxu0 %v661
    %729 = vmatpush1.bf16.msra.mxu0 %v658
    %730 = vmatprep.subr.bf16.mxu0 0
    %731 = vmatpush1.bf16.msra.mxu0 0
    %732 = vmatprep.subr.bf16.mxu0 0
    %733 = vmatpush1.bf16.msra.mxu0 0
    %734 = vmatprep.subr.bf16.mxu0 0
    %735 = vmatpush1.bf16.msra.mxu0 0
    %736 = vmatprep.subr.bf16.mxu0 0
    %737 = vmatpush1.bf16.msra.mxu0 0
    %738 = vmatprep.subr.bf16.mxu0 0
    %739 = vmatpush1.bf16.msra.mxu0 0
    %740 = vmatprep.subr.bf16.mxu0 0
    %741 = vmatpush1.bf16.msra.mxu0 0
    %742 = vmatprep.subr.bf16.mxu0 0
    %743 = vmatpush1.bf16.msra.mxu0 0
    %744 = vmatprep.subr.bf16.mxu0 0
    %745 = vmatpush1.bf16.msra.mxu0 0
    %746 = vmatprep.subr.bf16.mxu0 0
    %747 = vmatpush1.bf16.msra.mxu0 0
    %748 = vmatprep.subr.bf16.mxu0 0
    %749 = vmatpush1.bf16.msra.mxu0 0
    %750 = vmatprep.subr.bf16.mxu0 0
    %751 = vmatpush1.bf16.msra.mxu0 0
    %752 = vmatprep.subr.bf16.mxu0 0
    %753 = vmatpush1.bf16.msra.mxu0 0
    %754 = vmatprep.subr.bf16.mxu0 0
    %755 = vmatpush1.bf16.msra.mxu0 0
    %756 = vmatprep.subr.bf16.mxu0 0
    %757 = vmatpush1.bf16.msra.mxu0 0
    %758 = vmatprep.subr.bf16.mxu0 0
    %759 = vmatpush1.bf16.msra.mxu0 0
    %760 = vmatprep.mubr.bf16.mxu0 0
    %761 = vmatmul.mubr.bf16.gmra.mrb[0].mxu0 %v649
    %v762 = vpop.f32.mrb[0].mxu0
    %v763 = vadd.f32 %v478, %v762
    %v764 = vpop.f32.mrb[0].mxu0
    %v765 = vadd.f32 %v480, %v764
    %v766 = vpop.f32.mrb[0].mxu0
    %v767 = vpop.f32.mrb[0].mxu0
    %768 = vdwg.mxu0
    %769 = vmatprep.subr.bf16.mxu0 %v667
    %770 = vmatpush1.bf16.msra.mxu0 %v664
    %771 = vmatprep.subr.bf16.mxu0 0
    %772 = vmatpush1.bf16.msra.mxu0 0
    %773 = vmatprep.subr.bf16.mxu0 0
    %774 = vmatpush1.bf16.msra.mxu0 0
    %775 = vmatprep.subr.bf16.mxu0 0
    %776 = vmatpush1.bf16.msra.mxu0 0
    %777 = vmatprep.subr.bf16.mxu0 0
    %778 = vmatpush1.bf16.msra.mxu0 0
    %779 = vmatprep.subr.bf16.mxu0 0
    %780 = vmatpush1.bf16.msra.mxu0 0
    %781 = vmatprep.subr.bf16.mxu0 0
    %782 = vmatpush1.bf16.msra.mxu0 0
    %783 = vmatprep.subr.bf16.mxu0 0
    %784 = vmatpush1.bf16.msra.mxu0 0
    %785 = vmatprep.subr.bf16.mxu0 0
    %786 = vmatpush1.bf16.msra.mxu0 0
    %787 = vmatprep.subr.bf16.mxu0 0
    %788 = vmatpush1.bf16.msra.mxu0 0
    %789 = vmatprep.subr.bf16.mxu0 0
    %790 = vmatpush1.bf16.msra.mxu0 0
    %791 = vmatprep.subr.bf16.mxu0 0
    %792 = vmatpush1.bf16.msra.mxu0 0
    %793 = vmatprep.subr.bf16.mxu0 0
    %794 = vmatpush1.bf16.msra.mxu0 0
    %795 = vmatprep.subr.bf16.mxu0 0
    %796 = vmatpush1.bf16.msra.mxu0 0
    %797 = vmatprep.subr.bf16.mxu0 0
    %798 = vmatpush1.bf16.msra.mxu0 0
    %799 = vmatprep.subr.bf16.mxu0 0
    %800 = vmatpush1.bf16.msra.mxu0 0
    %801 = vmatprep.mubr.bf16.mxu0 0
    %802 = vmatmul.mubr.bf16.gmra.mrb[0].mxu0 %v649
    %v803 = vpop.f32.mrb[0].mxu0
    %v804 = vadd.f32 %v519, %v803
    %v805 = vpop.f32.mrb[0].mxu0
    %v806 = vadd.f32 %v521, %v805
    %v807 = vpop.f32.mrb[0].mxu0
    %v808 = vpop.f32.mrb[0].mxu0
    %809 = vdwg.mxu0
    %810 = vmatprep.subr.bf16.mxu0 %v673
    %811 = vmatpush1.bf16.msra.mxu0 %v670
    %812 = vmatprep.subr.bf16.mxu0 0
    %813 = vmatpush1.bf16.msra.mxu0 0
    %814 = vmatprep.subr.bf16.mxu0 0
    %815 = vmatpush1.bf16.msra.mxu0 0
    %816 = vmatprep.subr.bf16.mxu0 0
    %817 = vmatpush1.bf16.msra.mxu0 0
    %818 = vmatprep.subr.bf16.mxu0 0
    %819 = vmatpush1.bf16.msra.mxu0 0
    %820 = vmatprep.subr.bf16.mxu0 0
    %821 = vmatpush1.bf16.msra.mxu0 0
    %822 = vmatprep.subr.bf16.mxu0 0
    %823 = vmatpush1.bf16.msra.mxu0 0
    %824 = vmatprep.subr.bf16.mxu0 0
    %825 = vmatpush1.bf16.msra.mxu0 0
    %826 = vmatprep.subr.bf16.mxu0 0
    %827 = vmatpush1.bf16.msra.mxu0 0
    %828 = vmatprep.subr.bf16.mxu0 0
    %829 = vmatpush1.bf16.msra.mxu0 0
    %830 = vmatprep.subr.bf16.mxu0 0
    %831 = vmatpush1.bf16.msra.mxu0 0
    %832 = vmatprep.subr.bf16.mxu0 0
    %833 = vmatpush1.bf16.msra.mxu0 0
    %834 = vmatprep.subr.bf16.mxu0 0
    %835 = vmatpush1.bf16.msra.mxu0 0
    %836 = vmatprep.subr.bf16.mxu0 0
    %837 = vmatpush1.bf16.msra.mxu0 0
    %838 = vmatprep.subr.bf16.mxu0 0
    %839 = vmatpush1.bf16.msra.mxu0 0
    %840 = vmatprep.subr.bf16.mxu0 0
    %841 = vmatpush1.bf16.msra.mxu0 0
    %842 = vmatprep.mubr.bf16.mxu0 0
    %843 = vmatmul.mubr.bf16.gmra.mrb[0].mxu0 %v649
    %v844 = vpop.f32.mrb[0].mxu0
    %v845 = vadd.f32 %v560, %v844
    %v846 = vpop.f32.mrb[0].mxu0
    %v847 = vadd.f32 %v562, %v846
    %v848 = vpop.f32.mrb[0].mxu0
    %v849 = vpop.f32.mrb[0].mxu0
    %850 = vdwg.mxu0
    %851 = vmatprep.subr.bf16.mxu0 %v679
    %852 = vmatpush1.bf16.msra.mxu0 %v676
    %853 = vmatprep.subr.bf16.mxu0 0
    %854 = vmatpush1.bf16.msra.mxu0 0
    %855 = vmatprep.subr.bf16.mxu0 0
    %856 = vmatpush1.bf16.msra.mxu0 0
    %857 = vmatprep.subr.bf16.mxu0 0
    %858 = vmatpush1.bf16.msra.mxu0 0
    %859 = vmatprep.subr.bf16.mxu0 0
    %860 = vmatpush1.bf16.msra.mxu0 0
    %861 = vmatprep.subr.bf16.mxu0 0
    %862 = vmatpush1.bf16.msra.mxu0 0
    %863 = vmatprep.subr.bf16.mxu0 0
    %864 = vmatpush1.bf16.msra.mxu0 0
    %865 = vmatprep.subr.bf16.mxu0 0
    %866 = vmatpush1.bf16.msra.mxu0 0
    %867 = vmatprep.subr.bf16.mxu0 0
    %868 = vmatpush1.bf16.msra.mxu0 0
    %869 = vmatprep.subr.bf16.mxu0 0
    %870 = vmatpush1.bf16.msra.mxu0 0
    %871 = vmatprep.subr.bf16.mxu0 0
    %872 = vmatpush1.bf16.msra.mxu0 0
    %873 = vmatprep.subr.bf16.mxu0 0
    %874 = vmatpush1.bf16.msra.mxu0 0
    %875 = vmatprep.subr.bf16.mxu0 0
    %876 = vmatpush1.bf16.msra.mxu0 0
    %877 = vmatprep.subr.bf16.mxu0 0
    %878 = vmatpush1.bf16.msra.mxu0 0
    %879 = vmatprep.subr.bf16.mxu0 0
    %880 = vmatpush1.bf16.msra.mxu0 0
    %881 = vmatprep.subr.bf16.mxu0 0
    %882 = vmatpush1.bf16.msra.mxu0 0
    %883 = vmatprep.mubr.bf16.mxu0 0
    %884 = vmatmul.mubr.bf16.gmra.mrb[0].mxu0 %v649
    %v885 = vpop.f32.mrb[0].mxu0
    %v886 = vadd.f32 %v601, %v885
    %v887 = vpop.f32.mrb[0].mxu0
    %v888 = vadd.f32 %v603, %v887
    %v889 = vpop.f32.mrb[0].mxu0
    %v890 = vpop.f32.mrb[0].mxu0
    %891 = vdwg.mxu0
    %892 = vmatprep.subr.bf16.mxu0 %v685
    %893 = vmatpush1.bf16.msra.mxu0 %v682
    %894 = vmatprep.subr.bf16.mxu0 0
    %895 = vmatpush1.bf16.msra.mxu0 0
    %896 = vmatprep.subr.bf16.mxu0 0
    %897 = vmatpush1.bf16.msra.mxu0 0
    %898 = vmatprep.subr.bf16.mxu0 0
    %899 = vmatpush1.bf16.msra.mxu0 0
    %900 = vmatprep.subr.bf16.mxu0 0
    %901 = vmatpush1.bf16.msra.mxu0 0
    %902 = vmatprep.subr.bf16.mxu0 0
    %903 = vmatpush1.bf16.msra.mxu0 0
    %904 = vmatprep.subr.bf16.mxu0 0
    %905 = vmatpush1.bf16.msra.mxu0 0
    %906 = vmatprep.subr.bf16.mxu0 0
    %907 = vmatpush1.bf16.msra.mxu0 0
    %908 = vmatprep.subr.bf16.mxu0 0
    %909 = vmatpush1.bf16.msra.mxu0 0
    %910 = vmatprep.subr.bf16.mxu0 0
    %911 = vmatpush1.bf16.msra.mxu0 0
    %912 = vmatprep.subr.bf16.mxu0 0
    %913 = vmatpush1.bf16.msra.mxu0 0
    %914 = vmatprep.subr.bf16.mxu0 0
    %915 = vmatpush1.bf16.msra.mxu0 0
    %916 = vmatprep.subr.bf16.mxu0 0
    %917 = vmatpush1.bf16.msra.mxu0 0
    %918 = vmatprep.subr.bf16.mxu0 0
    %919 = vmatpush1.bf16.msra.mxu0 0
    %920 = vmatprep.subr.bf16.mxu0 0
    %921 = vmatpush1.bf16.msra.mxu0 0
    %922 = vmatprep.subr.bf16.mxu0 0
    %923 = vmatpush1.bf16.msra.mxu0 0
    %924 = vmatprep.mubr.bf16.mxu0 0
    %925 = vmatmul.mubr.bf16.gmra.mrb[0].mxu0 %v649
    %v926 = vpop.f32.mrb[0].mxu0
    %v927 = vadd.f32 %v642, %v926
    %v928 = vpop.f32.mrb[0].mxu0
    %v929 = vadd.f32 %v644, %v928
    %v930 = vpop.f32.mrb[0].mxu0
    %v931 = vpop.f32.mrb[0].mxu0
    %932 = vdwg.mxu0
    %933 = vrot.lane.b32.xlu0 %v87, 71
    %v934 = vpop.permute.xlu0 %933
    %935 = vrot.lane.b32.xlu0 %v88, 71
    %v936 = vpop.permute.xlu0 %935
    %937 = vrot.lane.b32.xlu0 %v89, 71
    %v938 = vpop.permute.xlu0 %937
    %939 = vrot.lane.b32.xlu0 %v90, 71
    %v940 = vpop.permute.xlu0 %939
    %941 = vrot.lane.b32.xlu0 %v91, 71
    %v942 = vpop.permute.xlu0 %941
    %943 = vrot.lane.b32.xlu0 %v92, 71
    %v944 = vpop.permute.xlu0 %943
    %945 = vrot.lane.b32.xlu0 %v93, 71
    %v946 = vpop.permute.xlu0 %945
    %947 = vrot.lane.b32.xlu0 %v94, 71
    %v948 = vpop.permute.xlu0 %947
    %949 = vrot.lane.b32.xlu0 %v95, 71
    %v950 = vpop.permute.xlu0 %949
    %951 = vrot.lane.b32.xlu0 %v96, 71
    %v952 = vpop.permute.xlu0 %951
    %953 = vrot.lane.b32.xlu0 %v97, 71
    %v954 = vpop.permute.xlu0 %953
    %955 = vrot.lane.b32.xlu0 %v98, 71
    %v956 = vpop.permute.xlu0 %955
    %vm957 = vcmp.lt.s32.totalorder %v124, 71
    %v958 = vsel %vm957, %v954, %v956
    %v959 = vsel %vm957, %v952, %v954
    %v960 = vsel %vm957, %v950, %v952
    %v961 = vsel %vm957, %v948, %v950
    %v962 = vsel %vm957, %v946, %v948
    %v963 = vsel %vm957, %v944, %v946
    %v964 = vsel %vm957, %v942, %v944
    %v965 = vsel %vm957, %v940, %v942
    %v966 = vsel %vm957, %v938, %v940
    %v967 = vsel %vm957, %v936, %v938
    %v968 = vsel %vm957, %v934, %v936
    %v969 = vsel %vm957, %v956, %v934
    %s970 = scalar_lea.vmem [#allocation3], 2
    %v971 = vld [vmem:[%s970] ss:$8 sm:$0xf]
    %v972 = vld [vmem:[%s970] ss:$8 sm:$0xf0]
    %v973 = vor.u32 %v971, %v972
    %s974 = scalar_lea.vmem [#allocation3], 66
    %v975 = vld [vmem:[%s974] ss:$8 sm:$0xf]
    %v978 = vlaneseq
    %v979 = vshrl.u32 %v978, 7
    %v980 = vsub.s32 0, %v979
    %v981 = vrot.slane %v973, %v980
    %v982 = vlaneseq
    %v983 = vshrl.u32 %v982, 7
    %v984 = vsub.s32 1, %v983
    %v985 = vrot.slane %v973, %v984
    %v986 = vlaneseq
    %v987 = vshrl.u32 %v986, 7
    %v988 = vsub.s32 2, %v987
    %v989 = vrot.slane %v973, %v988
    %v990 = vlaneseq
    %v991 = vshrl.u32 %v990, 7
    %v992 = vsub.s32 3, %v991
    %v993 = vrot.slane %v973, %v992
    %v994 = vlaneseq
    %v995 = vshrl.u32 %v994, 7
    %v996 = vsub.s32 4, %v995
    %v997 = vrot.slane %v973, %v996
    %v998 = vlaneseq
    %v999 = vshrl.u32 %v998, 7
    %v1000 = vsub.s32 5, %v999
    %v1001 = vrot.slane %v973, %v1000
    %v1002 = vlaneseq
    %v1003 = vshrl.u32 %v1002, 7
    %v1004 = vsub.s32 6, %v1003
    %v1005 = vrot.slane %v973, %v1004
    %v1006 = vlaneseq
    %v1007 = vshrl.u32 %v1006, 7
    %v1008 = vsub.s32 7, %v1007
    %v1009 = vrot.slane %v973, %v1008
    %v1010 = vlaneseq
    %v1011 = vshrl.u32 %v1010, 7
    %v1012 = vsub.s32 0, %v1011
    %v1013 = vrot.slane %v975, %v1012
    %v1014 = vlaneseq
    %v1015 = vshrl.u32 %v1014, 7
    %v1016 = vsub.s32 1, %v1015
    %v1017 = vrot.slane %v975, %v1016
    %v1018 = vlaneseq
    %v1019 = vshrl.u32 %v1018, 7
    %v1020 = vsub.s32 2, %v1019
    %v1021 = vrot.slane %v975, %v1020
    %v1022 = vlaneseq
    %v1023 = vshrl.u32 %v1022, 7
    %v1024 = vsub.s32 3, %v1023
    %v1025 = vrot.slane %v975, %v1024
    %v1038 = vmul.f32 %v969, %v981
    %v1039 = vmul.f32 %v968, %v985
    %v1040 = vmul.f32 %v967, %v989
    %v1041 = vmul.f32 %v966, %v993
    %v1042 = vmul.f32 %v965, %v997
    %v1043 = vmul.f32 %v964, %v1001
    %v1044 = vmul.f32 %v963, %v1005
    %v1045 = vmul.f32 %v962, %v1009
    %v1046 = vmul.f32 %v961, %v1013
    %v1047 = vmul.f32 %v960, %v1017
    %v1048 = vmul.f32 %v959, %v1021
    %v1049 = vmul.f32 %v958, %v1025
    %s1050 = scalar_lea.vmem %s1, 8
    %v1051 = vld [vmem:[%s1050] sm:$0xf]
    %v1052 = vpack.c.bf16 %v1038, %v1038
    %v1053 = vpack.c.bf16 %v1039, %v1039
    %v1054 = vpack.c.bf16 %v1040, %v1040
    %v1055 = vpack.c.bf16 %v1041, %v1041
    %v1056 = vpack.c.bf16 %v1042, %v1042
    %v1057 = vpack.c.bf16 %v1043, %v1043
    %v1058 = vpack.c.bf16 %v1044, %v1044
    %v1059 = vpack.c.bf16 %v1045, %v1045
    %v1060 = vpack.c.bf16 %v1046, %v1046
    %v1061 = vpack.c.bf16 %v1047, %v1047
    %v1062 = vpack.c.bf16 %v1048, %v1048
    %v1063 = vpack.c.bf16 %v1049, %v1049
    %v1065 = vsel %vm361, %v1051, 0
    %v1068 = vsel %vm365, %v1052, 0
    %v1071 = vsel %vm365, %v1053, 0
    %v1074 = vsel %vm365, %v1054, 0
    %v1077 = vsel %vm365, %v1055, 0
    %v1080 = vsel %vm365, %v1056, 0
    %v1083 = vsel %vm365, %v1057, 0
    %v1086 = vsel %vm365, %v1058, 0
    %v1089 = vsel %vm365, %v1059, 0
    %v1092 = vsel %vm365, %v1060, 0
    %v1095 = vsel %vm365, %v1061, 0
    %v1098 = vsel %vm365, %v1062, 0
    %v1101 = vsel %vm365, %v1063, 0
    %1103 = vmatprep.subr.bf16.mxu0 %v1071
    %1104 = vmatpush1.bf16.msra.mxu0 %v1068
    %1105 = vmatprep.subr.bf16.mxu0 0
    %1106 = vmatpush1.bf16.msra.mxu0 0
    %1107 = vmatprep.subr.bf16.mxu0 0
    %1108 = vmatpush1.bf16.msra.mxu0 0
    %1109 = vmatprep.subr.bf16.mxu0 0
    %1110 = vmatpush1.bf16.msra.mxu0 0
    %1111 = vmatprep.subr.bf16.mxu0 0
    %1112 = vmatpush1.bf16.msra.mxu0 0
    %1113 = vmatprep.subr.bf16.mxu0 0
    %1114 = vmatpush1.bf16.msra.mxu0 0
    %1115 = vmatprep.subr.bf16.mxu0 0
    %1116 = vmatpush1.bf16.msra.mxu0 0
    %1117 = vmatprep.subr.bf16.mxu0 0
    %1118 = vmatpush1.bf16.msra.mxu0 0
    %1119 = vmatprep.subr.bf16.mxu0 0
    %1120 = vmatpush1.bf16.msra.mxu0 0
    %1121 = vmatprep.subr.bf16.mxu0 0
    %1122 = vmatpush1.bf16.msra.mxu0 0
    %1123 = vmatprep.subr.bf16.mxu0 0
    %1124 = vmatpush1.bf16.msra.mxu0 0
    %1125 = vmatprep.subr.bf16.mxu0 0
    %1126 = vmatpush1.bf16.msra.mxu0 0
    %1127 = vmatprep.subr.bf16.mxu0 0
    %1128 = vmatpush1.bf16.msra.mxu0 0
    %1129 = vmatprep.subr.bf16.mxu0 0
    %1130 = vmatpush1.bf16.msra.mxu0 0
    %1131 = vmatprep.subr.bf16.mxu0 0
    %1132 = vmatpush1.bf16.msra.mxu0 0
    %1133 = vmatprep.subr.bf16.mxu0 0
    %1134 = vmatpush1.bf16.msra.mxu0 0
    %1135 = vmatprep.mubr.bf16.mxu0 0
    %1136 = vmatmul.mubr.bf16.gmra.mrb[0].mxu0 %v1065
    %v1137 = vpop.f32.mrb[0].mxu0
    %v1138 = vadd.f32 0.0, %v1137
    %v1139 = vpop.f32.mrb[0].mxu0
    %v1140 = vadd.f32 0.0, %v1139
    %v1141 = vpop.f32.mrb[0].mxu0
    %v1142 = vpop.f32.mrb[0].mxu0
    %1143 = vdwg.mxu0
    %1144 = vmatprep.subr.bf16.mxu0 %v1077
    %1145 = vmatpush1.bf16.msra.mxu0 %v1074
    %1146 = vmatprep.subr.bf16.mxu0 0
    %1147 = vmatpush1.bf16.msra.mxu0 0
    %1148 = vmatprep.subr.bf16.mxu0 0
    %1149 = vmatpush1.bf16.msra.mxu0 0
    %1150 = vmatprep.subr.bf16.mxu0 0
    %1151 = vmatpush1.bf16.msra.mxu0 0
    %1152 = vmatprep.subr.bf16.mxu0 0
    %1153 = vmatpush1.bf16.msra.mxu0 0
    %1154 = vmatprep.subr.bf16.mxu0 0
    %1155 = vmatpush1.bf16.msra.mxu0 0
    %1156 = vmatprep.subr.bf16.mxu0 0
    %1157 = vmatpush1.bf16.msra.mxu0 0
    %1158 = vmatprep.subr.bf16.mxu0 0
    %1159 = vmatpush1.bf16.msra.mxu0 0
    %1160 = vmatprep.subr.bf16.mxu0 0
    %1161 = vmatpush1.bf16.msra.mxu0 0
    %1162 = vmatprep.subr.bf16.mxu0 0
    %1163 = vmatpush1.bf16.msra.mxu0 0
    %1164 = vmatprep.subr.bf16.mxu0 0
    %1165 = vmatpush1.bf16.msra.mxu0 0
    %1166 = vmatprep.subr.bf16.mxu0 0
    %1167 = vmatpush1.bf16.msra.mxu0 0
    %1168 = vmatprep.subr.bf16.mxu0 0
    %1169 = vmatpush1.bf16.msra.mxu0 0
    %1170 = vmatprep.subr.bf16.mxu0 0
    %1171 = vmatpush1.bf16.msra.mxu0 0
    %1172 = vmatprep.subr.bf16.mxu0 0
    %1173 = vmatpush1.bf16.msra.mxu0 0
    %1174 = vmatprep.subr.bf16.mxu0 0
    %1175 = vmatpush1.bf16.msra.mxu0 0
    %1176 = vmatprep.mubr.bf16.mxu0 0
    %1177 = vmatmul.mubr.bf16.gmra.mrb[0].mxu0 %v1065
    %v1178 = vpop.f32.mrb[0].mxu0
    %v1179 = vadd.f32 0.0, %v1178
    %v1180 = vpop.f32.mrb[0].mxu0
    %v1181 = vadd.f32 0.0, %v1180
    %v1182 = vpop.f32.mrb[0].mxu0
    %v1183 = vpop.f32.mrb[0].mxu0
    %1184 = vdwg.mxu0
    %1185 = vmatprep.subr.bf16.mxu0 %v1083
    %1186 = vmatpush1.bf16.msra.mxu0 %v1080
    %1187 = vmatprep.subr.bf16.mxu0 0
    %1188 = vmatpush1.bf16.msra.mxu0 0
    %1189 = vmatprep.subr.bf16.mxu0 0
    %1190 = vmatpush1.bf16.msra.mxu0 0
    %1191 = vmatprep.subr.bf16.mxu0 0
    %1192 = vmatpush1.bf16.msra.mxu0 0
    %1193 = vmatprep.subr.bf16.mxu0 0
    %1194 = vmatpush1.bf16.msra.mxu0 0
    %1195 = vmatprep.subr.bf16.mxu0 0
    %1196 = vmatpush1.bf16.msra.mxu0 0
    %1197 = vmatprep.subr.bf16.mxu0 0
    %1198 = vmatpush1.bf16.msra.mxu0 0
    %1199 = vmatprep.subr.bf16.mxu0 0
    %1200 = vmatpush1.bf16.msra.mxu0 0
    %1201 = vmatprep.subr.bf16.mxu0 0
    %1202 = vmatpush1.bf16.msra.mxu0 0
    %1203 = vmatprep.subr.bf16.mxu0 0
    %1204 = vmatpush1.bf16.msra.mxu0 0
    %1205 = vmatprep.subr.bf16.mxu0 0
    %1206 = vmatpush1.bf16.msra.mxu0 0
    %1207 = vmatprep.subr.bf16.mxu0 0
    %1208 = vmatpush1.bf16.msra.mxu0 0
    %1209 = vmatprep.subr.bf16.mxu0 0
    %1210 = vmatpush1.bf16.msra.mxu0 0
    %1211 = vmatprep.subr.bf16.mxu0 0
    %1212 = vmatpush1.bf16.msra.mxu0 0
    %1213 = vmatprep.subr.bf16.mxu0 0
    %1214 = vmatpush1.bf16.msra.mxu0 0
    %1215 = vmatprep.subr.bf16.mxu0 0
    %1216 = vmatpush1.bf16.msra.mxu0 0
    %1217 = vmatprep.mubr.bf16.mxu0 0
    %1218 = vmatmul.mubr.bf16.gmra.mrb[0].mxu0 %v1065
    %v1219 = vpop.f32.mrb[0].mxu0
    %v1220 = vadd.f32 0.0, %v1219
    %v1221 = vpop.f32.mrb[0].mxu0
    %v1222 = vadd.f32 0.0, %v1221
    %v1223 = vpop.f32.mrb[0].mxu0
    %v1224 = vpop.f32.mrb[0].mxu0
    %1225 = vdwg.mxu0
    %1226 = vmatprep.subr.bf16.mxu0 %v1089
    %1227 = vmatpush1.bf16.msra.mxu0 %v1086
    %1228 = vmatprep.subr.bf16.mxu0 0
    %1229 = vmatpush1.bf16.msra.mxu0 0
    %1230 = vmatprep.subr.bf16.mxu0 0
    %1231 = vmatpush1.bf16.msra.mxu0 0
    %1232 = vmatprep.subr.bf16.mxu0 0
    %1233 = vmatpush1.bf16.msra.mxu0 0
    %1234 = vmatprep.subr.bf16.mxu0 0
    %1235 = vmatpush1.bf16.msra.mxu0 0
    %1236 = vmatprep.subr.bf16.mxu0 0
    %1237 = vmatpush1.bf16.msra.mxu0 0
    %1238 = vmatprep.subr.bf16.mxu0 0
    %1239 = vmatpush1.bf16.msra.mxu0 0
    %1240 = vmatprep.subr.bf16.mxu0 0
    %1241 = vmatpush1.bf16.msra.mxu0 0
    %1242 = vmatprep.subr.bf16.mxu0 0
    %1243 = vmatpush1.bf16.msra.mxu0 0
    %1244 = vmatprep.subr.bf16.mxu0 0
    %1245 = vmatpush1.bf16.msra.mxu0 0
    %1246 = vmatprep.subr.bf16.mxu0 0
    %1247 = vmatpush1.bf16.msra.mxu0 0
    %1248 = vmatprep.subr.bf16.mxu0 0
    %1249 = vmatpush1.bf16.msra.mxu0 0
    %1250 = vmatprep.subr.bf16.mxu0 0
    %1251 = vmatpush1.bf16.msra.mxu0 0
    %1252 = vmatprep.subr.bf16.mxu0 0
    %1253 = vmatpush1.bf16.msra.mxu0 0
    %1254 = vmatprep.subr.bf16.mxu0 0
    %1255 = vmatpush1.bf16.msra.mxu0 0
    %1256 = vmatprep.subr.bf16.mxu0 0
    %1257 = vmatpush1.bf16.msra.mxu0 0
    %1258 = vmatprep.mubr.bf16.mxu0 0
    %1259 = vmatmul.mubr.bf16.gmra.mrb[0].mxu0 %v1065
    %v1260 = vpop.f32.mrb[0].mxu0
    %v1261 = vadd.f32 0.0, %v1260
    %v1262 = vpop.f32.mrb[0].mxu0
    %v1263 = vadd.f32 0.0, %v1262
    %v1264 = vpop.f32.mrb[0].mxu0
    %v1265 = vpop.f32.mrb[0].mxu0
    %1266 = vdwg.mxu0
    %1267 = vmatprep.subr.bf16.mxu0 %v1095
    %1268 = vmatpush1.bf16.msra.mxu0 %v1092
    %1269 = vmatprep.subr.bf16.mxu0 0
    %1270 = vmatpush1.bf16.msra.mxu0 0
    %1271 = vmatprep.subr.bf16.mxu0 0
    %1272 = vmatpush1.bf16.msra.mxu0 0
    %1273 = vmatprep.subr.bf16.mxu0 0
    %1274 = vmatpush1.bf16.msra.mxu0 0
    %1275 = vmatprep.subr.bf16.mxu0 0
    %1276 = vmatpush1.bf16.msra.mxu0 0
    %1277 = vmatprep.subr.bf16.mxu0 0
    %1278 = vmatpush1.bf16.msra.mxu0 0
    %1279 = vmatprep.subr.bf16.mxu0 0
    %1280 = vmatpush1.bf16.msra.mxu0 0
    %1281 = vmatprep.subr.bf16.mxu0 0
    %1282 = vmatpush1.bf16.msra.mxu0 0
    %1283 = vmatprep.subr.bf16.mxu0 0
    %1284 = vmatpush1.bf16.msra.mxu0 0
    %1285 = vmatprep.subr.bf16.mxu0 0
    %1286 = vmatpush1.bf16.msra.mxu0 0
    %1287 = vmatprep.subr.bf16.mxu0 0
    %1288 = vmatpush1.bf16.msra.mxu0 0
    %1289 = vmatprep.subr.bf16.mxu0 0
    %1290 = vmatpush1.bf16.msra.mxu0 0
    %1291 = vmatprep.subr.bf16.mxu0 0
    %1292 = vmatpush1.bf16.msra.mxu0 0
    %1293 = vmatprep.subr.bf16.mxu0 0
    %1294 = vmatpush1.bf16.msra.mxu0 0
    %1295 = vmatprep.subr.bf16.mxu0 0
    %1296 = vmatpush1.bf16.msra.mxu0 0
    %1297 = vmatprep.subr.bf16.mxu0 0
    %1298 = vmatpush1.bf16.msra.mxu0 0
    %1299 = vmatprep.mubr.bf16.mxu0 0
    %1300 = vmatmul.mubr.bf16.gmra.mrb[0].mxu0 %v1065
    %v1301 = vpop.f32.mrb[0].mxu0
    %v1302 = vadd.f32 0.0, %v1301
    %v1303 = vpop.f32.mrb[0].mxu0
    %v1304 = vadd.f32 0.0, %v1303
    %v1305 = vpop.f32.mrb[0].mxu0
    %v1306 = vpop.f32.mrb[0].mxu0
    %1307 = vdwg.mxu0
    %1308 = vmatprep.subr.bf16.mxu0 %v1101
    %1309 = vmatpush1.bf16.msra.mxu0 %v1098
    %1310 = vmatprep.subr.bf16.mxu0 0
    %1311 = vmatpush1.bf16.msra.mxu0 0
    %1312 = vmatprep.subr.bf16.mxu0 0
    %1313 = vmatpush1.bf16.msra.mxu0 0
    %1314 = vmatprep.subr.bf16.mxu0 0
    %1315 = vmatpush1.bf16.msra.mxu0 0
    %1316 = vmatprep.subr.bf16.mxu0 0
    %1317 = vmatpush1.bf16.msra.mxu0 0
    %1318 = vmatprep.subr.bf16.mxu0 0
    %1319 = vmatpush1.bf16.msra.mxu0 0
    %1320 = vmatprep.subr.bf16.mxu0 0
    %1321 = vmatpush1.bf16.msra.mxu0 0
    %1322 = vmatprep.subr.bf16.mxu0 0
    %1323 = vmatpush1.bf16.msra.mxu0 0
    %1324 = vmatprep.subr.bf16.mxu0 0
    %1325 = vmatpush1.bf16.msra.mxu0 0
    %1326 = vmatprep.subr.bf16.mxu0 0
    %1327 = vmatpush1.bf16.msra.mxu0 0
    %1328 = vmatprep.subr.bf16.mxu0 0
    %1329 = vmatpush1.bf16.msra.mxu0 0
    %1330 = vmatprep.subr.bf16.mxu0 0
    %1331 = vmatpush1.bf16.msra.mxu0 0
    %1332 = vmatprep.subr.bf16.mxu0 0
    %1333 = vmatpush1.bf16.msra.mxu0 0
    %1334 = vmatprep.subr.bf16.mxu0 0
    %1335 = vmatpush1.bf16.msra.mxu0 0
    %1336 = vmatprep.subr.bf16.mxu0 0
    %1337 = vmatpush1.bf16.msra.mxu0 0
    %1338 = vmatprep.subr.bf16.mxu0 0
    %1339 = vmatpush1.bf16.msra.mxu0 0
    %1340 = vmatprep.mubr.bf16.mxu0 0
    %1341 = vmatmul.mubr.bf16.gmra.mrb[0].mxu0 %v1065
    %v1342 = vpop.f32.mrb[0].mxu0
    %v1343 = vadd.f32 0.0, %v1342
    %v1344 = vpop.f32.mrb[0].mxu0
    %v1345 = vadd.f32 0.0, %v1344
    %v1346 = vpop.f32.mrb[0].mxu0
    %v1347 = vpop.f32.mrb[0].mxu0
    %1348 = vdwg.mxu0
    %v1349 = vadd.f32 %v722, %v1138
    %v1350 = vadd.f32 %v724, %v1140
    %v1351 = vadd.f32 %v763, %v1179
    %v1352 = vadd.f32 %v765, %v1181
    %v1353 = vadd.f32 %v804, %v1220
    %v1354 = vadd.f32 %v806, %v1222
    %v1355 = vadd.f32 %v845, %v1261
    %v1356 = vadd.f32 %v847, %v1263
    %v1357 = vadd.f32 %v886, %v1302
    %v1358 = vadd.f32 %v888, %v1304
    %v1359 = vadd.f32 %v927, %v1343
    %v1360 = vadd.f32 %v929, %v1345
    %1361 = vrot.lane.b32.xlu0 %v87, 65
    %v1362 = vpop.permute.xlu0 %1361
    %1363 = vrot.lane.b32.xlu0 %v88, 65
    %v1364 = vpop.permute.xlu0 %1363
    %1365 = vrot.lane.b32.xlu0 %v89, 65
    %v1366 = vpop.permute.xlu0 %1365
    %1367 = vrot.lane.b32.xlu0 %v90, 65
    %v1368 = vpop.permute.xlu0 %1367
    %1369 = vrot.lane.b32.xlu0 %v91, 65
    %v1370 = vpop.permute.xlu0 %1369
    %1371 = vrot.lane.b32.xlu0 %v92, 65
    %v1372 = vpop.permute.xlu0 %1371
    %1373 = vrot.lane.b32.xlu0 %v93, 65
    %v1374 = vpop.permute.xlu0 %1373
    %1375 = vrot.lane.b32.xlu0 %v94, 65
    %v1376 = vpop.permute.xlu0 %1375
    %1377 = vrot.lane.b32.xlu0 %v95, 65
    %v1378 = vpop.permute.xlu0 %1377
    %1379 = vrot.lane.b32.xlu0 %v96, 65
    %v1380 = vpop.permute.xlu0 %1379
    %1381 = vrot.lane.b32.xlu0 %v97, 65
    %v1382 = vpop.permute.xlu0 %1381
    %1383 = vrot.lane.b32.xlu0 %v98, 65
    %v1384 = vpop.permute.xlu0 %1383
    %vm1385 = vcmp.lt.s32.totalorder %v124, 65
    %v1386 = vsel %vm1385, %v1382, %v1384
    %v1387 = vsel %vm1385, %v1380, %v1382
    %v1388 = vsel %vm1385, %v1378, %v1380
    %v1389 = vsel %vm1385, %v1376, %v1378
    %v1390 = vsel %vm1385, %v1374, %v1376
    %v1391 = vsel %vm1385, %v1372, %v1374
    %v1392 = vsel %vm1385, %v1370, %v1372
    %v1393 = vsel %vm1385, %v1368, %v1370
    %v1394 = vsel %vm1385, %v1366, %v1368
    %v1395 = vsel %vm1385, %v1364, %v1366
    %v1396 = vsel %vm1385, %v1362, %v1364
    %v1397 = vsel %vm1385, %v1384, %v1362
    %s1398 = scalar_lea.vmem [#allocation3], 3
    %v1399 = vld [vmem:[%s1398] ss:$8 sm:$0xf]
    %v1400 = vld [vmem:[%s1398] ss:$8 sm:$0xf0]
    %v1401 = vor.u32 %v1399, %v1400
    %s1402 = scalar_lea.vmem [#allocation3], 67
    %v1403 = vld [vmem:[%s1402] ss:$8 sm:$0xf]
    %v1406 = vlaneseq
    %v1407 = vshrl.u32 %v1406, 7
    %v1408 = vsub.s32 0, %v1407
    %v1409 = vrot.slane %v1401, %v1408
    %v1410 = vlaneseq
    %v1411 = vshrl.u32 %v1410, 7
    %v1412 = vsub.s32 1, %v1411
    %v1413 = vrot.slane %v1401, %v1412
    %v1414 = vlaneseq
    %v1415 = vshrl.u32 %v1414, 7
    %v1416 = vsub.s32 2, %v1415
    %v1417 = vrot.slane %v1401, %v1416
    %v1418 = vlaneseq
    %v1419 = vshrl.u32 %v1418, 7
    %v1420 = vsub.s32 3, %v1419
    %v1421 = vrot.slane %v1401, %v1420
    %v1422 = vlaneseq
    %v1423 = vshrl.u32 %v1422, 7
    %v1424 = vsub.s32 4, %v1423
    %v1425 = vrot.slane %v1401, %v1424
    %v1426 = vlaneseq
    %v1427 = vshrl.u32 %v1426, 7
    %v1428 = vsub.s32 5, %v1427
    %v1429 = vrot.slane %v1401, %v1428
    %v1430 = vlaneseq
    %v1431 = vshrl.u32 %v1430, 7
    %v1432 = vsub.s32 6, %v1431
    %v1433 = vrot.slane %v1401, %v1432
    %v1434 = vlaneseq
    %v1435 = vshrl.u32 %v1434, 7
    %v1436 = vsub.s32 7, %v1435
    %v1437 = vrot.slane %v1401, %v1436
    %v1438 = vlaneseq
    %v1439 = vshrl.u32 %v1438, 7
    %v1440 = vsub.s32 0, %v1439
    %v1441 = vrot.slane %v1403, %v1440
    %v1442 = vlaneseq
    %v1443 = vshrl.u32 %v1442, 7
    %v1444 = vsub.s32 1, %v1443
    %v1445 = vrot.slane %v1403, %v1444
    %v1446 = vlaneseq
    %v1447 = vshrl.u32 %v1446, 7
    %v1448 = vsub.s32 2, %v1447
    %v1449 = vrot.slane %v1403, %v1448
    %v1450 = vlaneseq
    %v1451 = vshrl.u32 %v1450, 7
    %v1452 = vsub.s32 3, %v1451
    %v1453 = vrot.slane %v1403, %v1452
    %v1466 = vmul.f32 %v1397, %v1409
    %v1467 = vmul.f32 %v1396, %v1413
    %v1468 = vmul.f32 %v1395, %v1417
    %v1469 = vmul.f32 %v1394, %v1421
    %v1470 = vmul.f32 %v1393, %v1425
    %v1471 = vmul.f32 %v1392, %v1429
    %v1472 = vmul.f32 %v1391, %v1433
    %v1473 = vmul.f32 %v1390, %v1437
    %v1474 = vmul.f32 %v1389, %v1441
    %v1475 = vmul.f32 %v1388, %v1445
    %v1476 = vmul.f32 %v1387, %v1449
    %v1477 = vmul.f32 %v1386, %v1453
    %s1478 = scalar_lea.vmem %s1, 12
    %v1479 = vld [vmem:[%s1478] sm:$0xf]
    %v1480 = vpack.c.bf16 %v1466, %v1466
    %v1481 = vpack.c.bf16 %v1467, %v1467
    %v1482 = vpack.c.bf16 %v1468, %v1468
    %v1483 = vpack.c.bf16 %v1469, %v1469
    %v1484 = vpack.c.bf16 %v1470, %v1470
    %v1485 = vpack.c.bf16 %v1471, %v1471
    %v1486 = vpack.c.bf16 %v1472, %v1472
    %v1487 = vpack.c.bf16 %v1473, %v1473
    %v1488 = vpack.c.bf16 %v1474, %v1474
    %v1489 = vpack.c.bf16 %v1475, %v1475
    %v1490 = vpack.c.bf16 %v1476, %v1476
    %v1491 = vpack.c.bf16 %v1477, %v1477
    %v1493 = vsel %vm361, %v1479, 0
    %v1496 = vsel %vm365, %v1480, 0
    %v1499 = vsel %vm365, %v1481, 0
    %v1502 = vsel %vm365, %v1482, 0
    %v1505 = vsel %vm365, %v1483, 0
    %v1508 = vsel %vm365, %v1484, 0
    %v1511 = vsel %vm365, %v1485, 0
    %v1514 = vsel %vm365, %v1486, 0
    %v1517 = vsel %vm365, %v1487, 0
    %v1520 = vsel %vm365, %v1488, 0
    %v1523 = vsel %vm365, %v1489, 0
    %v1526 = vsel %vm365, %v1490, 0
    %v1529 = vsel %vm365, %v1491, 0
    %1531 = vmatprep.subr.bf16.mxu0 %v1499
    %1532 = vmatpush1.bf16.msra.mxu0 %v1496
    %1533 = vmatprep.subr.bf16.mxu0 0
    %1534 = vmatpush1.bf16.msra.mxu0 0
    %1535 = vmatprep.subr.bf16.mxu0 0
    %1536 = vmatpush1.bf16.msra.mxu0 0
    %1537 = vmatprep.subr.bf16.mxu0 0
    %1538 = vmatpush1.bf16.msra.mxu0 0
    %1539 = vmatprep.subr.bf16.mxu0 0
    %1540 = vmatpush1.bf16.msra.mxu0 0
    %1541 = vmatprep.subr.bf16.mxu0 0
    %1542 = vmatpush1.bf16.msra.mxu0 0
    %1543 = vmatprep.subr.bf16.mxu0 0
    %1544 = vmatpush1.bf16.msra.mxu0 0
    %1545 = vmatprep.subr.bf16.mxu0 0
    %1546 = vmatpush1.bf16.msra.mxu0 0
    %1547 = vmatprep.subr.bf16.mxu0 0
    %1548 = vmatpush1.bf16.msra.mxu0 0
    %1549 = vmatprep.subr.bf16.mxu0 0
    %1550 = vmatpush1.bf16.msra.mxu0 0
    %1551 = vmatprep.subr.bf16.mxu0 0
    %1552 = vmatpush1.bf16.msra.mxu0 0
    %1553 = vmatprep.subr.bf16.mxu0 0
    %1554 = vmatpush1.bf16.msra.mxu0 0
    %1555 = vmatprep.subr.bf16.mxu0 0
    %1556 = vmatpush1.bf16.msra.mxu0 0
    %1557 = vmatprep.subr.bf16.mxu0 0
    %1558 = vmatpush1.bf16.msra.mxu0 0
    %1559 = vmatprep.subr.bf16.mxu0 0
    %1560 = vmatpush1.bf16.msra.mxu0 0
    %1561 = vmatprep.subr.bf16.mxu0 0
    %1562 = vmatpush1.bf16.msra.mxu0 0
    %1563 = vmatprep.mubr.bf16.mxu0 0
    %1564 = vmatmul.mubr.bf16.gmra.mrb[0].mxu0 %v1493
    %v1565 = vpop.f32.mrb[0].mxu0
    %v1566 = vadd.f32 0.0, %v1565
    %v1567 = vpop.f32.mrb[0].mxu0
    %v1568 = vadd.f32 0.0, %v1567
    %v1569 = vpop.f32.mrb[0].mxu0
    %v1570 = vpop.f32.mrb[0].mxu0
    %1571 = vdwg.mxu0
    %1572 = vmatprep.subr.bf16.mxu0 %v1505
    %1573 = vmatpush1.bf16.msra.mxu0 %v1502
    %1574 = vmatprep.subr.bf16.mxu0 0
    %1575 = vmatpush1.bf16.msra.mxu0 0
    %1576 = vmatprep.subr.bf16.mxu0 0
    %1577 = vmatpush1.bf16.msra.mxu0 0
    %1578 = vmatprep.subr.bf16.mxu0 0
    %1579 = vmatpush1.bf16.msra.mxu0 0
    %1580 = vmatprep.subr.bf16.mxu0 0
    %1581 = vmatpush1.bf16.msra.mxu0 0
    %1582 = vmatprep.subr.bf16.mxu0 0
    %1583 = vmatpush1.bf16.msra.mxu0 0
    %1584 = vmatprep.subr.bf16.mxu0 0
    %1585 = vmatpush1.bf16.msra.mxu0 0
    %1586 = vmatprep.subr.bf16.mxu0 0
    %1587 = vmatpush1.bf16.msra.mxu0 0
    %1588 = vmatprep.subr.bf16.mxu0 0
    %1589 = vmatpush1.bf16.msra.mxu0 0
    %1590 = vmatprep.subr.bf16.mxu0 0
    %1591 = vmatpush1.bf16.msra.mxu0 0
    %1592 = vmatprep.subr.bf16.mxu0 0
    %1593 = vmatpush1.bf16.msra.mxu0 0
    %1594 = vmatprep.subr.bf16.mxu0 0
    %1595 = vmatpush1.bf16.msra.mxu0 0
    %1596 = vmatprep.subr.bf16.mxu0 0
    %1597 = vmatpush1.bf16.msra.mxu0 0
    %1598 = vmatprep.subr.bf16.mxu0 0
    %1599 = vmatpush1.bf16.msra.mxu0 0
    %1600 = vmatprep.subr.bf16.mxu0 0
    %1601 = vmatpush1.bf16.msra.mxu0 0
    %1602 = vmatprep.subr.bf16.mxu0 0
    %1603 = vmatpush1.bf16.msra.mxu0 0
    %1604 = vmatprep.mubr.bf16.mxu0 0
    %1605 = vmatmul.mubr.bf16.gmra.mrb[0].mxu0 %v1493
    %v1606 = vpop.f32.mrb[0].mxu0
    %v1607 = vadd.f32 0.0, %v1606
    %v1608 = vpop.f32.mrb[0].mxu0
    %v1609 = vadd.f32 0.0, %v1608
    %v1610 = vpop.f32.mrb[0].mxu0
    %v1611 = vpop.f32.mrb[0].mxu0
    %1612 = vdwg.mxu0
    %1613 = vmatprep.subr.bf16.mxu0 %v1511
    %1614 = vmatpush1.bf16.msra.mxu0 %v1508
    %1615 = vmatprep.subr.bf16.mxu0 0
    %1616 = vmatpush1.bf16.msra.mxu0 0
    %1617 = vmatprep.subr.bf16.mxu0 0
    %1618 = vmatpush1.bf16.msra.mxu0 0
    %1619 = vmatprep.subr.bf16.mxu0 0
    %1620 = vmatpush1.bf16.msra.mxu0 0
    %1621 = vmatprep.subr.bf16.mxu0 0
    %1622 = vmatpush1.bf16.msra.mxu0 0
    %1623 = vmatprep.subr.bf16.mxu0 0
    %1624 = vmatpush1.bf16.msra.mxu0 0
    %1625 = vmatprep.subr.bf16.mxu0 0
    %1626 = vmatpush1.bf16.msra.mxu0 0
    %1627 = vmatprep.subr.bf16.mxu0 0
    %1628 = vmatpush1.bf16.msra.mxu0 0
    %1629 = vmatprep.subr.bf16.mxu0 0
    %1630 = vmatpush1.bf16.msra.mxu0 0
    %1631 = vmatprep.subr.bf16.mxu0 0
    %1632 = vmatpush1.bf16.msra.mxu0 0
    %1633 = vmatprep.subr.bf16.mxu0 0
    %1634 = vmatpush1.bf16.msra.mxu0 0
    %1635 = vmatprep.subr.bf16.mxu0 0
    %1636 = vmatpush1.bf16.msra.mxu0 0
    %1637 = vmatprep.subr.bf16.mxu0 0
    %1638 = vmatpush1.bf16.msra.mxu0 0
    %1639 = vmatprep.subr.bf16.mxu0 0
    %1640 = vmatpush1.bf16.msra.mxu0 0
    %1641 = vmatprep.subr.bf16.mxu0 0
    %1642 = vmatpush1.bf16.msra.mxu0 0
    %1643 = vmatprep.subr.bf16.mxu0 0
    %1644 = vmatpush1.bf16.msra.mxu0 0
    %1645 = vmatprep.mubr.bf16.mxu0 0
    %1646 = vmatmul.mubr.bf16.gmra.mrb[0].mxu0 %v1493
    %v1647 = vpop.f32.mrb[0].mxu0
    %v1648 = vadd.f32 0.0, %v1647
    %v1649 = vpop.f32.mrb[0].mxu0
    %v1650 = vadd.f32 0.0, %v1649
    %v1651 = vpop.f32.mrb[0].mxu0
    %v1652 = vpop.f32.mrb[0].mxu0
    %1653 = vdwg.mxu0
    %1654 = vmatprep.subr.bf16.mxu0 %v1517
    %1655 = vmatpush1.bf16.msra.mxu0 %v1514
    %1656 = vmatprep.subr.bf16.mxu0 0
    %1657 = vmatpush1.bf16.msra.mxu0 0
    %1658 = vmatprep.subr.bf16.mxu0 0
    %1659 = vmatpush1.bf16.msra.mxu0 0
    %1660 = vmatprep.subr.bf16.mxu0 0
    %1661 = vmatpush1.bf16.msra.mxu0 0
    %1662 = vmatprep.subr.bf16.mxu0 0
    %1663 = vmatpush1.bf16.msra.mxu0 0
    %1664 = vmatprep.subr.bf16.mxu0 0
    %1665 = vmatpush1.bf16.msra.mxu0 0
    %1666 = vmatprep.subr.bf16.mxu0 0
    %1667 = vmatpush1.bf16.msra.mxu0 0
    %1668 = vmatprep.subr.bf16.mxu0 0
    %1669 = vmatpush1.bf16.msra.mxu0 0
    %1670 = vmatprep.subr.bf16.mxu0 0
    %1671 = vmatpush1.bf16.msra.mxu0 0
    %1672 = vmatprep.subr.bf16.mxu0 0
    %1673 = vmatpush1.bf16.msra.mxu0 0
    %1674 = vmatprep.subr.bf16.mxu0 0
    %1675 = vmatpush1.bf16.msra.mxu0 0
    %1676 = vmatprep.subr.bf16.mxu0 0
    %1677 = vmatpush1.bf16.msra.mxu0 0
    %1678 = vmatprep.subr.bf16.mxu0 0
    %1679 = vmatpush1.bf16.msra.mxu0 0
    %1680 = vmatprep.subr.bf16.mxu0 0
    %1681 = vmatpush1.bf16.msra.mxu0 0
    %1682 = vmatprep.subr.bf16.mxu0 0
    %1683 = vmatpush1.bf16.msra.mxu0 0
    %1684 = vmatprep.subr.bf16.mxu0 0
    %1685 = vmatpush1.bf16.msra.mxu0 0
    %1686 = vmatprep.mubr.bf16.mxu0 0
    %1687 = vmatmul.mubr.bf16.gmra.mrb[0].mxu0 %v1493
    %v1688 = vpop.f32.mrb[0].mxu0
    %v1689 = vadd.f32 0.0, %v1688
    %v1690 = vpop.f32.mrb[0].mxu0
    %v1691 = vadd.f32 0.0, %v1690
    %v1692 = vpop.f32.mrb[0].mxu0
    %v1693 = vpop.f32.mrb[0].mxu0
    %1694 = vdwg.mxu0
    %1695 = vmatprep.subr.bf16.mxu0 %v1523
    %1696 = vmatpush1.bf16.msra.mxu0 %v1520
    %1697 = vmatprep.subr.bf16.mxu0 0
    %1698 = vmatpush1.bf16.msra.mxu0 0
    %1699 = vmatprep.subr.bf16.mxu0 0
    %1700 = vmatpush1.bf16.msra.mxu0 0
    %1701 = vmatprep.subr.bf16.mxu0 0
    %1702 = vmatpush1.bf16.msra.mxu0 0
    %1703 = vmatprep.subr.bf16.mxu0 0
    %1704 = vmatpush1.bf16.msra.mxu0 0
    %1705 = vmatprep.subr.bf16.mxu0 0
    %1706 = vmatpush1.bf16.msra.mxu0 0
    %1707 = vmatprep.subr.bf16.mxu0 0
    %1708 = vmatpush1.bf16.msra.mxu0 0
    %1709 = vmatprep.subr.bf16.mxu0 0
    %1710 = vmatpush1.bf16.msra.mxu0 0
    %1711 = vmatprep.subr.bf16.mxu0 0
    %1712 = vmatpush1.bf16.msra.mxu0 0
    %1713 = vmatprep.subr.bf16.mxu0 0
    %1714 = vmatpush1.bf16.msra.mxu0 0
    %1715 = vmatprep.subr.bf16.mxu0 0
    %1716 = vmatpush1.bf16.msra.mxu0 0
    %1717 = vmatprep.subr.bf16.mxu0 0
    %1718 = vmatpush1.bf16.msra.mxu0 0
    %1719 = vmatprep.subr.bf16.mxu0 0
    %1720 = vmatpush1.bf16.msra.mxu0 0
    %1721 = vmatprep.subr.bf16.mxu0 0
    %1722 = vmatpush1.bf16.msra.mxu0 0
    %1723 = vmatprep.subr.bf16.mxu0 0
    %1724 = vmatpush1.bf16.msra.mxu0 0
    %1725 = vmatprep.subr.bf16.mxu0 0
    %1726 = vmatpush1.bf16.msra.mxu0 0
    %1727 = vmatprep.mubr.bf16.mxu0 0
    %1728 = vmatmul.mubr.bf16.gmra.mrb[0].mxu0 %v1493
    %v1729 = vpop.f32.mrb[0].mxu0
    %v1730 = vadd.f32 0.0, %v1729
    %v1731 = vpop.f32.mrb[0].mxu0
    %v1732 = vadd.f32 0.0, %v1731
    %v1733 = vpop.f32.mrb[0].mxu0
    %v1734 = vpop.f32.mrb[0].mxu0
    %1735 = vdwg.mxu0
    %1736 = vmatprep.subr.bf16.mxu0 %v1529
    %1737 = vmatpush1.bf16.msra.mxu0 %v1526
    %1738 = vmatprep.subr.bf16.mxu0 0
    %1739 = vmatpush1.bf16.msra.mxu0 0
    %1740 = vmatprep.subr.bf16.mxu0 0
    %1741 = vmatpush1.bf16.msra.mxu0 0
    %1742 = vmatprep.subr.bf16.mxu0 0
    %1743 = vmatpush1.bf16.msra.mxu0 0
    %1744 = vmatprep.subr.bf16.mxu0 0
    %1745 = vmatpush1.bf16.msra.mxu0 0
    %1746 = vmatprep.subr.bf16.mxu0 0
    %1747 = vmatpush1.bf16.msra.mxu0 0
    %1748 = vmatprep.subr.bf16.mxu0 0
    %1749 = vmatpush1.bf16.msra.mxu0 0
    %1750 = vmatprep.subr.bf16.mxu0 0
    %1751 = vmatpush1.bf16.msra.mxu0 0
    %1752 = vmatprep.subr.bf16.mxu0 0
    %1753 = vmatpush1.bf16.msra.mxu0 0
    %1754 = vmatprep.subr.bf16.mxu0 0
    %1755 = vmatpush1.bf16.msra.mxu0 0
    %1756 = vmatprep.subr.bf16.mxu0 0
    %1757 = vmatpush1.bf16.msra.mxu0 0
    %1758 = vmatprep.subr.bf16.mxu0 0
    %1759 = vmatpush1.bf16.msra.mxu0 0
    %1760 = vmatprep.subr.bf16.mxu0 0
    %1761 = vmatpush1.bf16.msra.mxu0 0
    %1762 = vmatprep.subr.bf16.mxu0 0
    %1763 = vmatpush1.bf16.msra.mxu0 0
    %1764 = vmatprep.subr.bf16.mxu0 0
    %1765 = vmatpush1.bf16.msra.mxu0 0
    %1766 = vmatprep.subr.bf16.mxu0 0
    %1767 = vmatpush1.bf16.msra.mxu0 0
    %1768 = vmatprep.mubr.bf16.mxu0 0
    %1769 = vmatmul.mubr.bf16.gmra.mrb[0].mxu0 %v1493
    %v1770 = vpop.f32.mrb[0].mxu0
    %v1771 = vadd.f32 0.0, %v1770
    %v1772 = vpop.f32.mrb[0].mxu0
    %v1773 = vadd.f32 0.0, %v1772
    %v1774 = vpop.f32.mrb[0].mxu0
    %v1775 = vpop.f32.mrb[0].mxu0
    %1776 = vdwg.mxu0
    %v1777 = vadd.f32 %v1349, %v1566
    %v1778 = vadd.f32 %v1350, %v1568
    %v1779 = vadd.f32 %v1351, %v1607
    %v1780 = vadd.f32 %v1352, %v1609
    %v1781 = vadd.f32 %v1353, %v1648
    %v1782 = vadd.f32 %v1354, %v1650
    %v1783 = vadd.f32 %v1355, %v1689
    %v1784 = vadd.f32 %v1356, %v1691
    %v1785 = vadd.f32 %v1357, %v1730
    %v1786 = vadd.f32 %v1358, %v1732
    %v1787 = vadd.f32 %v1359, %v1771
    %v1788 = vadd.f32 %v1360, %v1773
    %1789 = vrot.lane.b32.xlu0 %v87, 64
    %v1790 = vpop.permute.xlu0 %1789
    %1791 = vrot.lane.b32.xlu0 %v88, 64
    %v1792 = vpop.permute.xlu0 %1791
    %1793 = vrot.lane.b32.xlu0 %v89, 64
    %v1794 = vpop.permute.xlu0 %1793
    %1795 = vrot.lane.b32.xlu0 %v90, 64
    %v1796 = vpop.permute.xlu0 %1795
    %1797 = vrot.lane.b32.xlu0 %v91, 64
    %v1798 = vpop.permute.xlu0 %1797
    %1799 = vrot.lane.b32.xlu0 %v92, 64
    %v1800 = vpop.permute.xlu0 %1799
    %1801 = vrot.lane.b32.xlu0 %v93, 64
    %v1802 = vpop.permute.xlu0 %1801
    %1803 = vrot.lane.b32.xlu0 %v94, 64
    %v1804 = vpop.permute.xlu0 %1803
    %1805 = vrot.lane.b32.xlu0 %v95, 64
    %v1806 = vpop.permute.xlu0 %1805
    %1807 = vrot.lane.b32.xlu0 %v96, 64
    %v1808 = vpop.permute.xlu0 %1807
    %1809 = vrot.lane.b32.xlu0 %v97, 64
    %v1810 = vpop.permute.xlu0 %1809
    %1811 = vrot.lane.b32.xlu0 %v98, 64
    %v1812 = vpop.permute.xlu0 %1811
    %vm1813 = vcmp.lt.s32.totalorder %v124, 64
    %v1814 = vsel %vm1813, %v1810, %v1812
    %v1815 = vsel %vm1813, %v1808, %v1810
    %v1816 = vsel %vm1813, %v1806, %v1808
    %v1817 = vsel %vm1813, %v1804, %v1806
    %v1818 = vsel %vm1813, %v1802, %v1804
    %v1819 = vsel %vm1813, %v1800, %v1802
    %v1820 = vsel %vm1813, %v1798, %v1800
    %v1821 = vsel %vm1813, %v1796, %v1798
    %v1822 = vsel %vm1813, %v1794, %v1796
    %v1823 = vsel %vm1813, %v1792, %v1794
    %v1824 = vsel %vm1813, %v1790, %v1792
    %v1825 = vsel %vm1813, %v1812, %v1790
    %s1826 = scalar_lea.vmem [#allocation3], 4
    %v1827 = vld [vmem:[%s1826] ss:$8 sm:$0xf]
    %v1828 = vld [vmem:[%s1826] ss:$8 sm:$0xf0]
    %v1829 = vor.u32 %v1827, %v1828
    %s1830 = scalar_lea.vmem [#allocation3], 68
    %v1831 = vld [vmem:[%s1830] ss:$8 sm:$0xf]
    %v1834 = vlaneseq
    %v1835 = vshrl.u32 %v1834, 7
    %v1836 = vsub.s32 0, %v1835
    %v1837 = vrot.slane %v1829, %v1836
    %v1838 = vlaneseq
    %v1839 = vshrl.u32 %v1838, 7
    %v1840 = vsub.s32 1, %v1839
    %v1841 = vrot.slane %v1829, %v1840
    %v1842 = vlaneseq
    %v1843 = vshrl.u32 %v1842, 7
    %v1844 = vsub.s32 2, %v1843
    %v1845 = vrot.slane %v1829, %v1844
    %v1846 = vlaneseq
    %v1847 = vshrl.u32 %v1846, 7
    %v1848 = vsub.s32 3, %v1847
    %v1849 = vrot.slane %v1829, %v1848
    %v1850 = vlaneseq
    %v1851 = vshrl.u32 %v1850, 7
    %v1852 = vsub.s32 4, %v1851
    %v1853 = vrot.slane %v1829, %v1852
    %v1854 = vlaneseq
    %v1855 = vshrl.u32 %v1854, 7
    %v1856 = vsub.s32 5, %v1855
    %v1857 = vrot.slane %v1829, %v1856
    %v1858 = vlaneseq
    %v1859 = vshrl.u32 %v1858, 7
    %v1860 = vsub.s32 6, %v1859
    %v1861 = vrot.slane %v1829, %v1860
    %v1862 = vlaneseq
    %v1863 = vshrl.u32 %v1862, 7
    %v1864 = vsub.s32 7, %v1863
    %v1865 = vrot.slane %v1829, %v1864
    %v1866 = vlaneseq
    %v1867 = vshrl.u32 %v1866, 7
    %v1868 = vsub.s32 0, %v1867
    %v1869 = vrot.slane %v1831, %v1868
    %v1870 = vlaneseq
    %v1871 = vshrl.u32 %v1870, 7
    %v1872 = vsub.s32 1, %v1871
    %v1873 = vrot.slane %v1831, %v1872
    %v1874 = vlaneseq
    %v1875 = vshrl.u32 %v1874, 7
    %v1876 = vsub.s32 2, %v1875
    %v1877 = vrot.slane %v1831, %v1876
    %v1878 = vlaneseq
    %v1879 = vshrl.u32 %v1878, 7
    %v1880 = vsub.s32 3, %v1879
    %v1881 = vrot.slane %v1831, %v1880
    %v1894 = vmul.f32 %v1825, %v1837
    %v1895 = vmul.f32 %v1824, %v1841
    %v1896 = vmul.f32 %v1823, %v1845
    %v1897 = vmul.f32 %v1822, %v1849
    %v1898 = vmul.f32 %v1821, %v1853
    %v1899 = vmul.f32 %v1820, %v1857
    %v1900 = vmul.f32 %v1819, %v1861
    %v1901 = vmul.f32 %v1818, %v1865
    %v1902 = vmul.f32 %v1817, %v1869
    %v1903 = vmul.f32 %v1816, %v1873
    %v1904 = vmul.f32 %v1815, %v1877
    %v1905 = vmul.f32 %v1814, %v1881
    %s1906 = scalar_lea.vmem %s1, 16
    %v1907 = vld [vmem:[%s1906] sm:$0xf]
    %v1908 = vpack.c.bf16 %v1894, %v1894
    %v1909 = vpack.c.bf16 %v1895, %v1895
    %v1910 = vpack.c.bf16 %v1896, %v1896
    %v1911 = vpack.c.bf16 %v1897, %v1897
    %v1912 = vpack.c.bf16 %v1898, %v1898
    %v1913 = vpack.c.bf16 %v1899, %v1899
    %v1914 = vpack.c.bf16 %v1900, %v1900
    %v1915 = vpack.c.bf16 %v1901, %v1901
    %v1916 = vpack.c.bf16 %v1902, %v1902
    %v1917 = vpack.c.bf16 %v1903, %v1903
    %v1918 = vpack.c.bf16 %v1904, %v1904
    %v1919 = vpack.c.bf16 %v1905, %v1905
    %v1921 = vsel %vm361, %v1907, 0
    %v1924 = vsel %vm365, %v1908, 0
    %v1927 = vsel %vm365, %v1909, 0
    %v1930 = vsel %vm365, %v1910, 0
    %v1933 = vsel %vm365, %v1911, 0
    %v1936 = vsel %vm365, %v1912, 0
    %v1939 = vsel %vm365, %v1913, 0
    %v1942 = vsel %vm365, %v1914, 0
    %v1945 = vsel %vm365, %v1915, 0
    %v1948 = vsel %vm365, %v1916, 0
    %v1951 = vsel %vm365, %v1917, 0
    %v1954 = vsel %vm365, %v1918, 0
    %v1957 = vsel %vm365, %v1919, 0
    %1959 = vmatprep.subr.bf16.mxu0 %v1927
    %1960 = vmatpush1.bf16.msra.mxu0 %v1924
    %1961 = vmatprep.subr.bf16.mxu0 0
    %1962 = vmatpush1.bf16.msra.mxu0 0
    %1963 = vmatprep.subr.bf16.mxu0 0
    %1964 = vmatpush1.bf16.msra.mxu0 0
    %1965 = vmatprep.subr.bf16.mxu0 0
    %1966 = vmatpush1.bf16.msra.mxu0 0
    %1967 = vmatprep.subr.bf16.mxu0 0
    %1968 = vmatpush1.bf16.msra.mxu0 0
    %1969 = vmatprep.subr.bf16.mxu0 0
    %1970 = vmatpush1.bf16.msra.mxu0 0
    %1971 = vmatprep.subr.bf16.mxu0 0
    %1972 = vmatpush1.bf16.msra.mxu0 0
    %1973 = vmatprep.subr.bf16.mxu0 0
    %1974 = vmatpush1.bf16.msra.mxu0 0
    %1975 = vmatprep.subr.bf16.mxu0 0
    %1976 = vmatpush1.bf16.msra.mxu0 0
    %1977 = vmatprep.subr.bf16.mxu0 0
    %1978 = vmatpush1.bf16.msra.mxu0 0
    %1979 = vmatprep.subr.bf16.mxu0 0
    %1980 = vmatpush1.bf16.msra.mxu0 0
    %1981 = vmatprep.subr.bf16.mxu0 0
    %1982 = vmatpush1.bf16.msra.mxu0 0
    %1983 = vmatprep.subr.bf16.mxu0 0
    %1984 = vmatpush1.bf16.msra.mxu0 0
    %1985 = vmatprep.subr.bf16.mxu0 0
    %1986 = vmatpush1.bf16.msra.mxu0 0
    %1987 = vmatprep.subr.bf16.mxu0 0
    %1988 = vmatpush1.bf16.msra.mxu0 0
    %1989 = vmatprep.subr.bf16.mxu0 0
    %1990 = vmatpush1.bf16.msra.mxu0 0
    %1991 = vmatprep.mubr.bf16.mxu0 0
    %1992 = vmatmul.mubr.bf16.gmra.mrb[0].mxu0 %v1921
    %v1993 = vpop.f32.mrb[0].mxu0
    %v1994 = vadd.f32 0.0, %v1993
    %v1995 = vpop.f32.mrb[0].mxu0
    %v1996 = vadd.f32 0.0, %v1995
    %v1997 = vpop.f32.mrb[0].mxu0
    %v1998 = vpop.f32.mrb[0].mxu0
    %1999 = vdwg.mxu0
    %2000 = vmatprep.subr.bf16.mxu0 %v1933
    %2001 = vmatpush1.bf16.msra.mxu0 %v1930
    %2002 = vmatprep.subr.bf16.mxu0 0
    %2003 = vmatpush1.bf16.msra.mxu0 0
    %2004 = vmatprep.subr.bf16.mxu0 0
    %2005 = vmatpush1.bf16.msra.mxu0 0
    %2006 = vmatprep.subr.bf16.mxu0 0
    %2007 = vmatpush1.bf16.msra.mxu0 0
    %2008 = vmatprep.subr.bf16.mxu0 0
    %2009 = vmatpush1.bf16.msra.mxu0 0
    %2010 = vmatprep.subr.bf16.mxu0 0
    %2011 = vmatpush1.bf16.msra.mxu0 0
    %2012 = vmatprep.subr.bf16.mxu0 0
    %2013 = vmatpush1.bf16.msra.mxu0 0
    %2014 = vmatprep.subr.bf16.mxu0 0
    %2015 = vmatpush1.bf16.msra.mxu0 0
    %2016 = vmatprep.subr.bf16.mxu0 0
    %2017 = vmatpush1.bf16.msra.mxu0 0
    %2018 = vmatprep.subr.bf16.mxu0 0
    %2019 = vmatpush1.bf16.msra.mxu0 0
    %2020 = vmatprep.subr.bf16.mxu0 0
    %2021 = vmatpush1.bf16.msra.mxu0 0
    %2022 = vmatprep.subr.bf16.mxu0 0
    %2023 = vmatpush1.bf16.msra.mxu0 0
    %2024 = vmatprep.subr.bf16.mxu0 0
    %2025 = vmatpush1.bf16.msra.mxu0 0
    %2026 = vmatprep.subr.bf16.mxu0 0
    %2027 = vmatpush1.bf16.msra.mxu0 0
    %2028 = vmatprep.subr.bf16.mxu0 0
    %2029 = vmatpush1.bf16.msra.mxu0 0
    %2030 = vmatprep.subr.bf16.mxu0 0
    %2031 = vmatpush1.bf16.msra.mxu0 0
    %2032 = vmatprep.mubr.bf16.mxu0 0
    %2033 = vmatmul.mubr.bf16.gmra.mrb[0].mxu0 %v1921
    %v2034 = vpop.f32.mrb[0].mxu0
    %v2035 = vadd.f32 0.0, %v2034
    %v2036 = vpop.f32.mrb[0].mxu0
    %v2037 = vadd.f32 0.0, %v2036
    %v2038 = vpop.f32.mrb[0].mxu0
    %v2039 = vpop.f32.mrb[0].mxu0
    %2040 = vdwg.mxu0
    %2041 = vmatprep.subr.bf16.mxu0 %v1939
    %2042 = vmatpush1.bf16.msra.mxu0 %v1936
    %2043 = vmatprep.subr.bf16.mxu0 0
    %2044 = vmatpush1.bf16.msra.mxu0 0
    %2045 = vmatprep.subr.bf16.mxu0 0
    %2046 = vmatpush1.bf16.msra.mxu0 0
    %2047 = vmatprep.subr.bf16.mxu0 0
    %2048 = vmatpush1.bf16.msra.mxu0 0
    %2049 = vmatprep.subr.bf16.mxu0 0
    %2050 = vmatpush1.bf16.msra.mxu0 0
    %2051 = vmatprep.subr.bf16.mxu0 0
    %2052 = vmatpush1.bf16.msra.mxu0 0
    %2053 = vmatprep.subr.bf16.mxu0 0
    %2054 = vmatpush1.bf16.msra.mxu0 0
    %2055 = vmatprep.subr.bf16.mxu0 0
    %2056 = vmatpush1.bf16.msra.mxu0 0
    %2057 = vmatprep.subr.bf16.mxu0 0
    %2058 = vmatpush1.bf16.msra.mxu0 0
    %2059 = vmatprep.subr.bf16.mxu0 0
    %2060 = vmatpush1.bf16.msra.mxu0 0
    %2061 = vmatprep.subr.bf16.mxu0 0
    %2062 = vmatpush1.bf16.msra.mxu0 0
    %2063 = vmatprep.subr.bf16.mxu0 0
    %2064 = vmatpush1.bf16.msra.mxu0 0
    %2065 = vmatprep.subr.bf16.mxu0 0
    %2066 = vmatpush1.bf16.msra.mxu0 0
    %2067 = vmatprep.subr.bf16.mxu0 0
    %2068 = vmatpush1.bf16.msra.mxu0 0
    %2069 = vmatprep.subr.bf16.mxu0 0
    %2070 = vmatpush1.bf16.msra.mxu0 0
    %2071 = vmatprep.subr.bf16.mxu0 0
    %2072 = vmatpush1.bf16.msra.mxu0 0
    %2073 = vmatprep.mubr.bf16.mxu0 0
    %2074 = vmatmul.mubr.bf16.gmra.mrb[0].mxu0 %v1921
    %v2075 = vpop.f32.mrb[0].mxu0
    %v2076 = vadd.f32 0.0, %v2075
    %v2077 = vpop.f32.mrb[0].mxu0
    %v2078 = vadd.f32 0.0, %v2077
    %v2079 = vpop.f32.mrb[0].mxu0
    %v2080 = vpop.f32.mrb[0].mxu0
    %2081 = vdwg.mxu0
    %2082 = vmatprep.subr.bf16.mxu0 %v1945
    %2083 = vmatpush1.bf16.msra.mxu0 %v1942
    %2084 = vmatprep.subr.bf16.mxu0 0
    %2085 = vmatpush1.bf16.msra.mxu0 0
    %2086 = vmatprep.subr.bf16.mxu0 0
    %2087 = vmatpush1.bf16.msra.mxu0 0
    %2088 = vmatprep.subr.bf16.mxu0 0
    %2089 = vmatpush1.bf16.msra.mxu0 0
    %2090 = vmatprep.subr.bf16.mxu0 0
    %2091 = vmatpush1.bf16.msra.mxu0 0
    %2092 = vmatprep.subr.bf16.mxu0 0
    %2093 = vmatpush1.bf16.msra.mxu0 0
    %2094 = vmatprep.subr.bf16.mxu0 0
    %2095 = vmatpush1.bf16.msra.mxu0 0
    %2096 = vmatprep.subr.bf16.mxu0 0
    %2097 = vmatpush1.bf16.msra.mxu0 0
    %2098 = vmatprep.subr.bf16.mxu0 0
    %2099 = vmatpush1.bf16.msra.mxu0 0
    %2100 = vmatprep.subr.bf16.mxu0 0
    %2101 = vmatpush1.bf16.msra.mxu0 0
    %2102 = vmatprep.subr.bf16.mxu0 0
    %2103 = vmatpush1.bf16.msra.mxu0 0
    %2104 = vmatprep.subr.bf16.mxu0 0
    %2105 = vmatpush1.bf16.msra.mxu0 0
    %2106 = vmatprep.subr.bf16.mxu0 0
    %2107 = vmatpush1.bf16.msra.mxu0 0
    %2108 = vmatprep.subr.bf16.mxu0 0
    %2109 = vmatpush1.bf16.msra.mxu0 0
    %2110 = vmatprep.subr.bf16.mxu0 0
    %2111 = vmatpush1.bf16.msra.mxu0 0
    %2112 = vmatprep.subr.bf16.mxu0 0
    %2113 = vmatpush1.bf16.msra.mxu0 0
    %2114 = vmatprep.mubr.bf16.mxu0 0
    %2115 = vmatmul.mubr.bf16.gmra.mrb[0].mxu0 %v1921
    %v2116 = vpop.f32.mrb[0].mxu0
    %v2117 = vadd.f32 0.0, %v2116
    %v2118 = vpop.f32.mrb[0].mxu0
    %v2119 = vadd.f32 0.0, %v2118
    %v2120 = vpop.f32.mrb[0].mxu0
    %v2121 = vpop.f32.mrb[0].mxu0
    %2122 = vdwg.mxu0
    %2123 = vmatprep.subr.bf16.mxu0 %v1951
    %2124 = vmatpush1.bf16.msra.mxu0 %v1948
    %2125 = vmatprep.subr.bf16.mxu0 0
    %2126 = vmatpush1.bf16.msra.mxu0 0
    %2127 = vmatprep.subr.bf16.mxu0 0
    %2128 = vmatpush1.bf16.msra.mxu0 0
    %2129 = vmatprep.subr.bf16.mxu0 0
    %2130 = vmatpush1.bf16.msra.mxu0 0
    %2131 = vmatprep.subr.bf16.mxu0 0
    %2132 = vmatpush1.bf16.msra.mxu0 0
    %2133 = vmatprep.subr.bf16.mxu0 0
    %2134 = vmatpush1.bf16.msra.mxu0 0
    %2135 = vmatprep.subr.bf16.mxu0 0
    %2136 = vmatpush1.bf16.msra.mxu0 0
    %2137 = vmatprep.subr.bf16.mxu0 0
    %2138 = vmatpush1.bf16.msra.mxu0 0
    %2139 = vmatprep.subr.bf16.mxu0 0
    %2140 = vmatpush1.bf16.msra.mxu0 0
    %2141 = vmatprep.subr.bf16.mxu0 0
    %2142 = vmatpush1.bf16.msra.mxu0 0
    %2143 = vmatprep.subr.bf16.mxu0 0
    %2144 = vmatpush1.bf16.msra.mxu0 0
    %2145 = vmatprep.subr.bf16.mxu0 0
    %2146 = vmatpush1.bf16.msra.mxu0 0
    %2147 = vmatprep.subr.bf16.mxu0 0
    %2148 = vmatpush1.bf16.msra.mxu0 0
    %2149 = vmatprep.subr.bf16.mxu0 0
    %2150 = vmatpush1.bf16.msra.mxu0 0
    %2151 = vmatprep.subr.bf16.mxu0 0
    %2152 = vmatpush1.bf16.msra.mxu0 0
    %2153 = vmatprep.subr.bf16.mxu0 0
    %2154 = vmatpush1.bf16.msra.mxu0 0
    %2155 = vmatprep.mubr.bf16.mxu0 0
    %2156 = vmatmul.mubr.bf16.gmra.mrb[0].mxu0 %v1921
    %v2157 = vpop.f32.mrb[0].mxu0
    %v2158 = vadd.f32 0.0, %v2157
    %v2159 = vpop.f32.mrb[0].mxu0
    %v2160 = vadd.f32 0.0, %v2159
    %v2161 = vpop.f32.mrb[0].mxu0
    %v2162 = vpop.f32.mrb[0].mxu0
    %2163 = vdwg.mxu0
    %2164 = vmatprep.subr.bf16.mxu0 %v1957
    %2165 = vmatpush1.bf16.msra.mxu0 %v1954
    %2166 = vmatprep.subr.bf16.mxu0 0
    %2167 = vmatpush1.bf16.msra.mxu0 0
    %2168 = vmatprep.subr.bf16.mxu0 0
    %2169 = vmatpush1.bf16.msra.mxu0 0
    %2170 = vmatprep.subr.bf16.mxu0 0
    %2171 = vmatpush1.bf16.msra.mxu0 0
    %2172 = vmatprep.subr.bf16.mxu0 0
    %2173 = vmatpush1.bf16.msra.mxu0 0
    %2174 = vmatprep.subr.bf16.mxu0 0
    %2175 = vmatpush1.bf16.msra.mxu0 0
    %2176 = vmatprep.subr.bf16.mxu0 0
    %2177 = vmatpush1.bf16.msra.mxu0 0
    %2178 = vmatprep.subr.bf16.mxu0 0
    %2179 = vmatpush1.bf16.msra.mxu0 0
    %2180 = vmatprep.subr.bf16.mxu0 0
    %2181 = vmatpush1.bf16.msra.mxu0 0
    %2182 = vmatprep.subr.bf16.mxu0 0
    %2183 = vmatpush1.bf16.msra.mxu0 0
    %2184 = vmatprep.subr.bf16.mxu0 0
    %2185 = vmatpush1.bf16.msra.mxu0 0
    %2186 = vmatprep.subr.bf16.mxu0 0
    %2187 = vmatpush1.bf16.msra.mxu0 0
    %2188 = vmatprep.subr.bf16.mxu0 0
    %2189 = vmatpush1.bf16.msra.mxu0 0
    %2190 = vmatprep.subr.bf16.mxu0 0
    %2191 = vmatpush1.bf16.msra.mxu0 0
    %2192 = vmatprep.subr.bf16.mxu0 0
    %2193 = vmatpush1.bf16.msra.mxu0 0
    %2194 = vmatprep.subr.bf16.mxu0 0
    %2195 = vmatpush1.bf16.msra.mxu0 0
    %2196 = vmatprep.mubr.bf16.mxu0 0
    %2197 = vmatmul.mubr.bf16.gmra.mrb[0].mxu0 %v1921
    %v2198 = vpop.f32.mrb[0].mxu0
    %v2199 = vadd.f32 0.0, %v2198
    %v2200 = vpop.f32.mrb[0].mxu0
    %v2201 = vadd.f32 0.0, %v2200
    %v2202 = vpop.f32.mrb[0].mxu0
    %v2203 = vpop.f32.mrb[0].mxu0
    %2204 = vdwg.mxu0
    %v2205 = vadd.f32 %v1777, %v1994
    %v2206 = vadd.f32 %v1778, %v1996
    %v2207 = vadd.f32 %v1779, %v2035
    %v2208 = vadd.f32 %v1780, %v2037
    %v2209 = vadd.f32 %v1781, %v2076
    %v2210 = vadd.f32 %v1782, %v2078
    %v2211 = vadd.f32 %v1783, %v2117
    %v2212 = vadd.f32 %v1784, %v2119
    %v2213 = vadd.f32 %v1785, %v2158
    %v2214 = vadd.f32 %v1786, %v2160
    %v2215 = vadd.f32 %v1787, %v2199
    %v2216 = vadd.f32 %v1788, %v2201
    %2217 = vrot.lane.b32.xlu0 %v87, 63
    %v2218 = vpop.permute.xlu0 %2217
    %2219 = vrot.lane.b32.xlu0 %v88, 63
    %v2220 = vpop.permute.xlu0 %2219
    %2221 = vrot.lane.b32.xlu0 %v89, 63
    %v2222 = vpop.permute.xlu0 %2221
    %2223 = vrot.lane.b32.xlu0 %v90, 63
    %v2224 = vpop.permute.xlu0 %2223
    %2225 = vrot.lane.b32.xlu0 %v91, 63
    %v2226 = vpop.permute.xlu0 %2225
    %2227 = vrot.lane.b32.xlu0 %v92, 63
    %v2228 = vpop.permute.xlu0 %2227
    %2229 = vrot.lane.b32.xlu0 %v93, 63
    %v2230 = vpop.permute.xlu0 %2229
    %2231 = vrot.lane.b32.xlu0 %v94, 63
    %v2232 = vpop.permute.xlu0 %2231
    %2233 = vrot.lane.b32.xlu0 %v95, 63
    %v2234 = vpop.permute.xlu0 %2233
    %2235 = vrot.lane.b32.xlu0 %v96, 63
    %v2236 = vpop.permute.xlu0 %2235
    %2237 = vrot.lane.b32.xlu0 %v97, 63
    %v2238 = vpop.permute.xlu0 %2237
    %2239 = vrot.lane.b32.xlu0 %v98, 63
    %v2240 = vpop.permute.xlu0 %2239
    %vm2241 = vcmp.lt.s32.totalorder %v124, 63
    %v2242 = vsel %vm2241, %v2238, %v2240
    %v2243 = vsel %vm2241, %v2236, %v2238
    %v2244 = vsel %vm2241, %v2234, %v2236
    %v2245 = vsel %vm2241, %v2232, %v2234
    %v2246 = vsel %vm2241, %v2230, %v2232
    %v2247 = vsel %vm2241, %v2228, %v2230
    %v2248 = vsel %vm2241, %v2226, %v2228
    %v2249 = vsel %vm2241, %v2224, %v2226
    %v2250 = vsel %vm2241, %v2222, %v2224
    %v2251 = vsel %vm2241, %v2220, %v2222
    %v2252 = vsel %vm2241, %v2218, %v2220
    %v2253 = vsel %vm2241, %v2240, %v2218
    %s2254 = scalar_lea.vmem [#allocation3], 5
    %v2255 = vld [vmem:[%s2254] ss:$8 sm:$0xf]
    %v2256 = vld [vmem:[%s2254] ss:$8 sm:$0xf0]
    %v2257 = vor.u32 %v2255, %v2256
    %s2258 = scalar_lea.vmem [#allocation3], 69
    %v2259 = vld [vmem:[%s2258] ss:$8 sm:$0xf]
    %v2262 = vlaneseq
    %v2263 = vshrl.u32 %v2262, 7
    %v2264 = vsub.s32 0, %v2263
    %v2265 = vrot.slane %v2257, %v2264
    %v2266 = vlaneseq
    %v2267 = vshrl.u32 %v2266, 7
    %v2268 = vsub.s32 1, %v2267
    %v2269 = vrot.slane %v2257, %v2268
    %v2270 = vlaneseq
    %v2271 = vshrl.u32 %v2270, 7
    %v2272 = vsub.s32 2, %v2271
    %v2273 = vrot.slane %v2257, %v2272
    %v2274 = vlaneseq
    %v2275 = vshrl.u32 %v2274, 7
    %v2276 = vsub.s32 3, %v2275
    %v2277 = vrot.slane %v2257, %v2276
    %v2278 = vlaneseq
    %v2279 = vshrl.u32 %v2278, 7
    %v2280 = vsub.s32 4, %v2279
    %v2281 = vrot.slane %v2257, %v2280
    %v2282 = vlaneseq
    %v2283 = vshrl.u32 %v2282, 7
    %v2284 = vsub.s32 5, %v2283
    %v2285 = vrot.slane %v2257, %v2284
    %v2286 = vlaneseq
    %v2287 = vshrl.u32 %v2286, 7
    %v2288 = vsub.s32 6, %v2287
    %v2289 = vrot.slane %v2257, %v2288
    %v2290 = vlaneseq
    %v2291 = vshrl.u32 %v2290, 7
    %v2292 = vsub.s32 7, %v2291
    %v2293 = vrot.slane %v2257, %v2292
    %v2294 = vlaneseq
    %v2295 = vshrl.u32 %v2294, 7
    %v2296 = vsub.s32 0, %v2295
    %v2297 = vrot.slane %v2259, %v2296
    %v2298 = vlaneseq
    %v2299 = vshrl.u32 %v2298, 7
    %v2300 = vsub.s32 1, %v2299
    %v2301 = vrot.slane %v2259, %v2300
    %v2302 = vlaneseq
    %v2303 = vshrl.u32 %v2302, 7
    %v2304 = vsub.s32 2, %v2303
    %v2305 = vrot.slane %v2259, %v2304
    %v2306 = vlaneseq
    %v2307 = vshrl.u32 %v2306, 7
    %v2308 = vsub.s32 3, %v2307
    %v2309 = vrot.slane %v2259, %v2308
    %v2322 = vmul.f32 %v2253, %v2265
    %v2323 = vmul.f32 %v2252, %v2269
    %v2324 = vmul.f32 %v2251, %v2273
    %v2325 = vmul.f32 %v2250, %v2277
    %v2326 = vmul.f32 %v2249, %v2281
    %v2327 = vmul.f32 %v2248, %v2285
    %v2328 = vmul.f32 %v2247, %v2289
    %v2329 = vmul.f32 %v2246, %v2293
    %v2330 = vmul.f32 %v2245, %v2297
    %v2331 = vmul.f32 %v2244, %v2301
    %v2332 = vmul.f32 %v2243, %v2305
    %v2333 = vmul.f32 %v2242, %v2309
    %s2334 = scalar_lea.vmem %s1, 20
    %v2335 = vld [vmem:[%s2334] sm:$0xf]
    %v2336 = vpack.c.bf16 %v2322, %v2322
    %v2337 = vpack.c.bf16 %v2323, %v2323
    %v2338 = vpack.c.bf16 %v2324, %v2324
    %v2339 = vpack.c.bf16 %v2325, %v2325
    %v2340 = vpack.c.bf16 %v2326, %v2326
    %v2341 = vpack.c.bf16 %v2327, %v2327
    %v2342 = vpack.c.bf16 %v2328, %v2328
    %v2343 = vpack.c.bf16 %v2329, %v2329
    %v2344 = vpack.c.bf16 %v2330, %v2330
    %v2345 = vpack.c.bf16 %v2331, %v2331
    %v2346 = vpack.c.bf16 %v2332, %v2332
    %v2347 = vpack.c.bf16 %v2333, %v2333
    %v2349 = vsel %vm361, %v2335, 0
    %v2352 = vsel %vm365, %v2336, 0
    %v2355 = vsel %vm365, %v2337, 0
    %v2358 = vsel %vm365, %v2338, 0
    %v2361 = vsel %vm365, %v2339, 0
    %v2364 = vsel %vm365, %v2340, 0
    %v2367 = vsel %vm365, %v2341, 0
    %v2370 = vsel %vm365, %v2342, 0
    %v2373 = vsel %vm365, %v2343, 0
    %v2376 = vsel %vm365, %v2344, 0
    %v2379 = vsel %vm365, %v2345, 0
    %v2382 = vsel %vm365, %v2346, 0
    %v2385 = vsel %vm365, %v2347, 0
    %2387 = vmatprep.subr.bf16.mxu0 %v2355
    %2388 = vmatpush1.bf16.msra.mxu0 %v2352
    %2389 = vmatprep.subr.bf16.mxu0 0
    %2390 = vmatpush1.bf16.msra.mxu0 0
    %2391 = vmatprep.subr.bf16.mxu0 0
    %2392 = vmatpush1.bf16.msra.mxu0 0
    %2393 = vmatprep.subr.bf16.mxu0 0
    %2394 = vmatpush1.bf16.msra.mxu0 0
    %2395 = vmatprep.subr.bf16.mxu0 0
    %2396 = vmatpush1.bf16.msra.mxu0 0
    %2397 = vmatprep.subr.bf16.mxu0 0
    %2398 = vmatpush1.bf16.msra.mxu0 0
    %2399 = vmatprep.subr.bf16.mxu0 0
    %2400 = vmatpush1.bf16.msra.mxu0 0
    %2401 = vmatprep.subr.bf16.mxu0 0
    %2402 = vmatpush1.bf16.msra.mxu0 0
    %2403 = vmatprep.subr.bf16.mxu0 0
    %2404 = vmatpush1.bf16.msra.mxu0 0
    %2405 = vmatprep.subr.bf16.mxu0 0
    %2406 = vmatpush1.bf16.msra.mxu0 0
    %2407 = vmatprep.subr.bf16.mxu0 0
    %2408 = vmatpush1.bf16.msra.mxu0 0
    %2409 = vmatprep.subr.bf16.mxu0 0
    %2410 = vmatpush1.bf16.msra.mxu0 0
    %2411 = vmatprep.subr.bf16.mxu0 0
    %2412 = vmatpush1.bf16.msra.mxu0 0
    %2413 = vmatprep.subr.bf16.mxu0 0
    %2414 = vmatpush1.bf16.msra.mxu0 0
    %2415 = vmatprep.subr.bf16.mxu0 0
    %2416 = vmatpush1.bf16.msra.mxu0 0
    %2417 = vmatprep.subr.bf16.mxu0 0
    %2418 = vmatpush1.bf16.msra.mxu0 0
    %2419 = vmatprep.mubr.bf16.mxu0 0
    %2420 = vmatmul.mubr.bf16.gmra.mrb[0].mxu0 %v2349
    %v2421 = vpop.f32.mrb[0].mxu0
    %v2422 = vadd.f32 0.0, %v2421
    %v2423 = vpop.f32.mrb[0].mxu0
    %v2424 = vadd.f32 0.0, %v2423
    %v2425 = vpop.f32.mrb[0].mxu0
    %v2426 = vpop.f32.mrb[0].mxu0
    %2427 = vdwg.mxu0
    %2428 = vmatprep.subr.bf16.mxu0 %v2361
    %2429 = vmatpush1.bf16.msra.mxu0 %v2358
    %2430 = vmatprep.subr.bf16.mxu0 0
    %2431 = vmatpush1.bf16.msra.mxu0 0
    %2432 = vmatprep.subr.bf16.mxu0 0
    %2433 = vmatpush1.bf16.msra.mxu0 0
    %2434 = vmatprep.subr.bf16.mxu0 0
    %2435 = vmatpush1.bf16.msra.mxu0 0
    %2436 = vmatprep.subr.bf16.mxu0 0
    %2437 = vmatpush1.bf16.msra.mxu0 0
    %2438 = vmatprep.subr.bf16.mxu0 0
    %2439 = vmatpush1.bf16.msra.mxu0 0
    %2440 = vmatprep.subr.bf16.mxu0 0
    %2441 = vmatpush1.bf16.msra.mxu0 0
    %2442 = vmatprep.subr.bf16.mxu0 0
    %2443 = vmatpush1.bf16.msra.mxu0 0
    %2444 = vmatprep.subr.bf16.mxu0 0
    %2445 = vmatpush1.bf16.msra.mxu0 0
    %2446 = vmatprep.subr.bf16.mxu0 0
    %2447 = vmatpush1.bf16.msra.mxu0 0
    %2448 = vmatprep.subr.bf16.mxu0 0
    %2449 = vmatpush1.bf16.msra.mxu0 0
    %2450 = vmatprep.subr.bf16.mxu0 0
    %2451 = vmatpush1.bf16.msra.mxu0 0
    %2452 = vmatprep.subr.bf16.mxu0 0
    %2453 = vmatpush1.bf16.msra.mxu0 0
    %2454 = vmatprep.subr.bf16.mxu0 0
    %2455 = vmatpush1.bf16.msra.mxu0 0
    %2456 = vmatprep.subr.bf16.mxu0 0
    %2457 = vmatpush1.bf16.msra.mxu0 0
    %2458 = vmatprep.subr.bf16.mxu0 0
    %2459 = vmatpush1.bf16.msra.mxu0 0
    %2460 = vmatprep.mubr.bf16.mxu0 0
    %2461 = vmatmul.mubr.bf16.gmra.mrb[0].mxu0 %v2349
    %v2462 = vpop.f32.mrb[0].mxu0
    %v2463 = vadd.f32 0.0, %v2462
    %v2464 = vpop.f32.mrb[0].mxu0
    %v2465 = vadd.f32 0.0, %v2464
    %v2466 = vpop.f32.mrb[0].mxu0
    %v2467 = vpop.f32.mrb[0].mxu0
    %2468 = vdwg.mxu0
    %2469 = vmatprep.subr.bf16.mxu0 %v2367
    %2470 = vmatpush1.bf16.msra.mxu0 %v2364
    %2471 = vmatprep.subr.bf16.mxu0 0
    %2472 = vmatpush1.bf16.msra.mxu0 0
    %2473 = vmatprep.subr.bf16.mxu0 0
    %2474 = vmatpush1.bf16.msra.mxu0 0
    %2475 = vmatprep.subr.bf16.mxu0 0
    %2476 = vmatpush1.bf16.msra.mxu0 0
    %2477 = vmatprep.subr.bf16.mxu0 0
    %2478 = vmatpush1.bf16.msra.mxu0 0
    %2479 = vmatprep.subr.bf16.mxu0 0
    %2480 = vmatpush1.bf16.msra.mxu0 0
    %2481 = vmatprep.subr.bf16.mxu0 0
    %2482 = vmatpush1.bf16.msra.mxu0 0
    %2483 = vmatprep.subr.bf16.mxu0 0
    %2484 = vmatpush1.bf16.msra.mxu0 0
    %2485 = vmatprep.subr.bf16.mxu0 0
    %2486 = vmatpush1.bf16.msra.mxu0 0
    %2487 = vmatprep.subr.bf16.mxu0 0
    %2488 = vmatpush1.bf16.msra.mxu0 0
    %2489 = vmatprep.subr.bf16.mxu0 0
    %2490 = vmatpush1.bf16.msra.mxu0 0
    %2491 = vmatprep.subr.bf16.mxu0 0
    %2492 = vmatpush1.bf16.msra.mxu0 0
    %2493 = vmatprep.subr.bf16.mxu0 0
    %2494 = vmatpush1.bf16.msra.mxu0 0
    %2495 = vmatprep.subr.bf16.mxu0 0
    %2496 = vmatpush1.bf16.msra.mxu0 0
    %2497 = vmatprep.subr.bf16.mxu0 0
    %2498 = vmatpush1.bf16.msra.mxu0 0
    %2499 = vmatprep.subr.bf16.mxu0 0
    %2500 = vmatpush1.bf16.msra.mxu0 0
    %2501 = vmatprep.mubr.bf16.mxu0 0
    %2502 = vmatmul.mubr.bf16.gmra.mrb[0].mxu0 %v2349
    %v2503 = vpop.f32.mrb[0].mxu0
    %v2504 = vadd.f32 0.0, %v2503
    %v2505 = vpop.f32.mrb[0].mxu0
    %v2506 = vadd.f32 0.0, %v2505
    %v2507 = vpop.f32.mrb[0].mxu0
    %v2508 = vpop.f32.mrb[0].mxu0
    %2509 = vdwg.mxu0
    %2510 = vmatprep.subr.bf16.mxu0 %v2373
    %2511 = vmatpush1.bf16.msra.mxu0 %v2370
    %2512 = vmatprep.subr.bf16.mxu0 0
    %2513 = vmatpush1.bf16.msra.mxu0 0
    %2514 = vmatprep.subr.bf16.mxu0 0
    %2515 = vmatpush1.bf16.msra.mxu0 0
    %2516 = vmatprep.subr.bf16.mxu0 0
    %2517 = vmatpush1.bf16.msra.mxu0 0
    %2518 = vmatprep.subr.bf16.mxu0 0
    %2519 = vmatpush1.bf16.msra.mxu0 0
    %2520 = vmatprep.subr.bf16.mxu0 0
    %2521 = vmatpush1.bf16.msra.mxu0 0
    %2522 = vmatprep.subr.bf16.mxu0 0
    %2523 = vmatpush1.bf16.msra.mxu0 0
    %2524 = vmatprep.subr.bf16.mxu0 0
    %2525 = vmatpush1.bf16.msra.mxu0 0
    %2526 = vmatprep.subr.bf16.mxu0 0
    %2527 = vmatpush1.bf16.msra.mxu0 0
    %2528 = vmatprep.subr.bf16.mxu0 0
    %2529 = vmatpush1.bf16.msra.mxu0 0
    %2530 = vmatprep.subr.bf16.mxu0 0
    %2531 = vmatpush1.bf16.msra.mxu0 0
    %2532 = vmatprep.subr.bf16.mxu0 0
    %2533 = vmatpush1.bf16.msra.mxu0 0
    %2534 = vmatprep.subr.bf16.mxu0 0
    %2535 = vmatpush1.bf16.msra.mxu0 0
    %2536 = vmatprep.subr.bf16.mxu0 0
    %2537 = vmatpush1.bf16.msra.mxu0 0
    %2538 = vmatprep.subr.bf16.mxu0 0
    %2539 = vmatpush1.bf16.msra.mxu0 0
    %2540 = vmatprep.subr.bf16.mxu0 0
    %2541 = vmatpush1.bf16.msra.mxu0 0
    %2542 = vmatprep.mubr.bf16.mxu0 0
    %2543 = vmatmul.mubr.bf16.gmra.mrb[0].mxu0 %v2349
    %v2544 = vpop.f32.mrb[0].mxu0
    %v2545 = vadd.f32 0.0, %v2544
    %v2546 = vpop.f32.mrb[0].mxu0
    %v2547 = vadd.f32 0.0, %v2546
    %v2548 = vpop.f32.mrb[0].mxu0
    %v2549 = vpop.f32.mrb[0].mxu0
    %2550 = vdwg.mxu0
    %2551 = vmatprep.subr.bf16.mxu0 %v2379
    %2552 = vmatpush1.bf16.msra.mxu0 %v2376
    %2553 = vmatprep.subr.bf16.mxu0 0
    %2554 = vmatpush1.bf16.msra.mxu0 0
    %2555 = vmatprep.subr.bf16.mxu0 0
    %2556 = vmatpush1.bf16.msra.mxu0 0
    %2557 = vmatprep.subr.bf16.mxu0 0
    %2558 = vmatpush1.bf16.msra.mxu0 0
    %2559 = vmatprep.subr.bf16.mxu0 0
    %2560 = vmatpush1.bf16.msra.mxu0 0
    %2561 = vmatprep.subr.bf16.mxu0 0
    %2562 = vmatpush1.bf16.msra.mxu0 0
    %2563 = vmatprep.subr.bf16.mxu0 0
    %2564 = vmatpush1.bf16.msra.mxu0 0
    %2565 = vmatprep.subr.bf16.mxu0 0
    %2566 = vmatpush1.bf16.msra.mxu0 0
    %2567 = vmatprep.subr.bf16.mxu0 0
    %2568 = vmatpush1.bf16.msra.mxu0 0
    %2569 = vmatprep.subr.bf16.mxu0 0
    %2570 = vmatpush1.bf16.msra.mxu0 0
    %2571 = vmatprep.subr.bf16.mxu0 0
    %2572 = vmatpush1.bf16.msra.mxu0 0
    %2573 = vmatprep.subr.bf16.mxu0 0
    %2574 = vmatpush1.bf16.msra.mxu0 0
    %2575 = vmatprep.subr.bf16.mxu0 0
    %2576 = vmatpush1.bf16.msra.mxu0 0
    %2577 = vmatprep.subr.bf16.mxu0 0
    %2578 = vmatpush1.bf16.msra.mxu0 0
    %2579 = vmatprep.subr.bf16.mxu0 0
    %2580 = vmatpush1.bf16.msra.mxu0 0
    %2581 = vmatprep.subr.bf16.mxu0 0
    %2582 = vmatpush1.bf16.msra.mxu0 0
    %2583 = vmatprep.mubr.bf16.mxu0 0
    %2584 = vmatmul.mubr.bf16.gmra.mrb[0].mxu0 %v2349
    %v2585 = vpop.f32.mrb[0].mxu0
    %v2586 = vadd.f32 0.0, %v2585
    %v2587 = vpop.f32.mrb[0].mxu0
    %v2588 = vadd.f32 0.0, %v2587
    %v2589 = vpop.f32.mrb[0].mxu0
    %v2590 = vpop.f32.mrb[0].mxu0
    %2591 = vdwg.mxu0
    %2592 = vmatprep.subr.bf16.mxu0 %v2385
    %2593 = vmatpush1.bf16.msra.mxu0 %v2382
    %2594 = vmatprep.subr.bf16.mxu0 0
    %2595 = vmatpush1.bf16.msra.mxu0 0
    %2596 = vmatprep.subr.bf16.mxu0 0
    %2597 = vmatpush1.bf16.msra.mxu0 0
    %2598 = vmatprep.subr.bf16.mxu0 0
    %2599 = vmatpush1.bf16.msra.mxu0 0
    %2600 = vmatprep.subr.bf16.mxu0 0
    %2601 = vmatpush1.bf16.msra.mxu0 0
    %2602 = vmatprep.subr.bf16.mxu0 0
    %2603 = vmatpush1.bf16.msra.mxu0 0
    %2604 = vmatprep.subr.bf16.mxu0 0
    %2605 = vmatpush1.bf16.msra.mxu0 0
    %2606 = vmatprep.subr.bf16.mxu0 0
    %2607 = vmatpush1.bf16.msra.mxu0 0
    %2608 = vmatprep.subr.bf16.mxu0 0
    %2609 = vmatpush1.bf16.msra.mxu0 0
    %2610 = vmatprep.subr.bf16.mxu0 0
    %2611 = vmatpush1.bf16.msra.mxu0 0
    %2612 = vmatprep.subr.bf16.mxu0 0
    %2613 = vmatpush1.bf16.msra.mxu0 0
    %2614 = vmatprep.subr.bf16.mxu0 0
    %2615 = vmatpush1.bf16.msra.mxu0 0
    %2616 = vmatprep.subr.bf16.mxu0 0
    %2617 = vmatpush1.bf16.msra.mxu0 0
    %2618 = vmatprep.subr.bf16.mxu0 0
    %2619 = vmatpush1.bf16.msra.mxu0 0
    %2620 = vmatprep.subr.bf16.mxu0 0
    %2621 = vmatpush1.bf16.msra.mxu0 0
    %2622 = vmatprep.subr.bf16.mxu0 0
    %2623 = vmatpush1.bf16.msra.mxu0 0
    %2624 = vmatprep.mubr.bf16.mxu0 0
    %2625 = vmatmul.mubr.bf16.gmra.mrb[0].mxu0 %v2349
    %v2626 = vpop.f32.mrb[0].mxu0
    %v2627 = vadd.f32 0.0, %v2626
    %v2628 = vpop.f32.mrb[0].mxu0
    %v2629 = vadd.f32 0.0, %v2628
    %v2630 = vpop.f32.mrb[0].mxu0
    %v2631 = vpop.f32.mrb[0].mxu0
    %2632 = vdwg.mxu0
    %v2633 = vadd.f32 %v2205, %v2422
    %v2634 = vadd.f32 %v2206, %v2424
    %v2635 = vadd.f32 %v2207, %v2463
    %v2636 = vadd.f32 %v2208, %v2465
    %v2637 = vadd.f32 %v2209, %v2504
    %v2638 = vadd.f32 %v2210, %v2506
    %v2639 = vadd.f32 %v2211, %v2545
    %v2640 = vadd.f32 %v2212, %v2547
    %v2641 = vadd.f32 %v2213, %v2586
    %v2642 = vadd.f32 %v2214, %v2588
    %v2643 = vadd.f32 %v2215, %v2627
    %v2644 = vadd.f32 %v2216, %v2629
    %2645 = vrot.lane.b32.xlu0 %v87, 57
    %v2646 = vpop.permute.xlu0 %2645
    %2647 = vrot.lane.b32.xlu0 %v88, 57
    %v2648 = vpop.permute.xlu0 %2647
    %2649 = vrot.lane.b32.xlu0 %v89, 57
    %v2650 = vpop.permute.xlu0 %2649
    %2651 = vrot.lane.b32.xlu0 %v90, 57
    %v2652 = vpop.permute.xlu0 %2651
    %2653 = vrot.lane.b32.xlu0 %v91, 57
    %v2654 = vpop.permute.xlu0 %2653
    %2655 = vrot.lane.b32.xlu0 %v92, 57
    %v2656 = vpop.permute.xlu0 %2655
    %2657 = vrot.lane.b32.xlu0 %v93, 57
    %v2658 = vpop.permute.xlu0 %2657
    %2659 = vrot.lane.b32.xlu0 %v94, 57
    %v2660 = vpop.permute.xlu0 %2659
    %2661 = vrot.lane.b32.xlu0 %v95, 57
    %v2662 = vpop.permute.xlu0 %2661
    %2663 = vrot.lane.b32.xlu0 %v96, 57
    %v2664 = vpop.permute.xlu0 %2663
    %2665 = vrot.lane.b32.xlu0 %v97, 57
    %v2666 = vpop.permute.xlu0 %2665
    %2667 = vrot.lane.b32.xlu0 %v98, 57
    %v2668 = vpop.permute.xlu0 %2667
    %vm2669 = vcmp.lt.s32.totalorder %v124, 57
    %v2670 = vsel %vm2669, %v2666, %v2668
    %v2671 = vsel %vm2669, %v2664, %v2666
    %v2672 = vsel %vm2669, %v2662, %v2664
    %v2673 = vsel %vm2669, %v2660, %v2662
    %v2674 = vsel %vm2669, %v2658, %v2660
    %v2675 = vsel %vm2669, %v2656, %v2658
    %v2676 = vsel %vm2669, %v2654, %v2656
    %v2677 = vsel %vm2669, %v2652, %v2654
    %v2678 = vsel %vm2669, %v2650, %v2652
    %v2679 = vsel %vm2669, %v2648, %v2650
    %v2680 = vsel %vm2669, %v2646, %v2648
    %v2681 = vsel %vm2669, %v2668, %v2646
    %s2682 = scalar_lea.vmem [#allocation3], 6
    %v2683 = vld [vmem:[%s2682] ss:$8 sm:$0xf]
    %v2684 = vld [vmem:[%s2682] ss:$8 sm:$0xf0]
    %v2685 = vor.u32 %v2683, %v2684
    %s2686 = scalar_lea.vmem [#allocation3], 70
    %v2687 = vld [vmem:[%s2686] ss:$8 sm:$0xf]
    %v2690 = vlaneseq
    %v2691 = vshrl.u32 %v2690, 7
    %v2692 = vsub.s32 0, %v2691
    %v2693 = vrot.slane %v2685, %v2692
    %v2694 = vlaneseq
    %v2695 = vshrl.u32 %v2694, 7
    %v2696 = vsub.s32 1, %v2695
    %v2697 = vrot.slane %v2685, %v2696
    %v2698 = vlaneseq
    %v2699 = vshrl.u32 %v2698, 7
    %v2700 = vsub.s32 2, %v2699
    %v2701 = vrot.slane %v2685, %v2700
    %v2702 = vlaneseq
    %v2703 = vshrl.u32 %v2702, 7
    %v2704 = vsub.s32 3, %v2703
    %v2705 = vrot.slane %v2685, %v2704
    %v2706 = vlaneseq
    %v2707 = vshrl.u32 %v2706, 7
    %v2708 = vsub.s32 4, %v2707
    %v2709 = vrot.slane %v2685, %v2708
    %v2710 = vlaneseq
    %v2711 = vshrl.u32 %v2710, 7
    %v2712 = vsub.s32 5, %v2711
    %v2713 = vrot.slane %v2685, %v2712
    %v2714 = vlaneseq
    %v2715 = vshrl.u32 %v2714, 7
    %v2716 = vsub.s32 6, %v2715
    %v2717 = vrot.slane %v2685, %v2716
    %v2718 = vlaneseq
    %v2719 = vshrl.u32 %v2718, 7
    %v2720 = vsub.s32 7, %v2719
    %v2721 = vrot.slane %v2685, %v2720
    %v2722 = vlaneseq
    %v2723 = vshrl.u32 %v2722, 7
    %v2724 = vsub.s32 0, %v2723
    %v2725 = vrot.slane %v2687, %v2724
    %v2726 = vlaneseq
    %v2727 = vshrl.u32 %v2726, 7
    %v2728 = vsub.s32 1, %v2727
    %v2729 = vrot.slane %v2687, %v2728
    %v2730 = vlaneseq
    %v2731 = vshrl.u32 %v2730, 7
    %v2732 = vsub.s32 2, %v2731
    %v2733 = vrot.slane %v2687, %v2732
    %v2734 = vlaneseq
    %v2735 = vshrl.u32 %v2734, 7
    %v2736 = vsub.s32 3, %v2735
    %v2737 = vrot.slane %v2687, %v2736
    %v2750 = vmul.f32 %v2681, %v2693
    %v2751 = vmul.f32 %v2680, %v2697
    %v2752 = vmul.f32 %v2679, %v2701
    %v2753 = vmul.f32 %v2678, %v2705
    %v2754 = vmul.f32 %v2677, %v2709
    %v2755 = vmul.f32 %v2676, %v2713
    %v2756 = vmul.f32 %v2675, %v2717
    %v2757 = vmul.f32 %v2674, %v2721
    %v2758 = vmul.f32 %v2673, %v2725
    %v2759 = vmul.f32 %v2672, %v2729
    %v2760 = vmul.f32 %v2671, %v2733
    %v2761 = vmul.f32 %v2670, %v2737
    %s2762 = scalar_lea.vmem %s1, 24
    %v2763 = vld [vmem:[%s2762] sm:$0xf]
    %v2764 = vpack.c.bf16 %v2750, %v2750
    %v2765 = vpack.c.bf16 %v2751, %v2751
    %v2766 = vpack.c.bf16 %v2752, %v2752
    %v2767 = vpack.c.bf16 %v2753, %v2753
    %v2768 = vpack.c.bf16 %v2754, %v2754
    %v2769 = vpack.c.bf16 %v2755, %v2755
    %v2770 = vpack.c.bf16 %v2756, %v2756
    %v2771 = vpack.c.bf16 %v2757, %v2757
    %v2772 = vpack.c.bf16 %v2758, %v2758
    %v2773 = vpack.c.bf16 %v2759, %v2759
    %v2774 = vpack.c.bf16 %v2760, %v2760
    %v2775 = vpack.c.bf16 %v2761, %v2761
    %v2777 = vsel %vm361, %v2763, 0
    %v2780 = vsel %vm365, %v2764, 0
    %v2783 = vsel %vm365, %v2765, 0
    %v2786 = vsel %vm365, %v2766, 0
    %v2789 = vsel %vm365, %v2767, 0
    %v2792 = vsel %vm365, %v2768, 0
    %v2795 = vsel %vm365, %v2769, 0
    %v2798 = vsel %vm365, %v2770, 0
    %v2801 = vsel %vm365, %v2771, 0
    %v2804 = vsel %vm365, %v2772, 0
    %v2807 = vsel %vm365, %v2773, 0
    %v2810 = vsel %vm365, %v2774, 0
    %v2813 = vsel %vm365, %v2775, 0
    %2815 = vmatprep.subr.bf16.mxu0 %v2783
    %2816 = vmatpush1.bf16.msra.mxu0 %v2780
    %2817 = vmatprep.subr.bf16.mxu0 0
    %2818 = vmatpush1.bf16.msra.mxu0 0
    %2819 = vmatprep.subr.bf16.mxu0 0
    %2820 = vmatpush1.bf16.msra.mxu0 0
    %2821 = vmatprep.subr.bf16.mxu0 0
    %2822 = vmatpush1.bf16.msra.mxu0 0
    %2823 = vmatprep.subr.bf16.mxu0 0
    %2824 = vmatpush1.bf16.msra.mxu0 0
    %2825 = vmatprep.subr.bf16.mxu0 0
    %2826 = vmatpush1.bf16.msra.mxu0 0
    %2827 = vmatprep.subr.bf16.mxu0 0
    %2828 = vmatpush1.bf16.msra.mxu0 0
    %2829 = vmatprep.subr.bf16.mxu0 0
    %2830 = vmatpush1.bf16.msra.mxu0 0
    %2831 = vmatprep.subr.bf16.mxu0 0
    %2832 = vmatpush1.bf16.msra.mxu0 0
    %2833 = vmatprep.subr.bf16.mxu0 0
    %2834 = vmatpush1.bf16.msra.mxu0 0
    %2835 = vmatprep.subr.bf16.mxu0 0
    %2836 = vmatpush1.bf16.msra.mxu0 0
    %2837 = vmatprep.subr.bf16.mxu0 0
    %2838 = vmatpush1.bf16.msra.mxu0 0
    %2839 = vmatprep.subr.bf16.mxu0 0
    %2840 = vmatpush1.bf16.msra.mxu0 0
    %2841 = vmatprep.subr.bf16.mxu0 0
    %2842 = vmatpush1.bf16.msra.mxu0 0
    %2843 = vmatprep.subr.bf16.mxu0 0
    %2844 = vmatpush1.bf16.msra.mxu0 0
    %2845 = vmatprep.subr.bf16.mxu0 0
    %2846 = vmatpush1.bf16.msra.mxu0 0
    %2847 = vmatprep.mubr.bf16.mxu0 0
    %2848 = vmatmul.mubr.bf16.gmra.mrb[0].mxu0 %v2777
    %v2849 = vpop.f32.mrb[0].mxu0
    %v2850 = vadd.f32 0.0, %v2849
    %v2851 = vpop.f32.mrb[0].mxu0
    %v2852 = vadd.f32 0.0, %v2851
    %v2853 = vpop.f32.mrb[0].mxu0
    %v2854 = vpop.f32.mrb[0].mxu0
    %2855 = vdwg.mxu0
    %2856 = vmatprep.subr.bf16.mxu0 %v2789
    %2857 = vmatpush1.bf16.msra.mxu0 %v2786
    %2858 = vmatprep.subr.bf16.mxu0 0
    %2859 = vmatpush1.bf16.msra.mxu0 0
    %2860 = vmatprep.subr.bf16.mxu0 0
    %2861 = vmatpush1.bf16.msra.mxu0 0
    %2862 = vmatprep.subr.bf16.mxu0 0
    %2863 = vmatpush1.bf16.msra.mxu0 0
    %2864 = vmatprep.subr.bf16.mxu0 0
    %2865 = vmatpush1.bf16.msra.mxu0 0
    %2866 = vmatprep.subr.bf16.mxu0 0
    %2867 = vmatpush1.bf16.msra.mxu0 0
    %2868 = vmatprep.subr.bf16.mxu0 0
    %2869 = vmatpush1.bf16.msra.mxu0 0
    %2870 = vmatprep.subr.bf16.mxu0 0
    %2871 = vmatpush1.bf16.msra.mxu0 0
    %2872 = vmatprep.subr.bf16.mxu0 0
    %2873 = vmatpush1.bf16.msra.mxu0 0
    %2874 = vmatprep.subr.bf16.mxu0 0
    %2875 = vmatpush1.bf16.msra.mxu0 0
    %2876 = vmatprep.subr.bf16.mxu0 0
    %2877 = vmatpush1.bf16.msra.mxu0 0
    %2878 = vmatprep.subr.bf16.mxu0 0
    %2879 = vmatpush1.bf16.msra.mxu0 0
    %2880 = vmatprep.subr.bf16.mxu0 0
    %2881 = vmatpush1.bf16.msra.mxu0 0
    %2882 = vmatprep.subr.bf16.mxu0 0
    %2883 = vmatpush1.bf16.msra.mxu0 0
    %2884 = vmatprep.subr.bf16.mxu0 0
    %2885 = vmatpush1.bf16.msra.mxu0 0
    %2886 = vmatprep.subr.bf16.mxu0 0
    %2887 = vmatpush1.bf16.msra.mxu0 0
    %2888 = vmatprep.mubr.bf16.mxu0 0
    %2889 = vmatmul.mubr.bf16.gmra.mrb[0].mxu0 %v2777
    %v2890 = vpop.f32.mrb[0].mxu0
    %v2891 = vadd.f32 0.0, %v2890
    %v2892 = vpop.f32.mrb[0].mxu0
    %v2893 = vadd.f32 0.0, %v2892
    %v2894 = vpop.f32.mrb[0].mxu0
    %v2895 = vpop.f32.mrb[0].mxu0
    %2896 = vdwg.mxu0
    %2897 = vmatprep.subr.bf16.mxu0 %v2795
    %2898 = vmatpush1.bf16.msra.mxu0 %v2792
    %2899 = vmatprep.subr.bf16.mxu0 0
    %2900 = vmatpush1.bf16.msra.mxu0 0
    %2901 = vmatprep.subr.bf16.mxu0 0
    %2902 = vmatpush1.bf16.msra.mxu0 0
    %2903 = vmatprep.subr.bf16.mxu0 0
    %2904 = vmatpush1.bf16.msra.mxu0 0
    %2905 = vmatprep.subr.bf16.mxu0 0
    %2906 = vmatpush1.bf16.msra.mxu0 0
    %2907 = vmatprep.subr.bf16.mxu0 0
    %2908 = vmatpush1.bf16.msra.mxu0 0
    %2909 = vmatprep.subr.bf16.mxu0 0
    %2910 = vmatpush1.bf16.msra.mxu0 0
    %2911 = vmatprep.subr.bf16.mxu0 0
    %2912 = vmatpush1.bf16.msra.mxu0 0
    %2913 = vmatprep.subr.bf16.mxu0 0
    %2914 = vmatpush1.bf16.msra.mxu0 0
    %2915 = vmatprep.subr.bf16.mxu0 0
    %2916 = vmatpush1.bf16.msra.mxu0 0
    %2917 = vmatprep.subr.bf16.mxu0 0
    %2918 = vmatpush1.bf16.msra.mxu0 0
    %2919 = vmatprep.subr.bf16.mxu0 0
    %2920 = vmatpush1.bf16.msra.mxu0 0
    %2921 = vmatprep.subr.bf16.mxu0 0
    %2922 = vmatpush1.bf16.msra.mxu0 0
    %2923 = vmatprep.subr.bf16.mxu0 0
    %2924 = vmatpush1.bf16.msra.mxu0 0
    %2925 = vmatprep.subr.bf16.mxu0 0
    %2926 = vmatpush1.bf16.msra.mxu0 0
    %2927 = vmatprep.subr.bf16.mxu0 0
    %2928 = vmatpush1.bf16.msra.mxu0 0
    %2929 = vmatprep.mubr.bf16.mxu0 0
    %2930 = vmatmul.mubr.bf16.gmra.mrb[0].mxu0 %v2777
    %v2931 = vpop.f32.mrb[0].mxu0
    %v2932 = vadd.f32 0.0, %v2931
    %v2933 = vpop.f32.mrb[0].mxu0
    %v2934 = vadd.f32 0.0, %v2933
    %v2935 = vpop.f32.mrb[0].mxu0
    %v2936 = vpop.f32.mrb[0].mxu0
    %2937 = vdwg.mxu0
    %2938 = vmatprep.subr.bf16.mxu0 %v2801
    %2939 = vmatpush1.bf16.msra.mxu0 %v2798
    %2940 = vmatprep.subr.bf16.mxu0 0
    %2941 = vmatpush1.bf16.msra.mxu0 0
    %2942 = vmatprep.subr.bf16.mxu0 0
    %2943 = vmatpush1.bf16.msra.mxu0 0
    %2944 = vmatprep.subr.bf16.mxu0 0
    %2945 = vmatpush1.bf16.msra.mxu0 0
    %2946 = vmatprep.subr.bf16.mxu0 0
    %2947 = vmatpush1.bf16.msra.mxu0 0
    %2948 = vmatprep.subr.bf16.mxu0 0
    %2949 = vmatpush1.bf16.msra.mxu0 0
    %2950 = vmatprep.subr.bf16.mxu0 0
    %2951 = vmatpush1.bf16.msra.mxu0 0
    %2952 = vmatprep.subr.bf16.mxu0 0
    %2953 = vmatpush1.bf16.msra.mxu0 0
    %2954 = vmatprep.subr.bf16.mxu0 0
    %2955 = vmatpush1.bf16.msra.mxu0 0
    %2956 = vmatprep.subr.bf16.mxu0 0
    %2957 = vmatpush1.bf16.msra.mxu0 0
    %2958 = vmatprep.subr.bf16.mxu0 0
    %2959 = vmatpush1.bf16.msra.mxu0 0
    %2960 = vmatprep.subr.bf16.mxu0 0
    %2961 = vmatpush1.bf16.msra.mxu0 0
    %2962 = vmatprep.subr.bf16.mxu0 0
    %2963 = vmatpush1.bf16.msra.mxu0 0
    %2964 = vmatprep.subr.bf16.mxu0 0
    %2965 = vmatpush1.bf16.msra.mxu0 0
    %2966 = vmatprep.subr.bf16.mxu0 0
    %2967 = vmatpush1.bf16.msra.mxu0 0
    %2968 = vmatprep.subr.bf16.mxu0 0
    %2969 = vmatpush1.bf16.msra.mxu0 0
    %2970 = vmatprep.mubr.bf16.mxu0 0
    %2971 = vmatmul.mubr.bf16.gmra.mrb[0].mxu0 %v2777
    %v2972 = vpop.f32.mrb[0].mxu0
    %v2973 = vadd.f32 0.0, %v2972
    %v2974 = vpop.f32.mrb[0].mxu0
    %v2975 = vadd.f32 0.0, %v2974
    %v2976 = vpop.f32.mrb[0].mxu0
    %v2977 = vpop.f32.mrb[0].mxu0
    %2978 = vdwg.mxu0
    %2979 = vmatprep.subr.bf16.mxu0 %v2807
    %2980 = vmatpush1.bf16.msra.mxu0 %v2804
    %2981 = vmatprep.subr.bf16.mxu0 0
    %2982 = vmatpush1.bf16.msra.mxu0 0
    %2983 = vmatprep.subr.bf16.mxu0 0
    %2984 = vmatpush1.bf16.msra.mxu0 0
    %2985 = vmatprep.subr.bf16.mxu0 0
    %2986 = vmatpush1.bf16.msra.mxu0 0
    %2987 = vmatprep.subr.bf16.mxu0 0
    %2988 = vmatpush1.bf16.msra.mxu0 0
    %2989 = vmatprep.subr.bf16.mxu0 0
    %2990 = vmatpush1.bf16.msra.mxu0 0
    %2991 = vmatprep.subr.bf16.mxu0 0
    %2992 = vmatpush1.bf16.msra.mxu0 0
    %2993 = vmatprep.subr.bf16.mxu0 0
    %2994 = vmatpush1.bf16.msra.mxu0 0
    %2995 = vmatprep.subr.bf16.mxu0 0
    %2996 = vmatpush1.bf16.msra.mxu0 0
    %2997 = vmatprep.subr.bf16.mxu0 0
    %2998 = vmatpush1.bf16.msra.mxu0 0
    %2999 = vmatprep.subr.bf16.mxu0 0
    %3000 = vmatpush1.bf16.msra.mxu0 0
    %3001 = vmatprep.subr.bf16.mxu0 0
    %3002 = vmatpush1.bf16.msra.mxu0 0
    %3003 = vmatprep.subr.bf16.mxu0 0
    %3004 = vmatpush1.bf16.msra.mxu0 0
    %3005 = vmatprep.subr.bf16.mxu0 0
    %3006 = vmatpush1.bf16.msra.mxu0 0
    %3007 = vmatprep.subr.bf16.mxu0 0
    %3008 = vmatpush1.bf16.msra.mxu0 0
    %3009 = vmatprep.subr.bf16.mxu0 0
    %3010 = vmatpush1.bf16.msra.mxu0 0
    %3011 = vmatprep.mubr.bf16.mxu0 0
    %3012 = vmatmul.mubr.bf16.gmra.mrb[0].mxu0 %v2777
    %v3013 = vpop.f32.mrb[0].mxu0
    %v3014 = vadd.f32 0.0, %v3013
    %v3015 = vpop.f32.mrb[0].mxu0
    %v3016 = vadd.f32 0.0, %v3015
    %v3017 = vpop.f32.mrb[0].mxu0
    %v3018 = vpop.f32.mrb[0].mxu0
    %3019 = vdwg.mxu0
    %3020 = vmatprep.subr.bf16.mxu0 %v2813
    %3021 = vmatpush1.bf16.msra.mxu0 %v2810
    %3022 = vmatprep.subr.bf16.mxu0 0
    %3023 = vmatpush1.bf16.msra.mxu0 0
    %3024 = vmatprep.subr.bf16.mxu0 0
    %3025 = vmatpush1.bf16.msra.mxu0 0
    %3026 = vmatprep.subr.bf16.mxu0 0
    %3027 = vmatpush1.bf16.msra.mxu0 0
    %3028 = vmatprep.subr.bf16.mxu0 0
    %3029 = vmatpush1.bf16.msra.mxu0 0
    %3030 = vmatprep.subr.bf16.mxu0 0
    %3031 = vmatpush1.bf16.msra.mxu0 0
    %3032 = vmatprep.subr.bf16.mxu0 0
    %3033 = vmatpush1.bf16.msra.mxu0 0
    %3034 = vmatprep.subr.bf16.mxu0 0
    %3035 = vmatpush1.bf16.msra.mxu0 0
    %3036 = vmatprep.subr.bf16.mxu0 0
    %3037 = vmatpush1.bf16.msra.mxu0 0
    %3038 = vmatprep.subr.bf16.mxu0 0
    %3039 = vmatpush1.bf16.msra.mxu0 0
    %3040 = vmatprep.subr.bf16.mxu0 0
    %3041 = vmatpush1.bf16.msra.mxu0 0
    %3042 = vmatprep.subr.bf16.mxu0 0
    %3043 = vmatpush1.bf16.msra.mxu0 0
    %3044 = vmatprep.subr.bf16.mxu0 0
    %3045 = vmatpush1.bf16.msra.mxu0 0
    %3046 = vmatprep.subr.bf16.mxu0 0
    %3047 = vmatpush1.bf16.msra.mxu0 0
    %3048 = vmatprep.subr.bf16.mxu0 0
    %3049 = vmatpush1.bf16.msra.mxu0 0
    %3050 = vmatprep.subr.bf16.mxu0 0
    %3051 = vmatpush1.bf16.msra.mxu0 0
    %3052 = vmatprep.mubr.bf16.mxu0 0
    %3053 = vmatmul.mubr.bf16.gmra.mrb[0].mxu0 %v2777
    %v3054 = vpop.f32.mrb[0].mxu0
    %v3055 = vadd.f32 0.0, %v3054
    %v3056 = vpop.f32.mrb[0].mxu0
    %v3057 = vadd.f32 0.0, %v3056
    %v3058 = vpop.f32.mrb[0].mxu0
    %v3059 = vpop.f32.mrb[0].mxu0
    %3060 = vdwg.mxu0
    %v3061 = vadd.f32 %v2633, %v2850
    %v3062 = vadd.f32 %v2634, %v2852
    %v3063 = vadd.f32 %v2635, %v2891
    %v3064 = vadd.f32 %v2636, %v2893
    %v3065 = vadd.f32 %v2637, %v2932
    %v3066 = vadd.f32 %v2638, %v2934
    %v3067 = vadd.f32 %v2639, %v2973
    %v3068 = vadd.f32 %v2640, %v2975
    %v3069 = vadd.f32 %v2641, %v3014
    %v3070 = vadd.f32 %v2642, %v3016
    %v3071 = vadd.f32 %v2643, %v3055
    %v3072 = vadd.f32 %v2644, %v3057
    %3073 = vrot.lane.b32.xlu0 %v87, 56
    %v3074 = vpop.permute.xlu0 %3073
    %3075 = vrot.lane.b32.xlu0 %v88, 56
    %v3076 = vpop.permute.xlu0 %3075
    %3077 = vrot.lane.b32.xlu0 %v89, 56
    %v3078 = vpop.permute.xlu0 %3077
    %3079 = vrot.lane.b32.xlu0 %v90, 56
    %v3080 = vpop.permute.xlu0 %3079
    %3081 = vrot.lane.b32.xlu0 %v91, 56
    %v3082 = vpop.permute.xlu0 %3081
    %3083 = vrot.lane.b32.xlu0 %v92, 56
    %v3084 = vpop.permute.xlu0 %3083
    %3085 = vrot.lane.b32.xlu0 %v93, 56
    %v3086 = vpop.permute.xlu0 %3085
    %3087 = vrot.lane.b32.xlu0 %v94, 56
    %v3088 = vpop.permute.xlu0 %3087
    %3089 = vrot.lane.b32.xlu0 %v95, 56
    %v3090 = vpop.permute.xlu0 %3089
    %3091 = vrot.lane.b32.xlu0 %v96, 56
    %v3092 = vpop.permute.xlu0 %3091
    %3093 = vrot.lane.b32.xlu0 %v97, 56
    %v3094 = vpop.permute.xlu0 %3093
    %3095 = vrot.lane.b32.xlu0 %v98, 56
    %v3096 = vpop.permute.xlu0 %3095
    %vm3097 = vcmp.lt.s32.totalorder %v124, 56
    %v3098 = vsel %vm3097, %v3094, %v3096
    %v3099 = vsel %vm3097, %v3092, %v3094
    %v3100 = vsel %vm3097, %v3090, %v3092
    %v3101 = vsel %vm3097, %v3088, %v3090
    %v3102 = vsel %vm3097, %v3086, %v3088
    %v3103 = vsel %vm3097, %v3084, %v3086
    %v3104 = vsel %vm3097, %v3082, %v3084
    %v3105 = vsel %vm3097, %v3080, %v3082
    %v3106 = vsel %vm3097, %v3078, %v3080
    %v3107 = vsel %vm3097, %v3076, %v3078
    %v3108 = vsel %vm3097, %v3074, %v3076
    %v3109 = vsel %vm3097, %v3096, %v3074
    %s3110 = scalar_lea.vmem [#allocation3], 7
    %v3111 = vld [vmem:[%s3110] ss:$8 sm:$0xf]
    %v3112 = vld [vmem:[%s3110] ss:$8 sm:$0xf0]
    %v3113 = vor.u32 %v3111, %v3112
    %s3114 = scalar_lea.vmem [#allocation3], 71
    %v3115 = vld [vmem:[%s3114] ss:$8 sm:$0xf]
    %v3118 = vlaneseq
    %v3119 = vshrl.u32 %v3118, 7
    %v3120 = vsub.s32 0, %v3119
    %v3121 = vrot.slane %v3113, %v3120
    %v3122 = vlaneseq
    %v3123 = vshrl.u32 %v3122, 7
    %v3124 = vsub.s32 1, %v3123
    %v3125 = vrot.slane %v3113, %v3124
    %v3126 = vlaneseq
    %v3127 = vshrl.u32 %v3126, 7
    %v3128 = vsub.s32 2, %v3127
    %v3129 = vrot.slane %v3113, %v3128
    %v3130 = vlaneseq
    %v3131 = vshrl.u32 %v3130, 7
    %v3132 = vsub.s32 3, %v3131
    %v3133 = vrot.slane %v3113, %v3132
    %v3134 = vlaneseq
    %v3135 = vshrl.u32 %v3134, 7
    %v3136 = vsub.s32 4, %v3135
    %v3137 = vrot.slane %v3113, %v3136
    %v3138 = vlaneseq
    %v3139 = vshrl.u32 %v3138, 7
    %v3140 = vsub.s32 5, %v3139
    %v3141 = vrot.slane %v3113, %v3140
    %v3142 = vlaneseq
    %v3143 = vshrl.u32 %v3142, 7
    %v3144 = vsub.s32 6, %v3143
    %v3145 = vrot.slane %v3113, %v3144
    %v3146 = vlaneseq
    %v3147 = vshrl.u32 %v3146, 7
    %v3148 = vsub.s32 7, %v3147
    %v3149 = vrot.slane %v3113, %v3148
    %v3150 = vlaneseq
    %v3151 = vshrl.u32 %v3150, 7
    %v3152 = vsub.s32 0, %v3151
    %v3153 = vrot.slane %v3115, %v3152
    %v3154 = vlaneseq
    %v3155 = vshrl.u32 %v3154, 7
    %v3156 = vsub.s32 1, %v3155
    %v3157 = vrot.slane %v3115, %v3156
    %v3158 = vlaneseq
    %v3159 = vshrl.u32 %v3158, 7
    %v3160 = vsub.s32 2, %v3159
    %v3161 = vrot.slane %v3115, %v3160
    %v3162 = vlaneseq
    %v3163 = vshrl.u32 %v3162, 7
    %v3164 = vsub.s32 3, %v3163
    %v3165 = vrot.slane %v3115, %v3164
    %v3178 = vmul.f32 %v3109, %v3121
    %v3179 = vmul.f32 %v3108, %v3125
    %v3180 = vmul.f32 %v3107, %v3129
    %v3181 = vmul.f32 %v3106, %v3133
    %v3182 = vmul.f32 %v3105, %v3137
    %v3183 = vmul.f32 %v3104, %v3141
    %v3184 = vmul.f32 %v3103, %v3145
    %v3185 = vmul.f32 %v3102, %v3149
    %v3186 = vmul.f32 %v3101, %v3153
    %v3187 = vmul.f32 %v3100, %v3157
    %v3188 = vmul.f32 %v3099, %v3161
    %v3189 = vmul.f32 %v3098, %v3165
    %s3190 = scalar_lea.vmem %s1, 28
    %v3191 = vld [vmem:[%s3190] sm:$0xf]
    %v3192 = vpack.c.bf16 %v3178, %v3178
    %v3193 = vpack.c.bf16 %v3179, %v3179
    %v3194 = vpack.c.bf16 %v3180, %v3180
    %v3195 = vpack.c.bf16 %v3181, %v3181
    %v3196 = vpack.c.bf16 %v3182, %v3182
    %v3197 = vpack.c.bf16 %v3183, %v3183
    %v3198 = vpack.c.bf16 %v3184, %v3184
    %v3199 = vpack.c.bf16 %v3185, %v3185
    %v3200 = vpack.c.bf16 %v3186, %v3186
    %v3201 = vpack.c.bf16 %v3187, %v3187
    %v3202 = vpack.c.bf16 %v3188, %v3188
    %v3203 = vpack.c.bf16 %v3189, %v3189
    %v3205 = vsel %vm361, %v3191, 0
    %v3208 = vsel %vm365, %v3192, 0
    %v3211 = vsel %vm365, %v3193, 0
    %v3214 = vsel %vm365, %v3194, 0
    %v3217 = vsel %vm365, %v3195, 0
    %v3220 = vsel %vm365, %v3196, 0
    %v3223 = vsel %vm365, %v3197, 0
    %v3226 = vsel %vm365, %v3198, 0
    %v3229 = vsel %vm365, %v3199, 0
    %v3232 = vsel %vm365, %v3200, 0
    %v3235 = vsel %vm365, %v3201, 0
    %v3238 = vsel %vm365, %v3202, 0
    %v3241 = vsel %vm365, %v3203, 0
    %3243 = vmatprep.subr.bf16.mxu0 %v3211
    %3244 = vmatpush1.bf16.msra.mxu0 %v3208
    %3245 = vmatprep.subr.bf16.mxu0 0
    %3246 = vmatpush1.bf16.msra.mxu0 0
    %3247 = vmatprep.subr.bf16.mxu0 0
    %3248 = vmatpush1.bf16.msra.mxu0 0
    %3249 = vmatprep.subr.bf16.mxu0 0
    %3250 = vmatpush1.bf16.msra.mxu0 0
    %3251 = vmatprep.subr.bf16.mxu0 0
    %3252 = vmatpush1.bf16.msra.mxu0 0
    %3253 = vmatprep.subr.bf16.mxu0 0
    %3254 = vmatpush1.bf16.msra.mxu0 0
    %3255 = vmatprep.subr.bf16.mxu0 0
    %3256 = vmatpush1.bf16.msra.mxu0 0
    %3257 = vmatprep.subr.bf16.mxu0 0
    %3258 = vmatpush1.bf16.msra.mxu0 0
    %3259 = vmatprep.subr.bf16.mxu0 0
    %3260 = vmatpush1.bf16.msra.mxu0 0
    %3261 = vmatprep.subr.bf16.mxu0 0
    %3262 = vmatpush1.bf16.msra.mxu0 0
    %3263 = vmatprep.subr.bf16.mxu0 0
    %3264 = vmatpush1.bf16.msra.mxu0 0
    %3265 = vmatprep.subr.bf16.mxu0 0
    %3266 = vmatpush1.bf16.msra.mxu0 0
    %3267 = vmatprep.subr.bf16.mxu0 0
    %3268 = vmatpush1.bf16.msra.mxu0 0
    %3269 = vmatprep.subr.bf16.mxu0 0
    %3270 = vmatpush1.bf16.msra.mxu0 0
    %3271 = vmatprep.subr.bf16.mxu0 0
    %3272 = vmatpush1.bf16.msra.mxu0 0
    %3273 = vmatprep.subr.bf16.mxu0 0
    %3274 = vmatpush1.bf16.msra.mxu0 0
    %3275 = vmatprep.mubr.bf16.mxu0 0
    %3276 = vmatmul.mubr.bf16.gmra.mrb[0].mxu0 %v3205
    %v3277 = vpop.f32.mrb[0].mxu0
    %v3278 = vadd.f32 0.0, %v3277
    %v3279 = vpop.f32.mrb[0].mxu0
    %v3280 = vadd.f32 0.0, %v3279
    %v3281 = vpop.f32.mrb[0].mxu0
    %v3282 = vpop.f32.mrb[0].mxu0
    %3283 = vdwg.mxu0
    %3284 = vmatprep.subr.bf16.mxu0 %v3217
    %3285 = vmatpush1.bf16.msra.mxu0 %v3214
    %3286 = vmatprep.subr.bf16.mxu0 0
    %3287 = vmatpush1.bf16.msra.mxu0 0
    %3288 = vmatprep.subr.bf16.mxu0 0
    %3289 = vmatpush1.bf16.msra.mxu0 0
    %3290 = vmatprep.subr.bf16.mxu0 0
    %3291 = vmatpush1.bf16.msra.mxu0 0
    %3292 = vmatprep.subr.bf16.mxu0 0
    %3293 = vmatpush1.bf16.msra.mxu0 0
    %3294 = vmatprep.subr.bf16.mxu0 0
    %3295 = vmatpush1.bf16.msra.mxu0 0
    %3296 = vmatprep.subr.bf16.mxu0 0
    %3297 = vmatpush1.bf16.msra.mxu0 0
    %3298 = vmatprep.subr.bf16.mxu0 0
    %3299 = vmatpush1.bf16.msra.mxu0 0
    %3300 = vmatprep.subr.bf16.mxu0 0
    %3301 = vmatpush1.bf16.msra.mxu0 0
    %3302 = vmatprep.subr.bf16.mxu0 0
    %3303 = vmatpush1.bf16.msra.mxu0 0
    %3304 = vmatprep.subr.bf16.mxu0 0
    %3305 = vmatpush1.bf16.msra.mxu0 0
    %3306 = vmatprep.subr.bf16.mxu0 0
    %3307 = vmatpush1.bf16.msra.mxu0 0
    %3308 = vmatprep.subr.bf16.mxu0 0
    %3309 = vmatpush1.bf16.msra.mxu0 0
    %3310 = vmatprep.subr.bf16.mxu0 0
    %3311 = vmatpush1.bf16.msra.mxu0 0
    %3312 = vmatprep.subr.bf16.mxu0 0
    %3313 = vmatpush1.bf16.msra.mxu0 0
    %3314 = vmatprep.subr.bf16.mxu0 0
    %3315 = vmatpush1.bf16.msra.mxu0 0
    %3316 = vmatprep.mubr.bf16.mxu0 0
    %3317 = vmatmul.mubr.bf16.gmra.mrb[0].mxu0 %v3205
    %v3318 = vpop.f32.mrb[0].mxu0
    %v3319 = vadd.f32 0.0, %v3318
    %v3320 = vpop.f32.mrb[0].mxu0
    %v3321 = vadd.f32 0.0, %v3320
    %v3322 = vpop.f32.mrb[0].mxu0
    %v3323 = vpop.f32.mrb[0].mxu0
    %3324 = vdwg.mxu0
    %3325 = vmatprep.subr.bf16.mxu0 %v3223
    %3326 = vmatpush1.bf16.msra.mxu0 %v3220
    %3327 = vmatprep.subr.bf16.mxu0 0
    %3328 = vmatpush1.bf16.msra.mxu0 0
    %3329 = vmatprep.subr.bf16.mxu0 0
    %3330 = vmatpush1.bf16.msra.mxu0 0
    %3331 = vmatprep.subr.bf16.mxu0 0
    %3332 = vmatpush1.bf16.msra.mxu0 0
    %3333 = vmatprep.subr.bf16.mxu0 0
    %3334 = vmatpush1.bf16.msra.mxu0 0
    %3335 = vmatprep.subr.bf16.mxu0 0
    %3336 = vmatpush1.bf16.msra.mxu0 0
    %3337 = vmatprep.subr.bf16.mxu0 0
    %3338 = vmatpush1.bf16.msra.mxu0 0
    %3339 = vmatprep.subr.bf16.mxu0 0
    %3340 = vmatpush1.bf16.msra.mxu0 0
    %3341 = vmatprep.subr.bf16.mxu0 0
    %3342 = vmatpush1.bf16.msra.mxu0 0
    %3343 = vmatprep.subr.bf16.mxu0 0
    %3344 = vmatpush1.bf16.msra.mxu0 0
    %3345 = vmatprep.subr.bf16.mxu0 0
    %3346 = vmatpush1.bf16.msra.mxu0 0
    %3347 = vmatprep.subr.bf16.mxu0 0
    %3348 = vmatpush1.bf16.msra.mxu0 0
    %3349 = vmatprep.subr.bf16.mxu0 0
    %3350 = vmatpush1.bf16.msra.mxu0 0
    %3351 = vmatprep.subr.bf16.mxu0 0
    %3352 = vmatpush1.bf16.msra.mxu0 0
    %3353 = vmatprep.subr.bf16.mxu0 0
    %3354 = vmatpush1.bf16.msra.mxu0 0
    %3355 = vmatprep.subr.bf16.mxu0 0
    %3356 = vmatpush1.bf16.msra.mxu0 0
    %3357 = vmatprep.mubr.bf16.mxu0 0
    %3358 = vmatmul.mubr.bf16.gmra.mrb[0].mxu0 %v3205
    %v3359 = vpop.f32.mrb[0].mxu0
    %v3360 = vadd.f32 0.0, %v3359
    %v3361 = vpop.f32.mrb[0].mxu0
    %v3362 = vadd.f32 0.0, %v3361
    %v3363 = vpop.f32.mrb[0].mxu0
    %v3364 = vpop.f32.mrb[0].mxu0
    %3365 = vdwg.mxu0
    %3366 = vmatprep.subr.bf16.mxu0 %v3229
    %3367 = vmatpush1.bf16.msra.mxu0 %v3226
    %3368 = vmatprep.subr.bf16.mxu0 0
    %3369 = vmatpush1.bf16.msra.mxu0 0
    %3370 = vmatprep.subr.bf16.mxu0 0
    %3371 = vmatpush1.bf16.msra.mxu0 0
    %3372 = vmatprep.subr.bf16.mxu0 0
    %3373 = vmatpush1.bf16.msra.mxu0 0
    %3374 = vmatprep.subr.bf16.mxu0 0
    %3375 = vmatpush1.bf16.msra.mxu0 0
    %3376 = vmatprep.subr.bf16.mxu0 0
    %3377 = vmatpush1.bf16.msra.mxu0 0
    %3378 = vmatprep.subr.bf16.mxu0 0
    %3379 = vmatpush1.bf16.msra.mxu0 0
    %3380 = vmatprep.subr.bf16.mxu0 0
    %3381 = vmatpush1.bf16.msra.mxu0 0
    %3382 = vmatprep.subr.bf16.mxu0 0
    %3383 = vmatpush1.bf16.msra.mxu0 0
    %3384 = vmatprep.subr.bf16.mxu0 0
    %3385 = vmatpush1.bf16.msra.mxu0 0
    %3386 = vmatprep.subr.bf16.mxu0 0
    %3387 = vmatpush1.bf16.msra.mxu0 0
    %3388 = vmatprep.subr.bf16.mxu0 0
    %3389 = vmatpush1.bf16.msra.mxu0 0
    %3390 = vmatprep.subr.bf16.mxu0 0
    %3391 = vmatpush1.bf16.msra.mxu0 0
    %3392 = vmatprep.subr.bf16.mxu0 0
    %3393 = vmatpush1.bf16.msra.mxu0 0
    %3394 = vmatprep.subr.bf16.mxu0 0
    %3395 = vmatpush1.bf16.msra.mxu0 0
    %3396 = vmatprep.subr.bf16.mxu0 0
    %3397 = vmatpush1.bf16.msra.mxu0 0
    %3398 = vmatprep.mubr.bf16.mxu0 0
    %3399 = vmatmul.mubr.bf16.gmra.mrb[0].mxu0 %v3205
    %v3400 = vpop.f32.mrb[0].mxu0
    %v3401 = vadd.f32 0.0, %v3400
    %v3402 = vpop.f32.mrb[0].mxu0
    %v3403 = vadd.f32 0.0, %v3402
    %v3404 = vpop.f32.mrb[0].mxu0
    %v3405 = vpop.f32.mrb[0].mxu0
    %3406 = vdwg.mxu0
    %3407 = vmatprep.subr.bf16.mxu0 %v3235
    %3408 = vmatpush1.bf16.msra.mxu0 %v3232
    %3409 = vmatprep.subr.bf16.mxu0 0
    %3410 = vmatpush1.bf16.msra.mxu0 0
    %3411 = vmatprep.subr.bf16.mxu0 0
    %3412 = vmatpush1.bf16.msra.mxu0 0
    %3413 = vmatprep.subr.bf16.mxu0 0
    %3414 = vmatpush1.bf16.msra.mxu0 0
    %3415 = vmatprep.subr.bf16.mxu0 0
    %3416 = vmatpush1.bf16.msra.mxu0 0
    %3417 = vmatprep.subr.bf16.mxu0 0
    %3418 = vmatpush1.bf16.msra.mxu0 0
    %3419 = vmatprep.subr.bf16.mxu0 0
    %3420 = vmatpush1.bf16.msra.mxu0 0
    %3421 = vmatprep.subr.bf16.mxu0 0
    %3422 = vmatpush1.bf16.msra.mxu0 0
    %3423 = vmatprep.subr.bf16.mxu0 0
    %3424 = vmatpush1.bf16.msra.mxu0 0
    %3425 = vmatprep.subr.bf16.mxu0 0
    %3426 = vmatpush1.bf16.msra.mxu0 0
    %3427 = vmatprep.subr.bf16.mxu0 0
    %3428 = vmatpush1.bf16.msra.mxu0 0
    %3429 = vmatprep.subr.bf16.mxu0 0
    %3430 = vmatpush1.bf16.msra.mxu0 0
    %3431 = vmatprep.subr.bf16.mxu0 0
    %3432 = vmatpush1.bf16.msra.mxu0 0
    %3433 = vmatprep.subr.bf16.mxu0 0
    %3434 = vmatpush1.bf16.msra.mxu0 0
    %3435 = vmatprep.subr.bf16.mxu0 0
    %3436 = vmatpush1.bf16.msra.mxu0 0
    %3437 = vmatprep.subr.bf16.mxu0 0
    %3438 = vmatpush1.bf16.msra.mxu0 0
    %3439 = vmatprep.mubr.bf16.mxu0 0
    %3440 = vmatmul.mubr.bf16.gmra.mrb[0].mxu0 %v3205
    %v3441 = vpop.f32.mrb[0].mxu0
    %v3442 = vadd.f32 0.0, %v3441
    %v3443 = vpop.f32.mrb[0].mxu0
    %v3444 = vadd.f32 0.0, %v3443
    %v3445 = vpop.f32.mrb[0].mxu0
    %v3446 = vpop.f32.mrb[0].mxu0
    %3447 = vdwg.mxu0
    %3448 = vmatprep.subr.bf16.mxu0 %v3241
    %3449 = vmatpush1.bf16.msra.mxu0 %v3238
    %3450 = vmatprep.subr.bf16.mxu0 0
    %3451 = vmatpush1.bf16.msra.mxu0 0
    %3452 = vmatprep.subr.bf16.mxu0 0
    %3453 = vmatpush1.bf16.msra.mxu0 0
    %3454 = vmatprep.subr.bf16.mxu0 0
    %3455 = vmatpush1.bf16.msra.mxu0 0
    %3456 = vmatprep.subr.bf16.mxu0 0
    %3457 = vmatpush1.bf16.msra.mxu0 0
    %3458 = vmatprep.subr.bf16.mxu0 0
    %3459 = vmatpush1.bf16.msra.mxu0 0
    %3460 = vmatprep.subr.bf16.mxu0 0
    %3461 = vmatpush1.bf16.msra.mxu0 0
    %3462 = vmatprep.subr.bf16.mxu0 0
    %3463 = vmatpush1.bf16.msra.mxu0 0
    %3464 = vmatprep.subr.bf16.mxu0 0
    %3465 = vmatpush1.bf16.msra.mxu0 0
    %3466 = vmatprep.subr.bf16.mxu0 0
    %3467 = vmatpush1.bf16.msra.mxu0 0
    %3468 = vmatprep.subr.bf16.mxu0 0
    %3469 = vmatpush1.bf16.msra.mxu0 0
    %3470 = vmatprep.subr.bf16.mxu0 0
    %3471 = vmatpush1.bf16.msra.mxu0 0
    %3472 = vmatprep.subr.bf16.mxu0 0
    %3473 = vmatpush1.bf16.msra.mxu0 0
    %3474 = vmatprep.subr.bf16.mxu0 0
    %3475 = vmatpush1.bf16.msra.mxu0 0
    %3476 = vmatprep.subr.bf16.mxu0 0
    %3477 = vmatpush1.bf16.msra.mxu0 0
    %3478 = vmatprep.subr.bf16.mxu0 0
    %3479 = vmatpush1.bf16.msra.mxu0 0
    %3480 = vmatprep.mubr.bf16.mxu0 0
    %3481 = vmatmul.mubr.bf16.gmra.mrb[0].mxu0 %v3205
    %v3482 = vpop.f32.mrb[0].mxu0
    %v3483 = vadd.f32 0.0, %v3482
    %v3484 = vpop.f32.mrb[0].mxu0
    %v3485 = vadd.f32 0.0, %v3484
    %v3486 = vpop.f32.mrb[0].mxu0
    %v3487 = vpop.f32.mrb[0].mxu0
    %3488 = vdwg.mxu0
    %v3489 = vadd.f32 %v3061, %v3278
    %v3490 = vadd.f32 %v3062, %v3280
    %v3491 = vadd.f32 %v3063, %v3319
    %v3492 = vadd.f32 %v3064, %v3321
    %v3493 = vadd.f32 %v3065, %v3360
    %v3494 = vadd.f32 %v3066, %v3362
    %v3495 = vadd.f32 %v3067, %v3401
    %v3496 = vadd.f32 %v3068, %v3403
    %v3497 = vadd.f32 %v3069, %v3442
    %v3498 = vadd.f32 %v3070, %v3444
    %v3499 = vadd.f32 %v3071, %v3483
    %v3500 = vadd.f32 %v3072, %v3485
    %3501 = vrot.lane.b32.xlu0 %v87, 55
    %v3502 = vpop.permute.xlu0 %3501
    %3503 = vrot.lane.b32.xlu0 %v88, 55
    %v3504 = vpop.permute.xlu0 %3503
    %3505 = vrot.lane.b32.xlu0 %v89, 55
    %v3506 = vpop.permute.xlu0 %3505
    %3507 = vrot.lane.b32.xlu0 %v90, 55
    %v3508 = vpop.permute.xlu0 %3507
    %3509 = vrot.lane.b32.xlu0 %v91, 55
    %v3510 = vpop.permute.xlu0 %3509
    %3511 = vrot.lane.b32.xlu0 %v92, 55
    %v3512 = vpop.permute.xlu0 %3511
    %3513 = vrot.lane.b32.xlu0 %v93, 55
    %v3514 = vpop.permute.xlu0 %3513
    %3515 = vrot.lane.b32.xlu0 %v94, 55
    %v3516 = vpop.permute.xlu0 %3515
    %3517 = vrot.lane.b32.xlu0 %v95, 55
    %v3518 = vpop.permute.xlu0 %3517
    %3519 = vrot.lane.b32.xlu0 %v96, 55
    %v3520 = vpop.permute.xlu0 %3519
    %3521 = vrot.lane.b32.xlu0 %v97, 55
    %v3522 = vpop.permute.xlu0 %3521
    %3523 = vrot.lane.b32.xlu0 %v98, 55
    %v3524 = vpop.permute.xlu0 %3523
    %vm3525 = vcmp.lt.s32.totalorder %v124, 55
    %v3526 = vsel %vm3525, %v3522, %v3524
    %v3527 = vsel %vm3525, %v3520, %v3522
    %v3528 = vsel %vm3525, %v3518, %v3520
    %v3529 = vsel %vm3525, %v3516, %v3518
    %v3530 = vsel %vm3525, %v3514, %v3516
    %v3531 = vsel %vm3525, %v3512, %v3514
    %v3532 = vsel %vm3525, %v3510, %v3512
    %v3533 = vsel %vm3525, %v3508, %v3510
    %v3534 = vsel %vm3525, %v3506, %v3508
    %v3535 = vsel %vm3525, %v3504, %v3506
    %v3536 = vsel %vm3525, %v3502, %v3504
    %v3537 = vsel %vm3525, %v3524, %v3502
    %s3538 = scalar_lea.vmem [#allocation3], 96
    %v3539 = vld [vmem:[%s3538] ss:$8 sm:$0xf]
    %v3540 = vld [vmem:[%s3538] ss:$8 sm:$0xf0]
    %v3541 = vor.u32 %v3539, %v3540
    %s3542 = scalar_lea.vmem [#allocation3], 160
    %v3543 = vld [vmem:[%s3542] ss:$8 sm:$0xf]
    %v3546 = vlaneseq
    %v3547 = vshrl.u32 %v3546, 7
    %v3548 = vsub.s32 0, %v3547
    %v3549 = vrot.slane %v3541, %v3548
    %v3550 = vlaneseq
    %v3551 = vshrl.u32 %v3550, 7
    %v3552 = vsub.s32 1, %v3551
    %v3553 = vrot.slane %v3541, %v3552
    %v3554 = vlaneseq
    %v3555 = vshrl.u32 %v3554, 7
    %v3556 = vsub.s32 2, %v3555
    %v3557 = vrot.slane %v3541, %v3556
    %v3558 = vlaneseq
    %v3559 = vshrl.u32 %v3558, 7
    %v3560 = vsub.s32 3, %v3559
    %v3561 = vrot.slane %v3541, %v3560
    %v3562 = vlaneseq
    %v3563 = vshrl.u32 %v3562, 7
    %v3564 = vsub.s32 4, %v3563
    %v3565 = vrot.slane %v3541, %v3564
    %v3566 = vlaneseq
    %v3567 = vshrl.u32 %v3566, 7
    %v3568 = vsub.s32 5, %v3567
    %v3569 = vrot.slane %v3541, %v3568
    %v3570 = vlaneseq
    %v3571 = vshrl.u32 %v3570, 7
    %v3572 = vsub.s32 6, %v3571
    %v3573 = vrot.slane %v3541, %v3572
    %v3574 = vlaneseq
    %v3575 = vshrl.u32 %v3574, 7
    %v3576 = vsub.s32 7, %v3575
    %v3577 = vrot.slane %v3541, %v3576
    %v3578 = vlaneseq
    %v3579 = vshrl.u32 %v3578, 7
    %v3580 = vsub.s32 0, %v3579
    %v3581 = vrot.slane %v3543, %v3580
    %v3582 = vlaneseq
    %v3583 = vshrl.u32 %v3582, 7
    %v3584 = vsub.s32 1, %v3583
    %v3585 = vrot.slane %v3543, %v3584
    %v3586 = vlaneseq
    %v3587 = vshrl.u32 %v3586, 7
    %v3588 = vsub.s32 2, %v3587
    %v3589 = vrot.slane %v3543, %v3588
    %v3590 = vlaneseq
    %v3591 = vshrl.u32 %v3590, 7
    %v3592 = vsub.s32 3, %v3591
    %v3593 = vrot.slane %v3543, %v3592
    %v3606 = vmul.f32 %v3537, %v3549
    %v3607 = vmul.f32 %v3536, %v3553
    %v3608 = vmul.f32 %v3535, %v3557
    %v3609 = vmul.f32 %v3534, %v3561
    %v3610 = vmul.f32 %v3533, %v3565
    %v3611 = vmul.f32 %v3532, %v3569
    %v3612 = vmul.f32 %v3531, %v3573
    %v3613 = vmul.f32 %v3530, %v3577
    %v3614 = vmul.f32 %v3529, %v3581
    %v3615 = vmul.f32 %v3528, %v3585
    %v3616 = vmul.f32 %v3527, %v3589
    %v3617 = vmul.f32 %v3526, %v3593
    %s3618 = scalar_lea.vmem %s1, 32
    %v3619 = vld [vmem:[%s3618] sm:$0xf]
    %v3620 = vpack.c.bf16 %v3606, %v3606
    %v3621 = vpack.c.bf16 %v3607, %v3607
    %v3622 = vpack.c.bf16 %v3608, %v3608
    %v3623 = vpack.c.bf16 %v3609, %v3609
    %v3624 = vpack.c.bf16 %v3610, %v3610
    %v3625 = vpack.c.bf16 %v3611, %v3611
    %v3626 = vpack.c.bf16 %v3612, %v3612
    %v3627 = vpack.c.bf16 %v3613, %v3613
    %v3628 = vpack.c.bf16 %v3614, %v3614
    %v3629 = vpack.c.bf16 %v3615, %v3615
    %v3630 = vpack.c.bf16 %v3616, %v3616
    %v3631 = vpack.c.bf16 %v3617, %v3617
    %v3633 = vsel %vm361, %v3619, 0
    %v3636 = vsel %vm365, %v3620, 0
    %v3639 = vsel %vm365, %v3621, 0
    %v3642 = vsel %vm365, %v3622, 0
    %v3645 = vsel %vm365, %v3623, 0
    %v3648 = vsel %vm365, %v3624, 0
    %v3651 = vsel %vm365, %v3625, 0
    %v3654 = vsel %vm365, %v3626, 0
    %v3657 = vsel %vm365, %v3627, 0
    %v3660 = vsel %vm365, %v3628, 0
    %v3663 = vsel %vm365, %v3629, 0
    %v3666 = vsel %vm365, %v3630, 0
    %v3669 = vsel %vm365, %v3631, 0
    %3671 = vmatprep.subr.bf16.mxu0 %v3639
    %3672 = vmatpush1.bf16.msra.mxu0 %v3636
    %3673 = vmatprep.subr.bf16.mxu0 0
    %3674 = vmatpush1.bf16.msra.mxu0 0
    %3675 = vmatprep.subr.bf16.mxu0 0
    %3676 = vmatpush1.bf16.msra.mxu0 0
    %3677 = vmatprep.subr.bf16.mxu0 0
    %3678 = vmatpush1.bf16.msra.mxu0 0
    %3679 = vmatprep.subr.bf16.mxu0 0
    %3680 = vmatpush1.bf16.msra.mxu0 0
    %3681 = vmatprep.subr.bf16.mxu0 0
    %3682 = vmatpush1.bf16.msra.mxu0 0
    %3683 = vmatprep.subr.bf16.mxu0 0
    %3684 = vmatpush1.bf16.msra.mxu0 0
    %3685 = vmatprep.subr.bf16.mxu0 0
    %3686 = vmatpush1.bf16.msra.mxu0 0
    %3687 = vmatprep.subr.bf16.mxu0 0
    %3688 = vmatpush1.bf16.msra.mxu0 0
    %3689 = vmatprep.subr.bf16.mxu0 0
    %3690 = vmatpush1.bf16.msra.mxu0 0
    %3691 = vmatprep.subr.bf16.mxu0 0
    %3692 = vmatpush1.bf16.msra.mxu0 0
    %3693 = vmatprep.subr.bf16.mxu0 0
    %3694 = vmatpush1.bf16.msra.mxu0 0
    %3695 = vmatprep.subr.bf16.mxu0 0
    %3696 = vmatpush1.bf16.msra.mxu0 0
    %3697 = vmatprep.subr.bf16.mxu0 0
    %3698 = vmatpush1.bf16.msra.mxu0 0
    %3699 = vmatprep.subr.bf16.mxu0 0
    %3700 = vmatpush1.bf16.msra.mxu0 0
    %3701 = vmatprep.subr.bf16.mxu0 0
    %3702 = vmatpush1.bf16.msra.mxu0 0
    %3703 = vmatprep.mubr.bf16.mxu0 0
    %3704 = vmatmul.mubr.bf16.gmra.mrb[0].mxu0 %v3633
    %v3705 = vpop.f32.mrb[0].mxu0
    %v3706 = vadd.f32 0.0, %v3705
    %v3707 = vpop.f32.mrb[0].mxu0
    %v3708 = vadd.f32 0.0, %v3707
    %v3709 = vpop.f32.mrb[0].mxu0
    %v3710 = vpop.f32.mrb[0].mxu0
    %3711 = vdwg.mxu0
    %3712 = vmatprep.subr.bf16.mxu0 %v3645
    %3713 = vmatpush1.bf16.msra.mxu0 %v3642
    %3714 = vmatprep.subr.bf16.mxu0 0
    %3715 = vmatpush1.bf16.msra.mxu0 0
    %3716 = vmatprep.subr.bf16.mxu0 0
    %3717 = vmatpush1.bf16.msra.mxu0 0
    %3718 = vmatprep.subr.bf16.mxu0 0
    %3719 = vmatpush1.bf16.msra.mxu0 0
    %3720 = vmatprep.subr.bf16.mxu0 0
    %3721 = vmatpush1.bf16.msra.mxu0 0
    %3722 = vmatprep.subr.bf16.mxu0 0
    %3723 = vmatpush1.bf16.msra.mxu0 0
    %3724 = vmatprep.subr.bf16.mxu0 0
    %3725 = vmatpush1.bf16.msra.mxu0 0
    %3726 = vmatprep.subr.bf16.mxu0 0
    %3727 = vmatpush1.bf16.msra.mxu0 0
    %3728 = vmatprep.subr.bf16.mxu0 0
    %3729 = vmatpush1.bf16.msra.mxu0 0
    %3730 = vmatprep.subr.bf16.mxu0 0
    %3731 = vmatpush1.bf16.msra.mxu0 0
    %3732 = vmatprep.subr.bf16.mxu0 0
    %3733 = vmatpush1.bf16.msra.mxu0 0
    %3734 = vmatprep.subr.bf16.mxu0 0
    %3735 = vmatpush1.bf16.msra.mxu0 0
    %3736 = vmatprep.subr.bf16.mxu0 0
    %3737 = vmatpush1.bf16.msra.mxu0 0
    %3738 = vmatprep.subr.bf16.mxu0 0
    %3739 = vmatpush1.bf16.msra.mxu0 0
    %3740 = vmatprep.subr.bf16.mxu0 0
    %3741 = vmatpush1.bf16.msra.mxu0 0
    %3742 = vmatprep.subr.bf16.mxu0 0
    %3743 = vmatpush1.bf16.msra.mxu0 0
    %3744 = vmatprep.mubr.bf16.mxu0 0
    %3745 = vmatmul.mubr.bf16.gmra.mrb[0].mxu0 %v3633
    %v3746 = vpop.f32.mrb[0].mxu0
    %v3747 = vadd.f32 0.0, %v3746
    %v3748 = vpop.f32.mrb[0].mxu0
    %v3749 = vadd.f32 0.0, %v3748
    %v3750 = vpop.f32.mrb[0].mxu0
    %v3751 = vpop.f32.mrb[0].mxu0
    %3752 = vdwg.mxu0
    %3753 = vmatprep.subr.bf16.mxu0 %v3651
    %3754 = vmatpush1.bf16.msra.mxu0 %v3648
    %3755 = vmatprep.subr.bf16.mxu0 0
    %3756 = vmatpush1.bf16.msra.mxu0 0
    %3757 = vmatprep.subr.bf16.mxu0 0
    %3758 = vmatpush1.bf16.msra.mxu0 0
    %3759 = vmatprep.subr.bf16.mxu0 0
    %3760 = vmatpush1.bf16.msra.mxu0 0
    %3761 = vmatprep.subr.bf16.mxu0 0
    %3762 = vmatpush1.bf16.msra.mxu0 0
    %3763 = vmatprep.subr.bf16.mxu0 0
    %3764 = vmatpush1.bf16.msra.mxu0 0
    %3765 = vmatprep.subr.bf16.mxu0 0
    %3766 = vmatpush1.bf16.msra.mxu0 0
    %3767 = vmatprep.subr.bf16.mxu0 0
    %3768 = vmatpush1.bf16.msra.mxu0 0
    %3769 = vmatprep.subr.bf16.mxu0 0
    %3770 = vmatpush1.bf16.msra.mxu0 0
    %3771 = vmatprep.subr.bf16.mxu0 0
    %3772 = vmatpush1.bf16.msra.mxu0 0
    %3773 = vmatprep.subr.bf16.mxu0 0
    %3774 = vmatpush1.bf16.msra.mxu0 0
    %3775 = vmatprep.subr.bf16.mxu0 0
    %3776 = vmatpush1.bf16.msra.mxu0 0
    %3777 = vmatprep.subr.bf16.mxu0 0
    %3778 = vmatpush1.bf16.msra.mxu0 0
    %3779 = vmatprep.subr.bf16.mxu0 0
    %3780 = vmatpush1.bf16.msra.mxu0 0
    %3781 = vmatprep.subr.bf16.mxu0 0
    %3782 = vmatpush1.bf16.msra.mxu0 0
    %3783 = vmatprep.subr.bf16.mxu0 0
    %3784 = vmatpush1.bf16.msra.mxu0 0
    %3785 = vmatprep.mubr.bf16.mxu0 0
    %3786 = vmatmul.mubr.bf16.gmra.mrb[0].mxu0 %v3633
    %v3787 = vpop.f32.mrb[0].mxu0
    %v3788 = vadd.f32 0.0, %v3787
    %v3789 = vpop.f32.mrb[0].mxu0
    %v3790 = vadd.f32 0.0, %v3789
    %v3791 = vpop.f32.mrb[0].mxu0
    %v3792 = vpop.f32.mrb[0].mxu0
    %3793 = vdwg.mxu0
    %3794 = vmatprep.subr.bf16.mxu0 %v3657
    %3795 = vmatpush1.bf16.msra.mxu0 %v3654
    %3796 = vmatprep.subr.bf16.mxu0 0
    %3797 = vmatpush1.bf16.msra.mxu0 0
    %3798 = vmatprep.subr.bf16.mxu0 0
    %3799 = vmatpush1.bf16.msra.mxu0 0
    %3800 = vmatprep.subr.bf16.mxu0 0
    %3801 = vmatpush1.bf16.msra.mxu0 0
    %3802 = vmatprep.subr.bf16.mxu0 0
    %3803 = vmatpush1.bf16.msra.mxu0 0
    %3804 = vmatprep.subr.bf16.mxu0 0
    %3805 = vmatpush1.bf16.msra.mxu0 0
    %3806 = vmatprep.subr.bf16.mxu0 0
    %3807 = vmatpush1.bf16.msra.mxu0 0
    %3808 = vmatprep.subr.bf16.mxu0 0
    %3809 = vmatpush1.bf16.msra.mxu0 0
    %3810 = vmatprep.subr.bf16.mxu0 0
    %3811 = vmatpush1.bf16.msra.mxu0 0
    %3812 = vmatprep.subr.bf16.mxu0 0
    %3813 = vmatpush1.bf16.msra.mxu0 0
    %3814 = vmatprep.subr.bf16.mxu0 0
    %3815 = vmatpush1.bf16.msra.mxu0 0
    %3816 = vmatprep.subr.bf16.mxu0 0
    %3817 = vmatpush1.bf16.msra.mxu0 0
    %3818 = vmatprep.subr.bf16.mxu0 0
    %3819 = vmatpush1.bf16.msra.mxu0 0
    %3820 = vmatprep.subr.bf16.mxu0 0
    %3821 = vmatpush1.bf16.msra.mxu0 0
    %3822 = vmatprep.subr.bf16.mxu0 0
    %3823 = vmatpush1.bf16.msra.mxu0 0
    %3824 = vmatprep.subr.bf16.mxu0 0
    %3825 = vmatpush1.bf16.msra.mxu0 0
    %3826 = vmatprep.mubr.bf16.mxu0 0
    %3827 = vmatmul.mubr.bf16.gmra.mrb[0].mxu0 %v3633
    %v3828 = vpop.f32.mrb[0].mxu0
    %v3829 = vadd.f32 0.0, %v3828
    %v3830 = vpop.f32.mrb[0].mxu0
    %v3831 = vadd.f32 0.0, %v3830
    %v3832 = vpop.f32.mrb[0].mxu0
    %v3833 = vpop.f32.mrb[0].mxu0
    %3834 = vdwg.mxu0
    %3835 = vmatprep.subr.bf16.mxu0 %v3663
    %3836 = vmatpush1.bf16.msra.mxu0 %v3660
    %3837 = vmatprep.subr.bf16.mxu0 0
    %3838 = vmatpush1.bf16.msra.mxu0 0
    %3839 = vmatprep.subr.bf16.mxu0 0
    %3840 = vmatpush1.bf16.msra.mxu0 0
    %3841 = vmatprep.subr.bf16.mxu0 0
    %3842 = vmatpush1.bf16.msra.mxu0 0
    %3843 = vmatprep.subr.bf16.mxu0 0
    %3844 = vmatpush1.bf16.msra.mxu0 0
    %3845 = vmatprep.subr.bf16.mxu0 0
    %3846 = vmatpush1.bf16.msra.mxu0 0
    %3847 = vmatprep.subr.bf16.mxu0 0
    %3848 = vmatpush1.bf16.msra.mxu0 0
    %3849 = vmatprep.subr.bf16.mxu0 0
    %3850 = vmatpush1.bf16.msra.mxu0 0
    %3851 = vmatprep.subr.bf16.mxu0 0
    %3852 = vmatpush1.bf16.msra.mxu0 0
    %3853 = vmatprep.subr.bf16.mxu0 0
    %3854 = vmatpush1.bf16.msra.mxu0 0
    %3855 = vmatprep.subr.bf16.mxu0 0
    %3856 = vmatpush1.bf16.msra.mxu0 0
    %3857 = vmatprep.subr.bf16.mxu0 0
    %3858 = vmatpush1.bf16.msra.mxu0 0
    %3859 = vmatprep.subr.bf16.mxu0 0
    %3860 = vmatpush1.bf16.msra.mxu0 0
    %3861 = vmatprep.subr.bf16.mxu0 0
    %3862 = vmatpush1.bf16.msra.mxu0 0
    %3863 = vmatprep.subr.bf16.mxu0 0
    %3864 = vmatpush1.bf16.msra.mxu0 0
    %3865 = vmatprep.subr.bf16.mxu0 0
    %3866 = vmatpush1.bf16.msra.mxu0 0
    %3867 = vmatprep.mubr.bf16.mxu0 0
    %3868 = vmatmul.mubr.bf16.gmra.mrb[0].mxu0 %v3633
    %v3869 = vpop.f32.mrb[0].mxu0
    %v3870 = vadd.f32 0.0, %v3869
    %v3871 = vpop.f32.mrb[0].mxu0
    %v3872 = vadd.f32 0.0, %v3871
    %v3873 = vpop.f32.mrb[0].mxu0
    %v3874 = vpop.f32.mrb[0].mxu0
    %3875 = vdwg.mxu0
    %3876 = vmatprep.subr.bf16.mxu0 %v3669
    %3877 = vmatpush1.bf16.msra.mxu0 %v3666
    %3878 = vmatprep.subr.bf16.mxu0 0
    %3879 = vmatpush1.bf16.msra.mxu0 0
    %3880 = vmatprep.subr.bf16.mxu0 0
    %3881 = vmatpush1.bf16.msra.mxu0 0
    %3882 = vmatprep.subr.bf16.mxu0 0
    %3883 = vmatpush1.bf16.msra.mxu0 0
    %3884 = vmatprep.subr.bf16.mxu0 0
    %3885 = vmatpush1.bf16.msra.mxu0 0
    %3886 = vmatprep.subr.bf16.mxu0 0
    %3887 = vmatpush1.bf16.msra.mxu0 0
    %3888 = vmatprep.subr.bf16.mxu0 0
    %3889 = vmatpush1.bf16.msra.mxu0 0
    %3890 = vmatprep.subr.bf16.mxu0 0
    %3891 = vmatpush1.bf16.msra.mxu0 0
    %3892 = vmatprep.subr.bf16.mxu0 0
    %3893 = vmatpush1.bf16.msra.mxu0 0
    %3894 = vmatprep.subr.bf16.mxu0 0
    %3895 = vmatpush1.bf16.msra.mxu0 0
    %3896 = vmatprep.subr.bf16.mxu0 0
    %3897 = vmatpush1.bf16.msra.mxu0 0
    %3898 = vmatprep.subr.bf16.mxu0 0
    %3899 = vmatpush1.bf16.msra.mxu0 0
    %3900 = vmatprep.subr.bf16.mxu0 0
    %3901 = vmatpush1.bf16.msra.mxu0 0
    %3902 = vmatprep.subr.bf16.mxu0 0
    %3903 = vmatpush1.bf16.msra.mxu0 0
    %3904 = vmatprep.subr.bf16.mxu0 0
    %3905 = vmatpush1.bf16.msra.mxu0 0
    %3906 = vmatprep.subr.bf16.mxu0 0
    %3907 = vmatpush1.bf16.msra.mxu0 0
    %3908 = vmatprep.mubr.bf16.mxu0 0
    %3909 = vmatmul.mubr.bf16.gmra.mrb[0].mxu0 %v3633
    %v3910 = vpop.f32.mrb[0].mxu0
    %v3911 = vadd.f32 0.0, %v3910
    %v3912 = vpop.f32.mrb[0].mxu0
    %v3913 = vadd.f32 0.0, %v3912
    %v3914 = vpop.f32.mrb[0].mxu0
    %v3915 = vpop.f32.mrb[0].mxu0
    %3916 = vdwg.mxu0
    %v3917 = vadd.f32 %v3489, %v3706
    %v3918 = vadd.f32 %v3490, %v3708
    %v3919 = vadd.f32 %v3491, %v3747
    %v3920 = vadd.f32 %v3492, %v3749
    %v3921 = vadd.f32 %v3493, %v3788
    %v3922 = vadd.f32 %v3494, %v3790
    %v3923 = vadd.f32 %v3495, %v3829
    %v3924 = vadd.f32 %v3496, %v3831
    %v3925 = vadd.f32 %v3497, %v3870
    %v3926 = vadd.f32 %v3498, %v3872
    %v3927 = vadd.f32 %v3499, %v3911
    %v3928 = vadd.f32 %v3500, %v3913
    %3929 = vrot.lane.b32.xlu0 %v87, 9
    %v3930 = vpop.permute.xlu0 %3929
    %3931 = vrot.lane.b32.xlu0 %v88, 9
    %v3932 = vpop.permute.xlu0 %3931
    %3933 = vrot.lane.b32.xlu0 %v89, 9
    %v3934 = vpop.permute.xlu0 %3933
    %3935 = vrot.lane.b32.xlu0 %v90, 9
    %v3936 = vpop.permute.xlu0 %3935
    %3937 = vrot.lane.b32.xlu0 %v91, 9
    %v3938 = vpop.permute.xlu0 %3937
    %3939 = vrot.lane.b32.xlu0 %v92, 9
    %v3940 = vpop.permute.xlu0 %3939
    %3941 = vrot.lane.b32.xlu0 %v93, 9
    %v3942 = vpop.permute.xlu0 %3941
    %3943 = vrot.lane.b32.xlu0 %v94, 9
    %v3944 = vpop.permute.xlu0 %3943
    %3945 = vrot.lane.b32.xlu0 %v95, 9
    %v3946 = vpop.permute.xlu0 %3945
    %3947 = vrot.lane.b32.xlu0 %v96, 9
    %v3948 = vpop.permute.xlu0 %3947
    %3949 = vrot.lane.b32.xlu0 %v97, 9
    %v3950 = vpop.permute.xlu0 %3949
    %3951 = vrot.lane.b32.xlu0 %v98, 9
    %v3952 = vpop.permute.xlu0 %3951
    %vm3953 = vcmp.lt.s32.totalorder %v124, 9
    %v3954 = vsel %vm3953, %v3950, %v3952
    %v3955 = vsel %vm3953, %v3948, %v3950
    %v3956 = vsel %vm3953, %v3946, %v3948
    %v3957 = vsel %vm3953, %v3944, %v3946
    %v3958 = vsel %vm3953, %v3942, %v3944
    %v3959 = vsel %vm3953, %v3940, %v3942
    %v3960 = vsel %vm3953, %v3938, %v3940
    %v3961 = vsel %vm3953, %v3936, %v3938
    %v3962 = vsel %vm3953, %v3934, %v3936
    %v3963 = vsel %vm3953, %v3932, %v3934
    %v3964 = vsel %vm3953, %v3930, %v3932
    %v3965 = vsel %vm3953, %v3952, %v3930
    %s3966 = scalar_lea.vmem [#allocation3], 97
    %v3967 = vld [vmem:[%s3966] ss:$8 sm:$0xf]
    %v3968 = vld [vmem:[%s3966] ss:$8 sm:$0xf0]
    %v3969 = vor.u32 %v3967, %v3968
    %s3970 = scalar_lea.vmem [#allocation3], 161
    %v3971 = vld [vmem:[%s3970] ss:$8 sm:$0xf]
    %v3974 = vlaneseq
    %v3975 = vshrl.u32 %v3974, 7
    %v3976 = vsub.s32 0, %v3975
    %v3977 = vrot.slane %v3969, %v3976
    %v3978 = vlaneseq
    %v3979 = vshrl.u32 %v3978, 7
    %v3980 = vsub.s32 1, %v3979
    %v3981 = vrot.slane %v3969, %v3980
    %v3982 = vlaneseq
    %v3983 = vshrl.u32 %v3982, 7
    %v3984 = vsub.s32 2, %v3983
    %v3985 = vrot.slane %v3969, %v3984
    %v3986 = vlaneseq
    %v3987 = vshrl.u32 %v3986, 7
    %v3988 = vsub.s32 3, %v3987
    %v3989 = vrot.slane %v3969, %v3988
    %v3990 = vlaneseq
    %v3991 = vshrl.u32 %v3990, 7
    %v3992 = vsub.s32 4, %v3991
    %v3993 = vrot.slane %v3969, %v3992
    %v3994 = vlaneseq
    %v3995 = vshrl.u32 %v3994, 7
    %v3996 = vsub.s32 5, %v3995
    %v3997 = vrot.slane %v3969, %v3996
    %v3998 = vlaneseq
    %v3999 = vshrl.u32 %v3998, 7
    %v4000 = vsub.s32 6, %v3999
    %v4001 = vrot.slane %v3969, %v4000
    %v4002 = vlaneseq
    %v4003 = vshrl.u32 %v4002, 7
    %v4004 = vsub.s32 7, %v4003
    %v4005 = vrot.slane %v3969, %v4004
    %v4006 = vlaneseq
    %v4007 = vshrl.u32 %v4006, 7
    %v4008 = vsub.s32 0, %v4007
    %v4009 = vrot.slane %v3971, %v4008
    %v4010 = vlaneseq
    %v4011 = vshrl.u32 %v4010, 7
    %v4012 = vsub.s32 1, %v4011
    %v4013 = vrot.slane %v3971, %v4012
    %v4014 = vlaneseq
    %v4015 = vshrl.u32 %v4014, 7
    %v4016 = vsub.s32 2, %v4015
    %v4017 = vrot.slane %v3971, %v4016
    %v4018 = vlaneseq
    %v4019 = vshrl.u32 %v4018, 7
    %v4020 = vsub.s32 3, %v4019
    %v4021 = vrot.slane %v3971, %v4020
    %v4034 = vmul.f32 %v3965, %v3977
    %v4035 = vmul.f32 %v3964, %v3981
    %v4036 = vmul.f32 %v3963, %v3985
    %v4037 = vmul.f32 %v3962, %v3989
    %v4038 = vmul.f32 %v3961, %v3993
    %v4039 = vmul.f32 %v3960, %v3997
    %v4040 = vmul.f32 %v3959, %v4001
    %v4041 = vmul.f32 %v3958, %v4005
    %v4042 = vmul.f32 %v3957, %v4009
    %v4043 = vmul.f32 %v3956, %v4013
    %v4044 = vmul.f32 %v3955, %v4017
    %v4045 = vmul.f32 %v3954, %v4021
    %s4046 = scalar_lea.vmem %s1, 36
    %v4047 = vld [vmem:[%s4046] sm:$0xf]
    %v4048 = vpack.c.bf16 %v4034, %v4034
    %v4049 = vpack.c.bf16 %v4035, %v4035
    %v4050 = vpack.c.bf16 %v4036, %v4036
    %v4051 = vpack.c.bf16 %v4037, %v4037
    %v4052 = vpack.c.bf16 %v4038, %v4038
    %v4053 = vpack.c.bf16 %v4039, %v4039
    %v4054 = vpack.c.bf16 %v4040, %v4040
    %v4055 = vpack.c.bf16 %v4041, %v4041
    %v4056 = vpack.c.bf16 %v4042, %v4042
    %v4057 = vpack.c.bf16 %v4043, %v4043
    %v4058 = vpack.c.bf16 %v4044, %v4044
    %v4059 = vpack.c.bf16 %v4045, %v4045
    %v4061 = vsel %vm361, %v4047, 0
    %v4064 = vsel %vm365, %v4048, 0
    %v4067 = vsel %vm365, %v4049, 0
    %v4070 = vsel %vm365, %v4050, 0
    %v4073 = vsel %vm365, %v4051, 0
    %v4076 = vsel %vm365, %v4052, 0
    %v4079 = vsel %vm365, %v4053, 0
    %v4082 = vsel %vm365, %v4054, 0
    %v4085 = vsel %vm365, %v4055, 0
    %v4088 = vsel %vm365, %v4056, 0
    %v4091 = vsel %vm365, %v4057, 0
    %v4094 = vsel %vm365, %v4058, 0
    %v4097 = vsel %vm365, %v4059, 0
    %4099 = vmatprep.subr.bf16.mxu0 %v4067
    %4100 = vmatpush1.bf16.msra.mxu0 %v4064
    %4101 = vmatprep.subr.bf16.mxu0 0
    %4102 = vmatpush1.bf16.msra.mxu0 0
    %4103 = vmatprep.subr.bf16.mxu0 0
    %4104 = vmatpush1.bf16.msra.mxu0 0
    %4105 = vmatprep.subr.bf16.mxu0 0
    %4106 = vmatpush1.bf16.msra.mxu0 0
    %4107 = vmatprep.subr.bf16.mxu0 0
    %4108 = vmatpush1.bf16.msra.mxu0 0
    %4109 = vmatprep.subr.bf16.mxu0 0
    %4110 = vmatpush1.bf16.msra.mxu0 0
    %4111 = vmatprep.subr.bf16.mxu0 0
    %4112 = vmatpush1.bf16.msra.mxu0 0
    %4113 = vmatprep.subr.bf16.mxu0 0
    %4114 = vmatpush1.bf16.msra.mxu0 0
    %4115 = vmatprep.subr.bf16.mxu0 0
    %4116 = vmatpush1.bf16.msra.mxu0 0
    %4117 = vmatprep.subr.bf16.mxu0 0
    %4118 = vmatpush1.bf16.msra.mxu0 0
    %4119 = vmatprep.subr.bf16.mxu0 0
    %4120 = vmatpush1.bf16.msra.mxu0 0
    %4121 = vmatprep.subr.bf16.mxu0 0
    %4122 = vmatpush1.bf16.msra.mxu0 0
    %4123 = vmatprep.subr.bf16.mxu0 0
    %4124 = vmatpush1.bf16.msra.mxu0 0
    %4125 = vmatprep.subr.bf16.mxu0 0
    %4126 = vmatpush1.bf16.msra.mxu0 0
    %4127 = vmatprep.subr.bf16.mxu0 0
    %4128 = vmatpush1.bf16.msra.mxu0 0
    %4129 = vmatprep.subr.bf16.mxu0 0
    %4130 = vmatpush1.bf16.msra.mxu0 0
    %4131 = vmatprep.mubr.bf16.mxu0 0
    %4132 = vmatmul.mubr.bf16.gmra.mrb[0].mxu0 %v4061
    %v4133 = vpop.f32.mrb[0].mxu0
    %v4134 = vadd.f32 0.0, %v4133
    %v4135 = vpop.f32.mrb[0].mxu0
    %v4136 = vadd.f32 0.0, %v4135
    %v4137 = vpop.f32.mrb[0].mxu0
    %v4138 = vpop.f32.mrb[0].mxu0
    %4139 = vdwg.mxu0
    %4140 = vmatprep.subr.bf16.mxu0 %v4073
    %4141 = vmatpush1.bf16.msra.mxu0 %v4070
    %4142 = vmatprep.subr.bf16.mxu0 0
    %4143 = vmatpush1.bf16.msra.mxu0 0
    %4144 = vmatprep.subr.bf16.mxu0 0
    %4145 = vmatpush1.bf16.msra.mxu0 0
    %4146 = vmatprep.subr.bf16.mxu0 0
    %4147 = vmatpush1.bf16.msra.mxu0 0
    %4148 = vmatprep.subr.bf16.mxu0 0
    %4149 = vmatpush1.bf16.msra.mxu0 0
    %4150 = vmatprep.subr.bf16.mxu0 0
    %4151 = vmatpush1.bf16.msra.mxu0 0
    %4152 = vmatprep.subr.bf16.mxu0 0
    %4153 = vmatpush1.bf16.msra.mxu0 0
    %4154 = vmatprep.subr.bf16.mxu0 0
    %4155 = vmatpush1.bf16.msra.mxu0 0
    %4156 = vmatprep.subr.bf16.mxu0 0
    %4157 = vmatpush1.bf16.msra.mxu0 0
    %4158 = vmatprep.subr.bf16.mxu0 0
    %4159 = vmatpush1.bf16.msra.mxu0 0
    %4160 = vmatprep.subr.bf16.mxu0 0
    %4161 = vmatpush1.bf16.msra.mxu0 0
    %4162 = vmatprep.subr.bf16.mxu0 0
    %4163 = vmatpush1.bf16.msra.mxu0 0
    %4164 = vmatprep.subr.bf16.mxu0 0
    %4165 = vmatpush1.bf16.msra.mxu0 0
    %4166 = vmatprep.subr.bf16.mxu0 0
    %4167 = vmatpush1.bf16.msra.mxu0 0
    %4168 = vmatprep.subr.bf16.mxu0 0
    %4169 = vmatpush1.bf16.msra.mxu0 0
    %4170 = vmatprep.subr.bf16.mxu0 0
    %4171 = vmatpush1.bf16.msra.mxu0 0
    %4172 = vmatprep.mubr.bf16.mxu0 0
    %4173 = vmatmul.mubr.bf16.gmra.mrb[0].mxu0 %v4061
    %v4174 = vpop.f32.mrb[0].mxu0
    %v4175 = vadd.f32 0.0, %v4174
    %v4176 = vpop.f32.mrb[0].mxu0
    %v4177 = vadd.f32 0.0, %v4176
    %v4178 = vpop.f32.mrb[0].mxu0
    %v4179 = vpop.f32.mrb[0].mxu0
    %4180 = vdwg.mxu0
    %4181 = vmatprep.subr.bf16.mxu0 %v4079
    %4182 = vmatpush1.bf16.msra.mxu0 %v4076
    %4183 = vmatprep.subr.bf16.mxu0 0
    %4184 = vmatpush1.bf16.msra.mxu0 0
    %4185 = vmatprep.subr.bf16.mxu0 0
    %4186 = vmatpush1.bf16.msra.mxu0 0
    %4187 = vmatprep.subr.bf16.mxu0 0
    %4188 = vmatpush1.bf16.msra.mxu0 0
    %4189 = vmatprep.subr.bf16.mxu0 0
    %4190 = vmatpush1.bf16.msra.mxu0 0
    %4191 = vmatprep.subr.bf16.mxu0 0
    %4192 = vmatpush1.bf16.msra.mxu0 0
    %4193 = vmatprep.subr.bf16.mxu0 0
    %4194 = vmatpush1.bf16.msra.mxu0 0
    %4195 = vmatprep.subr.bf16.mxu0 0
    %4196 = vmatpush1.bf16.msra.mxu0 0
    %4197 = vmatprep.subr.bf16.mxu0 0
    %4198 = vmatpush1.bf16.msra.mxu0 0
    %4199 = vmatprep.subr.bf16.mxu0 0
    %4200 = vmatpush1.bf16.msra.mxu0 0
    %4201 = vmatprep.subr.bf16.mxu0 0
    %4202 = vmatpush1.bf16.msra.mxu0 0
    %4203 = vmatprep.subr.bf16.mxu0 0
    %4204 = vmatpush1.bf16.msra.mxu0 0
    %4205 = vmatprep.subr.bf16.mxu0 0
    %4206 = vmatpush1.bf16.msra.mxu0 0
    %4207 = vmatprep.subr.bf16.mxu0 0
    %4208 = vmatpush1.bf16.msra.mxu0 0
    %4209 = vmatprep.subr.bf16.mxu0 0
    %4210 = vmatpush1.bf16.msra.mxu0 0
    %4211 = vmatprep.subr.bf16.mxu0 0
    %4212 = vmatpush1.bf16.msra.mxu0 0
    %4213 = vmatprep.mubr.bf16.mxu0 0
    %4214 = vmatmul.mubr.bf16.gmra.mrb[0].mxu0 %v4061
    %v4215 = vpop.f32.mrb[0].mxu0
    %v4216 = vadd.f32 0.0, %v4215
    %v4217 = vpop.f32.mrb[0].mxu0
    %v4218 = vadd.f32 0.0, %v4217
    %v4219 = vpop.f32.mrb[0].mxu0
    %v4220 = vpop.f32.mrb[0].mxu0
    %4221 = vdwg.mxu0
    %4222 = vmatprep.subr.bf16.mxu0 %v4085
    %4223 = vmatpush1.bf16.msra.mxu0 %v4082
    %4224 = vmatprep.subr.bf16.mxu0 0
    %4225 = vmatpush1.bf16.msra.mxu0 0
    %4226 = vmatprep.subr.bf16.mxu0 0
    %4227 = vmatpush1.bf16.msra.mxu0 0
    %4228 = vmatprep.subr.bf16.mxu0 0
    %4229 = vmatpush1.bf16.msra.mxu0 0
    %4230 = vmatprep.subr.bf16.mxu0 0
    %4231 = vmatpush1.bf16.msra.mxu0 0
    %4232 = vmatprep.subr.bf16.mxu0 0
    %4233 = vmatpush1.bf16.msra.mxu0 0
    %4234 = vmatprep.subr.bf16.mxu0 0
    %4235 = vmatpush1.bf16.msra.mxu0 0
    %4236 = vmatprep.subr.bf16.mxu0 0
    %4237 = vmatpush1.bf16.msra.mxu0 0
    %4238 = vmatprep.subr.bf16.mxu0 0
    %4239 = vmatpush1.bf16.msra.mxu0 0
    %4240 = vmatprep.subr.bf16.mxu0 0
    %4241 = vmatpush1.bf16.msra.mxu0 0
    %4242 = vmatprep.subr.bf16.mxu0 0
    %4243 = vmatpush1.bf16.msra.mxu0 0
    %4244 = vmatprep.subr.bf16.mxu0 0
    %4245 = vmatpush1.bf16.msra.mxu0 0
    %4246 = vmatprep.subr.bf16.mxu0 0
    %4247 = vmatpush1.bf16.msra.mxu0 0
    %4248 = vmatprep.subr.bf16.mxu0 0
    %4249 = vmatpush1.bf16.msra.mxu0 0
    %4250 = vmatprep.subr.bf16.mxu0 0
    %4251 = vmatpush1.bf16.msra.mxu0 0
    %4252 = vmatprep.subr.bf16.mxu0 0
    %4253 = vmatpush1.bf16.msra.mxu0 0
    %4254 = vmatprep.mubr.bf16.mxu0 0
    %4255 = vmatmul.mubr.bf16.gmra.mrb[0].mxu0 %v4061
    %v4256 = vpop.f32.mrb[0].mxu0
    %v4257 = vadd.f32 0.0, %v4256
    %v4258 = vpop.f32.mrb[0].mxu0
    %v4259 = vadd.f32 0.0, %v4258
    %v4260 = vpop.f32.mrb[0].mxu0
    %v4261 = vpop.f32.mrb[0].mxu0
    %4262 = vdwg.mxu0
    %4263 = vmatprep.subr.bf16.mxu0 %v4091
    %4264 = vmatpush1.bf16.msra.mxu0 %v4088
    %4265 = vmatprep.subr.bf16.mxu0 0
    %4266 = vmatpush1.bf16.msra.mxu0 0
    %4267 = vmatprep.subr.bf16.mxu0 0
    %4268 = vmatpush1.bf16.msra.mxu0 0
    %4269 = vmatprep.subr.bf16.mxu0 0
    %4270 = vmatpush1.bf16.msra.mxu0 0
    %4271 = vmatprep.subr.bf16.mxu0 0
    %4272 = vmatpush1.bf16.msra.mxu0 0
    %4273 = vmatprep.subr.bf16.mxu0 0
    %4274 = vmatpush1.bf16.msra.mxu0 0
    %4275 = vmatprep.subr.bf16.mxu0 0
    %4276 = vmatpush1.bf16.msra.mxu0 0
    %4277 = vmatprep.subr.bf16.mxu0 0
    %4278 = vmatpush1.bf16.msra.mxu0 0
    %4279 = vmatprep.subr.bf16.mxu0 0
    %4280 = vmatpush1.bf16.msra.mxu0 0
    %4281 = vmatprep.subr.bf16.mxu0 0
    %4282 = vmatpush1.bf16.msra.mxu0 0
    %4283 = vmatprep.subr.bf16.mxu0 0
    %4284 = vmatpush1.bf16.msra.mxu0 0
    %4285 = vmatprep.subr.bf16.mxu0 0
    %4286 = vmatpush1.bf16.msra.mxu0 0
    %4287 = vmatprep.subr.bf16.mxu0 0
    %4288 = vmatpush1.bf16.msra.mxu0 0
    %4289 = vmatprep.subr.bf16.mxu0 0
    %4290 = vmatpush1.bf16.msra.mxu0 0
    %4291 = vmatprep.subr.bf16.mxu0 0
    %4292 = vmatpush1.bf16.msra.mxu0 0
    %4293 = vmatprep.subr.bf16.mxu0 0
    %4294 = vmatpush1.bf16.msra.mxu0 0
    %4295 = vmatprep.mubr.bf16.mxu0 0
    %4296 = vmatmul.mubr.bf16.gmra.mrb[0].mxu0 %v4061
    %v4297 = vpop.f32.mrb[0].mxu0
    %v4298 = vadd.f32 0.0, %v4297
    %v4299 = vpop.f32.mrb[0].mxu0
    %v4300 = vadd.f32 0.0, %v4299
    %v4301 = vpop.f32.mrb[0].mxu0
    %v4302 = vpop.f32.mrb[0].mxu0
    %4303 = vdwg.mxu0
    %4304 = vmatprep.subr.bf16.mxu0 %v4097
    %4305 = vmatpush1.bf16.msra.mxu0 %v4094
    %4306 = vmatprep.subr.bf16.mxu0 0
    %4307 = vmatpush1.bf16.msra.mxu0 0
    %4308 = vmatprep.subr.bf16.mxu0 0
    %4309 = vmatpush1.bf16.msra.mxu0 0
    %4310 = vmatprep.subr.bf16.mxu0 0
    %4311 = vmatpush1.bf16.msra.mxu0 0
    %4312 = vmatprep.subr.bf16.mxu0 0
    %4313 = vmatpush1.bf16.msra.mxu0 0
    %4314 = vmatprep.subr.bf16.mxu0 0
    %4315 = vmatpush1.bf16.msra.mxu0 0
    %4316 = vmatprep.subr.bf16.mxu0 0
    %4317 = vmatpush1.bf16.msra.mxu0 0
    %4318 = vmatprep.subr.bf16.mxu0 0
    %4319 = vmatpush1.bf16.msra.mxu0 0
    %4320 = vmatprep.subr.bf16.mxu0 0
    %4321 = vmatpush1.bf16.msra.mxu0 0
    %4322 = vmatprep.subr.bf16.mxu0 0
    %4323 = vmatpush1.bf16.msra.mxu0 0
    %4324 = vmatprep.subr.bf16.mxu0 0
    %4325 = vmatpush1.bf16.msra.mxu0 0
    %4326 = vmatprep.subr.bf16.mxu0 0
    %4327 = vmatpush1.bf16.msra.mxu0 0
    %4328 = vmatprep.subr.bf16.mxu0 0
    %4329 = vmatpush1.bf16.msra.mxu0 0
    %4330 = vmatprep.subr.bf16.mxu0 0
    %4331 = vmatpush1.bf16.msra.mxu0 0
    %4332 = vmatprep.subr.bf16.mxu0 0
    %4333 = vmatpush1.bf16.msra.mxu0 0
    %4334 = vmatprep.subr.bf16.mxu0 0
    %4335 = vmatpush1.bf16.msra.mxu0 0
    %4336 = vmatprep.mubr.bf16.mxu0 0
    %4337 = vmatmul.mubr.bf16.gmra.mrb[0].mxu0 %v4061
    %v4338 = vpop.f32.mrb[0].mxu0
    %v4339 = vadd.f32 0.0, %v4338
    %v4340 = vpop.f32.mrb[0].mxu0
    %v4341 = vadd.f32 0.0, %v4340
    %v4342 = vpop.f32.mrb[0].mxu0
    %v4343 = vpop.f32.mrb[0].mxu0
    %4344 = vdwg.mxu0
    %v4345 = vadd.f32 %v3917, %v4134
    %v4346 = vadd.f32 %v3918, %v4136
    %v4347 = vadd.f32 %v3919, %v4175
    %v4348 = vadd.f32 %v3920, %v4177
    %v4349 = vadd.f32 %v3921, %v4216
    %v4350 = vadd.f32 %v3922, %v4218
    %v4351 = vadd.f32 %v3923, %v4257
    %v4352 = vadd.f32 %v3924, %v4259
    %v4353 = vadd.f32 %v3925, %v4298
    %v4354 = vadd.f32 %v3926, %v4300
    %v4355 = vadd.f32 %v3927, %v4339
    %v4356 = vadd.f32 %v3928, %v4341
    %4357 = vrot.lane.b32.xlu0 %v87, 8
    %v4358 = vpop.permute.xlu0 %4357
    %4359 = vrot.lane.b32.xlu0 %v88, 8
    %v4360 = vpop.permute.xlu0 %4359
    %4361 = vrot.lane.b32.xlu0 %v89, 8
    %v4362 = vpop.permute.xlu0 %4361
    %4363 = vrot.lane.b32.xlu0 %v90, 8
    %v4364 = vpop.permute.xlu0 %4363
    %4365 = vrot.lane.b32.xlu0 %v91, 8
    %v4366 = vpop.permute.xlu0 %4365
    %4367 = vrot.lane.b32.xlu0 %v92, 8
    %v4368 = vpop.permute.xlu0 %4367
    %4369 = vrot.lane.b32.xlu0 %v93, 8
    %v4370 = vpop.permute.xlu0 %4369
    %4371 = vrot.lane.b32.xlu0 %v94, 8
    %v4372 = vpop.permute.xlu0 %4371
    %4373 = vrot.lane.b32.xlu0 %v95, 8
    %v4374 = vpop.permute.xlu0 %4373
    %4375 = vrot.lane.b32.xlu0 %v96, 8
    %v4376 = vpop.permute.xlu0 %4375
    %4377 = vrot.lane.b32.xlu0 %v97, 8
    %v4378 = vpop.permute.xlu0 %4377
    %4379 = vrot.lane.b32.xlu0 %v98, 8
    %v4380 = vpop.permute.xlu0 %4379
    %vm4381 = vcmp.lt.s32.totalorder %v124, 8
    %v4382 = vsel %vm4381, %v4378, %v4380
    %v4383 = vsel %vm4381, %v4376, %v4378
    %v4384 = vsel %vm4381, %v4374, %v4376
    %v4385 = vsel %vm4381, %v4372, %v4374
    %v4386 = vsel %vm4381, %v4370, %v4372
    %v4387 = vsel %vm4381, %v4368, %v4370
    %v4388 = vsel %vm4381, %v4366, %v4368
    %v4389 = vsel %vm4381, %v4364, %v4366
    %v4390 = vsel %vm4381, %v4362, %v4364
    %v4391 = vsel %vm4381, %v4360, %v4362
    %v4392 = vsel %vm4381, %v4358, %v4360
    %v4393 = vsel %vm4381, %v4380, %v4358
    %s4394 = scalar_lea.vmem [#allocation3], 98
    %v4395 = vld [vmem:[%s4394] ss:$8 sm:$0xf]
    %v4396 = vld [vmem:[%s4394] ss:$8 sm:$0xf0]
    %v4397 = vor.u32 %v4395, %v4396
    %s4398 = scalar_lea.vmem [#allocation3], 162
    %v4399 = vld [vmem:[%s4398] ss:$8 sm:$0xf]
    %v4402 = vlaneseq
    %v4403 = vshrl.u32 %v4402, 7
    %v4404 = vsub.s32 0, %v4403
    %v4405 = vrot.slane %v4397, %v4404
    %v4406 = vlaneseq
    %v4407 = vshrl.u32 %v4406, 7
    %v4408 = vsub.s32 1, %v4407
    %v4409 = vrot.slane %v4397, %v4408
    %v4410 = vlaneseq
    %v4411 = vshrl.u32 %v4410, 7
    %v4412 = vsub.s32 2, %v4411
    %v4413 = vrot.slane %v4397, %v4412
    %v4414 = vlaneseq
    %v4415 = vshrl.u32 %v4414, 7
    %v4416 = vsub.s32 3, %v4415
    %v4417 = vrot.slane %v4397, %v4416
    %v4418 = vlaneseq
    %v4419 = vshrl.u32 %v4418, 7
    %v4420 = vsub.s32 4, %v4419
    %v4421 = vrot.slane %v4397, %v4420
    %v4422 = vlaneseq
    %v4423 = vshrl.u32 %v4422, 7
    %v4424 = vsub.s32 5, %v4423
    %v4425 = vrot.slane %v4397, %v4424
    %v4426 = vlaneseq
    %v4427 = vshrl.u32 %v4426, 7
    %v4428 = vsub.s32 6, %v4427
    %v4429 = vrot.slane %v4397, %v4428
    %v4430 = vlaneseq
    %v4431 = vshrl.u32 %v4430, 7
    %v4432 = vsub.s32 7, %v4431
    %v4433 = vrot.slane %v4397, %v4432
    %v4434 = vlaneseq
    %v4435 = vshrl.u32 %v4434, 7
    %v4436 = vsub.s32 0, %v4435
    %v4437 = vrot.slane %v4399, %v4436
    %v4438 = vlaneseq
    %v4439 = vshrl.u32 %v4438, 7
    %v4440 = vsub.s32 1, %v4439
    %v4441 = vrot.slane %v4399, %v4440
    %v4442 = vlaneseq
    %v4443 = vshrl.u32 %v4442, 7
    %v4444 = vsub.s32 2, %v4443
    %v4445 = vrot.slane %v4399, %v4444
    %v4446 = vlaneseq
    %v4447 = vshrl.u32 %v4446, 7
    %v4448 = vsub.s32 3, %v4447
    %v4449 = vrot.slane %v4399, %v4448
    %v4462 = vmul.f32 %v4393, %v4405
    %v4463 = vmul.f32 %v4392, %v4409
    %v4464 = vmul.f32 %v4391, %v4413
    %v4465 = vmul.f32 %v4390, %v4417
    %v4466 = vmul.f32 %v4389, %v4421
    %v4467 = vmul.f32 %v4388, %v4425
    %v4468 = vmul.f32 %v4387, %v4429
    %v4469 = vmul.f32 %v4386, %v4433
    %v4470 = vmul.f32 %v4385, %v4437
    %v4471 = vmul.f32 %v4384, %v4441
    %v4472 = vmul.f32 %v4383, %v4445
    %v4473 = vmul.f32 %v4382, %v4449
    %s4474 = scalar_lea.vmem %s1, 40
    %v4475 = vld [vmem:[%s4474] sm:$0xf]
    %v4476 = vpack.c.bf16 %v4462, %v4462
    %v4477 = vpack.c.bf16 %v4463, %v4463
    %v4478 = vpack.c.bf16 %v4464, %v4464
    %v4479 = vpack.c.bf16 %v4465, %v4465
    %v4480 = vpack.c.bf16 %v4466, %v4466
    %v4481 = vpack.c.bf16 %v4467, %v4467
    %v4482 = vpack.c.bf16 %v4468, %v4468
    %v4483 = vpack.c.bf16 %v4469, %v4469
    %v4484 = vpack.c.bf16 %v4470, %v4470
    %v4485 = vpack.c.bf16 %v4471, %v4471
    %v4486 = vpack.c.bf16 %v4472, %v4472
    %v4487 = vpack.c.bf16 %v4473, %v4473
    %v4489 = vsel %vm361, %v4475, 0
    %v4492 = vsel %vm365, %v4476, 0
    %v4495 = vsel %vm365, %v4477, 0
    %v4498 = vsel %vm365, %v4478, 0
    %v4501 = vsel %vm365, %v4479, 0
    %v4504 = vsel %vm365, %v4480, 0
    %v4507 = vsel %vm365, %v4481, 0
    %v4510 = vsel %vm365, %v4482, 0
    %v4513 = vsel %vm365, %v4483, 0
    %v4516 = vsel %vm365, %v4484, 0
    %v4519 = vsel %vm365, %v4485, 0
    %v4522 = vsel %vm365, %v4486, 0
    %v4525 = vsel %vm365, %v4487, 0
    %4527 = vmatprep.subr.bf16.mxu0 %v4495
    %4528 = vmatpush1.bf16.msra.mxu0 %v4492
    %4529 = vmatprep.subr.bf16.mxu0 0
    %4530 = vmatpush1.bf16.msra.mxu0 0
    %4531 = vmatprep.subr.bf16.mxu0 0
    %4532 = vmatpush1.bf16.msra.mxu0 0
    %4533 = vmatprep.subr.bf16.mxu0 0
    %4534 = vmatpush1.bf16.msra.mxu0 0
    %4535 = vmatprep.subr.bf16.mxu0 0
    %4536 = vmatpush1.bf16.msra.mxu0 0
    %4537 = vmatprep.subr.bf16.mxu0 0
    %4538 = vmatpush1.bf16.msra.mxu0 0
    %4539 = vmatprep.subr.bf16.mxu0 0
    %4540 = vmatpush1.bf16.msra.mxu0 0
    %4541 = vmatprep.subr.bf16.mxu0 0
    %4542 = vmatpush1.bf16.msra.mxu0 0
    %4543 = vmatprep.subr.bf16.mxu0 0
    %4544 = vmatpush1.bf16.msra.mxu0 0
    %4545 = vmatprep.subr.bf16.mxu0 0
    %4546 = vmatpush1.bf16.msra.mxu0 0
    %4547 = vmatprep.subr.bf16.mxu0 0
    %4548 = vmatpush1.bf16.msra.mxu0 0
    %4549 = vmatprep.subr.bf16.mxu0 0
    %4550 = vmatpush1.bf16.msra.mxu0 0
    %4551 = vmatprep.subr.bf16.mxu0 0
    %4552 = vmatpush1.bf16.msra.mxu0 0
    %4553 = vmatprep.subr.bf16.mxu0 0
    %4554 = vmatpush1.bf16.msra.mxu0 0
    %4555 = vmatprep.subr.bf16.mxu0 0
    %4556 = vmatpush1.bf16.msra.mxu0 0
    %4557 = vmatprep.subr.bf16.mxu0 0
    %4558 = vmatpush1.bf16.msra.mxu0 0
    %4559 = vmatprep.mubr.bf16.mxu0 0
    %4560 = vmatmul.mubr.bf16.gmra.mrb[0].mxu0 %v4489
    %v4561 = vpop.f32.mrb[0].mxu0
    %v4562 = vadd.f32 0.0, %v4561
    %v4563 = vpop.f32.mrb[0].mxu0
    %v4564 = vadd.f32 0.0, %v4563
    %v4565 = vpop.f32.mrb[0].mxu0
    %v4566 = vpop.f32.mrb[0].mxu0
    %4567 = vdwg.mxu0
    %4568 = vmatprep.subr.bf16.mxu0 %v4501
    %4569 = vmatpush1.bf16.msra.mxu0 %v4498
    %4570 = vmatprep.subr.bf16.mxu0 0
    %4571 = vmatpush1.bf16.msra.mxu0 0
    %4572 = vmatprep.subr.bf16.mxu0 0
    %4573 = vmatpush1.bf16.msra.mxu0 0
    %4574 = vmatprep.subr.bf16.mxu0 0
    %4575 = vmatpush1.bf16.msra.mxu0 0
    %4576 = vmatprep.subr.bf16.mxu0 0
    %4577 = vmatpush1.bf16.msra.mxu0 0
    %4578 = vmatprep.subr.bf16.mxu0 0
    %4579 = vmatpush1.bf16.msra.mxu0 0
    %4580 = vmatprep.subr.bf16.mxu0 0
    %4581 = vmatpush1.bf16.msra.mxu0 0
    %4582 = vmatprep.subr.bf16.mxu0 0
    %4583 = vmatpush1.bf16.msra.mxu0 0
    %4584 = vmatprep.subr.bf16.mxu0 0
    %4585 = vmatpush1.bf16.msra.mxu0 0
    %4586 = vmatprep.subr.bf16.mxu0 0
    %4587 = vmatpush1.bf16.msra.mxu0 0
    %4588 = vmatprep.subr.bf16.mxu0 0
    %4589 = vmatpush1.bf16.msra.mxu0 0
    %4590 = vmatprep.subr.bf16.mxu0 0
    %4591 = vmatpush1.bf16.msra.mxu0 0
    %4592 = vmatprep.subr.bf16.mxu0 0
    %4593 = vmatpush1.bf16.msra.mxu0 0
    %4594 = vmatprep.subr.bf16.mxu0 0
    %4595 = vmatpush1.bf16.msra.mxu0 0
    %4596 = vmatprep.subr.bf16.mxu0 0
    %4597 = vmatpush1.bf16.msra.mxu0 0
    %4598 = vmatprep.subr.bf16.mxu0 0
    %4599 = vmatpush1.bf16.msra.mxu0 0
    %4600 = vmatprep.mubr.bf16.mxu0 0
    %4601 = vmatmul.mubr.bf16.gmra.mrb[0].mxu0 %v4489
    %v4602 = vpop.f32.mrb[0].mxu0
    %v4603 = vadd.f32 0.0, %v4602
    %v4604 = vpop.f32.mrb[0].mxu0
    %v4605 = vadd.f32 0.0, %v4604
    %v4606 = vpop.f32.mrb[0].mxu0
    %v4607 = vpop.f32.mrb[0].mxu0
    %4608 = vdwg.mxu0
    %4609 = vmatprep.subr.bf16.mxu0 %v4507
    %4610 = vmatpush1.bf16.msra.mxu0 %v4504
    %4611 = vmatprep.subr.bf16.mxu0 0
    %4612 = vmatpush1.bf16.msra.mxu0 0
    %4613 = vmatprep.subr.bf16.mxu0 0
    %4614 = vmatpush1.bf16.msra.mxu0 0
    %4615 = vmatprep.subr.bf16.mxu0 0
    %4616 = vmatpush1.bf16.msra.mxu0 0
    %4617 = vmatprep.subr.bf16.mxu0 0
    %4618 = vmatpush1.bf16.msra.mxu0 0
    %4619 = vmatprep.subr.bf16.mxu0 0
    %4620 = vmatpush1.bf16.msra.mxu0 0
    %4621 = vmatprep.subr.bf16.mxu0 0
    %4622 = vmatpush1.bf16.msra.mxu0 0
    %4623 = vmatprep.subr.bf16.mxu0 0
    %4624 = vmatpush1.bf16.msra.mxu0 0
    %4625 = vmatprep.subr.bf16.mxu0 0
    %4626 = vmatpush1.bf16.msra.mxu0 0
    %4627 = vmatprep.subr.bf16.mxu0 0
    %4628 = vmatpush1.bf16.msra.mxu0 0
    %4629 = vmatprep.subr.bf16.mxu0 0
    %4630 = vmatpush1.bf16.msra.mxu0 0
    %4631 = vmatprep.subr.bf16.mxu0 0
    %4632 = vmatpush1.bf16.msra.mxu0 0
    %4633 = vmatprep.subr.bf16.mxu0 0
    %4634 = vmatpush1.bf16.msra.mxu0 0
    %4635 = vmatprep.subr.bf16.mxu0 0
    %4636 = vmatpush1.bf16.msra.mxu0 0
    %4637 = vmatprep.subr.bf16.mxu0 0
    %4638 = vmatpush1.bf16.msra.mxu0 0
    %4639 = vmatprep.subr.bf16.mxu0 0
    %4640 = vmatpush1.bf16.msra.mxu0 0
    %4641 = vmatprep.mubr.bf16.mxu0 0
    %4642 = vmatmul.mubr.bf16.gmra.mrb[0].mxu0 %v4489
    %v4643 = vpop.f32.mrb[0].mxu0
    %v4644 = vadd.f32 0.0, %v4643
    %v4645 = vpop.f32.mrb[0].mxu0
    %v4646 = vadd.f32 0.0, %v4645
    %v4647 = vpop.f32.mrb[0].mxu0
    %v4648 = vpop.f32.mrb[0].mxu0
    %4649 = vdwg.mxu0
    %4650 = vmatprep.subr.bf16.mxu0 %v4513
    %4651 = vmatpush1.bf16.msra.mxu0 %v4510
    %4652 = vmatprep.subr.bf16.mxu0 0
    %4653 = vmatpush1.bf16.msra.mxu0 0
    %4654 = vmatprep.subr.bf16.mxu0 0
    %4655 = vmatpush1.bf16.msra.mxu0 0
    %4656 = vmatprep.subr.bf16.mxu0 0
    %4657 = vmatpush1.bf16.msra.mxu0 0
    %4658 = vmatprep.subr.bf16.mxu0 0
    %4659 = vmatpush1.bf16.msra.mxu0 0
    %4660 = vmatprep.subr.bf16.mxu0 0
    %4661 = vmatpush1.bf16.msra.mxu0 0
    %4662 = vmatprep.subr.bf16.mxu0 0
    %4663 = vmatpush1.bf16.msra.mxu0 0
    %4664 = vmatprep.subr.bf16.mxu0 0
    %4665 = vmatpush1.bf16.msra.mxu0 0
    %4666 = vmatprep.subr.bf16.mxu0 0
    %4667 = vmatpush1.bf16.msra.mxu0 0
    %4668 = vmatprep.subr.bf16.mxu0 0
    %4669 = vmatpush1.bf16.msra.mxu0 0
    %4670 = vmatprep.subr.bf16.mxu0 0
    %4671 = vmatpush1.bf16.msra.mxu0 0
    %4672 = vmatprep.subr.bf16.mxu0 0
    %4673 = vmatpush1.bf16.msra.mxu0 0
    %4674 = vmatprep.subr.bf16.mxu0 0
    %4675 = vmatpush1.bf16.msra.mxu0 0
    %4676 = vmatprep.subr.bf16.mxu0 0
    %4677 = vmatpush1.bf16.msra.mxu0 0
    %4678 = vmatprep.subr.bf16.mxu0 0
    %4679 = vmatpush1.bf16.msra.mxu0 0
    %4680 = vmatprep.subr.bf16.mxu0 0
    %4681 = vmatpush1.bf16.msra.mxu0 0
    %4682 = vmatprep.mubr.bf16.mxu0 0
    %4683 = vmatmul.mubr.bf16.gmra.mrb[0].mxu0 %v4489
    %v4684 = vpop.f32.mrb[0].mxu0
    %v4685 = vadd.f32 0.0, %v4684
    %v4686 = vpop.f32.mrb[0].mxu0
    %v4687 = vadd.f32 0.0, %v4686
    %v4688 = vpop.f32.mrb[0].mxu0
    %v4689 = vpop.f32.mrb[0].mxu0
    %4690 = vdwg.mxu0
    %4691 = vmatprep.subr.bf16.mxu0 %v4519
    %4692 = vmatpush1.bf16.msra.mxu0 %v4516
    %4693 = vmatprep.subr.bf16.mxu0 0
    %4694 = vmatpush1.bf16.msra.mxu0 0
    %4695 = vmatprep.subr.bf16.mxu0 0
    %4696 = vmatpush1.bf16.msra.mxu0 0
    %4697 = vmatprep.subr.bf16.mxu0 0
    %4698 = vmatpush1.bf16.msra.mxu0 0
    %4699 = vmatprep.subr.bf16.mxu0 0
    %4700 = vmatpush1.bf16.msra.mxu0 0
    %4701 = vmatprep.subr.bf16.mxu0 0
    %4702 = vmatpush1.bf16.msra.mxu0 0
    %4703 = vmatprep.subr.bf16.mxu0 0
    %4704 = vmatpush1.bf16.msra.mxu0 0
    %4705 = vmatprep.subr.bf16.mxu0 0
    %4706 = vmatpush1.bf16.msra.mxu0 0
    %4707 = vmatprep.subr.bf16.mxu0 0
    %4708 = vmatpush1.bf16.msra.mxu0 0
    %4709 = vmatprep.subr.bf16.mxu0 0
    %4710 = vmatpush1.bf16.msra.mxu0 0
    %4711 = vmatprep.subr.bf16.mxu0 0
    %4712 = vmatpush1.bf16.msra.mxu0 0
    %4713 = vmatprep.subr.bf16.mxu0 0
    %4714 = vmatpush1.bf16.msra.mxu0 0
    %4715 = vmatprep.subr.bf16.mxu0 0
    %4716 = vmatpush1.bf16.msra.mxu0 0
    %4717 = vmatprep.subr.bf16.mxu0 0
    %4718 = vmatpush1.bf16.msra.mxu0 0
    %4719 = vmatprep.subr.bf16.mxu0 0
    %4720 = vmatpush1.bf16.msra.mxu0 0
    %4721 = vmatprep.subr.bf16.mxu0 0
    %4722 = vmatpush1.bf16.msra.mxu0 0
    %4723 = vmatprep.mubr.bf16.mxu0 0
    %4724 = vmatmul.mubr.bf16.gmra.mrb[0].mxu0 %v4489
    %v4725 = vpop.f32.mrb[0].mxu0
    %v4726 = vadd.f32 0.0, %v4725
    %v4727 = vpop.f32.mrb[0].mxu0
    %v4728 = vadd.f32 0.0, %v4727
    %v4729 = vpop.f32.mrb[0].mxu0
    %v4730 = vpop.f32.mrb[0].mxu0
    %4731 = vdwg.mxu0
    %4732 = vmatprep.subr.bf16.mxu0 %v4525
    %4733 = vmatpush1.bf16.msra.mxu0 %v4522
    %4734 = vmatprep.subr.bf16.mxu0 0
    %4735 = vmatpush1.bf16.msra.mxu0 0
    %4736 = vmatprep.subr.bf16.mxu0 0
    %4737 = vmatpush1.bf16.msra.mxu0 0
    %4738 = vmatprep.subr.bf16.mxu0 0
    %4739 = vmatpush1.bf16.msra.mxu0 0
    %4740 = vmatprep.subr.bf16.mxu0 0
    %4741 = vmatpush1.bf16.msra.mxu0 0
    %4742 = vmatprep.subr.bf16.mxu0 0
    %4743 = vmatpush1.bf16.msra.mxu0 0
    %4744 = vmatprep.subr.bf16.mxu0 0
    %4745 = vmatpush1.bf16.msra.mxu0 0
    %4746 = vmatprep.subr.bf16.mxu0 0
    %4747 = vmatpush1.bf16.msra.mxu0 0
    %4748 = vmatprep.subr.bf16.mxu0 0
    %4749 = vmatpush1.bf16.msra.mxu0 0
    %4750 = vmatprep.subr.bf16.mxu0 0
    %4751 = vmatpush1.bf16.msra.mxu0 0
    %4752 = vmatprep.subr.bf16.mxu0 0
    %4753 = vmatpush1.bf16.msra.mxu0 0
    %4754 = vmatprep.subr.bf16.mxu0 0
    %4755 = vmatpush1.bf16.msra.mxu0 0
    %4756 = vmatprep.subr.bf16.mxu0 0
    %4757 = vmatpush1.bf16.msra.mxu0 0
    %4758 = vmatprep.subr.bf16.mxu0 0
    %4759 = vmatpush1.bf16.msra.mxu0 0
    %4760 = vmatprep.subr.bf16.mxu0 0
    %4761 = vmatpush1.bf16.msra.mxu0 0
    %4762 = vmatprep.subr.bf16.mxu0 0
    %4763 = vmatpush1.bf16.msra.mxu0 0
    %4764 = vmatprep.mubr.bf16.mxu0 0
    %4765 = vmatmul.mubr.bf16.gmra.mrb[0].mxu0 %v4489
    %v4766 = vpop.f32.mrb[0].mxu0
    %v4767 = vadd.f32 0.0, %v4766
    %v4768 = vpop.f32.mrb[0].mxu0
    %v4769 = vadd.f32 0.0, %v4768
    %v4770 = vpop.f32.mrb[0].mxu0
    %v4771 = vpop.f32.mrb[0].mxu0
    %4772 = vdwg.mxu0
    %v4773 = vadd.f32 %v4345, %v4562
    %v4774 = vadd.f32 %v4346, %v4564
    %v4775 = vadd.f32 %v4347, %v4603
    %v4776 = vadd.f32 %v4348, %v4605
    %v4777 = vadd.f32 %v4349, %v4644
    %v4778 = vadd.f32 %v4350, %v4646
    %v4779 = vadd.f32 %v4351, %v4685
    %v4780 = vadd.f32 %v4352, %v4687
    %v4781 = vadd.f32 %v4353, %v4726
    %v4782 = vadd.f32 %v4354, %v4728
    %v4783 = vadd.f32 %v4355, %v4767
    %v4784 = vadd.f32 %v4356, %v4769
    %4785 = vrot.lane.b32.xlu0 %v87, 7
    %v4786 = vpop.permute.xlu0 %4785
    %4787 = vrot.lane.b32.xlu0 %v88, 7
    %v4788 = vpop.permute.xlu0 %4787
    %4789 = vrot.lane.b32.xlu0 %v89, 7
    %v4790 = vpop.permute.xlu0 %4789
    %4791 = vrot.lane.b32.xlu0 %v90, 7
    %v4792 = vpop.permute.xlu0 %4791
    %4793 = vrot.lane.b32.xlu0 %v91, 7
    %v4794 = vpop.permute.xlu0 %4793
    %4795 = vrot.lane.b32.xlu0 %v92, 7
    %v4796 = vpop.permute.xlu0 %4795
    %4797 = vrot.lane.b32.xlu0 %v93, 7
    %v4798 = vpop.permute.xlu0 %4797
    %4799 = vrot.lane.b32.xlu0 %v94, 7
    %v4800 = vpop.permute.xlu0 %4799
    %4801 = vrot.lane.b32.xlu0 %v95, 7
    %v4802 = vpop.permute.xlu0 %4801
    %4803 = vrot.lane.b32.xlu0 %v96, 7
    %v4804 = vpop.permute.xlu0 %4803
    %4805 = vrot.lane.b32.xlu0 %v97, 7
    %v4806 = vpop.permute.xlu0 %4805
    %4807 = vrot.lane.b32.xlu0 %v98, 7
    %v4808 = vpop.permute.xlu0 %4807
    %vm4809 = vcmp.lt.s32.totalorder %v124, 7
    %v4810 = vsel %vm4809, %v4806, %v4808
    %v4811 = vsel %vm4809, %v4804, %v4806
    %v4812 = vsel %vm4809, %v4802, %v4804
    %v4813 = vsel %vm4809, %v4800, %v4802
    %v4814 = vsel %vm4809, %v4798, %v4800
    %v4815 = vsel %vm4809, %v4796, %v4798
    %v4816 = vsel %vm4809, %v4794, %v4796
    %v4817 = vsel %vm4809, %v4792, %v4794
    %v4818 = vsel %vm4809, %v4790, %v4792
    %v4819 = vsel %vm4809, %v4788, %v4790
    %v4820 = vsel %vm4809, %v4786, %v4788
    %v4821 = vsel %vm4809, %v4808, %v4786
    %s4822 = scalar_lea.vmem [#allocation3], 99
    %v4823 = vld [vmem:[%s4822] ss:$8 sm:$0xf]
    %v4824 = vld [vmem:[%s4822] ss:$8 sm:$0xf0]
    %v4825 = vor.u32 %v4823, %v4824
    %s4826 = scalar_lea.vmem [#allocation3], 163
    %v4827 = vld [vmem:[%s4826] ss:$8 sm:$0xf]
    %v4830 = vlaneseq
    %v4831 = vshrl.u32 %v4830, 7
    %v4832 = vsub.s32 0, %v4831
    %v4833 = vrot.slane %v4825, %v4832
    %v4834 = vlaneseq
    %v4835 = vshrl.u32 %v4834, 7
    %v4836 = vsub.s32 1, %v4835
    %v4837 = vrot.slane %v4825, %v4836
    %v4838 = vlaneseq
    %v4839 = vshrl.u32 %v4838, 7
    %v4840 = vsub.s32 2, %v4839
    %v4841 = vrot.slane %v4825, %v4840
    %v4842 = vlaneseq
    %v4843 = vshrl.u32 %v4842, 7
    %v4844 = vsub.s32 3, %v4843
    %v4845 = vrot.slane %v4825, %v4844
    %v4846 = vlaneseq
    %v4847 = vshrl.u32 %v4846, 7
    %v4848 = vsub.s32 4, %v4847
    %v4849 = vrot.slane %v4825, %v4848
    %v4850 = vlaneseq
    %v4851 = vshrl.u32 %v4850, 7
    %v4852 = vsub.s32 5, %v4851
    %v4853 = vrot.slane %v4825, %v4852
    %v4854 = vlaneseq
    %v4855 = vshrl.u32 %v4854, 7
    %v4856 = vsub.s32 6, %v4855
    %v4857 = vrot.slane %v4825, %v4856
    %v4858 = vlaneseq
    %v4859 = vshrl.u32 %v4858, 7
    %v4860 = vsub.s32 7, %v4859
    %v4861 = vrot.slane %v4825, %v4860
    %v4862 = vlaneseq
    %v4863 = vshrl.u32 %v4862, 7
    %v4864 = vsub.s32 0, %v4863
    %v4865 = vrot.slane %v4827, %v4864
    %v4866 = vlaneseq
    %v4867 = vshrl.u32 %v4866, 7
    %v4868 = vsub.s32 1, %v4867
    %v4869 = vrot.slane %v4827, %v4868
    %v4870 = vlaneseq
    %v4871 = vshrl.u32 %v4870, 7
    %v4872 = vsub.s32 2, %v4871
    %v4873 = vrot.slane %v4827, %v4872
    %v4874 = vlaneseq
    %v4875 = vshrl.u32 %v4874, 7
    %v4876 = vsub.s32 3, %v4875
    %v4877 = vrot.slane %v4827, %v4876
    %v4890 = vmul.f32 %v4821, %v4833
    %v4891 = vmul.f32 %v4820, %v4837
    %v4892 = vmul.f32 %v4819, %v4841
    %v4893 = vmul.f32 %v4818, %v4845
    %v4894 = vmul.f32 %v4817, %v4849
    %v4895 = vmul.f32 %v4816, %v4853
    %v4896 = vmul.f32 %v4815, %v4857
    %v4897 = vmul.f32 %v4814, %v4861
    %v4898 = vmul.f32 %v4813, %v4865
    %v4899 = vmul.f32 %v4812, %v4869
    %v4900 = vmul.f32 %v4811, %v4873
    %v4901 = vmul.f32 %v4810, %v4877
    %s4902 = scalar_lea.vmem %s1, 44
    %v4903 = vld [vmem:[%s4902] sm:$0xf]
    %v4904 = vpack.c.bf16 %v4890, %v4890
    %v4905 = vpack.c.bf16 %v4891, %v4891
    %v4906 = vpack.c.bf16 %v4892, %v4892
    %v4907 = vpack.c.bf16 %v4893, %v4893
    %v4908 = vpack.c.bf16 %v4894, %v4894
    %v4909 = vpack.c.bf16 %v4895, %v4895
    %v4910 = vpack.c.bf16 %v4896, %v4896
    %v4911 = vpack.c.bf16 %v4897, %v4897
    %v4912 = vpack.c.bf16 %v4898, %v4898
    %v4913 = vpack.c.bf16 %v4899, %v4899
    %v4914 = vpack.c.bf16 %v4900, %v4900
    %v4915 = vpack.c.bf16 %v4901, %v4901
    %v4917 = vsel %vm361, %v4903, 0
    %v4920 = vsel %vm365, %v4904, 0
    %v4923 = vsel %vm365, %v4905, 0
    %v4926 = vsel %vm365, %v4906, 0
    %v4929 = vsel %vm365, %v4907, 0
    %v4932 = vsel %vm365, %v4908, 0
    %v4935 = vsel %vm365, %v4909, 0
    %v4938 = vsel %vm365, %v4910, 0
    %v4941 = vsel %vm365, %v4911, 0
    %v4944 = vsel %vm365, %v4912, 0
    %v4947 = vsel %vm365, %v4913, 0
    %v4950 = vsel %vm365, %v4914, 0
    %v4953 = vsel %vm365, %v4915, 0
    %4955 = vmatprep.subr.bf16.mxu0 %v4923
    %4956 = vmatpush1.bf16.msra.mxu0 %v4920
    %4957 = vmatprep.subr.bf16.mxu0 0
    %4958 = vmatpush1.bf16.msra.mxu0 0
    %4959 = vmatprep.subr.bf16.mxu0 0
    %4960 = vmatpush1.bf16.msra.mxu0 0
    %4961 = vmatprep.subr.bf16.mxu0 0
    %4962 = vmatpush1.bf16.msra.mxu0 0
    %4963 = vmatprep.subr.bf16.mxu0 0
    %4964 = vmatpush1.bf16.msra.mxu0 0
    %4965 = vmatprep.subr.bf16.mxu0 0
    %4966 = vmatpush1.bf16.msra.mxu0 0
    %4967 = vmatprep.subr.bf16.mxu0 0
    %4968 = vmatpush1.bf16.msra.mxu0 0
    %4969 = vmatprep.subr.bf16.mxu0 0
    %4970 = vmatpush1.bf16.msra.mxu0 0
    %4971 = vmatprep.subr.bf16.mxu0 0
    %4972 = vmatpush1.bf16.msra.mxu0 0
    %4973 = vmatprep.subr.bf16.mxu0 0
    %4974 = vmatpush1.bf16.msra.mxu0 0
    %4975 = vmatprep.subr.bf16.mxu0 0
    %4976 = vmatpush1.bf16.msra.mxu0 0
    %4977 = vmatprep.subr.bf16.mxu0 0
    %4978 = vmatpush1.bf16.msra.mxu0 0
    %4979 = vmatprep.subr.bf16.mxu0 0
    %4980 = vmatpush1.bf16.msra.mxu0 0
    %4981 = vmatprep.subr.bf16.mxu0 0
    %4982 = vmatpush1.bf16.msra.mxu0 0
    %4983 = vmatprep.subr.bf16.mxu0 0
    %4984 = vmatpush1.bf16.msra.mxu0 0
    %4985 = vmatprep.subr.bf16.mxu0 0
    %4986 = vmatpush1.bf16.msra.mxu0 0
    %4987 = vmatprep.mubr.bf16.mxu0 0
    %4988 = vmatmul.mubr.bf16.gmra.mrb[0].mxu0 %v4917
    %v4989 = vpop.f32.mrb[0].mxu0
    %v4990 = vadd.f32 0.0, %v4989
    %v4991 = vpop.f32.mrb[0].mxu0
    %v4992 = vadd.f32 0.0, %v4991
    %v4993 = vpop.f32.mrb[0].mxu0
    %v4994 = vpop.f32.mrb[0].mxu0
    %4995 = vdwg.mxu0
    %4996 = vmatprep.subr.bf16.mxu0 %v4929
    %4997 = vmatpush1.bf16.msra.mxu0 %v4926
    %4998 = vmatprep.subr.bf16.mxu0 0
    %4999 = vmatpush1.bf16.msra.mxu0 0
    %5000 = vmatprep.subr.bf16.mxu0 0
    %5001 = vmatpush1.bf16.msra.mxu0 0
    %5002 = vmatprep.subr.bf16.mxu0 0
    %5003 = vmatpush1.bf16.msra.mxu0 0
    %5004 = vmatprep.subr.bf16.mxu0 0
    %5005 = vmatpush1.bf16.msra.mxu0 0
    %5006 = vmatprep.subr.bf16.mxu0 0
    %5007 = vmatpush1.bf16.msra.mxu0 0
    %5008 = vmatprep.subr.bf16.mxu0 0
    %5009 = vmatpush1.bf16.msra.mxu0 0
    %5010 = vmatprep.subr.bf16.mxu0 0
    %5011 = vmatpush1.bf16.msra.mxu0 0
    %5012 = vmatprep.subr.bf16.mxu0 0
    %5013 = vmatpush1.bf16.msra.mxu0 0
    %5014 = vmatprep.subr.bf16.mxu0 0
    %5015 = vmatpush1.bf16.msra.mxu0 0
    %5016 = vmatprep.subr.bf16.mxu0 0
    %5017 = vmatpush1.bf16.msra.mxu0 0
    %5018 = vmatprep.subr.bf16.mxu0 0
    %5019 = vmatpush1.bf16.msra.mxu0 0
    %5020 = vmatprep.subr.bf16.mxu0 0
    %5021 = vmatpush1.bf16.msra.mxu0 0
    %5022 = vmatprep.subr.bf16.mxu0 0
    %5023 = vmatpush1.bf16.msra.mxu0 0
    %5024 = vmatprep.subr.bf16.mxu0 0
    %5025 = vmatpush1.bf16.msra.mxu0 0
    %5026 = vmatprep.subr.bf16.mxu0 0
    %5027 = vmatpush1.bf16.msra.mxu0 0
    %5028 = vmatprep.mubr.bf16.mxu0 0
    %5029 = vmatmul.mubr.bf16.gmra.mrb[0].mxu0 %v4917
    %v5030 = vpop.f32.mrb[0].mxu0
    %v5031 = vadd.f32 0.0, %v5030
    %v5032 = vpop.f32.mrb[0].mxu0
    %v5033 = vadd.f32 0.0, %v5032
    %v5034 = vpop.f32.mrb[0].mxu0
    %v5035 = vpop.f32.mrb[0].mxu0
    %5036 = vdwg.mxu0
    %5037 = vmatprep.subr.bf16.mxu0 %v4935
    %5038 = vmatpush1.bf16.msra.mxu0 %v4932
    %5039 = vmatprep.subr.bf16.mxu0 0
    %5040 = vmatpush1.bf16.msra.mxu0 0
    %5041 = vmatprep.subr.bf16.mxu0 0
    %5042 = vmatpush1.bf16.msra.mxu0 0
    %5043 = vmatprep.subr.bf16.mxu0 0
    %5044 = vmatpush1.bf16.msra.mxu0 0
    %5045 = vmatprep.subr.bf16.mxu0 0
    %5046 = vmatpush1.bf16.msra.mxu0 0
    %5047 = vmatprep.subr.bf16.mxu0 0
    %5048 = vmatpush1.bf16.msra.mxu0 0
    %5049 = vmatprep.subr.bf16.mxu0 0
    %5050 = vmatpush1.bf16.msra.mxu0 0
    %5051 = vmatprep.subr.bf16.mxu0 0
    %5052 = vmatpush1.bf16.msra.mxu0 0
    %5053 = vmatprep.subr.bf16.mxu0 0
    %5054 = vmatpush1.bf16.msra.mxu0 0
    %5055 = vmatprep.subr.bf16.mxu0 0
    %5056 = vmatpush1.bf16.msra.mxu0 0
    %5057 = vmatprep.subr.bf16.mxu0 0
    %5058 = vmatpush1.bf16.msra.mxu0 0
    %5059 = vmatprep.subr.bf16.mxu0 0
    %5060 = vmatpush1.bf16.msra.mxu0 0
    %5061 = vmatprep.subr.bf16.mxu0 0
    %5062 = vmatpush1.bf16.msra.mxu0 0
    %5063 = vmatprep.subr.bf16.mxu0 0
    %5064 = vmatpush1.bf16.msra.mxu0 0
    %5065 = vmatprep.subr.bf16.mxu0 0
    %5066 = vmatpush1.bf16.msra.mxu0 0
    %5067 = vmatprep.subr.bf16.mxu0 0
    %5068 = vmatpush1.bf16.msra.mxu0 0
    %5069 = vmatprep.mubr.bf16.mxu0 0
    %5070 = vmatmul.mubr.bf16.gmra.mrb[0].mxu0 %v4917
    %v5071 = vpop.f32.mrb[0].mxu0
    %v5072 = vadd.f32 0.0, %v5071
    %v5073 = vpop.f32.mrb[0].mxu0
    %v5074 = vadd.f32 0.0, %v5073
    %v5075 = vpop.f32.mrb[0].mxu0
    %v5076 = vpop.f32.mrb[0].mxu0
    %5077 = vdwg.mxu0
    %5078 = vmatprep.subr.bf16.mxu0 %v4941
    %5079 = vmatpush1.bf16.msra.mxu0 %v4938
    %5080 = vmatprep.subr.bf16.mxu0 0
    %5081 = vmatpush1.bf16.msra.mxu0 0
    %5082 = vmatprep.subr.bf16.mxu0 0
    %5083 = vmatpush1.bf16.msra.mxu0 0
    %5084 = vmatprep.subr.bf16.mxu0 0
    %5085 = vmatpush1.bf16.msra.mxu0 0
    %5086 = vmatprep.subr.bf16.mxu0 0
    %5087 = vmatpush1.bf16.msra.mxu0 0
    %5088 = vmatprep.subr.bf16.mxu0 0
    %5089 = vmatpush1.bf16.msra.mxu0 0
    %5090 = vmatprep.subr.bf16.mxu0 0
    %5091 = vmatpush1.bf16.msra.mxu0 0
    %5092 = vmatprep.subr.bf16.mxu0 0
    %5093 = vmatpush1.bf16.msra.mxu0 0
    %5094 = vmatprep.subr.bf16.mxu0 0
    %5095 = vmatpush1.bf16.msra.mxu0 0
    %5096 = vmatprep.subr.bf16.mxu0 0
    %5097 = vmatpush1.bf16.msra.mxu0 0
    %5098 = vmatprep.subr.bf16.mxu0 0
    %5099 = vmatpush1.bf16.msra.mxu0 0
    %5100 = vmatprep.subr.bf16.mxu0 0
    %5101 = vmatpush1.bf16.msra.mxu0 0
    %5102 = vmatprep.subr.bf16.mxu0 0
    %5103 = vmatpush1.bf16.msra.mxu0 0
    %5104 = vmatprep.subr.bf16.mxu0 0
    %5105 = vmatpush1.bf16.msra.mxu0 0
    %5106 = vmatprep.subr.bf16.mxu0 0
    %5107 = vmatpush1.bf16.msra.mxu0 0
    %5108 = vmatprep.subr.bf16.mxu0 0
    %5109 = vmatpush1.bf16.msra.mxu0 0
    %5110 = vmatprep.mubr.bf16.mxu0 0
    %5111 = vmatmul.mubr.bf16.gmra.mrb[0].mxu0 %v4917
    %v5112 = vpop.f32.mrb[0].mxu0
    %v5113 = vadd.f32 0.0, %v5112
    %v5114 = vpop.f32.mrb[0].mxu0
    %v5115 = vadd.f32 0.0, %v5114
    %v5116 = vpop.f32.mrb[0].mxu0
    %v5117 = vpop.f32.mrb[0].mxu0
    %5118 = vdwg.mxu0
    %5119 = vmatprep.subr.bf16.mxu0 %v4947
    %5120 = vmatpush1.bf16.msra.mxu0 %v4944
    %5121 = vmatprep.subr.bf16.mxu0 0
    %5122 = vmatpush1.bf16.msra.mxu0 0
    %5123 = vmatprep.subr.bf16.mxu0 0
    %5124 = vmatpush1.bf16.msra.mxu0 0
    %5125 = vmatprep.subr.bf16.mxu0 0
    %5126 = vmatpush1.bf16.msra.mxu0 0
    %5127 = vmatprep.subr.bf16.mxu0 0
    %5128 = vmatpush1.bf16.msra.mxu0 0
    %5129 = vmatprep.subr.bf16.mxu0 0
    %5130 = vmatpush1.bf16.msra.mxu0 0
    %5131 = vmatprep.subr.bf16.mxu0 0
    %5132 = vmatpush1.bf16.msra.mxu0 0
    %5133 = vmatprep.subr.bf16.mxu0 0
    %5134 = vmatpush1.bf16.msra.mxu0 0
    %5135 = vmatprep.subr.bf16.mxu0 0
    %5136 = vmatpush1.bf16.msra.mxu0 0
    %5137 = vmatprep.subr.bf16.mxu0 0
    %5138 = vmatpush1.bf16.msra.mxu0 0
    %5139 = vmatprep.subr.bf16.mxu0 0
    %5140 = vmatpush1.bf16.msra.mxu0 0
    %5141 = vmatprep.subr.bf16.mxu0 0
    %5142 = vmatpush1.bf16.msra.mxu0 0
    %5143 = vmatprep.subr.bf16.mxu0 0
    %5144 = vmatpush1.bf16.msra.mxu0 0
    %5145 = vmatprep.subr.bf16.mxu0 0
    %5146 = vmatpush1.bf16.msra.mxu0 0
    %5147 = vmatprep.subr.bf16.mxu0 0
    %5148 = vmatpush1.bf16.msra.mxu0 0
    %5149 = vmatprep.subr.bf16.mxu0 0
    %5150 = vmatpush1.bf16.msra.mxu0 0
    %5151 = vmatprep.mubr.bf16.mxu0 0
    %5152 = vmatmul.mubr.bf16.gmra.mrb[0].mxu0 %v4917
    %v5153 = vpop.f32.mrb[0].mxu0
    %v5154 = vadd.f32 0.0, %v5153
    %v5155 = vpop.f32.mrb[0].mxu0
    %v5156 = vadd.f32 0.0, %v5155
    %v5157 = vpop.f32.mrb[0].mxu0
    %v5158 = vpop.f32.mrb[0].mxu0
    %5159 = vdwg.mxu0
    %5160 = vmatprep.subr.bf16.mxu0 %v4953
    %5161 = vmatpush1.bf16.msra.mxu0 %v4950
    %5162 = vmatprep.subr.bf16.mxu0 0
    %5163 = vmatpush1.bf16.msra.mxu0 0
    %5164 = vmatprep.subr.bf16.mxu0 0
    %5165 = vmatpush1.bf16.msra.mxu0 0
    %5166 = vmatprep.subr.bf16.mxu0 0
    %5167 = vmatpush1.bf16.msra.mxu0 0
    %5168 = vmatprep.subr.bf16.mxu0 0
    %5169 = vmatpush1.bf16.msra.mxu0 0
    %5170 = vmatprep.subr.bf16.mxu0 0
    %5171 = vmatpush1.bf16.msra.mxu0 0
    %5172 = vmatprep.subr.bf16.mxu0 0
    %5173 = vmatpush1.bf16.msra.mxu0 0
    %5174 = vmatprep.subr.bf16.mxu0 0
    %5175 = vmatpush1.bf16.msra.mxu0 0
    %5176 = vmatprep.subr.bf16.mxu0 0
    %5177 = vmatpush1.bf16.msra.mxu0 0
    %5178 = vmatprep.subr.bf16.mxu0 0
    %5179 = vmatpush1.bf16.msra.mxu0 0
    %5180 = vmatprep.subr.bf16.mxu0 0
    %5181 = vmatpush1.bf16.msra.mxu0 0
    %5182 = vmatprep.subr.bf16.mxu0 0
    %5183 = vmatpush1.bf16.msra.mxu0 0
    %5184 = vmatprep.subr.bf16.mxu0 0
    %5185 = vmatpush1.bf16.msra.mxu0 0
    %5186 = vmatprep.subr.bf16.mxu0 0
    %5187 = vmatpush1.bf16.msra.mxu0 0
    %5188 = vmatprep.subr.bf16.mxu0 0
    %5189 = vmatpush1.bf16.msra.mxu0 0
    %5190 = vmatprep.subr.bf16.mxu0 0
    %5191 = vmatpush1.bf16.msra.mxu0 0
    %5192 = vmatprep.mubr.bf16.mxu0 0
    %5193 = vmatmul.mubr.bf16.gmra.mrb[0].mxu0 %v4917
    %v5194 = vpop.f32.mrb[0].mxu0
    %v5195 = vadd.f32 0.0, %v5194
    %v5196 = vpop.f32.mrb[0].mxu0
    %v5197 = vadd.f32 0.0, %v5196
    %v5198 = vpop.f32.mrb[0].mxu0
    %v5199 = vpop.f32.mrb[0].mxu0
    %5200 = vdwg.mxu0
    %v5201 = vadd.f32 %v4773, %v4990
    %v5202 = vadd.f32 %v4774, %v4992
    %v5203 = vadd.f32 %v4775, %v5031
    %v5204 = vadd.f32 %v4776, %v5033
    %v5205 = vadd.f32 %v4777, %v5072
    %v5206 = vadd.f32 %v4778, %v5074
    %v5207 = vadd.f32 %v4779, %v5113
    %v5208 = vadd.f32 %v4780, %v5115
    %v5209 = vadd.f32 %v4781, %v5154
    %v5210 = vadd.f32 %v4782, %v5156
    %v5211 = vadd.f32 %v4783, %v5195
    %v5212 = vadd.f32 %v4784, %v5197
    %5213 = vrot.lane.b32.xlu0 %v87, 1
    %v5214 = vpop.permute.xlu0 %5213
    %5215 = vrot.lane.b32.xlu0 %v88, 1
    %v5216 = vpop.permute.xlu0 %5215
    %5217 = vrot.lane.b32.xlu0 %v89, 1
    %v5218 = vpop.permute.xlu0 %5217
    %5219 = vrot.lane.b32.xlu0 %v90, 1
    %v5220 = vpop.permute.xlu0 %5219
    %5221 = vrot.lane.b32.xlu0 %v91, 1
    %v5222 = vpop.permute.xlu0 %5221
    %5223 = vrot.lane.b32.xlu0 %v92, 1
    %v5224 = vpop.permute.xlu0 %5223
    %5225 = vrot.lane.b32.xlu0 %v93, 1
    %v5226 = vpop.permute.xlu0 %5225
    %5227 = vrot.lane.b32.xlu0 %v94, 1
    %v5228 = vpop.permute.xlu0 %5227
    %5229 = vrot.lane.b32.xlu0 %v95, 1
    %v5230 = vpop.permute.xlu0 %5229
    %5231 = vrot.lane.b32.xlu0 %v96, 1
    %v5232 = vpop.permute.xlu0 %5231
    %5233 = vrot.lane.b32.xlu0 %v97, 1
    %v5234 = vpop.permute.xlu0 %5233
    %5235 = vrot.lane.b32.xlu0 %v98, 1
    %v5236 = vpop.permute.xlu0 %5235
    %vm5237 = vcmp.lt.s32.totalorder %v124, 1
    %v5238 = vsel %vm5237, %v5234, %v5236
    %v5239 = vsel %vm5237, %v5232, %v5234
    %v5240 = vsel %vm5237, %v5230, %v5232
    %v5241 = vsel %vm5237, %v5228, %v5230
    %v5242 = vsel %vm5237, %v5226, %v5228
    %v5243 = vsel %vm5237, %v5224, %v5226
    %v5244 = vsel %vm5237, %v5222, %v5224
    %v5245 = vsel %vm5237, %v5220, %v5222
    %v5246 = vsel %vm5237, %v5218, %v5220
    %v5247 = vsel %vm5237, %v5216, %v5218
    %v5248 = vsel %vm5237, %v5214, %v5216
    %v5249 = vsel %vm5237, %v5236, %v5214
    %s5250 = scalar_lea.vmem [#allocation3], 100
    %v5251 = vld [vmem:[%s5250] ss:$8 sm:$0xf]
    %v5252 = vld [vmem:[%s5250] ss:$8 sm:$0xf0]
    %v5253 = vor.u32 %v5251, %v5252
    %s5254 = scalar_lea.vmem [#allocation3], 164
    %v5255 = vld [vmem:[%s5254] ss:$8 sm:$0xf]
    %v5258 = vlaneseq
    %v5259 = vshrl.u32 %v5258, 7
    %v5260 = vsub.s32 0, %v5259
    %v5261 = vrot.slane %v5253, %v5260
    %v5262 = vlaneseq
    %v5263 = vshrl.u32 %v5262, 7
    %v5264 = vsub.s32 1, %v5263
    %v5265 = vrot.slane %v5253, %v5264
    %v5266 = vlaneseq
    %v5267 = vshrl.u32 %v5266, 7
    %v5268 = vsub.s32 2, %v5267
    %v5269 = vrot.slane %v5253, %v5268
    %v5270 = vlaneseq
    %v5271 = vshrl.u32 %v5270, 7
    %v5272 = vsub.s32 3, %v5271
    %v5273 = vrot.slane %v5253, %v5272
    %v5274 = vlaneseq
    %v5275 = vshrl.u32 %v5274, 7
    %v5276 = vsub.s32 4, %v5275
    %v5277 = vrot.slane %v5253, %v5276
    %v5278 = vlaneseq
    %v5279 = vshrl.u32 %v5278, 7
    %v5280 = vsub.s32 5, %v5279
    %v5281 = vrot.slane %v5253, %v5280
    %v5282 = vlaneseq
    %v5283 = vshrl.u32 %v5282, 7
    %v5284 = vsub.s32 6, %v5283
    %v5285 = vrot.slane %v5253, %v5284
    %v5286 = vlaneseq
    %v5287 = vshrl.u32 %v5286, 7
    %v5288 = vsub.s32 7, %v5287
    %v5289 = vrot.slane %v5253, %v5288
    %v5290 = vlaneseq
    %v5291 = vshrl.u32 %v5290, 7
    %v5292 = vsub.s32 0, %v5291
    %v5293 = vrot.slane %v5255, %v5292
    %v5294 = vlaneseq
    %v5295 = vshrl.u32 %v5294, 7
    %v5296 = vsub.s32 1, %v5295
    %v5297 = vrot.slane %v5255, %v5296
    %v5298 = vlaneseq
    %v5299 = vshrl.u32 %v5298, 7
    %v5300 = vsub.s32 2, %v5299
    %v5301 = vrot.slane %v5255, %v5300
    %v5302 = vlaneseq
    %v5303 = vshrl.u32 %v5302, 7
    %v5304 = vsub.s32 3, %v5303
    %v5305 = vrot.slane %v5255, %v5304
    %v5318 = vmul.f32 %v5249, %v5261
    %v5319 = vmul.f32 %v5248, %v5265
    %v5320 = vmul.f32 %v5247, %v5269
    %v5321 = vmul.f32 %v5246, %v5273
    %v5322 = vmul.f32 %v5245, %v5277
    %v5323 = vmul.f32 %v5244, %v5281
    %v5324 = vmul.f32 %v5243, %v5285
    %v5325 = vmul.f32 %v5242, %v5289
    %v5326 = vmul.f32 %v5241, %v5293
    %v5327 = vmul.f32 %v5240, %v5297
    %v5328 = vmul.f32 %v5239, %v5301
    %v5329 = vmul.f32 %v5238, %v5305
    %s5330 = scalar_lea.vmem %s1, 48
    %v5331 = vld [vmem:[%s5330] sm:$0xf]
    %v5332 = vpack.c.bf16 %v5318, %v5318
    %v5333 = vpack.c.bf16 %v5319, %v5319
    %v5334 = vpack.c.bf16 %v5320, %v5320
    %v5335 = vpack.c.bf16 %v5321, %v5321
    %v5336 = vpack.c.bf16 %v5322, %v5322
    %v5337 = vpack.c.bf16 %v5323, %v5323
    %v5338 = vpack.c.bf16 %v5324, %v5324
    %v5339 = vpack.c.bf16 %v5325, %v5325
    %v5340 = vpack.c.bf16 %v5326, %v5326
    %v5341 = vpack.c.bf16 %v5327, %v5327
    %v5342 = vpack.c.bf16 %v5328, %v5328
    %v5343 = vpack.c.bf16 %v5329, %v5329
    %v5345 = vsel %vm361, %v5331, 0
    %v5348 = vsel %vm365, %v5332, 0
    %v5351 = vsel %vm365, %v5333, 0
    %v5354 = vsel %vm365, %v5334, 0
    %v5357 = vsel %vm365, %v5335, 0
    %v5360 = vsel %vm365, %v5336, 0
    %v5363 = vsel %vm365, %v5337, 0
    %v5366 = vsel %vm365, %v5338, 0
    %v5369 = vsel %vm365, %v5339, 0
    %v5372 = vsel %vm365, %v5340, 0
    %v5375 = vsel %vm365, %v5341, 0
    %v5378 = vsel %vm365, %v5342, 0
    %v5381 = vsel %vm365, %v5343, 0
    %5383 = vmatprep.subr.bf16.mxu0 %v5351
    %5384 = vmatpush1.bf16.msra.mxu0 %v5348
    %5385 = vmatprep.subr.bf16.mxu0 0
    %5386 = vmatpush1.bf16.msra.mxu0 0
    %5387 = vmatprep.subr.bf16.mxu0 0
    %5388 = vmatpush1.bf16.msra.mxu0 0
    %5389 = vmatprep.subr.bf16.mxu0 0
    %5390 = vmatpush1.bf16.msra.mxu0 0
    %5391 = vmatprep.subr.bf16.mxu0 0
    %5392 = vmatpush1.bf16.msra.mxu0 0
    %5393 = vmatprep.subr.bf16.mxu0 0
    %5394 = vmatpush1.bf16.msra.mxu0 0
    %5395 = vmatprep.subr.bf16.mxu0 0
    %5396 = vmatpush1.bf16.msra.mxu0 0
    %5397 = vmatprep.subr.bf16.mxu0 0
    %5398 = vmatpush1.bf16.msra.mxu0 0
    %5399 = vmatprep.subr.bf16.mxu0 0
    %5400 = vmatpush1.bf16.msra.mxu0 0
    %5401 = vmatprep.subr.bf16.mxu0 0
    %5402 = vmatpush1.bf16.msra.mxu0 0
    %5403 = vmatprep.subr.bf16.mxu0 0
    %5404 = vmatpush1.bf16.msra.mxu0 0
    %5405 = vmatprep.subr.bf16.mxu0 0
    %5406 = vmatpush1.bf16.msra.mxu0 0
    %5407 = vmatprep.subr.bf16.mxu0 0
    %5408 = vmatpush1.bf16.msra.mxu0 0
    %5409 = vmatprep.subr.bf16.mxu0 0
    %5410 = vmatpush1.bf16.msra.mxu0 0
    %5411 = vmatprep.subr.bf16.mxu0 0
    %5412 = vmatpush1.bf16.msra.mxu0 0
    %5413 = vmatprep.subr.bf16.mxu0 0
    %5414 = vmatpush1.bf16.msra.mxu0 0
    %5415 = vmatprep.mubr.bf16.mxu0 0
    %5416 = vmatmul.mubr.bf16.gmra.mrb[0].mxu0 %v5345
    %v5417 = vpop.f32.mrb[0].mxu0
    %v5418 = vadd.f32 0.0, %v5417
    %v5419 = vpop.f32.mrb[0].mxu0
    %v5420 = vadd.f32 0.0, %v5419
    %v5421 = vpop.f32.mrb[0].mxu0
    %v5422 = vpop.f32.mrb[0].mxu0
    %5423 = vdwg.mxu0
    %5424 = vmatprep.subr.bf16.mxu0 %v5357
    %5425 = vmatpush1.bf16.msra.mxu0 %v5354
    %5426 = vmatprep.subr.bf16.mxu0 0
    %5427 = vmatpush1.bf16.msra.mxu0 0
    %5428 = vmatprep.subr.bf16.mxu0 0
    %5429 = vmatpush1.bf16.msra.mxu0 0
    %5430 = vmatprep.subr.bf16.mxu0 0
    %5431 = vmatpush1.bf16.msra.mxu0 0
    %5432 = vmatprep.subr.bf16.mxu0 0
    %5433 = vmatpush1.bf16.msra.mxu0 0
    %5434 = vmatprep.subr.bf16.mxu0 0
    %5435 = vmatpush1.bf16.msra.mxu0 0
    %5436 = vmatprep.subr.bf16.mxu0 0
    %5437 = vmatpush1.bf16.msra.mxu0 0
    %5438 = vmatprep.subr.bf16.mxu0 0
    %5439 = vmatpush1.bf16.msra.mxu0 0
    %5440 = vmatprep.subr.bf16.mxu0 0
    %5441 = vmatpush1.bf16.msra.mxu0 0
    %5442 = vmatprep.subr.bf16.mxu0 0
    %5443 = vmatpush1.bf16.msra.mxu0 0
    %5444 = vmatprep.subr.bf16.mxu0 0
    %5445 = vmatpush1.bf16.msra.mxu0 0
    %5446 = vmatprep.subr.bf16.mxu0 0
    %5447 = vmatpush1.bf16.msra.mxu0 0
    %5448 = vmatprep.subr.bf16.mxu0 0
    %5449 = vmatpush1.bf16.msra.mxu0 0
    %5450 = vmatprep.subr.bf16.mxu0 0
    %5451 = vmatpush1.bf16.msra.mxu0 0
    %5452 = vmatprep.subr.bf16.mxu0 0
    %5453 = vmatpush1.bf16.msra.mxu0 0
    %5454 = vmatprep.subr.bf16.mxu0 0
    %5455 = vmatpush1.bf16.msra.mxu0 0
    %5456 = vmatprep.mubr.bf16.mxu0 0
    %5457 = vmatmul.mubr.bf16.gmra.mrb[0].mxu0 %v5345
    %v5458 = vpop.f32.mrb[0].mxu0
    %v5459 = vadd.f32 0.0, %v5458
    %v5460 = vpop.f32.mrb[0].mxu0
    %v5461 = vadd.f32 0.0, %v5460
    %v5462 = vpop.f32.mrb[0].mxu0
    %v5463 = vpop.f32.mrb[0].mxu0
    %5464 = vdwg.mxu0
    %5465 = vmatprep.subr.bf16.mxu0 %v5363
    %5466 = vmatpush1.bf16.msra.mxu0 %v5360
    %5467 = vmatprep.subr.bf16.mxu0 0
    %5468 = vmatpush1.bf16.msra.mxu0 0
    %5469 = vmatprep.subr.bf16.mxu0 0
    %5470 = vmatpush1.bf16.msra.mxu0 0
    %5471 = vmatprep.subr.bf16.mxu0 0
    %5472 = vmatpush1.bf16.msra.mxu0 0
    %5473 = vmatprep.subr.bf16.mxu0 0
    %5474 = vmatpush1.bf16.msra.mxu0 0
    %5475 = vmatprep.subr.bf16.mxu0 0
    %5476 = vmatpush1.bf16.msra.mxu0 0
    %5477 = vmatprep.subr.bf16.mxu0 0
    %5478 = vmatpush1.bf16.msra.mxu0 0
    %5479 = vmatprep.subr.bf16.mxu0 0
    %5480 = vmatpush1.bf16.msra.mxu0 0
    %5481 = vmatprep.subr.bf16.mxu0 0
    %5482 = vmatpush1.bf16.msra.mxu0 0
    %5483 = vmatprep.subr.bf16.mxu0 0
    %5484 = vmatpush1.bf16.msra.mxu0 0
    %5485 = vmatprep.subr.bf16.mxu0 0
    %5486 = vmatpush1.bf16.msra.mxu0 0
    %5487 = vmatprep.subr.bf16.mxu0 0
    %5488 = vmatpush1.bf16.msra.mxu0 0
    %5489 = vmatprep.subr.bf16.mxu0 0
    %5490 = vmatpush1.bf16.msra.mxu0 0
    %5491 = vmatprep.subr.bf16.mxu0 0
    %5492 = vmatpush1.bf16.msra.mxu0 0
    %5493 = vmatprep.subr.bf16.mxu0 0
    %5494 = vmatpush1.bf16.msra.mxu0 0
    %5495 = vmatprep.subr.bf16.mxu0 0
    %5496 = vmatpush1.bf16.msra.mxu0 0
    %5497 = vmatprep.mubr.bf16.mxu0 0
    %5498 = vmatmul.mubr.bf16.gmra.mrb[0].mxu0 %v5345
    %v5499 = vpop.f32.mrb[0].mxu0
    %v5500 = vadd.f32 0.0, %v5499
    %v5501 = vpop.f32.mrb[0].mxu0
    %v5502 = vadd.f32 0.0, %v5501
    %v5503 = vpop.f32.mrb[0].mxu0
    %v5504 = vpop.f32.mrb[0].mxu0
    %5505 = vdwg.mxu0
    %5506 = vmatprep.subr.bf16.mxu0 %v5369
    %5507 = vmatpush1.bf16.msra.mxu0 %v5366
    %5508 = vmatprep.subr.bf16.mxu0 0
    %5509 = vmatpush1.bf16.msra.mxu0 0
    %5510 = vmatprep.subr.bf16.mxu0 0
    %5511 = vmatpush1.bf16.msra.mxu0 0
    %5512 = vmatprep.subr.bf16.mxu0 0
    %5513 = vmatpush1.bf16.msra.mxu0 0
    %5514 = vmatprep.subr.bf16.mxu0 0
    %5515 = vmatpush1.bf16.msra.mxu0 0
    %5516 = vmatprep.subr.bf16.mxu0 0
    %5517 = vmatpush1.bf16.msra.mxu0 0
    %5518 = vmatprep.subr.bf16.mxu0 0
    %5519 = vmatpush1.bf16.msra.mxu0 0
    %5520 = vmatprep.subr.bf16.mxu0 0
    %5521 = vmatpush1.bf16.msra.mxu0 0
    %5522 = vmatprep.subr.bf16.mxu0 0
    %5523 = vmatpush1.bf16.msra.mxu0 0
    %5524 = vmatprep.subr.bf16.mxu0 0
    %5525 = vmatpush1.bf16.msra.mxu0 0
    %5526 = vmatprep.subr.bf16.mxu0 0
    %5527 = vmatpush1.bf16.msra.mxu0 0
    %5528 = vmatprep.subr.bf16.mxu0 0
    %5529 = vmatpush1.bf16.msra.mxu0 0
    %5530 = vmatprep.subr.bf16.mxu0 0
    %5531 = vmatpush1.bf16.msra.mxu0 0
    %5532 = vmatprep.subr.bf16.mxu0 0
    %5533 = vmatpush1.bf16.msra.mxu0 0
    %5534 = vmatprep.subr.bf16.mxu0 0
    %5535 = vmatpush1.bf16.msra.mxu0 0
    %5536 = vmatprep.subr.bf16.mxu0 0
    %5537 = vmatpush1.bf16.msra.mxu0 0
    %5538 = vmatprep.mubr.bf16.mxu0 0
    %5539 = vmatmul.mubr.bf16.gmra.mrb[0].mxu0 %v5345
    %v5540 = vpop.f32.mrb[0].mxu0
    %v5541 = vadd.f32 0.0, %v5540
    %v5542 = vpop.f32.mrb[0].mxu0
    %v5543 = vadd.f32 0.0, %v5542
    %v5544 = vpop.f32.mrb[0].mxu0
    %v5545 = vpop.f32.mrb[0].mxu0
    %5546 = vdwg.mxu0
    %5547 = vmatprep.subr.bf16.mxu0 %v5375
    %5548 = vmatpush1.bf16.msra.mxu0 %v5372
    %5549 = vmatprep.subr.bf16.mxu0 0
    %5550 = vmatpush1.bf16.msra.mxu0 0
    %5551 = vmatprep.subr.bf16.mxu0 0
    %5552 = vmatpush1.bf16.msra.mxu0 0
    %5553 = vmatprep.subr.bf16.mxu0 0
    %5554 = vmatpush1.bf16.msra.mxu0 0
    %5555 = vmatprep.subr.bf16.mxu0 0
    %5556 = vmatpush1.bf16.msra.mxu0 0
    %5557 = vmatprep.subr.bf16.mxu0 0
    %5558 = vmatpush1.bf16.msra.mxu0 0
    %5559 = vmatprep.subr.bf16.mxu0 0
    %5560 = vmatpush1.bf16.msra.mxu0 0
    %5561 = vmatprep.subr.bf16.mxu0 0
    %5562 = vmatpush1.bf16.msra.mxu0 0
    %5563 = vmatprep.subr.bf16.mxu0 0
    %5564 = vmatpush1.bf16.msra.mxu0 0
    %5565 = vmatprep.subr.bf16.mxu0 0
    %5566 = vmatpush1.bf16.msra.mxu0 0
    %5567 = vmatprep.subr.bf16.mxu0 0
    %5568 = vmatpush1.bf16.msra.mxu0 0
    %5569 = vmatprep.subr.bf16.mxu0 0
    %5570 = vmatpush1.bf16.msra.mxu0 0
    %5571 = vmatprep.subr.bf16.mxu0 0
    %5572 = vmatpush1.bf16.msra.mxu0 0
    %5573 = vmatprep.subr.bf16.mxu0 0
    %5574 = vmatpush1.bf16.msra.mxu0 0
    %5575 = vmatprep.subr.bf16.mxu0 0
    %5576 = vmatpush1.bf16.msra.mxu0 0
    %5577 = vmatprep.subr.bf16.mxu0 0
    %5578 = vmatpush1.bf16.msra.mxu0 0
    %5579 = vmatprep.mubr.bf16.mxu0 0
    %5580 = vmatmul.mubr.bf16.gmra.mrb[0].mxu0 %v5345
    %v5581 = vpop.f32.mrb[0].mxu0
    %v5582 = vadd.f32 0.0, %v5581
    %v5583 = vpop.f32.mrb[0].mxu0
    %v5584 = vadd.f32 0.0, %v5583
    %v5585 = vpop.f32.mrb[0].mxu0
    %v5586 = vpop.f32.mrb[0].mxu0
    %5587 = vdwg.mxu0
    %5588 = vmatprep.subr.bf16.mxu0 %v5381
    %5589 = vmatpush1.bf16.msra.mxu0 %v5378
    %5590 = vmatprep.subr.bf16.mxu0 0
    %5591 = vmatpush1.bf16.msra.mxu0 0
    %5592 = vmatprep.subr.bf16.mxu0 0
    %5593 = vmatpush1.bf16.msra.mxu0 0
    %5594 = vmatprep.subr.bf16.mxu0 0
    %5595 = vmatpush1.bf16.msra.mxu0 0
    %5596 = vmatprep.subr.bf16.mxu0 0
    %5597 = vmatpush1.bf16.msra.mxu0 0
    %5598 = vmatprep.subr.bf16.mxu0 0
    %5599 = vmatpush1.bf16.msra.mxu0 0
    %5600 = vmatprep.subr.bf16.mxu0 0
    %5601 = vmatpush1.bf16.msra.mxu0 0
    %5602 = vmatprep.subr.bf16.mxu0 0
    %5603 = vmatpush1.bf16.msra.mxu0 0
    %5604 = vmatprep.subr.bf16.mxu0 0
    %5605 = vmatpush1.bf16.msra.mxu0 0
    %5606 = vmatprep.subr.bf16.mxu0 0
    %5607 = vmatpush1.bf16.msra.mxu0 0
    %5608 = vmatprep.subr.bf16.mxu0 0
    %5609 = vmatpush1.bf16.msra.mxu0 0
    %5610 = vmatprep.subr.bf16.mxu0 0
    %5611 = vmatpush1.bf16.msra.mxu0 0
    %5612 = vmatprep.subr.bf16.mxu0 0
    %5613 = vmatpush1.bf16.msra.mxu0 0
    %5614 = vmatprep.subr.bf16.mxu0 0
    %5615 = vmatpush1.bf16.msra.mxu0 0
    %5616 = vmatprep.subr.bf16.mxu0 0
    %5617 = vmatpush1.bf16.msra.mxu0 0
    %5618 = vmatprep.subr.bf16.mxu0 0
    %5619 = vmatpush1.bf16.msra.mxu0 0
    %5620 = vmatprep.mubr.bf16.mxu0 0
    %5621 = vmatmul.mubr.bf16.gmra.mrb[0].mxu0 %v5345
    %v5622 = vpop.f32.mrb[0].mxu0
    %v5623 = vadd.f32 0.0, %v5622
    %v5624 = vpop.f32.mrb[0].mxu0
    %v5625 = vadd.f32 0.0, %v5624
    %v5626 = vpop.f32.mrb[0].mxu0
    %v5627 = vpop.f32.mrb[0].mxu0
    %5628 = vdwg.mxu0
    %v5629 = vadd.f32 %v5201, %v5418
    %v5630 = vadd.f32 %v5202, %v5420
    %v5631 = vadd.f32 %v5203, %v5459
    %v5632 = vadd.f32 %v5204, %v5461
    %v5633 = vadd.f32 %v5205, %v5500
    %v5634 = vadd.f32 %v5206, %v5502
    %v5635 = vadd.f32 %v5207, %v5541
    %v5636 = vadd.f32 %v5208, %v5543
    %v5637 = vadd.f32 %v5209, %v5582
    %v5638 = vadd.f32 %v5210, %v5584
    %v5639 = vadd.f32 %v5211, %v5623
    %v5640 = vadd.f32 %v5212, %v5625
    %s5641 = scalar_lea.vmem %s1, 52
    %v5642 = vld [vmem:[%s5641] sm:$0xf]
    %v5643 = vpack.c.bf16 %v87, %v87
    %v5644 = vpack.c.bf16 %v88, %v88
    %v5645 = vpack.c.bf16 %v89, %v89
    %v5646 = vpack.c.bf16 %v90, %v90
    %v5647 = vpack.c.bf16 %v91, %v91
    %v5648 = vpack.c.bf16 %v92, %v92
    %v5649 = vpack.c.bf16 %v93, %v93
    %v5650 = vpack.c.bf16 %v94, %v94
    %v5651 = vpack.c.bf16 %v95, %v95
    %v5652 = vpack.c.bf16 %v96, %v96
    %v5653 = vpack.c.bf16 %v97, %v97
    %v5654 = vpack.c.bf16 %v98, %v98
    %v5656 = vsel %vm361, %v5642, 0
    %v5659 = vsel %vm365, %v5643, 0
    %v5662 = vsel %vm365, %v5644, 0
    %v5665 = vsel %vm365, %v5645, 0
    %v5668 = vsel %vm365, %v5646, 0
    %v5671 = vsel %vm365, %v5647, 0
    %v5674 = vsel %vm365, %v5648, 0
    %v5677 = vsel %vm365, %v5649, 0
    %v5680 = vsel %vm365, %v5650, 0
    %v5683 = vsel %vm365, %v5651, 0
    %v5686 = vsel %vm365, %v5652, 0
    %v5689 = vsel %vm365, %v5653, 0
    %v5692 = vsel %vm365, %v5654, 0
    %5694 = vmatprep.subr.bf16.mxu0 %v5662
    %5695 = vmatpush1.bf16.msra.mxu0 %v5659
    %5696 = vmatprep.subr.bf16.mxu0 0
    %5697 = vmatpush1.bf16.msra.mxu0 0
    %5698 = vmatprep.subr.bf16.mxu0 0
    %5699 = vmatpush1.bf16.msra.mxu0 0
    %5700 = vmatprep.subr.bf16.mxu0 0
    %5701 = vmatpush1.bf16.msra.mxu0 0
    %5702 = vmatprep.subr.bf16.mxu0 0
    %5703 = vmatpush1.bf16.msra.mxu0 0
    %5704 = vmatprep.subr.bf16.mxu0 0
    %5705 = vmatpush1.bf16.msra.mxu0 0
    %5706 = vmatprep.subr.bf16.mxu0 0
    %5707 = vmatpush1.bf16.msra.mxu0 0
    %5708 = vmatprep.subr.bf16.mxu0 0
    %5709 = vmatpush1.bf16.msra.mxu0 0
    %5710 = vmatprep.subr.bf16.mxu0 0
    %5711 = vmatpush1.bf16.msra.mxu0 0
    %5712 = vmatprep.subr.bf16.mxu0 0
    %5713 = vmatpush1.bf16.msra.mxu0 0
    %5714 = vmatprep.subr.bf16.mxu0 0
    %5715 = vmatpush1.bf16.msra.mxu0 0
    %5716 = vmatprep.subr.bf16.mxu0 0
    %5717 = vmatpush1.bf16.msra.mxu0 0
    %5718 = vmatprep.subr.bf16.mxu0 0
    %5719 = vmatpush1.bf16.msra.mxu0 0
    %5720 = vmatprep.subr.bf16.mxu0 0
    %5721 = vmatpush1.bf16.msra.mxu0 0
    %5722 = vmatprep.subr.bf16.mxu0 0
    %5723 = vmatpush1.bf16.msra.mxu0 0
    %5724 = vmatprep.subr.bf16.mxu0 0
    %5725 = vmatpush1.bf16.msra.mxu0 0
    %5726 = vmatprep.mubr.bf16.mxu0 0
    %5727 = vmatmul.mubr.bf16.gmra.mrb[0].mxu0 %v5656
    %v5728 = vpop.f32.mrb[0].mxu0
    %v5729 = vadd.f32 0.0, %v5728
    %v5730 = vpop.f32.mrb[0].mxu0
    %v5731 = vadd.f32 0.0, %v5730
    %v5732 = vpop.f32.mrb[0].mxu0
    %v5733 = vpop.f32.mrb[0].mxu0
    %5734 = vdwg.mxu0
    %5735 = vmatprep.subr.bf16.mxu0 %v5668
    %5736 = vmatpush1.bf16.msra.mxu0 %v5665
    %5737 = vmatprep.subr.bf16.mxu0 0
    %5738 = vmatpush1.bf16.msra.mxu0 0
    %5739 = vmatprep.subr.bf16.mxu0 0
    %5740 = vmatpush1.bf16.msra.mxu0 0
    %5741 = vmatprep.subr.bf16.mxu0 0
    %5742 = vmatpush1.bf16.msra.mxu0 0
    %5743 = vmatprep.subr.bf16.mxu0 0
    %5744 = vmatpush1.bf16.msra.mxu0 0
    %5745 = vmatprep.subr.bf16.mxu0 0
    %5746 = vmatpush1.bf16.msra.mxu0 0
    %5747 = vmatprep.subr.bf16.mxu0 0
    %5748 = vmatpush1.bf16.msra.mxu0 0
    %5749 = vmatprep.subr.bf16.mxu0 0
    %5750 = vmatpush1.bf16.msra.mxu0 0
    %5751 = vmatprep.subr.bf16.mxu0 0
    %5752 = vmatpush1.bf16.msra.mxu0 0
    %5753 = vmatprep.subr.bf16.mxu0 0
    %5754 = vmatpush1.bf16.msra.mxu0 0
    %5755 = vmatprep.subr.bf16.mxu0 0
    %5756 = vmatpush1.bf16.msra.mxu0 0
    %5757 = vmatprep.subr.bf16.mxu0 0
    %5758 = vmatpush1.bf16.msra.mxu0 0
    %5759 = vmatprep.subr.bf16.mxu0 0
    %5760 = vmatpush1.bf16.msra.mxu0 0
    %5761 = vmatprep.subr.bf16.mxu0 0
    %5762 = vmatpush1.bf16.msra.mxu0 0
    %5763 = vmatprep.subr.bf16.mxu0 0
    %5764 = vmatpush1.bf16.msra.mxu0 0
    %5765 = vmatprep.subr.bf16.mxu0 0
    %5766 = vmatpush1.bf16.msra.mxu0 0
    %5767 = vmatprep.mubr.bf16.mxu0 0
    %5768 = vmatmul.mubr.bf16.gmra.mrb[0].mxu0 %v5656
    %v5769 = vpop.f32.mrb[0].mxu0
    %v5770 = vadd.f32 0.0, %v5769
    %v5771 = vpop.f32.mrb[0].mxu0
    %v5772 = vadd.f32 0.0, %v5771
    %v5773 = vpop.f32.mrb[0].mxu0
    %v5774 = vpop.f32.mrb[0].mxu0
    %5775 = vdwg.mxu0
    %5776 = vmatprep.subr.bf16.mxu0 %v5674
    %5777 = vmatpush1.bf16.msra.mxu0 %v5671
    %5778 = vmatprep.subr.bf16.mxu0 0
    %5779 = vmatpush1.bf16.msra.mxu0 0
    %5780 = vmatprep.subr.bf16.mxu0 0
    %5781 = vmatpush1.bf16.msra.mxu0 0
    %5782 = vmatprep.subr.bf16.mxu0 0
    %5783 = vmatpush1.bf16.msra.mxu0 0
    %5784 = vmatprep.subr.bf16.mxu0 0
    %5785 = vmatpush1.bf16.msra.mxu0 0
    %5786 = vmatprep.subr.bf16.mxu0 0
    %5787 = vmatpush1.bf16.msra.mxu0 0
    %5788 = vmatprep.subr.bf16.mxu0 0
    %5789 = vmatpush1.bf16.msra.mxu0 0
    %5790 = vmatprep.subr.bf16.mxu0 0
    %5791 = vmatpush1.bf16.msra.mxu0 0
    %5792 = vmatprep.subr.bf16.mxu0 0
    %5793 = vmatpush1.bf16.msra.mxu0 0
    %5794 = vmatprep.subr.bf16.mxu0 0
    %5795 = vmatpush1.bf16.msra.mxu0 0
    %5796 = vmatprep.subr.bf16.mxu0 0
    %5797 = vmatpush1.bf16.msra.mxu0 0
    %5798 = vmatprep.subr.bf16.mxu0 0
    %5799 = vmatpush1.bf16.msra.mxu0 0
    %5800 = vmatprep.subr.bf16.mxu0 0
    %5801 = vmatpush1.bf16.msra.mxu0 0
    %5802 = vmatprep.subr.bf16.mxu0 0
    %5803 = vmatpush1.bf16.msra.mxu0 0
    %5804 = vmatprep.subr.bf16.mxu0 0
    %5805 = vmatpush1.bf16.msra.mxu0 0
    %5806 = vmatprep.subr.bf16.mxu0 0
    %5807 = vmatpush1.bf16.msra.mxu0 0
    %5808 = vmatprep.mubr.bf16.mxu0 0
    %5809 = vmatmul.mubr.bf16.gmra.mrb[0].mxu0 %v5656
    %v5810 = vpop.f32.mrb[0].mxu0
    %v5811 = vadd.f32 0.0, %v5810
    %v5812 = vpop.f32.mrb[0].mxu0
    %v5813 = vadd.f32 0.0, %v5812
    %v5814 = vpop.f32.mrb[0].mxu0
    %v5815 = vpop.f32.mrb[0].mxu0
    %5816 = vdwg.mxu0
    %5817 = vmatprep.subr.bf16.mxu0 %v5680
    %5818 = vmatpush1.bf16.msra.mxu0 %v5677
    %5819 = vmatprep.subr.bf16.mxu0 0
    %5820 = vmatpush1.bf16.msra.mxu0 0
    %5821 = vmatprep.subr.bf16.mxu0 0
    %5822 = vmatpush1.bf16.msra.mxu0 0
    %5823 = vmatprep.subr.bf16.mxu0 0
    %5824 = vmatpush1.bf16.msra.mxu0 0
    %5825 = vmatprep.subr.bf16.mxu0 0
    %5826 = vmatpush1.bf16.msra.mxu0 0
    %5827 = vmatprep.subr.bf16.mxu0 0
    %5828 = vmatpush1.bf16.msra.mxu0 0
    %5829 = vmatprep.subr.bf16.mxu0 0
    %5830 = vmatpush1.bf16.msra.mxu0 0
    %5831 = vmatprep.subr.bf16.mxu0 0
    %5832 = vmatpush1.bf16.msra.mxu0 0
    %5833 = vmatprep.subr.bf16.mxu0 0
    %5834 = vmatpush1.bf16.msra.mxu0 0
    %5835 = vmatprep.subr.bf16.mxu0 0
    %5836 = vmatpush1.bf16.msra.mxu0 0
    %5837 = vmatprep.subr.bf16.mxu0 0
    %5838 = vmatpush1.bf16.msra.mxu0 0
    %5839 = vmatprep.subr.bf16.mxu0 0
    %5840 = vmatpush1.bf16.msra.mxu0 0
    %5841 = vmatprep.subr.bf16.mxu0 0
    %5842 = vmatpush1.bf16.msra.mxu0 0
    %5843 = vmatprep.subr.bf16.mxu0 0
    %5844 = vmatpush1.bf16.msra.mxu0 0
    %5845 = vmatprep.subr.bf16.mxu0 0
    %5846 = vmatpush1.bf16.msra.mxu0 0
    %5847 = vmatprep.subr.bf16.mxu0 0
    %5848 = vmatpush1.bf16.msra.mxu0 0
    %5849 = vmatprep.mubr.bf16.mxu0 0
    %5850 = vmatmul.mubr.bf16.gmra.mrb[0].mxu0 %v5656
    %v5851 = vpop.f32.mrb[0].mxu0
    %v5852 = vadd.f32 0.0, %v5851
    %v5853 = vpop.f32.mrb[0].mxu0
    %v5854 = vadd.f32 0.0, %v5853
    %v5855 = vpop.f32.mrb[0].mxu0
    %v5856 = vpop.f32.mrb[0].mxu0
    %5857 = vdwg.mxu0
    %5858 = vmatprep.subr.bf16.mxu0 %v5686
    %5859 = vmatpush1.bf16.msra.mxu0 %v5683
    %5860 = vmatprep.subr.bf16.mxu0 0
    %5861 = vmatpush1.bf16.msra.mxu0 0
    %5862 = vmatprep.subr.bf16.mxu0 0
    %5863 = vmatpush1.bf16.msra.mxu0 0
    %5864 = vmatprep.subr.bf16.mxu0 0
    %5865 = vmatpush1.bf16.msra.mxu0 0
    %5866 = vmatprep.subr.bf16.mxu0 0
    %5867 = vmatpush1.bf16.msra.mxu0 0
    %5868 = vmatprep.subr.bf16.mxu0 0
    %5869 = vmatpush1.bf16.msra.mxu0 0
    %5870 = vmatprep.subr.bf16.mxu0 0
    %5871 = vmatpush1.bf16.msra.mxu0 0
    %5872 = vmatprep.subr.bf16.mxu0 0
    %5873 = vmatpush1.bf16.msra.mxu0 0
    %5874 = vmatprep.subr.bf16.mxu0 0
    %5875 = vmatpush1.bf16.msra.mxu0 0
    %5876 = vmatprep.subr.bf16.mxu0 0
    %5877 = vmatpush1.bf16.msra.mxu0 0
    %5878 = vmatprep.subr.bf16.mxu0 0
    %5879 = vmatpush1.bf16.msra.mxu0 0
    %5880 = vmatprep.subr.bf16.mxu0 0
    %5881 = vmatpush1.bf16.msra.mxu0 0
    %5882 = vmatprep.subr.bf16.mxu0 0
    %5883 = vmatpush1.bf16.msra.mxu0 0
    %5884 = vmatprep.subr.bf16.mxu0 0
    %5885 = vmatpush1.bf16.msra.mxu0 0
    %5886 = vmatprep.subr.bf16.mxu0 0
    %5887 = vmatpush1.bf16.msra.mxu0 0
    %5888 = vmatprep.subr.bf16.mxu0 0
    %5889 = vmatpush1.bf16.msra.mxu0 0
    %5890 = vmatprep.mubr.bf16.mxu0 0
    %5891 = vmatmul.mubr.bf16.gmra.mrb[0].mxu0 %v5656
    %v5892 = vpop.f32.mrb[0].mxu0
    %v5893 = vadd.f32 0.0, %v5892
    %v5894 = vpop.f32.mrb[0].mxu0
    %v5895 = vadd.f32 0.0, %v5894
    %v5896 = vpop.f32.mrb[0].mxu0
    %v5897 = vpop.f32.mrb[0].mxu0
    %5898 = vdwg.mxu0
    %5899 = vmatprep.subr.bf16.mxu0 %v5692
    %5900 = vmatpush1.bf16.msra.mxu0 %v5689
    %5901 = vmatprep.subr.bf16.mxu0 0
    %5902 = vmatpush1.bf16.msra.mxu0 0
    %5903 = vmatprep.subr.bf16.mxu0 0
    %5904 = vmatpush1.bf16.msra.mxu0 0
    %5905 = vmatprep.subr.bf16.mxu0 0
    %5906 = vmatpush1.bf16.msra.mxu0 0
    %5907 = vmatprep.subr.bf16.mxu0 0
    %5908 = vmatpush1.bf16.msra.mxu0 0
    %5909 = vmatprep.subr.bf16.mxu0 0
    %5910 = vmatpush1.bf16.msra.mxu0 0
    %5911 = vmatprep.subr.bf16.mxu0 0
    %5912 = vmatpush1.bf16.msra.mxu0 0
    %5913 = vmatprep.subr.bf16.mxu0 0
    %5914 = vmatpush1.bf16.msra.mxu0 0
    %5915 = vmatprep.subr.bf16.mxu0 0
    %5916 = vmatpush1.bf16.msra.mxu0 0
    %5917 = vmatprep.subr.bf16.mxu0 0
    %5918 = vmatpush1.bf16.msra.mxu0 0
    %5919 = vmatprep.subr.bf16.mxu0 0
    %5920 = vmatpush1.bf16.msra.mxu0 0
    %5921 = vmatprep.subr.bf16.mxu0 0
    %5922 = vmatpush1.bf16.msra.mxu0 0
    %5923 = vmatprep.subr.bf16.mxu0 0
    %5924 = vmatpush1.bf16.msra.mxu0 0
    %5925 = vmatprep.subr.bf16.mxu0 0
    %5926 = vmatpush1.bf16.msra.mxu0 0
    %5927 = vmatprep.subr.bf16.mxu0 0
    %5928 = vmatpush1.bf16.msra.mxu0 0
    %5929 = vmatprep.subr.bf16.mxu0 0
    %5930 = vmatpush1.bf16.msra.mxu0 0
    %5931 = vmatprep.mubr.bf16.mxu0 0
    %5932 = vmatmul.mubr.bf16.gmra.mrb[0].mxu0 %v5656
    %v5933 = vpop.f32.mrb[0].mxu0
    %v5934 = vadd.f32 0.0, %v5933
    %v5935 = vpop.f32.mrb[0].mxu0
    %v5936 = vadd.f32 0.0, %v5935
    %v5937 = vpop.f32.mrb[0].mxu0
    %v5938 = vpop.f32.mrb[0].mxu0
    %5939 = vdwg.mxu0
    %v5940 = vadd.f32 %v5629, %v5729
    %v5941 = vadd.f32 %v5630, %v5731
    %v5942 = vadd.f32 %v5631, %v5770
    %v5943 = vadd.f32 %v5632, %v5772
    %v5944 = vadd.f32 %v5633, %v5811
    %v5945 = vadd.f32 %v5634, %v5813
    %v5946 = vadd.f32 %v5635, %v5852
    %v5947 = vadd.f32 %v5636, %v5854
    %v5948 = vadd.f32 %v5637, %v5893
    %v5949 = vadd.f32 %v5638, %v5895
    %v5950 = vadd.f32 %v5639, %v5934
    %v5951 = vadd.f32 %v5640, %v5936
    %5952 = vrot.lane.b32.xlu0 %v87, 127
    %v5953 = vpop.permute.xlu0 %5952
    %5954 = vrot.lane.b32.xlu0 %v88, 127
    %v5955 = vpop.permute.xlu0 %5954
    %5956 = vrot.lane.b32.xlu0 %v89, 127
    %v5957 = vpop.permute.xlu0 %5956
    %5958 = vrot.lane.b32.xlu0 %v90, 127
    %v5959 = vpop.permute.xlu0 %5958
    %5960 = vrot.lane.b32.xlu0 %v91, 127
    %v5961 = vpop.permute.xlu0 %5960
    %5962 = vrot.lane.b32.xlu0 %v92, 127
    %v5963 = vpop.permute.xlu0 %5962
    %5964 = vrot.lane.b32.xlu0 %v93, 127
    %v5965 = vpop.permute.xlu0 %5964
    %5966 = vrot.lane.b32.xlu0 %v94, 127
    %v5967 = vpop.permute.xlu0 %5966
    %5968 = vrot.lane.b32.xlu0 %v95, 127
    %v5969 = vpop.permute.xlu0 %5968
    %5970 = vrot.lane.b32.xlu0 %v96, 127
    %v5971 = vpop.permute.xlu0 %5970
    %5972 = vrot.lane.b32.xlu0 %v97, 127
    %v5973 = vpop.permute.xlu0 %5972
    %5974 = vrot.lane.b32.xlu0 %v98, 127
    %v5975 = vpop.permute.xlu0 %5974
    %vm5976 = vcmp.lt.s32.totalorder %v124, 127
    %v5977 = vsel %vm5976, %v5973, %v5975
    %v5978 = vsel %vm5976, %v5971, %v5973
    %v5979 = vsel %vm5976, %v5969, %v5971
    %v5980 = vsel %vm5976, %v5967, %v5969
    %v5981 = vsel %vm5976, %v5965, %v5967
    %v5982 = vsel %vm5976, %v5963, %v5965
    %v5983 = vsel %vm5976, %v5961, %v5963
    %v5984 = vsel %vm5976, %v5959, %v5961
    %v5985 = vsel %vm5976, %v5957, %v5959
    %v5986 = vsel %vm5976, %v5955, %v5957
    %v5987 = vsel %vm5976, %v5953, %v5955
    %v5988 = vsel %vm5976, %v5975, %v5953
    %s5989 = scalar_lea.vmem [#allocation3], 102
    %v5990 = vld [vmem:[%s5989] ss:$8 sm:$0xf]
    %v5991 = vld [vmem:[%s5989] ss:$8 sm:$0xf0]
    %v5992 = vor.u32 %v5990, %v5991
    %s5993 = scalar_lea.vmem [#allocation3], 166
    %v5994 = vld [vmem:[%s5993] ss:$8 sm:$0xf]
    %v5997 = vlaneseq
    %v5998 = vshrl.u32 %v5997, 7
    %v5999 = vsub.s32 0, %v5998
    %v6000 = vrot.slane %v5992, %v5999
    %v6001 = vlaneseq
    %v6002 = vshrl.u32 %v6001, 7
    %v6003 = vsub.s32 1, %v6002
    %v6004 = vrot.slane %v5992, %v6003
    %v6005 = vlaneseq
    %v6006 = vshrl.u32 %v6005, 7
    %v6007 = vsub.s32 2, %v6006
    %v6008 = vrot.slane %v5992, %v6007
    %v6009 = vlaneseq
    %v6010 = vshrl.u32 %v6009, 7
    %v6011 = vsub.s32 3, %v6010
    %v6012 = vrot.slane %v5992, %v6011
    %v6013 = vlaneseq
    %v6014 = vshrl.u32 %v6013, 7
    %v6015 = vsub.s32 4, %v6014
    %v6016 = vrot.slane %v5992, %v6015
    %v6017 = vlaneseq
    %v6018 = vshrl.u32 %v6017, 7
    %v6019 = vsub.s32 5, %v6018
    %v6020 = vrot.slane %v5992, %v6019
    %v6021 = vlaneseq
    %v6022 = vshrl.u32 %v6021, 7
    %v6023 = vsub.s32 6, %v6022
    %v6024 = vrot.slane %v5992, %v6023
    %v6025 = vlaneseq
    %v6026 = vshrl.u32 %v6025, 7
    %v6027 = vsub.s32 7, %v6026
    %v6028 = vrot.slane %v5992, %v6027
    %v6029 = vlaneseq
    %v6030 = vshrl.u32 %v6029, 7
    %v6031 = vsub.s32 0, %v6030
    %v6032 = vrot.slane %v5994, %v6031
    %v6033 = vlaneseq
    %v6034 = vshrl.u32 %v6033, 7
    %v6035 = vsub.s32 1, %v6034
    %v6036 = vrot.slane %v5994, %v6035
    %v6037 = vlaneseq
    %v6038 = vshrl.u32 %v6037, 7
    %v6039 = vsub.s32 2, %v6038
    %v6040 = vrot.slane %v5994, %v6039
    %v6041 = vlaneseq
    %v6042 = vshrl.u32 %v6041, 7
    %v6043 = vsub.s32 3, %v6042
    %v6044 = vrot.slane %v5994, %v6043
    %v6057 = vmul.f32 %v5987, %v6000
    %v6058 = vmul.f32 %v5986, %v6004
    %v6059 = vmul.f32 %v5985, %v6008
    %v6060 = vmul.f32 %v5984, %v6012
    %v6061 = vmul.f32 %v5983, %v6016
    %v6062 = vmul.f32 %v5982, %v6020
    %v6063 = vmul.f32 %v5981, %v6024
    %v6064 = vmul.f32 %v5980, %v6028
    %v6065 = vmul.f32 %v5979, %v6032
    %v6066 = vmul.f32 %v5978, %v6036
    %v6067 = vmul.f32 %v5977, %v6040
    %v6068 = vmul.f32 %v5988, %v6044
    %s6069 = scalar_lea.vmem %s1, 56
    %v6070 = vld [vmem:[%s6069] sm:$0xf]
    %v6071 = vpack.c.bf16 %v6057, %v6057
    %v6072 = vpack.c.bf16 %v6058, %v6058
    %v6073 = vpack.c.bf16 %v6059, %v6059
    %v6074 = vpack.c.bf16 %v6060, %v6060
    %v6075 = vpack.c.bf16 %v6061, %v6061
    %v6076 = vpack.c.bf16 %v6062, %v6062
    %v6077 = vpack.c.bf16 %v6063, %v6063
    %v6078 = vpack.c.bf16 %v6064, %v6064
    %v6079 = vpack.c.bf16 %v6065, %v6065
    %v6080 = vpack.c.bf16 %v6066, %v6066
    %v6081 = vpack.c.bf16 %v6067, %v6067
    %v6082 = vpack.c.bf16 %v6068, %v6068
    %v6084 = vsel %vm361, %v6070, 0
    %v6087 = vsel %vm365, %v6071, 0
    %v6090 = vsel %vm365, %v6072, 0
    %v6093 = vsel %vm365, %v6073, 0
    %v6096 = vsel %vm365, %v6074, 0
    %v6099 = vsel %vm365, %v6075, 0
    %v6102 = vsel %vm365, %v6076, 0
    %v6105 = vsel %vm365, %v6077, 0
    %v6108 = vsel %vm365, %v6078, 0
    %v6111 = vsel %vm365, %v6079, 0
    %v6114 = vsel %vm365, %v6080, 0
    %v6117 = vsel %vm365, %v6081, 0
    %v6120 = vsel %vm365, %v6082, 0
    %6122 = vmatprep.subr.bf16.mxu0 %v6090
    %6123 = vmatpush1.bf16.msra.mxu0 %v6087
    %6124 = vmatprep.subr.bf16.mxu0 0
    %6125 = vmatpush1.bf16.msra.mxu0 0
    %6126 = vmatprep.subr.bf16.mxu0 0
    %6127 = vmatpush1.bf16.msra.mxu0 0
    %6128 = vmatprep.subr.bf16.mxu0 0
    %6129 = vmatpush1.bf16.msra.mxu0 0
    %6130 = vmatprep.subr.bf16.mxu0 0
    %6131 = vmatpush1.bf16.msra.mxu0 0
    %6132 = vmatprep.subr.bf16.mxu0 0
    %6133 = vmatpush1.bf16.msra.mxu0 0
    %6134 = vmatprep.subr.bf16.mxu0 0
    %6135 = vmatpush1.bf16.msra.mxu0 0
    %6136 = vmatprep.subr.bf16.mxu0 0
    %6137 = vmatpush1.bf16.msra.mxu0 0
    %6138 = vmatprep.subr.bf16.mxu0 0
    %6139 = vmatpush1.bf16.msra.mxu0 0
    %6140 = vmatprep.subr.bf16.mxu0 0
    %6141 = vmatpush1.bf16.msra.mxu0 0
    %6142 = vmatprep.subr.bf16.mxu0 0
    %6143 = vmatpush1.bf16.msra.mxu0 0
    %6144 = vmatprep.subr.bf16.mxu0 0
    %6145 = vmatpush1.bf16.msra.mxu0 0
    %6146 = vmatprep.subr.bf16.mxu0 0
    %6147 = vmatpush1.bf16.msra.mxu0 0
    %6148 = vmatprep.subr.bf16.mxu0 0
    %6149 = vmatpush1.bf16.msra.mxu0 0
    %6150 = vmatprep.subr.bf16.mxu0 0
    %6151 = vmatpush1.bf16.msra.mxu0 0
    %6152 = vmatprep.subr.bf16.mxu0 0
    %6153 = vmatpush1.bf16.msra.mxu0 0
    %6154 = vmatprep.mubr.bf16.mxu0 0
    %6155 = vmatmul.mubr.bf16.gmra.mrb[0].mxu0 %v6084
    %v6156 = vpop.f32.mrb[0].mxu0
    %v6157 = vadd.f32 0.0, %v6156
    %v6158 = vpop.f32.mrb[0].mxu0
    %v6159 = vadd.f32 0.0, %v6158
    %v6160 = vpop.f32.mrb[0].mxu0
    %v6161 = vpop.f32.mrb[0].mxu0
    %6162 = vdwg.mxu0
    %6163 = vmatprep.subr.bf16.mxu0 %v6096
    %6164 = vmatpush1.bf16.msra.mxu0 %v6093
    %6165 = vmatprep.subr.bf16.mxu0 0
    %6166 = vmatpush1.bf16.msra.mxu0 0
    %6167 = vmatprep.subr.bf16.mxu0 0
    %6168 = vmatpush1.bf16.msra.mxu0 0
    %6169 = vmatprep.subr.bf16.mxu0 0
    %6170 = vmatpush1.bf16.msra.mxu0 0
    %6171 = vmatprep.subr.bf16.mxu0 0
    %6172 = vmatpush1.bf16.msra.mxu0 0
    %6173 = vmatprep.subr.bf16.mxu0 0
    %6174 = vmatpush1.bf16.msra.mxu0 0
    %6175 = vmatprep.subr.bf16.mxu0 0
    %6176 = vmatpush1.bf16.msra.mxu0 0
    %6177 = vmatprep.subr.bf16.mxu0 0
    %6178 = vmatpush1.bf16.msra.mxu0 0
    %6179 = vmatprep.subr.bf16.mxu0 0
    %6180 = vmatpush1.bf16.msra.mxu0 0
    %6181 = vmatprep.subr.bf16.mxu0 0
    %6182 = vmatpush1.bf16.msra.mxu0 0
    %6183 = vmatprep.subr.bf16.mxu0 0
    %6184 = vmatpush1.bf16.msra.mxu0 0
    %6185 = vmatprep.subr.bf16.mxu0 0
    %6186 = vmatpush1.bf16.msra.mxu0 0
    %6187 = vmatprep.subr.bf16.mxu0 0
    %6188 = vmatpush1.bf16.msra.mxu0 0
    %6189 = vmatprep.subr.bf16.mxu0 0
    %6190 = vmatpush1.bf16.msra.mxu0 0
    %6191 = vmatprep.subr.bf16.mxu0 0
    %6192 = vmatpush1.bf16.msra.mxu0 0
    %6193 = vmatprep.subr.bf16.mxu0 0
    %6194 = vmatpush1.bf16.msra.mxu0 0
    %6195 = vmatprep.mubr.bf16.mxu0 0
    %6196 = vmatmul.mubr.bf16.gmra.mrb[0].mxu0 %v6084
    %v6197 = vpop.f32.mrb[0].mxu0
    %v6198 = vadd.f32 0.0, %v6197
    %v6199 = vpop.f32.mrb[0].mxu0
    %v6200 = vadd.f32 0.0, %v6199
    %v6201 = vpop.f32.mrb[0].mxu0
    %v6202 = vpop.f32.mrb[0].mxu0
    %6203 = vdwg.mxu0
    %6204 = vmatprep.subr.bf16.mxu0 %v6102
    %6205 = vmatpush1.bf16.msra.mxu0 %v6099
    %6206 = vmatprep.subr.bf16.mxu0 0
    %6207 = vmatpush1.bf16.msra.mxu0 0
    %6208 = vmatprep.subr.bf16.mxu0 0
    %6209 = vmatpush1.bf16.msra.mxu0 0
    %6210 = vmatprep.subr.bf16.mxu0 0
    %6211 = vmatpush1.bf16.msra.mxu0 0
    %6212 = vmatprep.subr.bf16.mxu0 0
    %6213 = vmatpush1.bf16.msra.mxu0 0
    %6214 = vmatprep.subr.bf16.mxu0 0
    %6215 = vmatpush1.bf16.msra.mxu0 0
    %6216 = vmatprep.subr.bf16.mxu0 0
    %6217 = vmatpush1.bf16.msra.mxu0 0
    %6218 = vmatprep.subr.bf16.mxu0 0
    %6219 = vmatpush1.bf16.msra.mxu0 0
    %6220 = vmatprep.subr.bf16.mxu0 0
    %6221 = vmatpush1.bf16.msra.mxu0 0
    %6222 = vmatprep.subr.bf16.mxu0 0
    %6223 = vmatpush1.bf16.msra.mxu0 0
    %6224 = vmatprep.subr.bf16.mxu0 0
    %6225 = vmatpush1.bf16.msra.mxu0 0
    %6226 = vmatprep.subr.bf16.mxu0 0
    %6227 = vmatpush1.bf16.msra.mxu0 0
    %6228 = vmatprep.subr.bf16.mxu0 0
    %6229 = vmatpush1.bf16.msra.mxu0 0
    %6230 = vmatprep.subr.bf16.mxu0 0
    %6231 = vmatpush1.bf16.msra.mxu0 0
    %6232 = vmatprep.subr.bf16.mxu0 0
    %6233 = vmatpush1.bf16.msra.mxu0 0
    %6234 = vmatprep.subr.bf16.mxu0 0
    %6235 = vmatpush1.bf16.msra.mxu0 0
    %6236 = vmatprep.mubr.bf16.mxu0 0
    %6237 = vmatmul.mubr.bf16.gmra.mrb[0].mxu0 %v6084
    %v6238 = vpop.f32.mrb[0].mxu0
    %v6239 = vadd.f32 0.0, %v6238
    %v6240 = vpop.f32.mrb[0].mxu0
    %v6241 = vadd.f32 0.0, %v6240
    %v6242 = vpop.f32.mrb[0].mxu0
    %v6243 = vpop.f32.mrb[0].mxu0
    %6244 = vdwg.mxu0
    %6245 = vmatprep.subr.bf16.mxu0 %v6108
    %6246 = vmatpush1.bf16.msra.mxu0 %v6105
    %6247 = vmatprep.subr.bf16.mxu0 0
    %6248 = vmatpush1.bf16.msra.mxu0 0
    %6249 = vmatprep.subr.bf16.mxu0 0
    %6250 = vmatpush1.bf16.msra.mxu0 0
    %6251 = vmatprep.subr.bf16.mxu0 0
    %6252 = vmatpush1.bf16.msra.mxu0 0
    %6253 = vmatprep.subr.bf16.mxu0 0
    %6254 = vmatpush1.bf16.msra.mxu0 0
    %6255 = vmatprep.subr.bf16.mxu0 0
    %6256 = vmatpush1.bf16.msra.mxu0 0
    %6257 = vmatprep.subr.bf16.mxu0 0
    %6258 = vmatpush1.bf16.msra.mxu0 0
    %6259 = vmatprep.subr.bf16.mxu0 0
    %6260 = vmatpush1.bf16.msra.mxu0 0
    %6261 = vmatprep.subr.bf16.mxu0 0
    %6262 = vmatpush1.bf16.msra.mxu0 0
    %6263 = vmatprep.subr.bf16.mxu0 0
    %6264 = vmatpush1.bf16.msra.mxu0 0
    %6265 = vmatprep.subr.bf16.mxu0 0
    %6266 = vmatpush1.bf16.msra.mxu0 0
    %6267 = vmatprep.subr.bf16.mxu0 0
    %6268 = vmatpush1.bf16.msra.mxu0 0
    %6269 = vmatprep.subr.bf16.mxu0 0
    %6270 = vmatpush1.bf16.msra.mxu0 0
    %6271 = vmatprep.subr.bf16.mxu0 0
    %6272 = vmatpush1.bf16.msra.mxu0 0
    %6273 = vmatprep.subr.bf16.mxu0 0
    %6274 = vmatpush1.bf16.msra.mxu0 0
    %6275 = vmatprep.subr.bf16.mxu0 0
    %6276 = vmatpush1.bf16.msra.mxu0 0
    %6277 = vmatprep.mubr.bf16.mxu0 0
    %6278 = vmatmul.mubr.bf16.gmra.mrb[0].mxu0 %v6084
    %v6279 = vpop.f32.mrb[0].mxu0
    %v6280 = vadd.f32 0.0, %v6279
    %v6281 = vpop.f32.mrb[0].mxu0
    %v6282 = vadd.f32 0.0, %v6281
    %v6283 = vpop.f32.mrb[0].mxu0
    %v6284 = vpop.f32.mrb[0].mxu0
    %6285 = vdwg.mxu0
    %6286 = vmatprep.subr.bf16.mxu0 %v6114
    %6287 = vmatpush1.bf16.msra.mxu0 %v6111
    %6288 = vmatprep.subr.bf16.mxu0 0
    %6289 = vmatpush1.bf16.msra.mxu0 0
    %6290 = vmatprep.subr.bf16.mxu0 0
    %6291 = vmatpush1.bf16.msra.mxu0 0
    %6292 = vmatprep.subr.bf16.mxu0 0
    %6293 = vmatpush1.bf16.msra.mxu0 0
    %6294 = vmatprep.subr.bf16.mxu0 0
    %6295 = vmatpush1.bf16.msra.mxu0 0
    %6296 = vmatprep.subr.bf16.mxu0 0
    %6297 = vmatpush1.bf16.msra.mxu0 0
    %6298 = vmatprep.subr.bf16.mxu0 0
    %6299 = vmatpush1.bf16.msra.mxu0 0
    %6300 = vmatprep.subr.bf16.mxu0 0
    %6301 = vmatpush1.bf16.msra.mxu0 0
    %6302 = vmatprep.subr.bf16.mxu0 0
    %6303 = vmatpush1.bf16.msra.mxu0 0
    %6304 = vmatprep.subr.bf16.mxu0 0
    %6305 = vmatpush1.bf16.msra.mxu0 0
    %6306 = vmatprep.subr.bf16.mxu0 0
    %6307 = vmatpush1.bf16.msra.mxu0 0
    %6308 = vmatprep.subr.bf16.mxu0 0
    %6309 = vmatpush1.bf16.msra.mxu0 0
    %6310 = vmatprep.subr.bf16.mxu0 0
    %6311 = vmatpush1.bf16.msra.mxu0 0
    %6312 = vmatprep.subr.bf16.mxu0 0
    %6313 = vmatpush1.bf16.msra.mxu0 0
    %6314 = vmatprep.subr.bf16.mxu0 0
    %6315 = vmatpush1.bf16.msra.mxu0 0
    %6316 = vmatprep.subr.bf16.mxu0 0
    %6317 = vmatpush1.bf16.msra.mxu0 0
    %6318 = vmatprep.mubr.bf16.mxu0 0
    %6319 = vmatmul.mubr.bf16.gmra.mrb[0].mxu0 %v6084
    %v6320 = vpop.f32.mrb[0].mxu0
    %v6321 = vadd.f32 0.0, %v6320
    %v6322 = vpop.f32.mrb[0].mxu0
    %v6323 = vadd.f32 0.0, %v6322
    %v6324 = vpop.f32.mrb[0].mxu0
    %v6325 = vpop.f32.mrb[0].mxu0
    %6326 = vdwg.mxu0
    %6327 = vmatprep.subr.bf16.mxu0 %v6120
    %6328 = vmatpush1.bf16.msra.mxu0 %v6117
    %6329 = vmatprep.subr.bf16.mxu0 0
    %6330 = vmatpush1.bf16.msra.mxu0 0
    %6331 = vmatprep.subr.bf16.mxu0 0
    %6332 = vmatpush1.bf16.msra.mxu0 0
    %6333 = vmatprep.subr.bf16.mxu0 0
    %6334 = vmatpush1.bf16.msra.mxu0 0
    %6335 = vmatprep.subr.bf16.mxu0 0
    %6336 = vmatpush1.bf16.msra.mxu0 0
    %6337 = vmatprep.subr.bf16.mxu0 0
    %6338 = vmatpush1.bf16.msra.mxu0 0
    %6339 = vmatprep.subr.bf16.mxu0 0
    %6340 = vmatpush1.bf16.msra.mxu0 0
    %6341 = vmatprep.subr.bf16.mxu0 0
    %6342 = vmatpush1.bf16.msra.mxu0 0
    %6343 = vmatprep.subr.bf16.mxu0 0
    %6344 = vmatpush1.bf16.msra.mxu0 0
    %6345 = vmatprep.subr.bf16.mxu0 0
    %6346 = vmatpush1.bf16.msra.mxu0 0
    %6347 = vmatprep.subr.bf16.mxu0 0
    %6348 = vmatpush1.bf16.msra.mxu0 0
    %6349 = vmatprep.subr.bf16.mxu0 0
    %6350 = vmatpush1.bf16.msra.mxu0 0
    %6351 = vmatprep.subr.bf16.mxu0 0
    %6352 = vmatpush1.bf16.msra.mxu0 0
    %6353 = vmatprep.subr.bf16.mxu0 0
    %6354 = vmatpush1.bf16.msra.mxu0 0
    %6355 = vmatprep.subr.bf16.mxu0 0
    %6356 = vmatpush1.bf16.msra.mxu0 0
    %6357 = vmatprep.subr.bf16.mxu0 0
    %6358 = vmatpush1.bf16.msra.mxu0 0
    %6359 = vmatprep.mubr.bf16.mxu0 0
    %6360 = vmatmul.mubr.bf16.gmra.mrb[0].mxu0 %v6084
    %v6361 = vpop.f32.mrb[0].mxu0
    %v6362 = vadd.f32 0.0, %v6361
    %v6363 = vpop.f32.mrb[0].mxu0
    %v6364 = vadd.f32 0.0, %v6363
    %v6365 = vpop.f32.mrb[0].mxu0
    %v6366 = vpop.f32.mrb[0].mxu0
    %6367 = vdwg.mxu0
    %v6368 = vadd.f32 %v5940, %v6157
    %v6369 = vadd.f32 %v5941, %v6159
    %v6370 = vadd.f32 %v5942, %v6198
    %v6371 = vadd.f32 %v5943, %v6200
    %v6372 = vadd.f32 %v5944, %v6239
    %v6373 = vadd.f32 %v5945, %v6241
    %v6374 = vadd.f32 %v5946, %v6280
    %v6375 = vadd.f32 %v5947, %v6282
    %v6376 = vadd.f32 %v5948, %v6321
    %v6377 = vadd.f32 %v5949, %v6323
    %v6378 = vadd.f32 %v5950, %v6362
    %v6379 = vadd.f32 %v5951, %v6364
    %6380 = vrot.lane.b32.xlu0 %v87, 121
    %v6381 = vpop.permute.xlu0 %6380
    %6382 = vrot.lane.b32.xlu0 %v88, 121
    %v6383 = vpop.permute.xlu0 %6382
    %6384 = vrot.lane.b32.xlu0 %v89, 121
    %v6385 = vpop.permute.xlu0 %6384
    %6386 = vrot.lane.b32.xlu0 %v90, 121
    %v6387 = vpop.permute.xlu0 %6386
    %6388 = vrot.lane.b32.xlu0 %v91, 121
    %v6389 = vpop.permute.xlu0 %6388
    %6390 = vrot.lane.b32.xlu0 %v92, 121
    %v6391 = vpop.permute.xlu0 %6390
    %6392 = vrot.lane.b32.xlu0 %v93, 121
    %v6393 = vpop.permute.xlu0 %6392
    %6394 = vrot.lane.b32.xlu0 %v94, 121
    %v6395 = vpop.permute.xlu0 %6394
    %6396 = vrot.lane.b32.xlu0 %v95, 121
    %v6397 = vpop.permute.xlu0 %6396
    %6398 = vrot.lane.b32.xlu0 %v96, 121
    %v6399 = vpop.permute.xlu0 %6398
    %6400 = vrot.lane.b32.xlu0 %v97, 121
    %v6401 = vpop.permute.xlu0 %6400
    %6402 = vrot.lane.b32.xlu0 %v98, 121
    %v6403 = vpop.permute.xlu0 %6402
    %vm6404 = vcmp.lt.s32.totalorder %v124, 121
    %v6405 = vsel %vm6404, %v6401, %v6403
    %v6406 = vsel %vm6404, %v6399, %v6401
    %v6407 = vsel %vm6404, %v6397, %v6399
    %v6408 = vsel %vm6404, %v6395, %v6397
    %v6409 = vsel %vm6404, %v6393, %v6395
    %v6410 = vsel %vm6404, %v6391, %v6393
    %v6411 = vsel %vm6404, %v6389, %v6391
    %v6412 = vsel %vm6404, %v6387, %v6389
    %v6413 = vsel %vm6404, %v6385, %v6387
    %v6414 = vsel %vm6404, %v6383, %v6385
    %v6415 = vsel %vm6404, %v6381, %v6383
    %v6416 = vsel %vm6404, %v6403, %v6381
    %s6417 = scalar_lea.vmem [#allocation3], 103
    %v6418 = vld [vmem:[%s6417] ss:$8 sm:$0xf]
    %v6419 = vld [vmem:[%s6417] ss:$8 sm:$0xf0]
    %v6420 = vor.u32 %v6418, %v6419
    %s6421 = scalar_lea.vmem [#allocation3], 167
    %v6422 = vld [vmem:[%s6421] ss:$8 sm:$0xf]
    %v6425 = vlaneseq
    %v6426 = vshrl.u32 %v6425, 7
    %v6427 = vsub.s32 0, %v6426
    %v6428 = vrot.slane %v6420, %v6427
    %v6429 = vlaneseq
    %v6430 = vshrl.u32 %v6429, 7
    %v6431 = vsub.s32 1, %v6430
    %v6432 = vrot.slane %v6420, %v6431
    %v6433 = vlaneseq
    %v6434 = vshrl.u32 %v6433, 7
    %v6435 = vsub.s32 2, %v6434
    %v6436 = vrot.slane %v6420, %v6435
    %v6437 = vlaneseq
    %v6438 = vshrl.u32 %v6437, 7
    %v6439 = vsub.s32 3, %v6438
    %v6440 = vrot.slane %v6420, %v6439
    %v6441 = vlaneseq
    %v6442 = vshrl.u32 %v6441, 7
    %v6443 = vsub.s32 4, %v6442
    %v6444 = vrot.slane %v6420, %v6443
    %v6445 = vlaneseq
    %v6446 = vshrl.u32 %v6445, 7
    %v6447 = vsub.s32 5, %v6446
    %v6448 = vrot.slane %v6420, %v6447
    %v6449 = vlaneseq
    %v6450 = vshrl.u32 %v6449, 7
    %v6451 = vsub.s32 6, %v6450
    %v6452 = vrot.slane %v6420, %v6451
    %v6453 = vlaneseq
    %v6454 = vshrl.u32 %v6453, 7
    %v6455 = vsub.s32 7, %v6454
    %v6456 = vrot.slane %v6420, %v6455
    %v6457 = vlaneseq
    %v6458 = vshrl.u32 %v6457, 7
    %v6459 = vsub.s32 0, %v6458
    %v6460 = vrot.slane %v6422, %v6459
    %v6461 = vlaneseq
    %v6462 = vshrl.u32 %v6461, 7
    %v6463 = vsub.s32 1, %v6462
    %v6464 = vrot.slane %v6422, %v6463
    %v6465 = vlaneseq
    %v6466 = vshrl.u32 %v6465, 7
    %v6467 = vsub.s32 2, %v6466
    %v6468 = vrot.slane %v6422, %v6467
    %v6469 = vlaneseq
    %v6470 = vshrl.u32 %v6469, 7
    %v6471 = vsub.s32 3, %v6470
    %v6472 = vrot.slane %v6422, %v6471
    %v6485 = vmul.f32 %v6415, %v6428
    %v6486 = vmul.f32 %v6414, %v6432
    %v6487 = vmul.f32 %v6413, %v6436
    %v6488 = vmul.f32 %v6412, %v6440
    %v6489 = vmul.f32 %v6411, %v6444
    %v6490 = vmul.f32 %v6410, %v6448
    %v6491 = vmul.f32 %v6409, %v6452
    %v6492 = vmul.f32 %v6408, %v6456
    %v6493 = vmul.f32 %v6407, %v6460
    %v6494 = vmul.f32 %v6406, %v6464
    %v6495 = vmul.f32 %v6405, %v6468
    %v6496 = vmul.f32 %v6416, %v6472
    %s6497 = scalar_lea.vmem %s1, 60
    %v6498 = vld [vmem:[%s6497] sm:$0xf]
    %v6499 = vpack.c.bf16 %v6485, %v6485
    %v6500 = vpack.c.bf16 %v6486, %v6486
    %v6501 = vpack.c.bf16 %v6487, %v6487
    %v6502 = vpack.c.bf16 %v6488, %v6488
    %v6503 = vpack.c.bf16 %v6489, %v6489
    %v6504 = vpack.c.bf16 %v6490, %v6490
    %v6505 = vpack.c.bf16 %v6491, %v6491
    %v6506 = vpack.c.bf16 %v6492, %v6492
    %v6507 = vpack.c.bf16 %v6493, %v6493
    %v6508 = vpack.c.bf16 %v6494, %v6494
    %v6509 = vpack.c.bf16 %v6495, %v6495
    %v6510 = vpack.c.bf16 %v6496, %v6496
    %v6512 = vsel %vm361, %v6498, 0
    %v6515 = vsel %vm365, %v6499, 0
    %v6518 = vsel %vm365, %v6500, 0
    %v6521 = vsel %vm365, %v6501, 0
    %v6524 = vsel %vm365, %v6502, 0
    %v6527 = vsel %vm365, %v6503, 0
    %v6530 = vsel %vm365, %v6504, 0
    %v6533 = vsel %vm365, %v6505, 0
    %v6536 = vsel %vm365, %v6506, 0
    %v6539 = vsel %vm365, %v6507, 0
    %v6542 = vsel %vm365, %v6508, 0
    %v6545 = vsel %vm365, %v6509, 0
    %v6548 = vsel %vm365, %v6510, 0
    %6550 = vmatprep.subr.bf16.mxu0 %v6518
    %6551 = vmatpush1.bf16.msra.mxu0 %v6515
    %6552 = vmatprep.subr.bf16.mxu0 0
    %6553 = vmatpush1.bf16.msra.mxu0 0
    %6554 = vmatprep.subr.bf16.mxu0 0
    %6555 = vmatpush1.bf16.msra.mxu0 0
    %6556 = vmatprep.subr.bf16.mxu0 0
    %6557 = vmatpush1.bf16.msra.mxu0 0
    %6558 = vmatprep.subr.bf16.mxu0 0
    %6559 = vmatpush1.bf16.msra.mxu0 0
    %6560 = vmatprep.subr.bf16.mxu0 0
    %6561 = vmatpush1.bf16.msra.mxu0 0
    %6562 = vmatprep.subr.bf16.mxu0 0
    %6563 = vmatpush1.bf16.msra.mxu0 0
    %6564 = vmatprep.subr.bf16.mxu0 0
    %6565 = vmatpush1.bf16.msra.mxu0 0
    %6566 = vmatprep.subr.bf16.mxu0 0
    %6567 = vmatpush1.bf16.msra.mxu0 0
    %6568 = vmatprep.subr.bf16.mxu0 0
    %6569 = vmatpush1.bf16.msra.mxu0 0
    %6570 = vmatprep.subr.bf16.mxu0 0
    %6571 = vmatpush1.bf16.msra.mxu0 0
    %6572 = vmatprep.subr.bf16.mxu0 0
    %6573 = vmatpush1.bf16.msra.mxu0 0
    %6574 = vmatprep.subr.bf16.mxu0 0
    %6575 = vmatpush1.bf16.msra.mxu0 0
    %6576 = vmatprep.subr.bf16.mxu0 0
    %6577 = vmatpush1.bf16.msra.mxu0 0
    %6578 = vmatprep.subr.bf16.mxu0 0
    %6579 = vmatpush1.bf16.msra.mxu0 0
    %6580 = vmatprep.subr.bf16.mxu0 0
    %6581 = vmatpush1.bf16.msra.mxu0 0
    %6582 = vmatprep.mubr.bf16.mxu0 0
    %6583 = vmatmul.mubr.bf16.gmra.mrb[0].mxu0 %v6512
    %v6584 = vpop.f32.mrb[0].mxu0
    %v6585 = vadd.f32 0.0, %v6584
    %v6586 = vpop.f32.mrb[0].mxu0
    %v6587 = vadd.f32 0.0, %v6586
    %v6588 = vpop.f32.mrb[0].mxu0
    %v6589 = vpop.f32.mrb[0].mxu0
    %6590 = vdwg.mxu0
    %6591 = vmatprep.subr.bf16.mxu0 %v6524
    %6592 = vmatpush1.bf16.msra.mxu0 %v6521
    %6593 = vmatprep.subr.bf16.mxu0 0
    %6594 = vmatpush1.bf16.msra.mxu0 0
    %6595 = vmatprep.subr.bf16.mxu0 0
    %6596 = vmatpush1.bf16.msra.mxu0 0
    %6597 = vmatprep.subr.bf16.mxu0 0
    %6598 = vmatpush1.bf16.msra.mxu0 0
    %6599 = vmatprep.subr.bf16.mxu0 0
    %6600 = vmatpush1.bf16.msra.mxu0 0
    %6601 = vmatprep.subr.bf16.mxu0 0
    %6602 = vmatpush1.bf16.msra.mxu0 0
    %6603 = vmatprep.subr.bf16.mxu0 0
    %6604 = vmatpush1.bf16.msra.mxu0 0
    %6605 = vmatprep.subr.bf16.mxu0 0
    %6606 = vmatpush1.bf16.msra.mxu0 0
    %6607 = vmatprep.subr.bf16.mxu0 0
    %6608 = vmatpush1.bf16.msra.mxu0 0
    %6609 = vmatprep.subr.bf16.mxu0 0
    %6610 = vmatpush1.bf16.msra.mxu0 0
    %6611 = vmatprep.subr.bf16.mxu0 0
    %6612 = vmatpush1.bf16.msra.mxu0 0
    %6613 = vmatprep.subr.bf16.mxu0 0
    %6614 = vmatpush1.bf16.msra.mxu0 0
    %6615 = vmatprep.subr.bf16.mxu0 0
    %6616 = vmatpush1.bf16.msra.mxu0 0
    %6617 = vmatprep.subr.bf16.mxu0 0
    %6618 = vmatpush1.bf16.msra.mxu0 0
    %6619 = vmatprep.subr.bf16.mxu0 0
    %6620 = vmatpush1.bf16.msra.mxu0 0
    %6621 = vmatprep.subr.bf16.mxu0 0
    %6622 = vmatpush1.bf16.msra.mxu0 0
    %6623 = vmatprep.mubr.bf16.mxu0 0
    %6624 = vmatmul.mubr.bf16.gmra.mrb[0].mxu0 %v6512
    %v6625 = vpop.f32.mrb[0].mxu0
    %v6626 = vadd.f32 0.0, %v6625
    %v6627 = vpop.f32.mrb[0].mxu0
    %v6628 = vadd.f32 0.0, %v6627
    %v6629 = vpop.f32.mrb[0].mxu0
    %v6630 = vpop.f32.mrb[0].mxu0
    %6631 = vdwg.mxu0
    %6632 = vmatprep.subr.bf16.mxu0 %v6530
    %6633 = vmatpush1.bf16.msra.mxu0 %v6527
    %6634 = vmatprep.subr.bf16.mxu0 0
    %6635 = vmatpush1.bf16.msra.mxu0 0
    %6636 = vmatprep.subr.bf16.mxu0 0
    %6637 = vmatpush1.bf16.msra.mxu0 0
    %6638 = vmatprep.subr.bf16.mxu0 0
    %6639 = vmatpush1.bf16.msra.mxu0 0
    %6640 = vmatprep.subr.bf16.mxu0 0
    %6641 = vmatpush1.bf16.msra.mxu0 0
    %6642 = vmatprep.subr.bf16.mxu0 0
    %6643 = vmatpush1.bf16.msra.mxu0 0
    %6644 = vmatprep.subr.bf16.mxu0 0
    %6645 = vmatpush1.bf16.msra.mxu0 0
    %6646 = vmatprep.subr.bf16.mxu0 0
    %6647 = vmatpush1.bf16.msra.mxu0 0
    %6648 = vmatprep.subr.bf16.mxu0 0
    %6649 = vmatpush1.bf16.msra.mxu0 0
    %6650 = vmatprep.subr.bf16.mxu0 0
    %6651 = vmatpush1.bf16.msra.mxu0 0
    %6652 = vmatprep.subr.bf16.mxu0 0
    %6653 = vmatpush1.bf16.msra.mxu0 0
    %6654 = vmatprep.subr.bf16.mxu0 0
    %6655 = vmatpush1.bf16.msra.mxu0 0
    %6656 = vmatprep.subr.bf16.mxu0 0
    %6657 = vmatpush1.bf16.msra.mxu0 0
    %6658 = vmatprep.subr.bf16.mxu0 0
    %6659 = vmatpush1.bf16.msra.mxu0 0
    %6660 = vmatprep.subr.bf16.mxu0 0
    %6661 = vmatpush1.bf16.msra.mxu0 0
    %6662 = vmatprep.subr.bf16.mxu0 0
    %6663 = vmatpush1.bf16.msra.mxu0 0
    %6664 = vmatprep.mubr.bf16.mxu0 0
    %6665 = vmatmul.mubr.bf16.gmra.mrb[0].mxu0 %v6512
    %v6666 = vpop.f32.mrb[0].mxu0
    %v6667 = vadd.f32 0.0, %v6666
    %v6668 = vpop.f32.mrb[0].mxu0
    %v6669 = vadd.f32 0.0, %v6668
    %v6670 = vpop.f32.mrb[0].mxu0
    %v6671 = vpop.f32.mrb[0].mxu0
    %6672 = vdwg.mxu0
    %6673 = vmatprep.subr.bf16.mxu0 %v6536
    %6674 = vmatpush1.bf16.msra.mxu0 %v6533
    %6675 = vmatprep.subr.bf16.mxu0 0
    %6676 = vmatpush1.bf16.msra.mxu0 0
    %6677 = vmatprep.subr.bf16.mxu0 0
    %6678 = vmatpush1.bf16.msra.mxu0 0
    %6679 = vmatprep.subr.bf16.mxu0 0
    %6680 = vmatpush1.bf16.msra.mxu0 0
    %6681 = vmatprep.subr.bf16.mxu0 0
    %6682 = vmatpush1.bf16.msra.mxu0 0
    %6683 = vmatprep.subr.bf16.mxu0 0
    %6684 = vmatpush1.bf16.msra.mxu0 0
    %6685 = vmatprep.subr.bf16.mxu0 0
    %6686 = vmatpush1.bf16.msra.mxu0 0
    %6687 = vmatprep.subr.bf16.mxu0 0
    %6688 = vmatpush1.bf16.msra.mxu0 0
    %6689 = vmatprep.subr.bf16.mxu0 0
    %6690 = vmatpush1.bf16.msra.mxu0 0
    %6691 = vmatprep.subr.bf16.mxu0 0
    %6692 = vmatpush1.bf16.msra.mxu0 0
    %6693 = vmatprep.subr.bf16.mxu0 0
    %6694 = vmatpush1.bf16.msra.mxu0 0
    %6695 = vmatprep.subr.bf16.mxu0 0
    %6696 = vmatpush1.bf16.msra.mxu0 0
    %6697 = vmatprep.subr.bf16.mxu0 0
    %6698 = vmatpush1.bf16.msra.mxu0 0
    %6699 = vmatprep.subr.bf16.mxu0 0
    %6700 = vmatpush1.bf16.msra.mxu0 0
    %6701 = vmatprep.subr.bf16.mxu0 0
    %6702 = vmatpush1.bf16.msra.mxu0 0
    %6703 = vmatprep.subr.bf16.mxu0 0
    %6704 = vmatpush1.bf16.msra.mxu0 0
    %6705 = vmatprep.mubr.bf16.mxu0 0
    %6706 = vmatmul.mubr.bf16.gmra.mrb[0].mxu0 %v6512
    %v6707 = vpop.f32.mrb[0].mxu0
    %v6708 = vadd.f32 0.0, %v6707
    %v6709 = vpop.f32.mrb[0].mxu0
    %v6710 = vadd.f32 0.0, %v6709
    %v6711 = vpop.f32.mrb[0].mxu0
    %v6712 = vpop.f32.mrb[0].mxu0
    %6713 = vdwg.mxu0
    %6714 = vmatprep.subr.bf16.mxu0 %v6542
    %6715 = vmatpush1.bf16.msra.mxu0 %v6539
    %6716 = vmatprep.subr.bf16.mxu0 0
    %6717 = vmatpush1.bf16.msra.mxu0 0
    %6718 = vmatprep.subr.bf16.mxu0 0
    %6719 = vmatpush1.bf16.msra.mxu0 0
    %6720 = vmatprep.subr.bf16.mxu0 0
    %6721 = vmatpush1.bf16.msra.mxu0 0
    %6722 = vmatprep.subr.bf16.mxu0 0
    %6723 = vmatpush1.bf16.msra.mxu0 0
    %6724 = vmatprep.subr.bf16.mxu0 0
    %6725 = vmatpush1.bf16.msra.mxu0 0
    %6726 = vmatprep.subr.bf16.mxu0 0
    %6727 = vmatpush1.bf16.msra.mxu0 0
    %6728 = vmatprep.subr.bf16.mxu0 0
    %6729 = vmatpush1.bf16.msra.mxu0 0
    %6730 = vmatprep.subr.bf16.mxu0 0
    %6731 = vmatpush1.bf16.msra.mxu0 0
    %6732 = vmatprep.subr.bf16.mxu0 0
    %6733 = vmatpush1.bf16.msra.mxu0 0
    %6734 = vmatprep.subr.bf16.mxu0 0
    %6735 = vmatpush1.bf16.msra.mxu0 0
    %6736 = vmatprep.subr.bf16.mxu0 0
    %6737 = vmatpush1.bf16.msra.mxu0 0
    %6738 = vmatprep.subr.bf16.mxu0 0
    %6739 = vmatpush1.bf16.msra.mxu0 0
    %6740 = vmatprep.subr.bf16.mxu0 0
    %6741 = vmatpush1.bf16.msra.mxu0 0
    %6742 = vmatprep.subr.bf16.mxu0 0
    %6743 = vmatpush1.bf16.msra.mxu0 0
    %6744 = vmatprep.subr.bf16.mxu0 0
    %6745 = vmatpush1.bf16.msra.mxu0 0
    %6746 = vmatprep.mubr.bf16.mxu0 0
    %6747 = vmatmul.mubr.bf16.gmra.mrb[0].mxu0 %v6512
    %v6748 = vpop.f32.mrb[0].mxu0
    %v6749 = vadd.f32 0.0, %v6748
    %v6750 = vpop.f32.mrb[0].mxu0
    %v6751 = vadd.f32 0.0, %v6750
    %v6752 = vpop.f32.mrb[0].mxu0
    %v6753 = vpop.f32.mrb[0].mxu0
    %6754 = vdwg.mxu0
    %6755 = vmatprep.subr.bf16.mxu0 %v6548
    %6756 = vmatpush1.bf16.msra.mxu0 %v6545
    %6757 = vmatprep.subr.bf16.mxu0 0
    %6758 = vmatpush1.bf16.msra.mxu0 0
    %6759 = vmatprep.subr.bf16.mxu0 0
    %6760 = vmatpush1.bf16.msra.mxu0 0
    %6761 = vmatprep.subr.bf16.mxu0 0
    %6762 = vmatpush1.bf16.msra.mxu0 0
    %6763 = vmatprep.subr.bf16.mxu0 0
    %6764 = vmatpush1.bf16.msra.mxu0 0
    %6765 = vmatprep.subr.bf16.mxu0 0
    %6766 = vmatpush1.bf16.msra.mxu0 0
    %6767 = vmatprep.subr.bf16.mxu0 0
    %6768 = vmatpush1.bf16.msra.mxu0 0
    %6769 = vmatprep.subr.bf16.mxu0 0
    %6770 = vmatpush1.bf16.msra.mxu0 0
    %6771 = vmatprep.subr.bf16.mxu0 0
    %6772 = vmatpush1.bf16.msra.mxu0 0
    %6773 = vmatprep.subr.bf16.mxu0 0
    %6774 = vmatpush1.bf16.msra.mxu0 0
    %6775 = vmatprep.subr.bf16.mxu0 0
    %6776 = vmatpush1.bf16.msra.mxu0 0
    %6777 = vmatprep.subr.bf16.mxu0 0
    %6778 = vmatpush1.bf16.msra.mxu0 0
    %6779 = vmatprep.subr.bf16.mxu0 0
    %6780 = vmatpush1.bf16.msra.mxu0 0
    %6781 = vmatprep.subr.bf16.mxu0 0
    %6782 = vmatpush1.bf16.msra.mxu0 0
    %6783 = vmatprep.subr.bf16.mxu0 0
    %6784 = vmatpush1.bf16.msra.mxu0 0
    %6785 = vmatprep.subr.bf16.mxu0 0
    %6786 = vmatpush1.bf16.msra.mxu0 0
    %6787 = vmatprep.mubr.bf16.mxu0 0
    %6788 = vmatmul.mubr.bf16.gmra.mrb[0].mxu0 %v6512
    %v6789 = vpop.f32.mrb[0].mxu0
    %v6790 = vadd.f32 0.0, %v6789
    %v6791 = vpop.f32.mrb[0].mxu0
    %v6792 = vadd.f32 0.0, %v6791
    %v6793 = vpop.f32.mrb[0].mxu0
    %v6794 = vpop.f32.mrb[0].mxu0
    %6795 = vdwg.mxu0
    %v6796 = vadd.f32 %v6368, %v6585
    %v6797 = vadd.f32 %v6369, %v6587
    %v6798 = vadd.f32 %v6370, %v6626
    %v6799 = vadd.f32 %v6371, %v6628
    %v6800 = vadd.f32 %v6372, %v6667
    %v6801 = vadd.f32 %v6373, %v6669
    %v6802 = vadd.f32 %v6374, %v6708
    %v6803 = vadd.f32 %v6375, %v6710
    %v6804 = vadd.f32 %v6376, %v6749
    %v6805 = vadd.f32 %v6377, %v6751
    %v6806 = vadd.f32 %v6378, %v6790
    %v6807 = vadd.f32 %v6379, %v6792
    %6808 = vrot.lane.b32.xlu0 %v87, 120
    %v6809 = vpop.permute.xlu0 %6808
    %6810 = vrot.lane.b32.xlu0 %v88, 120
    %v6811 = vpop.permute.xlu0 %6810
    %6812 = vrot.lane.b32.xlu0 %v89, 120
    %v6813 = vpop.permute.xlu0 %6812
    %6814 = vrot.lane.b32.xlu0 %v90, 120
    %v6815 = vpop.permute.xlu0 %6814
    %6816 = vrot.lane.b32.xlu0 %v91, 120
    %v6817 = vpop.permute.xlu0 %6816
    %6818 = vrot.lane.b32.xlu0 %v92, 120
    %v6819 = vpop.permute.xlu0 %6818
    %6820 = vrot.lane.b32.xlu0 %v93, 120
    %v6821 = vpop.permute.xlu0 %6820
    %6822 = vrot.lane.b32.xlu0 %v94, 120
    %v6823 = vpop.permute.xlu0 %6822
    %6824 = vrot.lane.b32.xlu0 %v95, 120
    %v6825 = vpop.permute.xlu0 %6824
    %6826 = vrot.lane.b32.xlu0 %v96, 120
    %v6827 = vpop.permute.xlu0 %6826
    %6828 = vrot.lane.b32.xlu0 %v97, 120
    %v6829 = vpop.permute.xlu0 %6828
    %6830 = vrot.lane.b32.xlu0 %v98, 120
    %v6831 = vpop.permute.xlu0 %6830
    %vm6832 = vcmp.lt.s32.totalorder %v124, 120
    %v6833 = vsel %vm6832, %v6829, %v6831
    %v6834 = vsel %vm6832, %v6827, %v6829
    %v6835 = vsel %vm6832, %v6825, %v6827
    %v6836 = vsel %vm6832, %v6823, %v6825
    %v6837 = vsel %vm6832, %v6821, %v6823
    %v6838 = vsel %vm6832, %v6819, %v6821
    %v6839 = vsel %vm6832, %v6817, %v6819
    %v6840 = vsel %vm6832, %v6815, %v6817
    %v6841 = vsel %vm6832, %v6813, %v6815
    %v6842 = vsel %vm6832, %v6811, %v6813
    %v6843 = vsel %vm6832, %v6809, %v6811
    %v6844 = vsel %vm6832, %v6831, %v6809
    %s6845 = scalar_lea.vmem [#allocation3], 192
    %v6846 = vld [vmem:[%s6845] ss:$8 sm:$0xf]
    %v6847 = vld [vmem:[%s6845] ss:$8 sm:$0xf0]
    %v6848 = vor.u32 %v6846, %v6847
    %s6849 = scalar_lea.vmem [#allocation3], 256
    %v6850 = vld [vmem:[%s6849] ss:$8 sm:$0xf]
    %v6853 = vlaneseq
    %v6854 = vshrl.u32 %v6853, 7
    %v6855 = vsub.s32 0, %v6854
    %v6856 = vrot.slane %v6848, %v6855
    %v6857 = vlaneseq
    %v6858 = vshrl.u32 %v6857, 7
    %v6859 = vsub.s32 1, %v6858
    %v6860 = vrot.slane %v6848, %v6859
    %v6861 = vlaneseq
    %v6862 = vshrl.u32 %v6861, 7
    %v6863 = vsub.s32 2, %v6862
    %v6864 = vrot.slane %v6848, %v6863
    %v6865 = vlaneseq
    %v6866 = vshrl.u32 %v6865, 7
    %v6867 = vsub.s32 3, %v6866
    %v6868 = vrot.slane %v6848, %v6867
    %v6869 = vlaneseq
    %v6870 = vshrl.u32 %v6869, 7
    %v6871 = vsub.s32 4, %v6870
    %v6872 = vrot.slane %v6848, %v6871
    %v6873 = vlaneseq
    %v6874 = vshrl.u32 %v6873, 7
    %v6875 = vsub.s32 5, %v6874
    %v6876 = vrot.slane %v6848, %v6875
    %v6877 = vlaneseq
    %v6878 = vshrl.u32 %v6877, 7
    %v6879 = vsub.s32 6, %v6878
    %v6880 = vrot.slane %v6848, %v6879
    %v6881 = vlaneseq
    %v6882 = vshrl.u32 %v6881, 7
    %v6883 = vsub.s32 7, %v6882
    %v6884 = vrot.slane %v6848, %v6883
    %v6885 = vlaneseq
    %v6886 = vshrl.u32 %v6885, 7
    %v6887 = vsub.s32 0, %v6886
    %v6888 = vrot.slane %v6850, %v6887
    %v6889 = vlaneseq
    %v6890 = vshrl.u32 %v6889, 7
    %v6891 = vsub.s32 1, %v6890
    %v6892 = vrot.slane %v6850, %v6891
    %v6893 = vlaneseq
    %v6894 = vshrl.u32 %v6893, 7
    %v6895 = vsub.s32 2, %v6894
    %v6896 = vrot.slane %v6850, %v6895
    %v6897 = vlaneseq
    %v6898 = vshrl.u32 %v6897, 7
    %v6899 = vsub.s32 3, %v6898
    %v6900 = vrot.slane %v6850, %v6899
    %v6913 = vmul.f32 %v6843, %v6856
    %v6914 = vmul.f32 %v6842, %v6860
    %v6915 = vmul.f32 %v6841, %v6864
    %v6916 = vmul.f32 %v6840, %v6868
    %v6917 = vmul.f32 %v6839, %v6872
    %v6918 = vmul.f32 %v6838, %v6876
    %v6919 = vmul.f32 %v6837, %v6880
    %v6920 = vmul.f32 %v6836, %v6884
    %v6921 = vmul.f32 %v6835, %v6888
    %v6922 = vmul.f32 %v6834, %v6892
    %v6923 = vmul.f32 %v6833, %v6896
    %v6924 = vmul.f32 %v6844, %v6900
    %s6925 = scalar_lea.vmem %s1, 64
    %v6926 = vld [vmem:[%s6925] sm:$0xf]
    %v6927 = vpack.c.bf16 %v6913, %v6913
    %v6928 = vpack.c.bf16 %v6914, %v6914
    %v6929 = vpack.c.bf16 %v6915, %v6915
    %v6930 = vpack.c.bf16 %v6916, %v6916
    %v6931 = vpack.c.bf16 %v6917, %v6917
    %v6932 = vpack.c.bf16 %v6918, %v6918
    %v6933 = vpack.c.bf16 %v6919, %v6919
    %v6934 = vpack.c.bf16 %v6920, %v6920
    %v6935 = vpack.c.bf16 %v6921, %v6921
    %v6936 = vpack.c.bf16 %v6922, %v6922
    %v6937 = vpack.c.bf16 %v6923, %v6923
    %v6938 = vpack.c.bf16 %v6924, %v6924
    %v6940 = vsel %vm361, %v6926, 0
    %v6943 = vsel %vm365, %v6927, 0
    %v6946 = vsel %vm365, %v6928, 0
    %v6949 = vsel %vm365, %v6929, 0
    %v6952 = vsel %vm365, %v6930, 0
    %v6955 = vsel %vm365, %v6931, 0
    %v6958 = vsel %vm365, %v6932, 0
    %v6961 = vsel %vm365, %v6933, 0
    %v6964 = vsel %vm365, %v6934, 0
    %v6967 = vsel %vm365, %v6935, 0
    %v6970 = vsel %vm365, %v6936, 0
    %v6973 = vsel %vm365, %v6937, 0
    %v6976 = vsel %vm365, %v6938, 0
    %6978 = vmatprep.subr.bf16.mxu0 %v6946
    %6979 = vmatpush1.bf16.msra.mxu0 %v6943
    %6980 = vmatprep.subr.bf16.mxu0 0
    %6981 = vmatpush1.bf16.msra.mxu0 0
    %6982 = vmatprep.subr.bf16.mxu0 0
    %6983 = vmatpush1.bf16.msra.mxu0 0
    %6984 = vmatprep.subr.bf16.mxu0 0
    %6985 = vmatpush1.bf16.msra.mxu0 0
    %6986 = vmatprep.subr.bf16.mxu0 0
    %6987 = vmatpush1.bf16.msra.mxu0 0
    %6988 = vmatprep.subr.bf16.mxu0 0
    %6989 = vmatpush1.bf16.msra.mxu0 0
    %6990 = vmatprep.subr.bf16.mxu0 0
    %6991 = vmatpush1.bf16.msra.mxu0 0
    %6992 = vmatprep.subr.bf16.mxu0 0
    %6993 = vmatpush1.bf16.msra.mxu0 0
    %6994 = vmatprep.subr.bf16.mxu0 0
    %6995 = vmatpush1.bf16.msra.mxu0 0
    %6996 = vmatprep.subr.bf16.mxu0 0
    %6997 = vmatpush1.bf16.msra.mxu0 0
    %6998 = vmatprep.subr.bf16.mxu0 0
    %6999 = vmatpush1.bf16.msra.mxu0 0
    %7000 = vmatprep.subr.bf16.mxu0 0
    %7001 = vmatpush1.bf16.msra.mxu0 0
    %7002 = vmatprep.subr.bf16.mxu0 0
    %7003 = vmatpush1.bf16.msra.mxu0 0
    %7004 = vmatprep.subr.bf16.mxu0 0
    %7005 = vmatpush1.bf16.msra.mxu0 0
    %7006 = vmatprep.subr.bf16.mxu0 0
    %7007 = vmatpush1.bf16.msra.mxu0 0
    %7008 = vmatprep.subr.bf16.mxu0 0
    %7009 = vmatpush1.bf16.msra.mxu0 0
    %7010 = vmatprep.mubr.bf16.mxu0 0
    %7011 = vmatmul.mubr.bf16.gmra.mrb[0].mxu0 %v6940
    %v7012 = vpop.f32.mrb[0].mxu0
    %v7013 = vadd.f32 0.0, %v7012
    %v7014 = vpop.f32.mrb[0].mxu0
    %v7015 = vadd.f32 0.0, %v7014
    %v7016 = vpop.f32.mrb[0].mxu0
    %v7017 = vpop.f32.mrb[0].mxu0
    %7018 = vdwg.mxu0
    %7019 = vmatprep.subr.bf16.mxu0 %v6952
    %7020 = vmatpush1.bf16.msra.mxu0 %v6949
    %7021 = vmatprep.subr.bf16.mxu0 0
    %7022 = vmatpush1.bf16.msra.mxu0 0
    %7023 = vmatprep.subr.bf16.mxu0 0
    %7024 = vmatpush1.bf16.msra.mxu0 0
    %7025 = vmatprep.subr.bf16.mxu0 0
    %7026 = vmatpush1.bf16.msra.mxu0 0
    %7027 = vmatprep.subr.bf16.mxu0 0
    %7028 = vmatpush1.bf16.msra.mxu0 0
    %7029 = vmatprep.subr.bf16.mxu0 0
    %7030 = vmatpush1.bf16.msra.mxu0 0
    %7031 = vmatprep.subr.bf16.mxu0 0
    %7032 = vmatpush1.bf16.msra.mxu0 0
    %7033 = vmatprep.subr.bf16.mxu0 0
    %7034 = vmatpush1.bf16.msra.mxu0 0
    %7035 = vmatprep.subr.bf16.mxu0 0
    %7036 = vmatpush1.bf16.msra.mxu0 0
    %7037 = vmatprep.subr.bf16.mxu0 0
    %7038 = vmatpush1.bf16.msra.mxu0 0
    %7039 = vmatprep.subr.bf16.mxu0 0
    %7040 = vmatpush1.bf16.msra.mxu0 0
    %7041 = vmatprep.subr.bf16.mxu0 0
    %7042 = vmatpush1.bf16.msra.mxu0 0
    %7043 = vmatprep.subr.bf16.mxu0 0
    %7044 = vmatpush1.bf16.msra.mxu0 0
    %7045 = vmatprep.subr.bf16.mxu0 0
    %7046 = vmatpush1.bf16.msra.mxu0 0
    %7047 = vmatprep.subr.bf16.mxu0 0
    %7048 = vmatpush1.bf16.msra.mxu0 0
    %7049 = vmatprep.subr.bf16.mxu0 0
    %7050 = vmatpush1.bf16.msra.mxu0 0
    %7051 = vmatprep.mubr.bf16.mxu0 0
    %7052 = vmatmul.mubr.bf16.gmra.mrb[0].mxu0 %v6940
    %v7053 = vpop.f32.mrb[0].mxu0
    %v7054 = vadd.f32 0.0, %v7053
    %v7055 = vpop.f32.mrb[0].mxu0
    %v7056 = vadd.f32 0.0, %v7055
    %v7057 = vpop.f32.mrb[0].mxu0
    %v7058 = vpop.f32.mrb[0].mxu0
    %7059 = vdwg.mxu0
    %7060 = vmatprep.subr.bf16.mxu0 %v6958
    %7061 = vmatpush1.bf16.msra.mxu0 %v6955
    %7062 = vmatprep.subr.bf16.mxu0 0
    %7063 = vmatpush1.bf16.msra.mxu0 0
    %7064 = vmatprep.subr.bf16.mxu0 0
    %7065 = vmatpush1.bf16.msra.mxu0 0
    %7066 = vmatprep.subr.bf16.mxu0 0
    %7067 = vmatpush1.bf16.msra.mxu0 0
    %7068 = vmatprep.subr.bf16.mxu0 0
    %7069 = vmatpush1.bf16.msra.mxu0 0
    %7070 = vmatprep.subr.bf16.mxu0 0
    %7071 = vmatpush1.bf16.msra.mxu0 0
    %7072 = vmatprep.subr.bf16.mxu0 0
    %7073 = vmatpush1.bf16.msra.mxu0 0
    %7074 = vmatprep.subr.bf16.mxu0 0
    %7075 = vmatpush1.bf16.msra.mxu0 0
    %7076 = vmatprep.subr.bf16.mxu0 0
    %7077 = vmatpush1.bf16.msra.mxu0 0
    %7078 = vmatprep.subr.bf16.mxu0 0
    %7079 = vmatpush1.bf16.msra.mxu0 0
    %7080 = vmatprep.subr.bf16.mxu0 0
    %7081 = vmatpush1.bf16.msra.mxu0 0
    %7082 = vmatprep.subr.bf16.mxu0 0
    %7083 = vmatpush1.bf16.msra.mxu0 0
    %7084 = vmatprep.subr.bf16.mxu0 0
    %7085 = vmatpush1.bf16.msra.mxu0 0
    %7086 = vmatprep.subr.bf16.mxu0 0
    %7087 = vmatpush1.bf16.msra.mxu0 0
    %7088 = vmatprep.subr.bf16.mxu0 0
    %7089 = vmatpush1.bf16.msra.mxu0 0
    %7090 = vmatprep.subr.bf16.mxu0 0
    %7091 = vmatpush1.bf16.msra.mxu0 0
    %7092 = vmatprep.mubr.bf16.mxu0 0
    %7093 = vmatmul.mubr.bf16.gmra.mrb[0].mxu0 %v6940
    %v7094 = vpop.f32.mrb[0].mxu0
    %v7095 = vadd.f32 0.0, %v7094
    %v7096 = vpop.f32.mrb[0].mxu0
    %v7097 = vadd.f32 0.0, %v7096
    %v7098 = vpop.f32.mrb[0].mxu0
    %v7099 = vpop.f32.mrb[0].mxu0
    %7100 = vdwg.mxu0
    %7101 = vmatprep.subr.bf16.mxu0 %v6964
    %7102 = vmatpush1.bf16.msra.mxu0 %v6961
    %7103 = vmatprep.subr.bf16.mxu0 0
    %7104 = vmatpush1.bf16.msra.mxu0 0
    %7105 = vmatprep.subr.bf16.mxu0 0
    %7106 = vmatpush1.bf16.msra.mxu0 0
    %7107 = vmatprep.subr.bf16.mxu0 0
    %7108 = vmatpush1.bf16.msra.mxu0 0
    %7109 = vmatprep.subr.bf16.mxu0 0
    %7110 = vmatpush1.bf16.msra.mxu0 0
    %7111 = vmatprep.subr.bf16.mxu0 0
    %7112 = vmatpush1.bf16.msra.mxu0 0
    %7113 = vmatprep.subr.bf16.mxu0 0
    %7114 = vmatpush1.bf16.msra.mxu0 0
    %7115 = vmatprep.subr.bf16.mxu0 0
    %7116 = vmatpush1.bf16.msra.mxu0 0
    %7117 = vmatprep.subr.bf16.mxu0 0
    %7118 = vmatpush1.bf16.msra.mxu0 0
    %7119 = vmatprep.subr.bf16.mxu0 0
    %7120 = vmatpush1.bf16.msra.mxu0 0
    %7121 = vmatprep.subr.bf16.mxu0 0
    %7122 = vmatpush1.bf16.msra.mxu0 0
    %7123 = vmatprep.subr.bf16.mxu0 0
    %7124 = vmatpush1.bf16.msra.mxu0 0
    %7125 = vmatprep.subr.bf16.mxu0 0
    %7126 = vmatpush1.bf16.msra.mxu0 0
    %7127 = vmatprep.subr.bf16.mxu0 0
    %7128 = vmatpush1.bf16.msra.mxu0 0
    %7129 = vmatprep.subr.bf16.mxu0 0
    %7130 = vmatpush1.bf16.msra.mxu0 0
    %7131 = vmatprep.subr.bf16.mxu0 0
    %7132 = vmatpush1.bf16.msra.mxu0 0
    %7133 = vmatprep.mubr.bf16.mxu0 0
    %7134 = vmatmul.mubr.bf16.gmra.mrb[0].mxu0 %v6940
    %v7135 = vpop.f32.mrb[0].mxu0
    %v7136 = vadd.f32 0.0, %v7135
    %v7137 = vpop.f32.mrb[0].mxu0
    %v7138 = vadd.f32 0.0, %v7137
    %v7139 = vpop.f32.mrb[0].mxu0
    %v7140 = vpop.f32.mrb[0].mxu0
    %7141 = vdwg.mxu0
    %7142 = vmatprep.subr.bf16.mxu0 %v6970
    %7143 = vmatpush1.bf16.msra.mxu0 %v6967
    %7144 = vmatprep.subr.bf16.mxu0 0
    %7145 = vmatpush1.bf16.msra.mxu0 0
    %7146 = vmatprep.subr.bf16.mxu0 0
    %7147 = vmatpush1.bf16.msra.mxu0 0
    %7148 = vmatprep.subr.bf16.mxu0 0
    %7149 = vmatpush1.bf16.msra.mxu0 0
    %7150 = vmatprep.subr.bf16.mxu0 0
    %7151 = vmatpush1.bf16.msra.mxu0 0
    %7152 = vmatprep.subr.bf16.mxu0 0
    %7153 = vmatpush1.bf16.msra.mxu0 0
    %7154 = vmatprep.subr.bf16.mxu0 0
    %7155 = vmatpush1.bf16.msra.mxu0 0
    %7156 = vmatprep.subr.bf16.mxu0 0
    %7157 = vmatpush1.bf16.msra.mxu0 0
    %7158 = vmatprep.subr.bf16.mxu0 0
    %7159 = vmatpush1.bf16.msra.mxu0 0
    %7160 = vmatprep.subr.bf16.mxu0 0
    %7161 = vmatpush1.bf16.msra.mxu0 0
    %7162 = vmatprep.subr.bf16.mxu0 0
    %7163 = vmatpush1.bf16.msra.mxu0 0
    %7164 = vmatprep.subr.bf16.mxu0 0
    %7165 = vmatpush1.bf16.msra.mxu0 0
    %7166 = vmatprep.subr.bf16.mxu0 0
    %7167 = vmatpush1.bf16.msra.mxu0 0
    %7168 = vmatprep.subr.bf16.mxu0 0
    %7169 = vmatpush1.bf16.msra.mxu0 0
    %7170 = vmatprep.subr.bf16.mxu0 0
    %7171 = vmatpush1.bf16.msra.mxu0 0
    %7172 = vmatprep.subr.bf16.mxu0 0
    %7173 = vmatpush1.bf16.msra.mxu0 0
    %7174 = vmatprep.mubr.bf16.mxu0 0
    %7175 = vmatmul.mubr.bf16.gmra.mrb[0].mxu0 %v6940
    %v7176 = vpop.f32.mrb[0].mxu0
    %v7177 = vadd.f32 0.0, %v7176
    %v7178 = vpop.f32.mrb[0].mxu0
    %v7179 = vadd.f32 0.0, %v7178
    %v7180 = vpop.f32.mrb[0].mxu0
    %v7181 = vpop.f32.mrb[0].mxu0
    %7182 = vdwg.mxu0
    %7183 = vmatprep.subr.bf16.mxu0 %v6976
    %7184 = vmatpush1.bf16.msra.mxu0 %v6973
    %7185 = vmatprep.subr.bf16.mxu0 0
    %7186 = vmatpush1.bf16.msra.mxu0 0
    %7187 = vmatprep.subr.bf16.mxu0 0
    %7188 = vmatpush1.bf16.msra.mxu0 0
    %7189 = vmatprep.subr.bf16.mxu0 0
    %7190 = vmatpush1.bf16.msra.mxu0 0
    %7191 = vmatprep.subr.bf16.mxu0 0
    %7192 = vmatpush1.bf16.msra.mxu0 0
    %7193 = vmatprep.subr.bf16.mxu0 0
    %7194 = vmatpush1.bf16.msra.mxu0 0
    %7195 = vmatprep.subr.bf16.mxu0 0
    %7196 = vmatpush1.bf16.msra.mxu0 0
    %7197 = vmatprep.subr.bf16.mxu0 0
    %7198 = vmatpush1.bf16.msra.mxu0 0
    %7199 = vmatprep.subr.bf16.mxu0 0
    %7200 = vmatpush1.bf16.msra.mxu0 0
    %7201 = vmatprep.subr.bf16.mxu0 0
    %7202 = vmatpush1.bf16.msra.mxu0 0
    %7203 = vmatprep.subr.bf16.mxu0 0
    %7204 = vmatpush1.bf16.msra.mxu0 0
    %7205 = vmatprep.subr.bf16.mxu0 0
    %7206 = vmatpush1.bf16.msra.mxu0 0
    %7207 = vmatprep.subr.bf16.mxu0 0
    %7208 = vmatpush1.bf16.msra.mxu0 0
    %7209 = vmatprep.subr.bf16.mxu0 0
    %7210 = vmatpush1.bf16.msra.mxu0 0
    %7211 = vmatprep.subr.bf16.mxu0 0
    %7212 = vmatpush1.bf16.msra.mxu0 0
    %7213 = vmatprep.subr.bf16.mxu0 0
    %7214 = vmatpush1.bf16.msra.mxu0 0
    %7215 = vmatprep.mubr.bf16.mxu0 0
    %7216 = vmatmul.mubr.bf16.gmra.mrb[0].mxu0 %v6940
    %v7217 = vpop.f32.mrb[0].mxu0
    %v7218 = vadd.f32 0.0, %v7217
    %v7219 = vpop.f32.mrb[0].mxu0
    %v7220 = vadd.f32 0.0, %v7219
    %v7221 = vpop.f32.mrb[0].mxu0
    %v7222 = vpop.f32.mrb[0].mxu0
    %7223 = vdwg.mxu0
    %v7224 = vadd.f32 %v6796, %v7013
    %v7225 = vadd.f32 %v6797, %v7015
    %v7226 = vadd.f32 %v6798, %v7054
    %v7227 = vadd.f32 %v6799, %v7056
    %v7228 = vadd.f32 %v6800, %v7095
    %v7229 = vadd.f32 %v6801, %v7097
    %v7230 = vadd.f32 %v6802, %v7136
    %v7231 = vadd.f32 %v6803, %v7138
    %v7232 = vadd.f32 %v6804, %v7177
    %v7233 = vadd.f32 %v6805, %v7179
    %v7234 = vadd.f32 %v6806, %v7218
    %v7235 = vadd.f32 %v6807, %v7220
    %7236 = vrot.lane.b32.xlu0 %v87, 119
    %v7237 = vpop.permute.xlu0 %7236
    %7238 = vrot.lane.b32.xlu0 %v88, 119
    %v7239 = vpop.permute.xlu0 %7238
    %7240 = vrot.lane.b32.xlu0 %v89, 119
    %v7241 = vpop.permute.xlu0 %7240
    %7242 = vrot.lane.b32.xlu0 %v90, 119
    %v7243 = vpop.permute.xlu0 %7242
    %7244 = vrot.lane.b32.xlu0 %v91, 119
    %v7245 = vpop.permute.xlu0 %7244
    %7246 = vrot.lane.b32.xlu0 %v92, 119
    %v7247 = vpop.permute.xlu0 %7246
    %7248 = vrot.lane.b32.xlu0 %v93, 119
    %v7249 = vpop.permute.xlu0 %7248
    %7250 = vrot.lane.b32.xlu0 %v94, 119
    %v7251 = vpop.permute.xlu0 %7250
    %7252 = vrot.lane.b32.xlu0 %v95, 119
    %v7253 = vpop.permute.xlu0 %7252
    %7254 = vrot.lane.b32.xlu0 %v96, 119
    %v7255 = vpop.permute.xlu0 %7254
    %7256 = vrot.lane.b32.xlu0 %v97, 119
    %v7257 = vpop.permute.xlu0 %7256
    %7258 = vrot.lane.b32.xlu0 %v98, 119
    %v7259 = vpop.permute.xlu0 %7258
    %vm7260 = vcmp.lt.s32.totalorder %v124, 119
    %v7261 = vsel %vm7260, %v7257, %v7259
    %v7262 = vsel %vm7260, %v7255, %v7257
    %v7263 = vsel %vm7260, %v7253, %v7255
    %v7264 = vsel %vm7260, %v7251, %v7253
    %v7265 = vsel %vm7260, %v7249, %v7251
    %v7266 = vsel %vm7260, %v7247, %v7249
    %v7267 = vsel %vm7260, %v7245, %v7247
    %v7268 = vsel %vm7260, %v7243, %v7245
    %v7269 = vsel %vm7260, %v7241, %v7243
    %v7270 = vsel %vm7260, %v7239, %v7241
    %v7271 = vsel %vm7260, %v7237, %v7239
    %v7272 = vsel %vm7260, %v7259, %v7237
    %s7273 = scalar_lea.vmem [#allocation3], 193
    %v7274 = vld [vmem:[%s7273] ss:$8 sm:$0xf]
    %v7275 = vld [vmem:[%s7273] ss:$8 sm:$0xf0]
    %v7276 = vor.u32 %v7274, %v7275
    %s7277 = scalar_lea.vmem [#allocation3], 257
    %v7278 = vld [vmem:[%s7277] ss:$8 sm:$0xf]
    %v7281 = vlaneseq
    %v7282 = vshrl.u32 %v7281, 7
    %v7283 = vsub.s32 0, %v7282
    %v7284 = vrot.slane %v7276, %v7283
    %v7285 = vlaneseq
    %v7286 = vshrl.u32 %v7285, 7
    %v7287 = vsub.s32 1, %v7286
    %v7288 = vrot.slane %v7276, %v7287
    %v7289 = vlaneseq
    %v7290 = vshrl.u32 %v7289, 7
    %v7291 = vsub.s32 2, %v7290
    %v7292 = vrot.slane %v7276, %v7291
    %v7293 = vlaneseq
    %v7294 = vshrl.u32 %v7293, 7
    %v7295 = vsub.s32 3, %v7294
    %v7296 = vrot.slane %v7276, %v7295
    %v7297 = vlaneseq
    %v7298 = vshrl.u32 %v7297, 7
    %v7299 = vsub.s32 4, %v7298
    %v7300 = vrot.slane %v7276, %v7299
    %v7301 = vlaneseq
    %v7302 = vshrl.u32 %v7301, 7
    %v7303 = vsub.s32 5, %v7302
    %v7304 = vrot.slane %v7276, %v7303
    %v7305 = vlaneseq
    %v7306 = vshrl.u32 %v7305, 7
    %v7307 = vsub.s32 6, %v7306
    %v7308 = vrot.slane %v7276, %v7307
    %v7309 = vlaneseq
    %v7310 = vshrl.u32 %v7309, 7
    %v7311 = vsub.s32 7, %v7310
    %v7312 = vrot.slane %v7276, %v7311
    %v7313 = vlaneseq
    %v7314 = vshrl.u32 %v7313, 7
    %v7315 = vsub.s32 0, %v7314
    %v7316 = vrot.slane %v7278, %v7315
    %v7317 = vlaneseq
    %v7318 = vshrl.u32 %v7317, 7
    %v7319 = vsub.s32 1, %v7318
    %v7320 = vrot.slane %v7278, %v7319
    %v7321 = vlaneseq
    %v7322 = vshrl.u32 %v7321, 7
    %v7323 = vsub.s32 2, %v7322
    %v7324 = vrot.slane %v7278, %v7323
    %v7325 = vlaneseq
    %v7326 = vshrl.u32 %v7325, 7
    %v7327 = vsub.s32 3, %v7326
    %v7328 = vrot.slane %v7278, %v7327
    %v7341 = vmul.f32 %v7271, %v7284
    %v7342 = vmul.f32 %v7270, %v7288
    %v7343 = vmul.f32 %v7269, %v7292
    %v7344 = vmul.f32 %v7268, %v7296
    %v7345 = vmul.f32 %v7267, %v7300
    %v7346 = vmul.f32 %v7266, %v7304
    %v7347 = vmul.f32 %v7265, %v7308
    %v7348 = vmul.f32 %v7264, %v7312
    %v7349 = vmul.f32 %v7263, %v7316
    %v7350 = vmul.f32 %v7262, %v7320
    %v7351 = vmul.f32 %v7261, %v7324
    %v7352 = vmul.f32 %v7272, %v7328
    %s7353 = scalar_lea.vmem %s1, 68
    %v7354 = vld [vmem:[%s7353] sm:$0xf]
    %v7355 = vpack.c.bf16 %v7341, %v7341
    %v7356 = vpack.c.bf16 %v7342, %v7342
    %v7357 = vpack.c.bf16 %v7343, %v7343
    %v7358 = vpack.c.bf16 %v7344, %v7344
    %v7359 = vpack.c.bf16 %v7345, %v7345
    %v7360 = vpack.c.bf16 %v7346, %v7346
    %v7361 = vpack.c.bf16 %v7347, %v7347
    %v7362 = vpack.c.bf16 %v7348, %v7348
    %v7363 = vpack.c.bf16 %v7349, %v7349
    %v7364 = vpack.c.bf16 %v7350, %v7350
    %v7365 = vpack.c.bf16 %v7351, %v7351
    %v7366 = vpack.c.bf16 %v7352, %v7352
    %v7368 = vsel %vm361, %v7354, 0
    %v7371 = vsel %vm365, %v7355, 0
    %v7374 = vsel %vm365, %v7356, 0
    %v7377 = vsel %vm365, %v7357, 0
    %v7380 = vsel %vm365, %v7358, 0
    %v7383 = vsel %vm365, %v7359, 0
    %v7386 = vsel %vm365, %v7360, 0
    %v7389 = vsel %vm365, %v7361, 0
    %v7392 = vsel %vm365, %v7362, 0
    %v7395 = vsel %vm365, %v7363, 0
    %v7398 = vsel %vm365, %v7364, 0
    %v7401 = vsel %vm365, %v7365, 0
    %v7404 = vsel %vm365, %v7366, 0
    %7406 = vmatprep.subr.bf16.mxu0 %v7374
    %7407 = vmatpush1.bf16.msra.mxu0 %v7371
    %7408 = vmatprep.subr.bf16.mxu0 0
    %7409 = vmatpush1.bf16.msra.mxu0 0
    %7410 = vmatprep.subr.bf16.mxu0 0
    %7411 = vmatpush1.bf16.msra.mxu0 0
    %7412 = vmatprep.subr.bf16.mxu0 0
    %7413 = vmatpush1.bf16.msra.mxu0 0
    %7414 = vmatprep.subr.bf16.mxu0 0
    %7415 = vmatpush1.bf16.msra.mxu0 0
    %7416 = vmatprep.subr.bf16.mxu0 0
    %7417 = vmatpush1.bf16.msra.mxu0 0
    %7418 = vmatprep.subr.bf16.mxu0 0
    %7419 = vmatpush1.bf16.msra.mxu0 0
    %7420 = vmatprep.subr.bf16.mxu0 0
    %7421 = vmatpush1.bf16.msra.mxu0 0
    %7422 = vmatprep.subr.bf16.mxu0 0
    %7423 = vmatpush1.bf16.msra.mxu0 0
    %7424 = vmatprep.subr.bf16.mxu0 0
    %7425 = vmatpush1.bf16.msra.mxu0 0
    %7426 = vmatprep.subr.bf16.mxu0 0
    %7427 = vmatpush1.bf16.msra.mxu0 0
    %7428 = vmatprep.subr.bf16.mxu0 0
    %7429 = vmatpush1.bf16.msra.mxu0 0
    %7430 = vmatprep.subr.bf16.mxu0 0
    %7431 = vmatpush1.bf16.msra.mxu0 0
    %7432 = vmatprep.subr.bf16.mxu0 0
    %7433 = vmatpush1.bf16.msra.mxu0 0
    %7434 = vmatprep.subr.bf16.mxu0 0
    %7435 = vmatpush1.bf16.msra.mxu0 0
    %7436 = vmatprep.subr.bf16.mxu0 0
    %7437 = vmatpush1.bf16.msra.mxu0 0
    %7438 = vmatprep.mubr.bf16.mxu0 0
    %7439 = vmatmul.mubr.bf16.gmra.mrb[0].mxu0 %v7368
    %v7440 = vpop.f32.mrb[0].mxu0
    %v7441 = vadd.f32 0.0, %v7440
    %v7442 = vpop.f32.mrb[0].mxu0
    %v7443 = vadd.f32 0.0, %v7442
    %v7444 = vpop.f32.mrb[0].mxu0
    %v7445 = vpop.f32.mrb[0].mxu0
    %7446 = vdwg.mxu0
    %7447 = vmatprep.subr.bf16.mxu0 %v7380
    %7448 = vmatpush1.bf16.msra.mxu0 %v7377
    %7449 = vmatprep.subr.bf16.mxu0 0
    %7450 = vmatpush1.bf16.msra.mxu0 0
    %7451 = vmatprep.subr.bf16.mxu0 0
    %7452 = vmatpush1.bf16.msra.mxu0 0
    %7453 = vmatprep.subr.bf16.mxu0 0
    %7454 = vmatpush1.bf16.msra.mxu0 0
    %7455 = vmatprep.subr.bf16.mxu0 0
    %7456 = vmatpush1.bf16.msra.mxu0 0
    %7457 = vmatprep.subr.bf16.mxu0 0
    %7458 = vmatpush1.bf16.msra.mxu0 0
    %7459 = vmatprep.subr.bf16.mxu0 0
    %7460 = vmatpush1.bf16.msra.mxu0 0
    %7461 = vmatprep.subr.bf16.mxu0 0
    %7462 = vmatpush1.bf16.msra.mxu0 0
    %7463 = vmatprep.subr.bf16.mxu0 0
    %7464 = vmatpush1.bf16.msra.mxu0 0
    %7465 = vmatprep.subr.bf16.mxu0 0
    %7466 = vmatpush1.bf16.msra.mxu0 0
    %7467 = vmatprep.subr.bf16.mxu0 0
    %7468 = vmatpush1.bf16.msra.mxu0 0
    %7469 = vmatprep.subr.bf16.mxu0 0
    %7470 = vmatpush1.bf16.msra.mxu0 0
    %7471 = vmatprep.subr.bf16.mxu0 0
    %7472 = vmatpush1.bf16.msra.mxu0 0
    %7473 = vmatprep.subr.bf16.mxu0 0
    %7474 = vmatpush1.bf16.msra.mxu0 0
    %7475 = vmatprep.subr.bf16.mxu0 0
    %7476 = vmatpush1.bf16.msra.mxu0 0
    %7477 = vmatprep.subr.bf16.mxu0 0
    %7478 = vmatpush1.bf16.msra.mxu0 0
    %7479 = vmatprep.mubr.bf16.mxu0 0
    %7480 = vmatmul.mubr.bf16.gmra.mrb[0].mxu0 %v7368
    %v7481 = vpop.f32.mrb[0].mxu0
    %v7482 = vadd.f32 0.0, %v7481
    %v7483 = vpop.f32.mrb[0].mxu0
    %v7484 = vadd.f32 0.0, %v7483
    %v7485 = vpop.f32.mrb[0].mxu0
    %v7486 = vpop.f32.mrb[0].mxu0
    %7487 = vdwg.mxu0
    %7488 = vmatprep.subr.bf16.mxu0 %v7386
    %7489 = vmatpush1.bf16.msra.mxu0 %v7383
    %7490 = vmatprep.subr.bf16.mxu0 0
    %7491 = vmatpush1.bf16.msra.mxu0 0
    %7492 = vmatprep.subr.bf16.mxu0 0
    %7493 = vmatpush1.bf16.msra.mxu0 0
    %7494 = vmatprep.subr.bf16.mxu0 0
    %7495 = vmatpush1.bf16.msra.mxu0 0
    %7496 = vmatprep.subr.bf16.mxu0 0
    %7497 = vmatpush1.bf16.msra.mxu0 0
    %7498 = vmatprep.subr.bf16.mxu0 0
    %7499 = vmatpush1.bf16.msra.mxu0 0
    %7500 = vmatprep.subr.bf16.mxu0 0
    %7501 = vmatpush1.bf16.msra.mxu0 0
    %7502 = vmatprep.subr.bf16.mxu0 0
    %7503 = vmatpush1.bf16.msra.mxu0 0
    %7504 = vmatprep.subr.bf16.mxu0 0
    %7505 = vmatpush1.bf16.msra.mxu0 0
    %7506 = vmatprep.subr.bf16.mxu0 0
    %7507 = vmatpush1.bf16.msra.mxu0 0
    %7508 = vmatprep.subr.bf16.mxu0 0
    %7509 = vmatpush1.bf16.msra.mxu0 0
    %7510 = vmatprep.subr.bf16.mxu0 0
    %7511 = vmatpush1.bf16.msra.mxu0 0
    %7512 = vmatprep.subr.bf16.mxu0 0
    %7513 = vmatpush1.bf16.msra.mxu0 0
    %7514 = vmatprep.subr.bf16.mxu0 0
    %7515 = vmatpush1.bf16.msra.mxu0 0
    %7516 = vmatprep.subr.bf16.mxu0 0
    %7517 = vmatpush1.bf16.msra.mxu0 0
    %7518 = vmatprep.subr.bf16.mxu0 0
    %7519 = vmatpush1.bf16.msra.mxu0 0
    %7520 = vmatprep.mubr.bf16.mxu0 0
    %7521 = vmatmul.mubr.bf16.gmra.mrb[0].mxu0 %v7368
    %v7522 = vpop.f32.mrb[0].mxu0
    %v7523 = vadd.f32 0.0, %v7522
    %v7524 = vpop.f32.mrb[0].mxu0
    %v7525 = vadd.f32 0.0, %v7524
    %v7526 = vpop.f32.mrb[0].mxu0
    %v7527 = vpop.f32.mrb[0].mxu0
    %7528 = vdwg.mxu0
    %7529 = vmatprep.subr.bf16.mxu0 %v7392
    %7530 = vmatpush1.bf16.msra.mxu0 %v7389
    %7531 = vmatprep.subr.bf16.mxu0 0
    %7532 = vmatpush1.bf16.msra.mxu0 0
    %7533 = vmatprep.subr.bf16.mxu0 0
    %7534 = vmatpush1.bf16.msra.mxu0 0
    %7535 = vmatprep.subr.bf16.mxu0 0
    %7536 = vmatpush1.bf16.msra.mxu0 0
    %7537 = vmatprep.subr.bf16.mxu0 0
    %7538 = vmatpush1.bf16.msra.mxu0 0
    %7539 = vmatprep.subr.bf16.mxu0 0
    %7540 = vmatpush1.bf16.msra.mxu0 0
    %7541 = vmatprep.subr.bf16.mxu0 0
    %7542 = vmatpush1.bf16.msra.mxu0 0
    %7543 = vmatprep.subr.bf16.mxu0 0
    %7544 = vmatpush1.bf16.msra.mxu0 0
    %7545 = vmatprep.subr.bf16.mxu0 0
    %7546 = vmatpush1.bf16.msra.mxu0 0
    %7547 = vmatprep.subr.bf16.mxu0 0
    %7548 = vmatpush1.bf16.msra.mxu0 0
    %7549 = vmatprep.subr.bf16.mxu0 0
    %7550 = vmatpush1.bf16.msra.mxu0 0
    %7551 = vmatprep.subr.bf16.mxu0 0
    %7552 = vmatpush1.bf16.msra.mxu0 0
    %7553 = vmatprep.subr.bf16.mxu0 0
    %7554 = vmatpush1.bf16.msra.mxu0 0
    %7555 = vmatprep.subr.bf16.mxu0 0
    %7556 = vmatpush1.bf16.msra.mxu0 0
    %7557 = vmatprep.subr.bf16.mxu0 0
    %7558 = vmatpush1.bf16.msra.mxu0 0
    %7559 = vmatprep.subr.bf16.mxu0 0
    %7560 = vmatpush1.bf16.msra.mxu0 0
    %7561 = vmatprep.mubr.bf16.mxu0 0
    %7562 = vmatmul.mubr.bf16.gmra.mrb[0].mxu0 %v7368
    %v7563 = vpop.f32.mrb[0].mxu0
    %v7564 = vadd.f32 0.0, %v7563
    %v7565 = vpop.f32.mrb[0].mxu0
    %v7566 = vadd.f32 0.0, %v7565
    %v7567 = vpop.f32.mrb[0].mxu0
    %v7568 = vpop.f32.mrb[0].mxu0
    %7569 = vdwg.mxu0
    %7570 = vmatprep.subr.bf16.mxu0 %v7398
    %7571 = vmatpush1.bf16.msra.mxu0 %v7395
    %7572 = vmatprep.subr.bf16.mxu0 0
    %7573 = vmatpush1.bf16.msra.mxu0 0
    %7574 = vmatprep.subr.bf16.mxu0 0
    %7575 = vmatpush1.bf16.msra.mxu0 0
    %7576 = vmatprep.subr.bf16.mxu0 0
    %7577 = vmatpush1.bf16.msra.mxu0 0
    %7578 = vmatprep.subr.bf16.mxu0 0
    %7579 = vmatpush1.bf16.msra.mxu0 0
    %7580 = vmatprep.subr.bf16.mxu0 0
    %7581 = vmatpush1.bf16.msra.mxu0 0
    %7582 = vmatprep.subr.bf16.mxu0 0
    %7583 = vmatpush1.bf16.msra.mxu0 0
    %7584 = vmatprep.subr.bf16.mxu0 0
    %7585 = vmatpush1.bf16.msra.mxu0 0
    %7586 = vmatprep.subr.bf16.mxu0 0
    %7587 = vmatpush1.bf16.msra.mxu0 0
    %7588 = vmatprep.subr.bf16.mxu0 0
    %7589 = vmatpush1.bf16.msra.mxu0 0
    %7590 = vmatprep.subr.bf16.mxu0 0
    %7591 = vmatpush1.bf16.msra.mxu0 0
    %7592 = vmatprep.subr.bf16.mxu0 0
    %7593 = vmatpush1.bf16.msra.mxu0 0
    %7594 = vmatprep.subr.bf16.mxu0 0
    %7595 = vmatpush1.bf16.msra.mxu0 0
    %7596 = vmatprep.subr.bf16.mxu0 0
    %7597 = vmatpush1.bf16.msra.mxu0 0
    %7598 = vmatprep.subr.bf16.mxu0 0
    %7599 = vmatpush1.bf16.msra.mxu0 0
    %7600 = vmatprep.subr.bf16.mxu0 0
    %7601 = vmatpush1.bf16.msra.mxu0 0
    %7602 = vmatprep.mubr.bf16.mxu0 0
    %7603 = vmatmul.mubr.bf16.gmra.mrb[0].mxu0 %v7368
    %v7604 = vpop.f32.mrb[0].mxu0
    %v7605 = vadd.f32 0.0, %v7604
    %v7606 = vpop.f32.mrb[0].mxu0
    %v7607 = vadd.f32 0.0, %v7606
    %v7608 = vpop.f32.mrb[0].mxu0
    %v7609 = vpop.f32.mrb[0].mxu0
    %7610 = vdwg.mxu0
    %7611 = vmatprep.subr.bf16.mxu0 %v7404
    %7612 = vmatpush1.bf16.msra.mxu0 %v7401
    %7613 = vmatprep.subr.bf16.mxu0 0
    %7614 = vmatpush1.bf16.msra.mxu0 0
    %7615 = vmatprep.subr.bf16.mxu0 0
    %7616 = vmatpush1.bf16.msra.mxu0 0
    %7617 = vmatprep.subr.bf16.mxu0 0
    %7618 = vmatpush1.bf16.msra.mxu0 0
    %7619 = vmatprep.subr.bf16.mxu0 0
    %7620 = vmatpush1.bf16.msra.mxu0 0
    %7621 = vmatprep.subr.bf16.mxu0 0
    %7622 = vmatpush1.bf16.msra.mxu0 0
    %7623 = vmatprep.subr.bf16.mxu0 0
    %7624 = vmatpush1.bf16.msra.mxu0 0
    %7625 = vmatprep.subr.bf16.mxu0 0
    %7626 = vmatpush1.bf16.msra.mxu0 0
    %7627 = vmatprep.subr.bf16.mxu0 0
    %7628 = vmatpush1.bf16.msra.mxu0 0
    %7629 = vmatprep.subr.bf16.mxu0 0
    %7630 = vmatpush1.bf16.msra.mxu0 0
    %7631 = vmatprep.subr.bf16.mxu0 0
    %7632 = vmatpush1.bf16.msra.mxu0 0
    %7633 = vmatprep.subr.bf16.mxu0 0
    %7634 = vmatpush1.bf16.msra.mxu0 0
    %7635 = vmatprep.subr.bf16.mxu0 0
    %7636 = vmatpush1.bf16.msra.mxu0 0
    %7637 = vmatprep.subr.bf16.mxu0 0
    %7638 = vmatpush1.bf16.msra.mxu0 0
    %7639 = vmatprep.subr.bf16.mxu0 0
    %7640 = vmatpush1.bf16.msra.mxu0 0
    %7641 = vmatprep.subr.bf16.mxu0 0
    %7642 = vmatpush1.bf16.msra.mxu0 0
    %7643 = vmatprep.mubr.bf16.mxu0 0
    %7644 = vmatmul.mubr.bf16.gmra.mrb[0].mxu0 %v7368
    %v7645 = vpop.f32.mrb[0].mxu0
    %v7646 = vadd.f32 0.0, %v7645
    %v7647 = vpop.f32.mrb[0].mxu0
    %v7648 = vadd.f32 0.0, %v7647
    %v7649 = vpop.f32.mrb[0].mxu0
    %v7650 = vpop.f32.mrb[0].mxu0
    %7651 = vdwg.mxu0
    %v7652 = vadd.f32 %v7224, %v7441
    %v7653 = vadd.f32 %v7225, %v7443
    %v7654 = vadd.f32 %v7226, %v7482
    %v7655 = vadd.f32 %v7227, %v7484
    %v7656 = vadd.f32 %v7228, %v7523
    %v7657 = vadd.f32 %v7229, %v7525
    %v7658 = vadd.f32 %v7230, %v7564
    %v7659 = vadd.f32 %v7231, %v7566
    %v7660 = vadd.f32 %v7232, %v7605
    %v7661 = vadd.f32 %v7233, %v7607
    %v7662 = vadd.f32 %v7234, %v7646
    %v7663 = vadd.f32 %v7235, %v7648
    %s7664 = scalar_lea.vmem [#allocation3], 194
    %v7665 = vld [vmem:[%s7664] ss:$8 sm:$0xf]
    %v7666 = vld [vmem:[%s7664] ss:$8 sm:$0xf0]
    %v7667 = vor.u32 %v7665, %v7666
    %s7668 = scalar_lea.vmem [#allocation3], 258
    %v7669 = vld [vmem:[%s7668] ss:$8 sm:$0xf]
    %v7672 = vlaneseq
    %v7673 = vshrl.u32 %v7672, 7
    %v7674 = vsub.s32 0, %v7673
    %v7675 = vrot.slane %v7667, %v7674
    %v7676 = vlaneseq
    %v7677 = vshrl.u32 %v7676, 7
    %v7678 = vsub.s32 1, %v7677
    %v7679 = vrot.slane %v7667, %v7678
    %v7680 = vlaneseq
    %v7681 = vshrl.u32 %v7680, 7
    %v7682 = vsub.s32 2, %v7681
    %v7683 = vrot.slane %v7667, %v7682
    %v7684 = vlaneseq
    %v7685 = vshrl.u32 %v7684, 7
    %v7686 = vsub.s32 3, %v7685
    %v7687 = vrot.slane %v7667, %v7686
    %v7688 = vlaneseq
    %v7689 = vshrl.u32 %v7688, 7
    %v7690 = vsub.s32 4, %v7689
    %v7691 = vrot.slane %v7667, %v7690
    %v7692 = vlaneseq
    %v7693 = vshrl.u32 %v7692, 7
    %v7694 = vsub.s32 5, %v7693
    %v7695 = vrot.slane %v7667, %v7694
    %v7696 = vlaneseq
    %v7697 = vshrl.u32 %v7696, 7
    %v7698 = vsub.s32 6, %v7697
    %v7699 = vrot.slane %v7667, %v7698
    %v7700 = vlaneseq
    %v7701 = vshrl.u32 %v7700, 7
    %v7702 = vsub.s32 7, %v7701
    %v7703 = vrot.slane %v7667, %v7702
    %v7704 = vlaneseq
    %v7705 = vshrl.u32 %v7704, 7
    %v7706 = vsub.s32 0, %v7705
    %v7707 = vrot.slane %v7669, %v7706
    %v7708 = vlaneseq
    %v7709 = vshrl.u32 %v7708, 7
    %v7710 = vsub.s32 1, %v7709
    %v7711 = vrot.slane %v7669, %v7710
    %v7712 = vlaneseq
    %v7713 = vshrl.u32 %v7712, 7
    %v7714 = vsub.s32 2, %v7713
    %v7715 = vrot.slane %v7669, %v7714
    %v7716 = vlaneseq
    %v7717 = vshrl.u32 %v7716, 7
    %v7718 = vsub.s32 3, %v7717
    %v7719 = vrot.slane %v7669, %v7718
    %v7732 = vmul.f32 %v136, %v7675
    %v7733 = vmul.f32 %v135, %v7679
    %v7734 = vmul.f32 %v134, %v7683
    %v7735 = vmul.f32 %v133, %v7687
    %v7736 = vmul.f32 %v132, %v7691
    %v7737 = vmul.f32 %v131, %v7695
    %v7738 = vmul.f32 %v130, %v7699
    %v7739 = vmul.f32 %v129, %v7703
    %v7740 = vmul.f32 %v128, %v7707
    %v7741 = vmul.f32 %v127, %v7711
    %v7742 = vmul.f32 %v126, %v7715
    %v7743 = vmul.f32 %v137, %v7719
    %s7744 = scalar_lea.vmem %s1, 72
    %v7745 = vld [vmem:[%s7744] sm:$0xf]
    %v7746 = vpack.c.bf16 %v7732, %v7732
    %v7747 = vpack.c.bf16 %v7733, %v7733
    %v7748 = vpack.c.bf16 %v7734, %v7734
    %v7749 = vpack.c.bf16 %v7735, %v7735
    %v7750 = vpack.c.bf16 %v7736, %v7736
    %v7751 = vpack.c.bf16 %v7737, %v7737
    %v7752 = vpack.c.bf16 %v7738, %v7738
    %v7753 = vpack.c.bf16 %v7739, %v7739
    %v7754 = vpack.c.bf16 %v7740, %v7740
    %v7755 = vpack.c.bf16 %v7741, %v7741
    %v7756 = vpack.c.bf16 %v7742, %v7742
    %v7757 = vpack.c.bf16 %v7743, %v7743
    %v7759 = vsel %vm361, %v7745, 0
    %v7762 = vsel %vm365, %v7746, 0
    %v7765 = vsel %vm365, %v7747, 0
    %v7768 = vsel %vm365, %v7748, 0
    %v7771 = vsel %vm365, %v7749, 0
    %v7774 = vsel %vm365, %v7750, 0
    %v7777 = vsel %vm365, %v7751, 0
    %v7780 = vsel %vm365, %v7752, 0
    %v7783 = vsel %vm365, %v7753, 0
    %v7786 = vsel %vm365, %v7754, 0
    %v7789 = vsel %vm365, %v7755, 0
    %v7792 = vsel %vm365, %v7756, 0
    %v7795 = vsel %vm365, %v7757, 0
    %7797 = vmatprep.subr.bf16.mxu0 %v7765
    %7798 = vmatpush1.bf16.msra.mxu0 %v7762
    %7799 = vmatprep.subr.bf16.mxu0 0
    %7800 = vmatpush1.bf16.msra.mxu0 0
    %7801 = vmatprep.subr.bf16.mxu0 0
    %7802 = vmatpush1.bf16.msra.mxu0 0
    %7803 = vmatprep.subr.bf16.mxu0 0
    %7804 = vmatpush1.bf16.msra.mxu0 0
    %7805 = vmatprep.subr.bf16.mxu0 0
    %7806 = vmatpush1.bf16.msra.mxu0 0
    %7807 = vmatprep.subr.bf16.mxu0 0
    %7808 = vmatpush1.bf16.msra.mxu0 0
    %7809 = vmatprep.subr.bf16.mxu0 0
    %7810 = vmatpush1.bf16.msra.mxu0 0
    %7811 = vmatprep.subr.bf16.mxu0 0
    %7812 = vmatpush1.bf16.msra.mxu0 0
    %7813 = vmatprep.subr.bf16.mxu0 0
    %7814 = vmatpush1.bf16.msra.mxu0 0
    %7815 = vmatprep.subr.bf16.mxu0 0
    %7816 = vmatpush1.bf16.msra.mxu0 0
    %7817 = vmatprep.subr.bf16.mxu0 0
    %7818 = vmatpush1.bf16.msra.mxu0 0
    %7819 = vmatprep.subr.bf16.mxu0 0
    %7820 = vmatpush1.bf16.msra.mxu0 0
    %7821 = vmatprep.subr.bf16.mxu0 0
    %7822 = vmatpush1.bf16.msra.mxu0 0
    %7823 = vmatprep.subr.bf16.mxu0 0
    %7824 = vmatpush1.bf16.msra.mxu0 0
    %7825 = vmatprep.subr.bf16.mxu0 0
    %7826 = vmatpush1.bf16.msra.mxu0 0
    %7827 = vmatprep.subr.bf16.mxu0 0
    %7828 = vmatpush1.bf16.msra.mxu0 0
    %7829 = vmatprep.mubr.bf16.mxu0 0
    %7830 = vmatmul.mubr.bf16.gmra.mrb[0].mxu0 %v7759
    %v7831 = vpop.f32.mrb[0].mxu0
    %v7832 = vadd.f32 0.0, %v7831
    %v7833 = vpop.f32.mrb[0].mxu0
    %v7834 = vadd.f32 0.0, %v7833
    %v7835 = vpop.f32.mrb[0].mxu0
    %v7836 = vpop.f32.mrb[0].mxu0
    %7837 = vdwg.mxu0
    %7838 = vmatprep.subr.bf16.mxu0 %v7771
    %7839 = vmatpush1.bf16.msra.mxu0 %v7768
    %7840 = vmatprep.subr.bf16.mxu0 0
    %7841 = vmatpush1.bf16.msra.mxu0 0
    %7842 = vmatprep.subr.bf16.mxu0 0
    %7843 = vmatpush1.bf16.msra.mxu0 0
    %7844 = vmatprep.subr.bf16.mxu0 0
    %7845 = vmatpush1.bf16.msra.mxu0 0
    %7846 = vmatprep.subr.bf16.mxu0 0
    %7847 = vmatpush1.bf16.msra.mxu0 0
    %7848 = vmatprep.subr.bf16.mxu0 0
    %7849 = vmatpush1.bf16.msra.mxu0 0
    %7850 = vmatprep.subr.bf16.mxu0 0
    %7851 = vmatpush1.bf16.msra.mxu0 0
    %7852 = vmatprep.subr.bf16.mxu0 0
    %7853 = vmatpush1.bf16.msra.mxu0 0
    %7854 = vmatprep.subr.bf16.mxu0 0
    %7855 = vmatpush1.bf16.msra.mxu0 0
    %7856 = vmatprep.subr.bf16.mxu0 0
    %7857 = vmatpush1.bf16.msra.mxu0 0
    %7858 = vmatprep.subr.bf16.mxu0 0
    %7859 = vmatpush1.bf16.msra.mxu0 0
    %7860 = vmatprep.subr.bf16.mxu0 0
    %7861 = vmatpush1.bf16.msra.mxu0 0
    %7862 = vmatprep.subr.bf16.mxu0 0
    %7863 = vmatpush1.bf16.msra.mxu0 0
    %7864 = vmatprep.subr.bf16.mxu0 0
    %7865 = vmatpush1.bf16.msra.mxu0 0
    %7866 = vmatprep.subr.bf16.mxu0 0
    %7867 = vmatpush1.bf16.msra.mxu0 0
    %7868 = vmatprep.subr.bf16.mxu0 0
    %7869 = vmatpush1.bf16.msra.mxu0 0
    %7870 = vmatprep.mubr.bf16.mxu0 0
    %7871 = vmatmul.mubr.bf16.gmra.mrb[0].mxu0 %v7759
    %v7872 = vpop.f32.mrb[0].mxu0
    %v7873 = vadd.f32 0.0, %v7872
    %v7874 = vpop.f32.mrb[0].mxu0
    %v7875 = vadd.f32 0.0, %v7874
    %v7876 = vpop.f32.mrb[0].mxu0
    %v7877 = vpop.f32.mrb[0].mxu0
    %7878 = vdwg.mxu0
    %7879 = vmatprep.subr.bf16.mxu0 %v7777
    %7880 = vmatpush1.bf16.msra.mxu0 %v7774
    %7881 = vmatprep.subr.bf16.mxu0 0
    %7882 = vmatpush1.bf16.msra.mxu0 0
    %7883 = vmatprep.subr.bf16.mxu0 0
    %7884 = vmatpush1.bf16.msra.mxu0 0
    %7885 = vmatprep.subr.bf16.mxu0 0
    %7886 = vmatpush1.bf16.msra.mxu0 0
    %7887 = vmatprep.subr.bf16.mxu0 0
    %7888 = vmatpush1.bf16.msra.mxu0 0
    %7889 = vmatprep.subr.bf16.mxu0 0
    %7890 = vmatpush1.bf16.msra.mxu0 0
    %7891 = vmatprep.subr.bf16.mxu0 0
    %7892 = vmatpush1.bf16.msra.mxu0 0
    %7893 = vmatprep.subr.bf16.mxu0 0
    %7894 = vmatpush1.bf16.msra.mxu0 0
    %7895 = vmatprep.subr.bf16.mxu0 0
    %7896 = vmatpush1.bf16.msra.mxu0 0
    %7897 = vmatprep.subr.bf16.mxu0 0
    %7898 = vmatpush1.bf16.msra.mxu0 0
    %7899 = vmatprep.subr.bf16.mxu0 0
    %7900 = vmatpush1.bf16.msra.mxu0 0
    %7901 = vmatprep.subr.bf16.mxu0 0
    %7902 = vmatpush1.bf16.msra.mxu0 0
    %7903 = vmatprep.subr.bf16.mxu0 0
    %7904 = vmatpush1.bf16.msra.mxu0 0
    %7905 = vmatprep.subr.bf16.mxu0 0
    %7906 = vmatpush1.bf16.msra.mxu0 0
    %7907 = vmatprep.subr.bf16.mxu0 0
    %7908 = vmatpush1.bf16.msra.mxu0 0
    %7909 = vmatprep.subr.bf16.mxu0 0
    %7910 = vmatpush1.bf16.msra.mxu0 0
    %7911 = vmatprep.mubr.bf16.mxu0 0
    %7912 = vmatmul.mubr.bf16.gmra.mrb[0].mxu0 %v7759
    %v7913 = vpop.f32.mrb[0].mxu0
    %v7914 = vadd.f32 0.0, %v7913
    %v7915 = vpop.f32.mrb[0].mxu0
    %v7916 = vadd.f32 0.0, %v7915
    %v7917 = vpop.f32.mrb[0].mxu0
    %v7918 = vpop.f32.mrb[0].mxu0
    %7919 = vdwg.mxu0
    %7920 = vmatprep.subr.bf16.mxu0 %v7783
    %7921 = vmatpush1.bf16.msra.mxu0 %v7780
    %7922 = vmatprep.subr.bf16.mxu0 0
    %7923 = vmatpush1.bf16.msra.mxu0 0
    %7924 = vmatprep.subr.bf16.mxu0 0
    %7925 = vmatpush1.bf16.msra.mxu0 0
    %7926 = vmatprep.subr.bf16.mxu0 0
    %7927 = vmatpush1.bf16.msra.mxu0 0
    %7928 = vmatprep.subr.bf16.mxu0 0
    %7929 = vmatpush1.bf16.msra.mxu0 0
    %7930 = vmatprep.subr.bf16.mxu0 0
    %7931 = vmatpush1.bf16.msra.mxu0 0
    %7932 = vmatprep.subr.bf16.mxu0 0
    %7933 = vmatpush1.bf16.msra.mxu0 0
    %7934 = vmatprep.subr.bf16.mxu0 0
    %7935 = vmatpush1.bf16.msra.mxu0 0
    %7936 = vmatprep.subr.bf16.mxu0 0
    %7937 = vmatpush1.bf16.msra.mxu0 0
    %7938 = vmatprep.subr.bf16.mxu0 0
    %7939 = vmatpush1.bf16.msra.mxu0 0
    %7940 = vmatprep.subr.bf16.mxu0 0
    %7941 = vmatpush1.bf16.msra.mxu0 0
    %7942 = vmatprep.subr.bf16.mxu0 0
    %7943 = vmatpush1.bf16.msra.mxu0 0
    %7944 = vmatprep.subr.bf16.mxu0 0
    %7945 = vmatpush1.bf16.msra.mxu0 0
    %7946 = vmatprep.subr.bf16.mxu0 0
    %7947 = vmatpush1.bf16.msra.mxu0 0
    %7948 = vmatprep.subr.bf16.mxu0 0
    %7949 = vmatpush1.bf16.msra.mxu0 0
    %7950 = vmatprep.subr.bf16.mxu0 0
    %7951 = vmatpush1.bf16.msra.mxu0 0
    %7952 = vmatprep.mubr.bf16.mxu0 0
    %7953 = vmatmul.mubr.bf16.gmra.mrb[0].mxu0 %v7759
    %v7954 = vpop.f32.mrb[0].mxu0
    %v7955 = vadd.f32 0.0, %v7954
    %v7956 = vpop.f32.mrb[0].mxu0
    %v7957 = vadd.f32 0.0, %v7956
    %v7958 = vpop.f32.mrb[0].mxu0
    %v7959 = vpop.f32.mrb[0].mxu0
    %7960 = vdwg.mxu0
    %7961 = vmatprep.subr.bf16.mxu0 %v7789
    %7962 = vmatpush1.bf16.msra.mxu0 %v7786
    %7963 = vmatprep.subr.bf16.mxu0 0
    %7964 = vmatpush1.bf16.msra.mxu0 0
    %7965 = vmatprep.subr.bf16.mxu0 0
    %7966 = vmatpush1.bf16.msra.mxu0 0
    %7967 = vmatprep.subr.bf16.mxu0 0
    %7968 = vmatpush1.bf16.msra.mxu0 0
    %7969 = vmatprep.subr.bf16.mxu0 0
    %7970 = vmatpush1.bf16.msra.mxu0 0
    %7971 = vmatprep.subr.bf16.mxu0 0
    %7972 = vmatpush1.bf16.msra.mxu0 0
    %7973 = vmatprep.subr.bf16.mxu0 0
    %7974 = vmatpush1.bf16.msra.mxu0 0
    %7975 = vmatprep.subr.bf16.mxu0 0
    %7976 = vmatpush1.bf16.msra.mxu0 0
    %7977 = vmatprep.subr.bf16.mxu0 0
    %7978 = vmatpush1.bf16.msra.mxu0 0
    %7979 = vmatprep.subr.bf16.mxu0 0
    %7980 = vmatpush1.bf16.msra.mxu0 0
    %7981 = vmatprep.subr.bf16.mxu0 0
    %7982 = vmatpush1.bf16.msra.mxu0 0
    %7983 = vmatprep.subr.bf16.mxu0 0
    %7984 = vmatpush1.bf16.msra.mxu0 0
    %7985 = vmatprep.subr.bf16.mxu0 0
    %7986 = vmatpush1.bf16.msra.mxu0 0
    %7987 = vmatprep.subr.bf16.mxu0 0
    %7988 = vmatpush1.bf16.msra.mxu0 0
    %7989 = vmatprep.subr.bf16.mxu0 0
    %7990 = vmatpush1.bf16.msra.mxu0 0
    %7991 = vmatprep.subr.bf16.mxu0 0
    %7992 = vmatpush1.bf16.msra.mxu0 0
    %7993 = vmatprep.mubr.bf16.mxu0 0
    %7994 = vmatmul.mubr.bf16.gmra.mrb[0].mxu0 %v7759
    %v7995 = vpop.f32.mrb[0].mxu0
    %v7996 = vadd.f32 0.0, %v7995
    %v7997 = vpop.f32.mrb[0].mxu0
    %v7998 = vadd.f32 0.0, %v7997
    %v7999 = vpop.f32.mrb[0].mxu0
    %v8000 = vpop.f32.mrb[0].mxu0
    %8001 = vdwg.mxu0
    %8002 = vmatprep.subr.bf16.mxu0 %v7795
    %8003 = vmatpush1.bf16.msra.mxu0 %v7792
    %8004 = vmatprep.subr.bf16.mxu0 0
    %8005 = vmatpush1.bf16.msra.mxu0 0
    %8006 = vmatprep.subr.bf16.mxu0 0
    %8007 = vmatpush1.bf16.msra.mxu0 0
    %8008 = vmatprep.subr.bf16.mxu0 0
    %8009 = vmatpush1.bf16.msra.mxu0 0
    %8010 = vmatprep.subr.bf16.mxu0 0
    %8011 = vmatpush1.bf16.msra.mxu0 0
    %8012 = vmatprep.subr.bf16.mxu0 0
    %8013 = vmatpush1.bf16.msra.mxu0 0
    %8014 = vmatprep.subr.bf16.mxu0 0
    %8015 = vmatpush1.bf16.msra.mxu0 0
    %8016 = vmatprep.subr.bf16.mxu0 0
    %8017 = vmatpush1.bf16.msra.mxu0 0
    %8018 = vmatprep.subr.bf16.mxu0 0
    %8019 = vmatpush1.bf16.msra.mxu0 0
    %8020 = vmatprep.subr.bf16.mxu0 0
    %8021 = vmatpush1.bf16.msra.mxu0 0
    %8022 = vmatprep.subr.bf16.mxu0 0
    %8023 = vmatpush1.bf16.msra.mxu0 0
    %8024 = vmatprep.subr.bf16.mxu0 0
    %8025 = vmatpush1.bf16.msra.mxu0 0
    %8026 = vmatprep.subr.bf16.mxu0 0
    %8027 = vmatpush1.bf16.msra.mxu0 0
    %8028 = vmatprep.subr.bf16.mxu0 0
    %8029 = vmatpush1.bf16.msra.mxu0 0
    %8030 = vmatprep.subr.bf16.mxu0 0
    %8031 = vmatpush1.bf16.msra.mxu0 0
    %8032 = vmatprep.subr.bf16.mxu0 0
    %8033 = vmatpush1.bf16.msra.mxu0 0
    %8034 = vmatprep.mubr.bf16.mxu0 0
    %8035 = vmatmul.mubr.bf16.gmra.mrb[0].mxu0 %v7759
    %v8036 = vpop.f32.mrb[0].mxu0
    %v8037 = vadd.f32 0.0, %v8036
    %v8038 = vpop.f32.mrb[0].mxu0
    %v8039 = vadd.f32 0.0, %v8038
    %v8040 = vpop.f32.mrb[0].mxu0
    %v8041 = vpop.f32.mrb[0].mxu0
    %8042 = vdwg.mxu0
    %v8043 = vadd.f32 %v7652, %v7832
    %v8044 = vadd.f32 %v7653, %v7834
    %v8045 = vadd.f32 %v7654, %v7873
    %v8046 = vadd.f32 %v7655, %v7875
    %v8047 = vadd.f32 %v7656, %v7914
    %v8048 = vadd.f32 %v7657, %v7916
    %v8049 = vadd.f32 %v7658, %v7955
    %v8050 = vadd.f32 %v7659, %v7957
    %v8051 = vadd.f32 %v7660, %v7996
    %v8052 = vadd.f32 %v7661, %v7998
    %v8053 = vadd.f32 %v7662, %v8037
    %v8054 = vadd.f32 %v7663, %v8039
    %s8055 = scalar_lea.vmem [#allocation3], 195
    %v8056 = vld [vmem:[%s8055] ss:$8 sm:$0xf]
    %v8057 = vld [vmem:[%s8055] ss:$8 sm:$0xf0]
    %v8058 = vor.u32 %v8056, %v8057
    %s8059 = scalar_lea.vmem [#allocation3], 259
    %v8060 = vld [vmem:[%s8059] ss:$8 sm:$0xf]
    %v8063 = vlaneseq
    %v8064 = vshrl.u32 %v8063, 7
    %v8065 = vsub.s32 0, %v8064
    %v8066 = vrot.slane %v8058, %v8065
    %v8067 = vlaneseq
    %v8068 = vshrl.u32 %v8067, 7
    %v8069 = vsub.s32 1, %v8068
    %v8070 = vrot.slane %v8058, %v8069
    %v8071 = vlaneseq
    %v8072 = vshrl.u32 %v8071, 7
    %v8073 = vsub.s32 2, %v8072
    %v8074 = vrot.slane %v8058, %v8073
    %v8075 = vlaneseq
    %v8076 = vshrl.u32 %v8075, 7
    %v8077 = vsub.s32 3, %v8076
    %v8078 = vrot.slane %v8058, %v8077
    %v8079 = vlaneseq
    %v8080 = vshrl.u32 %v8079, 7
    %v8081 = vsub.s32 4, %v8080
    %v8082 = vrot.slane %v8058, %v8081
    %v8083 = vlaneseq
    %v8084 = vshrl.u32 %v8083, 7
    %v8085 = vsub.s32 5, %v8084
    %v8086 = vrot.slane %v8058, %v8085
    %v8087 = vlaneseq
    %v8088 = vshrl.u32 %v8087, 7
    %v8089 = vsub.s32 6, %v8088
    %v8090 = vrot.slane %v8058, %v8089
    %v8091 = vlaneseq
    %v8092 = vshrl.u32 %v8091, 7
    %v8093 = vsub.s32 7, %v8092
    %v8094 = vrot.slane %v8058, %v8093
    %v8095 = vlaneseq
    %v8096 = vshrl.u32 %v8095, 7
    %v8097 = vsub.s32 0, %v8096
    %v8098 = vrot.slane %v8060, %v8097
    %v8099 = vlaneseq
    %v8100 = vshrl.u32 %v8099, 7
    %v8101 = vsub.s32 1, %v8100
    %v8102 = vrot.slane %v8060, %v8101
    %v8103 = vlaneseq
    %v8104 = vshrl.u32 %v8103, 7
    %v8105 = vsub.s32 2, %v8104
    %v8106 = vrot.slane %v8060, %v8105
    %v8107 = vlaneseq
    %v8108 = vshrl.u32 %v8107, 7
    %v8109 = vsub.s32 3, %v8108
    %v8110 = vrot.slane %v8060, %v8109
    %v8123 = vmul.f32 %v265, %v8066
    %v8124 = vmul.f32 %v264, %v8070
    %v8125 = vmul.f32 %v263, %v8074
    %v8126 = vmul.f32 %v262, %v8078
    %v8127 = vmul.f32 %v261, %v8082
    %v8128 = vmul.f32 %v260, %v8086
    %v8129 = vmul.f32 %v259, %v8090
    %v8130 = vmul.f32 %v258, %v8094
    %v8131 = vmul.f32 %v257, %v8098
    %v8132 = vmul.f32 %v256, %v8102
    %v8133 = vmul.f32 %v255, %v8106
    %v8134 = vmul.f32 %v266, %v8110
    %s8135 = scalar_lea.vmem %s1, 76
    %v8136 = vld [vmem:[%s8135] sm:$0xf]
    %v8137 = vpack.c.bf16 %v8123, %v8123
    %v8138 = vpack.c.bf16 %v8124, %v8124
    %v8139 = vpack.c.bf16 %v8125, %v8125
    %v8140 = vpack.c.bf16 %v8126, %v8126
    %v8141 = vpack.c.bf16 %v8127, %v8127
    %v8142 = vpack.c.bf16 %v8128, %v8128
    %v8143 = vpack.c.bf16 %v8129, %v8129
    %v8144 = vpack.c.bf16 %v8130, %v8130
    %v8145 = vpack.c.bf16 %v8131, %v8131
    %v8146 = vpack.c.bf16 %v8132, %v8132
    %v8147 = vpack.c.bf16 %v8133, %v8133
    %v8148 = vpack.c.bf16 %v8134, %v8134
    %v8150 = vsel %vm361, %v8136, 0
    %v8153 = vsel %vm365, %v8137, 0
    %v8156 = vsel %vm365, %v8138, 0
    %v8159 = vsel %vm365, %v8139, 0
    %v8162 = vsel %vm365, %v8140, 0
    %v8165 = vsel %vm365, %v8141, 0
    %v8168 = vsel %vm365, %v8142, 0
    %v8171 = vsel %vm365, %v8143, 0
    %v8174 = vsel %vm365, %v8144, 0
    %v8177 = vsel %vm365, %v8145, 0
    %v8180 = vsel %vm365, %v8146, 0
    %v8183 = vsel %vm365, %v8147, 0
    %v8186 = vsel %vm365, %v8148, 0
    %8188 = vmatprep.subr.bf16.mxu0 %v8156
    %8189 = vmatpush1.bf16.msra.mxu0 %v8153
    %8190 = vmatprep.subr.bf16.mxu0 0
    %8191 = vmatpush1.bf16.msra.mxu0 0
    %8192 = vmatprep.subr.bf16.mxu0 0
    %8193 = vmatpush1.bf16.msra.mxu0 0
    %8194 = vmatprep.subr.bf16.mxu0 0
    %8195 = vmatpush1.bf16.msra.mxu0 0
    %8196 = vmatprep.subr.bf16.mxu0 0
    %8197 = vmatpush1.bf16.msra.mxu0 0
    %8198 = vmatprep.subr.bf16.mxu0 0
    %8199 = vmatpush1.bf16.msra.mxu0 0
    %8200 = vmatprep.subr.bf16.mxu0 0
    %8201 = vmatpush1.bf16.msra.mxu0 0
    %8202 = vmatprep.subr.bf16.mxu0 0
    %8203 = vmatpush1.bf16.msra.mxu0 0
    %8204 = vmatprep.subr.bf16.mxu0 0
    %8205 = vmatpush1.bf16.msra.mxu0 0
    %8206 = vmatprep.subr.bf16.mxu0 0
    %8207 = vmatpush1.bf16.msra.mxu0 0
    %8208 = vmatprep.subr.bf16.mxu0 0
    %8209 = vmatpush1.bf16.msra.mxu0 0
    %8210 = vmatprep.subr.bf16.mxu0 0
    %8211 = vmatpush1.bf16.msra.mxu0 0
    %8212 = vmatprep.subr.bf16.mxu0 0
    %8213 = vmatpush1.bf16.msra.mxu0 0
    %8214 = vmatprep.subr.bf16.mxu0 0
    %8215 = vmatpush1.bf16.msra.mxu0 0
    %8216 = vmatprep.subr.bf16.mxu0 0
    %8217 = vmatpush1.bf16.msra.mxu0 0
    %8218 = vmatprep.subr.bf16.mxu0 0
    %8219 = vmatpush1.bf16.msra.mxu0 0
    %8220 = vmatprep.mubr.bf16.mxu0 0
    %8221 = vmatmul.mubr.bf16.gmra.mrb[0].mxu0 %v8150
    %v8222 = vpop.f32.mrb[0].mxu0
    %v8223 = vadd.f32 0.0, %v8222
    %v8224 = vpop.f32.mrb[0].mxu0
    %v8225 = vadd.f32 0.0, %v8224
    %v8226 = vpop.f32.mrb[0].mxu0
    %v8227 = vpop.f32.mrb[0].mxu0
    %8228 = vdwg.mxu0
    %8229 = vmatprep.subr.bf16.mxu0 %v8162
    %8230 = vmatpush1.bf16.msra.mxu0 %v8159
    %8231 = vmatprep.subr.bf16.mxu0 0
    %8232 = vmatpush1.bf16.msra.mxu0 0
    %8233 = vmatprep.subr.bf16.mxu0 0
    %8234 = vmatpush1.bf16.msra.mxu0 0
    %8235 = vmatprep.subr.bf16.mxu0 0
    %8236 = vmatpush1.bf16.msra.mxu0 0
    %8237 = vmatprep.subr.bf16.mxu0 0
    %8238 = vmatpush1.bf16.msra.mxu0 0
    %8239 = vmatprep.subr.bf16.mxu0 0
    %8240 = vmatpush1.bf16.msra.mxu0 0
    %8241 = vmatprep.subr.bf16.mxu0 0
    %8242 = vmatpush1.bf16.msra.mxu0 0
    %8243 = vmatprep.subr.bf16.mxu0 0
    %8244 = vmatpush1.bf16.msra.mxu0 0
    %8245 = vmatprep.subr.bf16.mxu0 0
    %8246 = vmatpush1.bf16.msra.mxu0 0
    %8247 = vmatprep.subr.bf16.mxu0 0
    %8248 = vmatpush1.bf16.msra.mxu0 0
    %8249 = vmatprep.subr.bf16.mxu0 0
    %8250 = vmatpush1.bf16.msra.mxu0 0
    %8251 = vmatprep.subr.bf16.mxu0 0
    %8252 = vmatpush1.bf16.msra.mxu0 0
    %8253 = vmatprep.subr.bf16.mxu0 0
    %8254 = vmatpush1.bf16.msra.mxu0 0
    %8255 = vmatprep.subr.bf16.mxu0 0
    %8256 = vmatpush1.bf16.msra.mxu0 0
    %8257 = vmatprep.subr.bf16.mxu0 0
    %8258 = vmatpush1.bf16.msra.mxu0 0
    %8259 = vmatprep.subr.bf16.mxu0 0
    %8260 = vmatpush1.bf16.msra.mxu0 0
    %8261 = vmatprep.mubr.bf16.mxu0 0
    %8262 = vmatmul.mubr.bf16.gmra.mrb[0].mxu0 %v8150
    %v8263 = vpop.f32.mrb[0].mxu0
    %v8264 = vadd.f32 0.0, %v8263
    %v8265 = vpop.f32.mrb[0].mxu0
    %v8266 = vadd.f32 0.0, %v8265
    %v8267 = vpop.f32.mrb[0].mxu0
    %v8268 = vpop.f32.mrb[0].mxu0
    %8269 = vdwg.mxu0
    %8270 = vmatprep.subr.bf16.mxu0 %v8168
    %8271 = vmatpush1.bf16.msra.mxu0 %v8165
    %8272 = vmatprep.subr.bf16.mxu0 0
    %8273 = vmatpush1.bf16.msra.mxu0 0
    %8274 = vmatprep.subr.bf16.mxu0 0
    %8275 = vmatpush1.bf16.msra.mxu0 0
    %8276 = vmatprep.subr.bf16.mxu0 0
    %8277 = vmatpush1.bf16.msra.mxu0 0
    %8278 = vmatprep.subr.bf16.mxu0 0
    %8279 = vmatpush1.bf16.msra.mxu0 0
    %8280 = vmatprep.subr.bf16.mxu0 0
    %8281 = vmatpush1.bf16.msra.mxu0 0
    %8282 = vmatprep.subr.bf16.mxu0 0
    %8283 = vmatpush1.bf16.msra.mxu0 0
    %8284 = vmatprep.subr.bf16.mxu0 0
    %8285 = vmatpush1.bf16.msra.mxu0 0
    %8286 = vmatprep.subr.bf16.mxu0 0
    %8287 = vmatpush1.bf16.msra.mxu0 0
    %8288 = vmatprep.subr.bf16.mxu0 0
    %8289 = vmatpush1.bf16.msra.mxu0 0
    %8290 = vmatprep.subr.bf16.mxu0 0
    %8291 = vmatpush1.bf16.msra.mxu0 0
    %8292 = vmatprep.subr.bf16.mxu0 0
    %8293 = vmatpush1.bf16.msra.mxu0 0
    %8294 = vmatprep.subr.bf16.mxu0 0
    %8295 = vmatpush1.bf16.msra.mxu0 0
    %8296 = vmatprep.subr.bf16.mxu0 0
    %8297 = vmatpush1.bf16.msra.mxu0 0
    %8298 = vmatprep.subr.bf16.mxu0 0
    %8299 = vmatpush1.bf16.msra.mxu0 0
    %8300 = vmatprep.subr.bf16.mxu0 0
    %8301 = vmatpush1.bf16.msra.mxu0 0
    %8302 = vmatprep.mubr.bf16.mxu0 0
    %8303 = vmatmul.mubr.bf16.gmra.mrb[0].mxu0 %v8150
    %v8304 = vpop.f32.mrb[0].mxu0
    %v8305 = vadd.f32 0.0, %v8304
    %v8306 = vpop.f32.mrb[0].mxu0
    %v8307 = vadd.f32 0.0, %v8306
    %v8308 = vpop.f32.mrb[0].mxu0
    %v8309 = vpop.f32.mrb[0].mxu0
    %8310 = vdwg.mxu0
    %8311 = vmatprep.subr.bf16.mxu0 %v8174
    %8312 = vmatpush1.bf16.msra.mxu0 %v8171
    %8313 = vmatprep.subr.bf16.mxu0 0
    %8314 = vmatpush1.bf16.msra.mxu0 0
    %8315 = vmatprep.subr.bf16.mxu0 0
    %8316 = vmatpush1.bf16.msra.mxu0 0
    %8317 = vmatprep.subr.bf16.mxu0 0
    %8318 = vmatpush1.bf16.msra.mxu0 0
    %8319 = vmatprep.subr.bf16.mxu0 0
    %8320 = vmatpush1.bf16.msra.mxu0 0
    %8321 = vmatprep.subr.bf16.mxu0 0
    %8322 = vmatpush1.bf16.msra.mxu0 0
    %8323 = vmatprep.subr.bf16.mxu0 0
    %8324 = vmatpush1.bf16.msra.mxu0 0
    %8325 = vmatprep.subr.bf16.mxu0 0
    %8326 = vmatpush1.bf16.msra.mxu0 0
    %8327 = vmatprep.subr.bf16.mxu0 0
    %8328 = vmatpush1.bf16.msra.mxu0 0
    %8329 = vmatprep.subr.bf16.mxu0 0
    %8330 = vmatpush1.bf16.msra.mxu0 0
    %8331 = vmatprep.subr.bf16.mxu0 0
    %8332 = vmatpush1.bf16.msra.mxu0 0
    %8333 = vmatprep.subr.bf16.mxu0 0
    %8334 = vmatpush1.bf16.msra.mxu0 0
    %8335 = vmatprep.subr.bf16.mxu0 0
    %8336 = vmatpush1.bf16.msra.mxu0 0
    %8337 = vmatprep.subr.bf16.mxu0 0
    %8338 = vmatpush1.bf16.msra.mxu0 0
    %8339 = vmatprep.subr.bf16.mxu0 0
    %8340 = vmatpush1.bf16.msra.mxu0 0
    %8341 = vmatprep.subr.bf16.mxu0 0
    %8342 = vmatpush1.bf16.msra.mxu0 0
    %8343 = vmatprep.mubr.bf16.mxu0 0
    %8344 = vmatmul.mubr.bf16.gmra.mrb[0].mxu0 %v8150
    %v8345 = vpop.f32.mrb[0].mxu0
    %v8346 = vadd.f32 0.0, %v8345
    %v8347 = vpop.f32.mrb[0].mxu0
    %v8348 = vadd.f32 0.0, %v8347
    %v8349 = vpop.f32.mrb[0].mxu0
    %v8350 = vpop.f32.mrb[0].mxu0
    %8351 = vdwg.mxu0
    %8352 = vmatprep.subr.bf16.mxu0 %v8180
    %8353 = vmatpush1.bf16.msra.mxu0 %v8177
    %8354 = vmatprep.subr.bf16.mxu0 0
    %8355 = vmatpush1.bf16.msra.mxu0 0
    %8356 = vmatprep.subr.bf16.mxu0 0
    %8357 = vmatpush1.bf16.msra.mxu0 0
    %8358 = vmatprep.subr.bf16.mxu0 0
    %8359 = vmatpush1.bf16.msra.mxu0 0
    %8360 = vmatprep.subr.bf16.mxu0 0
    %8361 = vmatpush1.bf16.msra.mxu0 0
    %8362 = vmatprep.subr.bf16.mxu0 0
    %8363 = vmatpush1.bf16.msra.mxu0 0
    %8364 = vmatprep.subr.bf16.mxu0 0
    %8365 = vmatpush1.bf16.msra.mxu0 0
    %8366 = vmatprep.subr.bf16.mxu0 0
    %8367 = vmatpush1.bf16.msra.mxu0 0
    %8368 = vmatprep.subr.bf16.mxu0 0
    %8369 = vmatpush1.bf16.msra.mxu0 0
    %8370 = vmatprep.subr.bf16.mxu0 0
    %8371 = vmatpush1.bf16.msra.mxu0 0
    %8372 = vmatprep.subr.bf16.mxu0 0
    %8373 = vmatpush1.bf16.msra.mxu0 0
    %8374 = vmatprep.subr.bf16.mxu0 0
    %8375 = vmatpush1.bf16.msra.mxu0 0
    %8376 = vmatprep.subr.bf16.mxu0 0
    %8377 = vmatpush1.bf16.msra.mxu0 0
    %8378 = vmatprep.subr.bf16.mxu0 0
    %8379 = vmatpush1.bf16.msra.mxu0 0
    %8380 = vmatprep.subr.bf16.mxu0 0
    %8381 = vmatpush1.bf16.msra.mxu0 0
    %8382 = vmatprep.subr.bf16.mxu0 0
    %8383 = vmatpush1.bf16.msra.mxu0 0
    %8384 = vmatprep.mubr.bf16.mxu0 0
    %8385 = vmatmul.mubr.bf16.gmra.mrb[0].mxu0 %v8150
    %v8386 = vpop.f32.mrb[0].mxu0
    %v8387 = vadd.f32 0.0, %v8386
    %v8388 = vpop.f32.mrb[0].mxu0
    %v8389 = vadd.f32 0.0, %v8388
    %v8390 = vpop.f32.mrb[0].mxu0
    %v8391 = vpop.f32.mrb[0].mxu0
    %8392 = vdwg.mxu0
    %8393 = vmatprep.subr.bf16.mxu0 %v8186
    %8394 = vmatpush1.bf16.msra.mxu0 %v8183
    %8395 = vmatprep.subr.bf16.mxu0 0
    %8396 = vmatpush1.bf16.msra.mxu0 0
    %8397 = vmatprep.subr.bf16.mxu0 0
    %8398 = vmatpush1.bf16.msra.mxu0 0
    %8399 = vmatprep.subr.bf16.mxu0 0
    %8400 = vmatpush1.bf16.msra.mxu0 0
    %8401 = vmatprep.subr.bf16.mxu0 0
    %8402 = vmatpush1.bf16.msra.mxu0 0
    %8403 = vmatprep.subr.bf16.mxu0 0
    %8404 = vmatpush1.bf16.msra.mxu0 0
    %8405 = vmatprep.subr.bf16.mxu0 0
    %8406 = vmatpush1.bf16.msra.mxu0 0
    %8407 = vmatprep.subr.bf16.mxu0 0
    %8408 = vmatpush1.bf16.msra.mxu0 0
    %8409 = vmatprep.subr.bf16.mxu0 0
    %8410 = vmatpush1.bf16.msra.mxu0 0
    %8411 = vmatprep.subr.bf16.mxu0 0
    %8412 = vmatpush1.bf16.msra.mxu0 0
    %8413 = vmatprep.subr.bf16.mxu0 0
    %8414 = vmatpush1.bf16.msra.mxu0 0
    %8415 = vmatprep.subr.bf16.mxu0 0
    %8416 = vmatpush1.bf16.msra.mxu0 0
    %8417 = vmatprep.subr.bf16.mxu0 0
    %8418 = vmatpush1.bf16.msra.mxu0 0
    %8419 = vmatprep.subr.bf16.mxu0 0
    %8420 = vmatpush1.bf16.msra.mxu0 0
    %8421 = vmatprep.subr.bf16.mxu0 0
    %8422 = vmatpush1.bf16.msra.mxu0 0
    %8423 = vmatprep.subr.bf16.mxu0 0
    %8424 = vmatpush1.bf16.msra.mxu0 0
    %8425 = vmatprep.mubr.bf16.mxu0 0
    %8426 = vmatmul.mubr.bf16.gmra.mrb[0].mxu0 %v8150
    %v8427 = vpop.f32.mrb[0].mxu0
    %v8428 = vadd.f32 0.0, %v8427
    %v8429 = vpop.f32.mrb[0].mxu0
    %v8430 = vadd.f32 0.0, %v8429
    %v8431 = vpop.f32.mrb[0].mxu0
    %v8432 = vpop.f32.mrb[0].mxu0
    %8433 = vdwg.mxu0
    %v8434 = vadd.f32 %v8043, %v8223
    %v8435 = vadd.f32 %v8044, %v8225
    %v8436 = vadd.f32 %v8045, %v8264
    %v8437 = vadd.f32 %v8046, %v8266
    %v8438 = vadd.f32 %v8047, %v8305
    %v8439 = vadd.f32 %v8048, %v8307
    %v8440 = vadd.f32 %v8049, %v8346
    %v8441 = vadd.f32 %v8050, %v8348
    %v8442 = vadd.f32 %v8051, %v8387
    %v8443 = vadd.f32 %v8052, %v8389
    %v8444 = vadd.f32 %v8053, %v8428
    %v8445 = vadd.f32 %v8054, %v8430
    %s8446 = scalar_lea.vmem [#allocation3], 196
    %v8447 = vld [vmem:[%s8446] ss:$8 sm:$0xf]
    %v8448 = vld [vmem:[%s8446] ss:$8 sm:$0xf0]
    %v8449 = vor.u32 %v8447, %v8448
    %s8450 = scalar_lea.vmem [#allocation3], 260
    %v8451 = vld [vmem:[%s8450] ss:$8 sm:$0xf]
    %v8454 = vlaneseq
    %v8455 = vshrl.u32 %v8454, 7
    %v8456 = vsub.s32 0, %v8455
    %v8457 = vrot.slane %v8449, %v8456
    %v8458 = vlaneseq
    %v8459 = vshrl.u32 %v8458, 7
    %v8460 = vsub.s32 1, %v8459
    %v8461 = vrot.slane %v8449, %v8460
    %v8462 = vlaneseq
    %v8463 = vshrl.u32 %v8462, 7
    %v8464 = vsub.s32 2, %v8463
    %v8465 = vrot.slane %v8449, %v8464
    %v8466 = vlaneseq
    %v8467 = vshrl.u32 %v8466, 7
    %v8468 = vsub.s32 3, %v8467
    %v8469 = vrot.slane %v8449, %v8468
    %v8470 = vlaneseq
    %v8471 = vshrl.u32 %v8470, 7
    %v8472 = vsub.s32 4, %v8471
    %v8473 = vrot.slane %v8449, %v8472
    %v8474 = vlaneseq
    %v8475 = vshrl.u32 %v8474, 7
    %v8476 = vsub.s32 5, %v8475
    %v8477 = vrot.slane %v8449, %v8476
    %v8478 = vlaneseq
    %v8479 = vshrl.u32 %v8478, 7
    %v8480 = vsub.s32 6, %v8479
    %v8481 = vrot.slane %v8449, %v8480
    %v8482 = vlaneseq
    %v8483 = vshrl.u32 %v8482, 7
    %v8484 = vsub.s32 7, %v8483
    %v8485 = vrot.slane %v8449, %v8484
    %v8486 = vlaneseq
    %v8487 = vshrl.u32 %v8486, 7
    %v8488 = vsub.s32 0, %v8487
    %v8489 = vrot.slane %v8451, %v8488
    %v8490 = vlaneseq
    %v8491 = vshrl.u32 %v8490, 7
    %v8492 = vsub.s32 1, %v8491
    %v8493 = vrot.slane %v8451, %v8492
    %v8494 = vlaneseq
    %v8495 = vshrl.u32 %v8494, 7
    %v8496 = vsub.s32 2, %v8495
    %v8497 = vrot.slane %v8451, %v8496
    %v8498 = vlaneseq
    %v8499 = vshrl.u32 %v8498, 7
    %v8500 = vsub.s32 3, %v8499
    %v8501 = vrot.slane %v8451, %v8500
    %v8514 = vmul.f32 %v968, %v8457
    %v8515 = vmul.f32 %v967, %v8461
    %v8516 = vmul.f32 %v966, %v8465
    %v8517 = vmul.f32 %v965, %v8469
    %v8518 = vmul.f32 %v964, %v8473
    %v8519 = vmul.f32 %v963, %v8477
    %v8520 = vmul.f32 %v962, %v8481
    %v8521 = vmul.f32 %v961, %v8485
    %v8522 = vmul.f32 %v960, %v8489
    %v8523 = vmul.f32 %v959, %v8493
    %v8524 = vmul.f32 %v958, %v8497
    %v8525 = vmul.f32 %v969, %v8501
    %s8526 = scalar_lea.vmem %s1, 80
    %v8527 = vld [vmem:[%s8526] sm:$0xf]
    %v8528 = vpack.c.bf16 %v8514, %v8514
    %v8529 = vpack.c.bf16 %v8515, %v8515
    %v8530 = vpack.c.bf16 %v8516, %v8516
    %v8531 = vpack.c.bf16 %v8517, %v8517
    %v8532 = vpack.c.bf16 %v8518, %v8518
    %v8533 = vpack.c.bf16 %v8519, %v8519
    %v8534 = vpack.c.bf16 %v8520, %v8520
    %v8535 = vpack.c.bf16 %v8521, %v8521
    %v8536 = vpack.c.bf16 %v8522, %v8522
    %v8537 = vpack.c.bf16 %v8523, %v8523
    %v8538 = vpack.c.bf16 %v8524, %v8524
    %v8539 = vpack.c.bf16 %v8525, %v8525
    %v8541 = vsel %vm361, %v8527, 0
    %v8544 = vsel %vm365, %v8528, 0
    %v8547 = vsel %vm365, %v8529, 0
    %v8550 = vsel %vm365, %v8530, 0
    %v8553 = vsel %vm365, %v8531, 0
    %v8556 = vsel %vm365, %v8532, 0
    %v8559 = vsel %vm365, %v8533, 0
    %v8562 = vsel %vm365, %v8534, 0
    %v8565 = vsel %vm365, %v8535, 0
    %v8568 = vsel %vm365, %v8536, 0
    %v8571 = vsel %vm365, %v8537, 0
    %v8574 = vsel %vm365, %v8538, 0
    %v8577 = vsel %vm365, %v8539, 0
    %8579 = vmatprep.subr.bf16.mxu0 %v8547
    %8580 = vmatpush1.bf16.msra.mxu0 %v8544
    %8581 = vmatprep.subr.bf16.mxu0 0
    %8582 = vmatpush1.bf16.msra.mxu0 0
    %8583 = vmatprep.subr.bf16.mxu0 0
    %8584 = vmatpush1.bf16.msra.mxu0 0
    %8585 = vmatprep.subr.bf16.mxu0 0
    %8586 = vmatpush1.bf16.msra.mxu0 0
    %8587 = vmatprep.subr.bf16.mxu0 0
    %8588 = vmatpush1.bf16.msra.mxu0 0
    %8589 = vmatprep.subr.bf16.mxu0 0
    %8590 = vmatpush1.bf16.msra.mxu0 0
    %8591 = vmatprep.subr.bf16.mxu0 0
    %8592 = vmatpush1.bf16.msra.mxu0 0
    %8593 = vmatprep.subr.bf16.mxu0 0
    %8594 = vmatpush1.bf16.msra.mxu0 0
    %8595 = vmatprep.subr.bf16.mxu0 0
    %8596 = vmatpush1.bf16.msra.mxu0 0
    %8597 = vmatprep.subr.bf16.mxu0 0
    %8598 = vmatpush1.bf16.msra.mxu0 0
    %8599 = vmatprep.subr.bf16.mxu0 0
    %8600 = vmatpush1.bf16.msra.mxu0 0
    %8601 = vmatprep.subr.bf16.mxu0 0
    %8602 = vmatpush1.bf16.msra.mxu0 0
    %8603 = vmatprep.subr.bf16.mxu0 0
    %8604 = vmatpush1.bf16.msra.mxu0 0
    %8605 = vmatprep.subr.bf16.mxu0 0
    %8606 = vmatpush1.bf16.msra.mxu0 0
    %8607 = vmatprep.subr.bf16.mxu0 0
    %8608 = vmatpush1.bf16.msra.mxu0 0
    %8609 = vmatprep.subr.bf16.mxu0 0
    %8610 = vmatpush1.bf16.msra.mxu0 0
    %8611 = vmatprep.mubr.bf16.mxu0 0
    %8612 = vmatmul.mubr.bf16.gmra.mrb[0].mxu0 %v8541
    %v8613 = vpop.f32.mrb[0].mxu0
    %v8614 = vadd.f32 0.0, %v8613
    %v8615 = vpop.f32.mrb[0].mxu0
    %v8616 = vadd.f32 0.0, %v8615
    %v8617 = vpop.f32.mrb[0].mxu0
    %v8618 = vpop.f32.mrb[0].mxu0
    %8619 = vdwg.mxu0
    %8620 = vmatprep.subr.bf16.mxu0 %v8553
    %8621 = vmatpush1.bf16.msra.mxu0 %v8550
    %8622 = vmatprep.subr.bf16.mxu0 0
    %8623 = vmatpush1.bf16.msra.mxu0 0
    %8624 = vmatprep.subr.bf16.mxu0 0
    %8625 = vmatpush1.bf16.msra.mxu0 0
    %8626 = vmatprep.subr.bf16.mxu0 0
    %8627 = vmatpush1.bf16.msra.mxu0 0
    %8628 = vmatprep.subr.bf16.mxu0 0
    %8629 = vmatpush1.bf16.msra.mxu0 0
    %8630 = vmatprep.subr.bf16.mxu0 0
    %8631 = vmatpush1.bf16.msra.mxu0 0
    %8632 = vmatprep.subr.bf16.mxu0 0
    %8633 = vmatpush1.bf16.msra.mxu0 0
    %8634 = vmatprep.subr.bf16.mxu0 0
    %8635 = vmatpush1.bf16.msra.mxu0 0
    %8636 = vmatprep.subr.bf16.mxu0 0
    %8637 = vmatpush1.bf16.msra.mxu0 0
    %8638 = vmatprep.subr.bf16.mxu0 0
    %8639 = vmatpush1.bf16.msra.mxu0 0
    %8640 = vmatprep.subr.bf16.mxu0 0
    %8641 = vmatpush1.bf16.msra.mxu0 0
    %8642 = vmatprep.subr.bf16.mxu0 0
    %8643 = vmatpush1.bf16.msra.mxu0 0
    %8644 = vmatprep.subr.bf16.mxu0 0
    %8645 = vmatpush1.bf16.msra.mxu0 0
    %8646 = vmatprep.subr.bf16.mxu0 0
    %8647 = vmatpush1.bf16.msra.mxu0 0
    %8648 = vmatprep.subr.bf16.mxu0 0
    %8649 = vmatpush1.bf16.msra.mxu0 0
    %8650 = vmatprep.subr.bf16.mxu0 0
    %8651 = vmatpush1.bf16.msra.mxu0 0
    %8652 = vmatprep.mubr.bf16.mxu0 0
    %8653 = vmatmul.mubr.bf16.gmra.mrb[0].mxu0 %v8541
    %v8654 = vpop.f32.mrb[0].mxu0
    %v8655 = vadd.f32 0.0, %v8654
    %v8656 = vpop.f32.mrb[0].mxu0
    %v8657 = vadd.f32 0.0, %v8656
    %v8658 = vpop.f32.mrb[0].mxu0
    %v8659 = vpop.f32.mrb[0].mxu0
    %8660 = vdwg.mxu0
    %8661 = vmatprep.subr.bf16.mxu0 %v8559
    %8662 = vmatpush1.bf16.msra.mxu0 %v8556
    %8663 = vmatprep.subr.bf16.mxu0 0
    %8664 = vmatpush1.bf16.msra.mxu0 0
    %8665 = vmatprep.subr.bf16.mxu0 0
    %8666 = vmatpush1.bf16.msra.mxu0 0
    %8667 = vmatprep.subr.bf16.mxu0 0
    %8668 = vmatpush1.bf16.msra.mxu0 0
    %8669 = vmatprep.subr.bf16.mxu0 0
    %8670 = vmatpush1.bf16.msra.mxu0 0
    %8671 = vmatprep.subr.bf16.mxu0 0
    %8672 = vmatpush1.bf16.msra.mxu0 0
    %8673 = vmatprep.subr.bf16.mxu0 0
    %8674 = vmatpush1.bf16.msra.mxu0 0
    %8675 = vmatprep.subr.bf16.mxu0 0
    %8676 = vmatpush1.bf16.msra.mxu0 0
    %8677 = vmatprep.subr.bf16.mxu0 0
    %8678 = vmatpush1.bf16.msra.mxu0 0
    %8679 = vmatprep.subr.bf16.mxu0 0
    %8680 = vmatpush1.bf16.msra.mxu0 0
    %8681 = vmatprep.subr.bf16.mxu0 0
    %8682 = vmatpush1.bf16.msra.mxu0 0
    %8683 = vmatprep.subr.bf16.mxu0 0
    %8684 = vmatpush1.bf16.msra.mxu0 0
    %8685 = vmatprep.subr.bf16.mxu0 0
    %8686 = vmatpush1.bf16.msra.mxu0 0
    %8687 = vmatprep.subr.bf16.mxu0 0
    %8688 = vmatpush1.bf16.msra.mxu0 0
    %8689 = vmatprep.subr.bf16.mxu0 0
    %8690 = vmatpush1.bf16.msra.mxu0 0
    %8691 = vmatprep.subr.bf16.mxu0 0
    %8692 = vmatpush1.bf16.msra.mxu0 0
    %8693 = vmatprep.mubr.bf16.mxu0 0
    %8694 = vmatmul.mubr.bf16.gmra.mrb[0].mxu0 %v8541
    %v8695 = vpop.f32.mrb[0].mxu0
    %v8696 = vadd.f32 0.0, %v8695
    %v8697 = vpop.f32.mrb[0].mxu0
    %v8698 = vadd.f32 0.0, %v8697
    %v8699 = vpop.f32.mrb[0].mxu0
    %v8700 = vpop.f32.mrb[0].mxu0
    %8701 = vdwg.mxu0
    %8702 = vmatprep.subr.bf16.mxu0 %v8565
    %8703 = vmatpush1.bf16.msra.mxu0 %v8562
    %8704 = vmatprep.subr.bf16.mxu0 0
    %8705 = vmatpush1.bf16.msra.mxu0 0
    %8706 = vmatprep.subr.bf16.mxu0 0
    %8707 = vmatpush1.bf16.msra.mxu0 0
    %8708 = vmatprep.subr.bf16.mxu0 0
    %8709 = vmatpush1.bf16.msra.mxu0 0
    %8710 = vmatprep.subr.bf16.mxu0 0
    %8711 = vmatpush1.bf16.msra.mxu0 0
    %8712 = vmatprep.subr.bf16.mxu0 0
    %8713 = vmatpush1.bf16.msra.mxu0 0
    %8714 = vmatprep.subr.bf16.mxu0 0
    %8715 = vmatpush1.bf16.msra.mxu0 0
    %8716 = vmatprep.subr.bf16.mxu0 0
    %8717 = vmatpush1.bf16.msra.mxu0 0
    %8718 = vmatprep.subr.bf16.mxu0 0
    %8719 = vmatpush1.bf16.msra.mxu0 0
    %8720 = vmatprep.subr.bf16.mxu0 0
    %8721 = vmatpush1.bf16.msra.mxu0 0
    %8722 = vmatprep.subr.bf16.mxu0 0
    %8723 = vmatpush1.bf16.msra.mxu0 0
    %8724 = vmatprep.subr.bf16.mxu0 0
    %8725 = vmatpush1.bf16.msra.mxu0 0
    %8726 = vmatprep.subr.bf16.mxu0 0
    %8727 = vmatpush1.bf16.msra.mxu0 0
    %8728 = vmatprep.subr.bf16.mxu0 0
    %8729 = vmatpush1.bf16.msra.mxu0 0
    %8730 = vmatprep.subr.bf16.mxu0 0
    %8731 = vmatpush1.bf16.msra.mxu0 0
    %8732 = vmatprep.subr.bf16.mxu0 0
    %8733 = vmatpush1.bf16.msra.mxu0 0
    %8734 = vmatprep.mubr.bf16.mxu0 0
    %8735 = vmatmul.mubr.bf16.gmra.mrb[0].mxu0 %v8541
    %v8736 = vpop.f32.mrb[0].mxu0
    %v8737 = vadd.f32 0.0, %v8736
    %v8738 = vpop.f32.mrb[0].mxu0
    %v8739 = vadd.f32 0.0, %v8738
    %v8740 = vpop.f32.mrb[0].mxu0
    %v8741 = vpop.f32.mrb[0].mxu0
    %8742 = vdwg.mxu0
    %8743 = vmatprep.subr.bf16.mxu0 %v8571
    %8744 = vmatpush1.bf16.msra.mxu0 %v8568
    %8745 = vmatprep.subr.bf16.mxu0 0
    %8746 = vmatpush1.bf16.msra.mxu0 0
    %8747 = vmatprep.subr.bf16.mxu0 0
    %8748 = vmatpush1.bf16.msra.mxu0 0
    %8749 = vmatprep.subr.bf16.mxu0 0
    %8750 = vmatpush1.bf16.msra.mxu0 0
    %8751 = vmatprep.subr.bf16.mxu0 0
    %8752 = vmatpush1.bf16.msra.mxu0 0
    %8753 = vmatprep.subr.bf16.mxu0 0
    %8754 = vmatpush1.bf16.msra.mxu0 0
    %8755 = vmatprep.subr.bf16.mxu0 0
    %8756 = vmatpush1.bf16.msra.mxu0 0
    %8757 = vmatprep.subr.bf16.mxu0 0
    %8758 = vmatpush1.bf16.msra.mxu0 0
    %8759 = vmatprep.subr.bf16.mxu0 0
    %8760 = vmatpush1.bf16.msra.mxu0 0
    %8761 = vmatprep.subr.bf16.mxu0 0
    %8762 = vmatpush1.bf16.msra.mxu0 0
    %8763 = vmatprep.subr.bf16.mxu0 0
    %8764 = vmatpush1.bf16.msra.mxu0 0
    %8765 = vmatprep.subr.bf16.mxu0 0
    %8766 = vmatpush1.bf16.msra.mxu0 0
    %8767 = vmatprep.subr.bf16.mxu0 0
    %8768 = vmatpush1.bf16.msra.mxu0 0
    %8769 = vmatprep.subr.bf16.mxu0 0
    %8770 = vmatpush1.bf16.msra.mxu0 0
    %8771 = vmatprep.subr.bf16.mxu0 0
    %8772 = vmatpush1.bf16.msra.mxu0 0
    %8773 = vmatprep.subr.bf16.mxu0 0
    %8774 = vmatpush1.bf16.msra.mxu0 0
    %8775 = vmatprep.mubr.bf16.mxu0 0
    %8776 = vmatmul.mubr.bf16.gmra.mrb[0].mxu0 %v8541
    %v8777 = vpop.f32.mrb[0].mxu0
    %v8778 = vadd.f32 0.0, %v8777
    %v8779 = vpop.f32.mrb[0].mxu0
    %v8780 = vadd.f32 0.0, %v8779
    %v8781 = vpop.f32.mrb[0].mxu0
    %v8782 = vpop.f32.mrb[0].mxu0
    %8783 = vdwg.mxu0
    %8784 = vmatprep.subr.bf16.mxu0 %v8577
    %8785 = vmatpush1.bf16.msra.mxu0 %v8574
    %8786 = vmatprep.subr.bf16.mxu0 0
    %8787 = vmatpush1.bf16.msra.mxu0 0
    %8788 = vmatprep.subr.bf16.mxu0 0
    %8789 = vmatpush1.bf16.msra.mxu0 0
    %8790 = vmatprep.subr.bf16.mxu0 0
    %8791 = vmatpush1.bf16.msra.mxu0 0
    %8792 = vmatprep.subr.bf16.mxu0 0
    %8793 = vmatpush1.bf16.msra.mxu0 0
    %8794 = vmatprep.subr.bf16.mxu0 0
    %8795 = vmatpush1.bf16.msra.mxu0 0
    %8796 = vmatprep.subr.bf16.mxu0 0
    %8797 = vmatpush1.bf16.msra.mxu0 0
    %8798 = vmatprep.subr.bf16.mxu0 0
    %8799 = vmatpush1.bf16.msra.mxu0 0
    %8800 = vmatprep.subr.bf16.mxu0 0
    %8801 = vmatpush1.bf16.msra.mxu0 0
    %8802 = vmatprep.subr.bf16.mxu0 0
    %8803 = vmatpush1.bf16.msra.mxu0 0
    %8804 = vmatprep.subr.bf16.mxu0 0
    %8805 = vmatpush1.bf16.msra.mxu0 0
    %8806 = vmatprep.subr.bf16.mxu0 0
    %8807 = vmatpush1.bf16.msra.mxu0 0
    %8808 = vmatprep.subr.bf16.mxu0 0
    %8809 = vmatpush1.bf16.msra.mxu0 0
    %8810 = vmatprep.subr.bf16.mxu0 0
    %8811 = vmatpush1.bf16.msra.mxu0 0
    %8812 = vmatprep.subr.bf16.mxu0 0
    %8813 = vmatpush1.bf16.msra.mxu0 0
    %8814 = vmatprep.subr.bf16.mxu0 0
    %8815 = vmatpush1.bf16.msra.mxu0 0
    %8816 = vmatprep.mubr.bf16.mxu0 0
    %8817 = vmatmul.mubr.bf16.gmra.mrb[0].mxu0 %v8541
    %v8818 = vpop.f32.mrb[0].mxu0
    %v8819 = vadd.f32 0.0, %v8818
    %v8820 = vpop.f32.mrb[0].mxu0
    %v8821 = vadd.f32 0.0, %v8820
    %v8822 = vpop.f32.mrb[0].mxu0
    %v8823 = vpop.f32.mrb[0].mxu0
    %8824 = vdwg.mxu0
    %v8825 = vadd.f32 %v8434, %v8614
    %v8826 = vadd.f32 %v8435, %v8616
    %v8827 = vadd.f32 %v8436, %v8655
    %v8828 = vadd.f32 %v8437, %v8657
    %v8829 = vadd.f32 %v8438, %v8696
    %v8830 = vadd.f32 %v8439, %v8698
    %v8831 = vadd.f32 %v8440, %v8737
    %v8832 = vadd.f32 %v8441, %v8739
    %v8833 = vadd.f32 %v8442, %v8778
    %v8834 = vadd.f32 %v8443, %v8780
    %v8835 = vadd.f32 %v8444, %v8819
    %v8836 = vadd.f32 %v8445, %v8821
    %s8837 = scalar_lea.vmem [#allocation3], 197
    %v8838 = vld [vmem:[%s8837] ss:$8 sm:$0xf]
    %v8839 = vld [vmem:[%s8837] ss:$8 sm:$0xf0]
    %v8840 = vor.u32 %v8838, %v8839
    %s8841 = scalar_lea.vmem [#allocation3], 261
    %v8842 = vld [vmem:[%s8841] ss:$8 sm:$0xf]
    %v8845 = vlaneseq
    %v8846 = vshrl.u32 %v8845, 7
    %v8847 = vsub.s32 0, %v8846
    %v8848 = vrot.slane %v8840, %v8847
    %v8849 = vlaneseq
    %v8850 = vshrl.u32 %v8849, 7
    %v8851 = vsub.s32 1, %v8850
    %v8852 = vrot.slane %v8840, %v8851
    %v8853 = vlaneseq
    %v8854 = vshrl.u32 %v8853, 7
    %v8855 = vsub.s32 2, %v8854
    %v8856 = vrot.slane %v8840, %v8855
    %v8857 = vlaneseq
    %v8858 = vshrl.u32 %v8857, 7
    %v8859 = vsub.s32 3, %v8858
    %v8860 = vrot.slane %v8840, %v8859
    %v8861 = vlaneseq
    %v8862 = vshrl.u32 %v8861, 7
    %v8863 = vsub.s32 4, %v8862
    %v8864 = vrot.slane %v8840, %v8863
    %v8865 = vlaneseq
    %v8866 = vshrl.u32 %v8865, 7
    %v8867 = vsub.s32 5, %v8866
    %v8868 = vrot.slane %v8840, %v8867
    %v8869 = vlaneseq
    %v8870 = vshrl.u32 %v8869, 7
    %v8871 = vsub.s32 6, %v8870
    %v8872 = vrot.slane %v8840, %v8871
    %v8873 = vlaneseq
    %v8874 = vshrl.u32 %v8873, 7
    %v8875 = vsub.s32 7, %v8874
    %v8876 = vrot.slane %v8840, %v8875
    %v8877 = vlaneseq
    %v8878 = vshrl.u32 %v8877, 7
    %v8879 = vsub.s32 0, %v8878
    %v8880 = vrot.slane %v8842, %v8879
    %v8881 = vlaneseq
    %v8882 = vshrl.u32 %v8881, 7
    %v8883 = vsub.s32 1, %v8882
    %v8884 = vrot.slane %v8842, %v8883
    %v8885 = vlaneseq
    %v8886 = vshrl.u32 %v8885, 7
    %v8887 = vsub.s32 2, %v8886
    %v8888 = vrot.slane %v8842, %v8887
    %v8889 = vlaneseq
    %v8890 = vshrl.u32 %v8889, 7
    %v8891 = vsub.s32 3, %v8890
    %v8892 = vrot.slane %v8842, %v8891
    %v8905 = vmul.f32 %v1396, %v8848
    %v8906 = vmul.f32 %v1395, %v8852
    %v8907 = vmul.f32 %v1394, %v8856
    %v8908 = vmul.f32 %v1393, %v8860
    %v8909 = vmul.f32 %v1392, %v8864
    %v8910 = vmul.f32 %v1391, %v8868
    %v8911 = vmul.f32 %v1390, %v8872
    %v8912 = vmul.f32 %v1389, %v8876
    %v8913 = vmul.f32 %v1388, %v8880
    %v8914 = vmul.f32 %v1387, %v8884
    %v8915 = vmul.f32 %v1386, %v8888
    %v8916 = vmul.f32 %v1397, %v8892
    %s8917 = scalar_lea.vmem %s1, 84
    %v8918 = vld [vmem:[%s8917] sm:$0xf]
    %v8919 = vpack.c.bf16 %v8905, %v8905
    %v8920 = vpack.c.bf16 %v8906, %v8906
    %v8921 = vpack.c.bf16 %v8907, %v8907
    %v8922 = vpack.c.bf16 %v8908, %v8908
    %v8923 = vpack.c.bf16 %v8909, %v8909
    %v8924 = vpack.c.bf16 %v8910, %v8910
    %v8925 = vpack.c.bf16 %v8911, %v8911
    %v8926 = vpack.c.bf16 %v8912, %v8912
    %v8927 = vpack.c.bf16 %v8913, %v8913
    %v8928 = vpack.c.bf16 %v8914, %v8914
    %v8929 = vpack.c.bf16 %v8915, %v8915
    %v8930 = vpack.c.bf16 %v8916, %v8916
    %v8932 = vsel %vm361, %v8918, 0
    %v8935 = vsel %vm365, %v8919, 0
    %v8938 = vsel %vm365, %v8920, 0
    %v8941 = vsel %vm365, %v8921, 0
    %v8944 = vsel %vm365, %v8922, 0
    %v8947 = vsel %vm365, %v8923, 0
    %v8950 = vsel %vm365, %v8924, 0
    %v8953 = vsel %vm365, %v8925, 0
    %v8956 = vsel %vm365, %v8926, 0
    %v8959 = vsel %vm365, %v8927, 0
    %v8962 = vsel %vm365, %v8928, 0
    %v8965 = vsel %vm365, %v8929, 0
    %v8968 = vsel %vm365, %v8930, 0
    %8970 = vmatprep.subr.bf16.mxu0 %v8938
    %8971 = vmatpush1.bf16.msra.mxu0 %v8935
    %8972 = vmatprep.subr.bf16.mxu0 0
    %8973 = vmatpush1.bf16.msra.mxu0 0
    %8974 = vmatprep.subr.bf16.mxu0 0
    %8975 = vmatpush1.bf16.msra.mxu0 0
    %8976 = vmatprep.subr.bf16.mxu0 0
    %8977 = vmatpush1.bf16.msra.mxu0 0
    %8978 = vmatprep.subr.bf16.mxu0 0
    %8979 = vmatpush1.bf16.msra.mxu0 0
    %8980 = vmatprep.subr.bf16.mxu0 0
    %8981 = vmatpush1.bf16.msra.mxu0 0
    %8982 = vmatprep.subr.bf16.mxu0 0
    %8983 = vmatpush1.bf16.msra.mxu0 0
    %8984 = vmatprep.subr.bf16.mxu0 0
    %8985 = vmatpush1.bf16.msra.mxu0 0
    %8986 = vmatprep.subr.bf16.mxu0 0
    %8987 = vmatpush1.bf16.msra.mxu0 0
    %8988 = vmatprep.subr.bf16.mxu0 0
    %8989 = vmatpush1.bf16.msra.mxu0 0
    %8990 = vmatprep.subr.bf16.mxu0 0
    %8991 = vmatpush1.bf16.msra.mxu0 0
    %8992 = vmatprep.subr.bf16.mxu0 0
    %8993 = vmatpush1.bf16.msra.mxu0 0
    %8994 = vmatprep.subr.bf16.mxu0 0
    %8995 = vmatpush1.bf16.msra.mxu0 0
    %8996 = vmatprep.subr.bf16.mxu0 0
    %8997 = vmatpush1.bf16.msra.mxu0 0
    %8998 = vmatprep.subr.bf16.mxu0 0
    %8999 = vmatpush1.bf16.msra.mxu0 0
    %9000 = vmatprep.subr.bf16.mxu0 0
    %9001 = vmatpush1.bf16.msra.mxu0 0
    %9002 = vmatprep.mubr.bf16.mxu0 0
    %9003 = vmatmul.mubr.bf16.gmra.mrb[0].mxu0 %v8932
    %v9004 = vpop.f32.mrb[0].mxu0
    %v9005 = vadd.f32 0.0, %v9004
    %v9006 = vpop.f32.mrb[0].mxu0
    %v9007 = vadd.f32 0.0, %v9006
    %v9008 = vpop.f32.mrb[0].mxu0
    %v9009 = vpop.f32.mrb[0].mxu0
    %9010 = vdwg.mxu0
    %9011 = vmatprep.subr.bf16.mxu0 %v8944
    %9012 = vmatpush1.bf16.msra.mxu0 %v8941
    %9013 = vmatprep.subr.bf16.mxu0 0
    %9014 = vmatpush1.bf16.msra.mxu0 0
    %9015 = vmatprep.subr.bf16.mxu0 0
    %9016 = vmatpush1.bf16.msra.mxu0 0
    %9017 = vmatprep.subr.bf16.mxu0 0
    %9018 = vmatpush1.bf16.msra.mxu0 0
    %9019 = vmatprep.subr.bf16.mxu0 0
    %9020 = vmatpush1.bf16.msra.mxu0 0
    %9021 = vmatprep.subr.bf16.mxu0 0
    %9022 = vmatpush1.bf16.msra.mxu0 0
    %9023 = vmatprep.subr.bf16.mxu0 0
    %9024 = vmatpush1.bf16.msra.mxu0 0
    %9025 = vmatprep.subr.bf16.mxu0 0
    %9026 = vmatpush1.bf16.msra.mxu0 0
    %9027 = vmatprep.subr.bf16.mxu0 0
    %9028 = vmatpush1.bf16.msra.mxu0 0
    %9029 = vmatprep.subr.bf16.mxu0 0
    %9030 = vmatpush1.bf16.msra.mxu0 0
    %9031 = vmatprep.subr.bf16.mxu0 0
    %9032 = vmatpush1.bf16.msra.mxu0 0
    %9033 = vmatprep.subr.bf16.mxu0 0
    %9034 = vmatpush1.bf16.msra.mxu0 0
    %9035 = vmatprep.subr.bf16.mxu0 0
    %9036 = vmatpush1.bf16.msra.mxu0 0
    %9037 = vmatprep.subr.bf16.mxu0 0
    %9038 = vmatpush1.bf16.msra.mxu0 0
    %9039 = vmatprep.subr.bf16.mxu0 0
    %9040 = vmatpush1.bf16.msra.mxu0 0
    %9041 = vmatprep.subr.bf16.mxu0 0
    %9042 = vmatpush1.bf16.msra.mxu0 0
    %9043 = vmatprep.mubr.bf16.mxu0 0
    %9044 = vmatmul.mubr.bf16.gmra.mrb[0].mxu0 %v8932
    %v9045 = vpop.f32.mrb[0].mxu0
    %v9046 = vadd.f32 0.0, %v9045
    %v9047 = vpop.f32.mrb[0].mxu0
    %v9048 = vadd.f32 0.0, %v9047
    %v9049 = vpop.f32.mrb[0].mxu0
    %v9050 = vpop.f32.mrb[0].mxu0
    %9051 = vdwg.mxu0
    %9052 = vmatprep.subr.bf16.mxu0 %v8950
    %9053 = vmatpush1.bf16.msra.mxu0 %v8947
    %9054 = vmatprep.subr.bf16.mxu0 0
    %9055 = vmatpush1.bf16.msra.mxu0 0
    %9056 = vmatprep.subr.bf16.mxu0 0
    %9057 = vmatpush1.bf16.msra.mxu0 0
    %9058 = vmatprep.subr.bf16.mxu0 0
    %9059 = vmatpush1.bf16.msra.mxu0 0
    %9060 = vmatprep.subr.bf16.mxu0 0
    %9061 = vmatpush1.bf16.msra.mxu0 0
    %9062 = vmatprep.subr.bf16.mxu0 0
    %9063 = vmatpush1.bf16.msra.mxu0 0
    %9064 = vmatprep.subr.bf16.mxu0 0
    %9065 = vmatpush1.bf16.msra.mxu0 0
    %9066 = vmatprep.subr.bf16.mxu0 0
    %9067 = vmatpush1.bf16.msra.mxu0 0
    %9068 = vmatprep.subr.bf16.mxu0 0
    %9069 = vmatpush1.bf16.msra.mxu0 0
    %9070 = vmatprep.subr.bf16.mxu0 0
    %9071 = vmatpush1.bf16.msra.mxu0 0
    %9072 = vmatprep.subr.bf16.mxu0 0
    %9073 = vmatpush1.bf16.msra.mxu0 0
    %9074 = vmatprep.subr.bf16.mxu0 0
    %9075 = vmatpush1.bf16.msra.mxu0 0
    %9076 = vmatprep.subr.bf16.mxu0 0
    %9077 = vmatpush1.bf16.msra.mxu0 0
    %9078 = vmatprep.subr.bf16.mxu0 0
    %9079 = vmatpush1.bf16.msra.mxu0 0
    %9080 = vmatprep.subr.bf16.mxu0 0
    %9081 = vmatpush1.bf16.msra.mxu0 0
    %9082 = vmatprep.subr.bf16.mxu0 0
    %9083 = vmatpush1.bf16.msra.mxu0 0
    %9084 = vmatprep.mubr.bf16.mxu0 0
    %9085 = vmatmul.mubr.bf16.gmra.mrb[0].mxu0 %v8932
    %v9086 = vpop.f32.mrb[0].mxu0
    %v9087 = vadd.f32 0.0, %v9086
    %v9088 = vpop.f32.mrb[0].mxu0
    %v9089 = vadd.f32 0.0, %v9088
    %v9090 = vpop.f32.mrb[0].mxu0
    %v9091 = vpop.f32.mrb[0].mxu0
    %9092 = vdwg.mxu0
    %9093 = vmatprep.subr.bf16.mxu0 %v8956
    %9094 = vmatpush1.bf16.msra.mxu0 %v8953
    %9095 = vmatprep.subr.bf16.mxu0 0
    %9096 = vmatpush1.bf16.msra.mxu0 0
    %9097 = vmatprep.subr.bf16.mxu0 0
    %9098 = vmatpush1.bf16.msra.mxu0 0
    %9099 = vmatprep.subr.bf16.mxu0 0
    %9100 = vmatpush1.bf16.msra.mxu0 0
    %9101 = vmatprep.subr.bf16.mxu0 0
    %9102 = vmatpush1.bf16.msra.mxu0 0
    %9103 = vmatprep.subr.bf16.mxu0 0
    %9104 = vmatpush1.bf16.msra.mxu0 0
    %9105 = vmatprep.subr.bf16.mxu0 0
    %9106 = vmatpush1.bf16.msra.mxu0 0
    %9107 = vmatprep.subr.bf16.mxu0 0
    %9108 = vmatpush1.bf16.msra.mxu0 0
    %9109 = vmatprep.subr.bf16.mxu0 0
    %9110 = vmatpush1.bf16.msra.mxu0 0
    %9111 = vmatprep.subr.bf16.mxu0 0
    %9112 = vmatpush1.bf16.msra.mxu0 0
    %9113 = vmatprep.subr.bf16.mxu0 0
    %9114 = vmatpush1.bf16.msra.mxu0 0
    %9115 = vmatprep.subr.bf16.mxu0 0
    %9116 = vmatpush1.bf16.msra.mxu0 0
    %9117 = vmatprep.subr.bf16.mxu0 0
    %9118 = vmatpush1.bf16.msra.mxu0 0
    %9119 = vmatprep.subr.bf16.mxu0 0
    %9120 = vmatpush1.bf16.msra.mxu0 0
    %9121 = vmatprep.subr.bf16.mxu0 0
    %9122 = vmatpush1.bf16.msra.mxu0 0
    %9123 = vmatprep.subr.bf16.mxu0 0
    %9124 = vmatpush1.bf16.msra.mxu0 0
    %9125 = vmatprep.mubr.bf16.mxu0 0
    %9126 = vmatmul.mubr.bf16.gmra.mrb[0].mxu0 %v8932
    %v9127 = vpop.f32.mrb[0].mxu0
    %v9128 = vadd.f32 0.0, %v9127
    %v9129 = vpop.f32.mrb[0].mxu0
    %v9130 = vadd.f32 0.0, %v9129
    %v9131 = vpop.f32.mrb[0].mxu0
    %v9132 = vpop.f32.mrb[0].mxu0
    %9133 = vdwg.mxu0
    %9134 = vmatprep.subr.bf16.mxu0 %v8962
    %9135 = vmatpush1.bf16.msra.mxu0 %v8959
    %9136 = vmatprep.subr.bf16.mxu0 0
    %9137 = vmatpush1.bf16.msra.mxu0 0
    %9138 = vmatprep.subr.bf16.mxu0 0
    %9139 = vmatpush1.bf16.msra.mxu0 0
    %9140 = vmatprep.subr.bf16.mxu0 0
    %9141 = vmatpush1.bf16.msra.mxu0 0
    %9142 = vmatprep.subr.bf16.mxu0 0
    %9143 = vmatpush1.bf16.msra.mxu0 0
    %9144 = vmatprep.subr.bf16.mxu0 0
    %9145 = vmatpush1.bf16.msra.mxu0 0
    %9146 = vmatprep.subr.bf16.mxu0 0
    %9147 = vmatpush1.bf16.msra.mxu0 0
    %9148 = vmatprep.subr.bf16.mxu0 0
    %9149 = vmatpush1.bf16.msra.mxu0 0
    %9150 = vmatprep.subr.bf16.mxu0 0
    %9151 = vmatpush1.bf16.msra.mxu0 0
    %9152 = vmatprep.subr.bf16.mxu0 0
    %9153 = vmatpush1.bf16.msra.mxu0 0
    %9154 = vmatprep.subr.bf16.mxu0 0
    %9155 = vmatpush1.bf16.msra.mxu0 0
    %9156 = vmatprep.subr.bf16.mxu0 0
    %9157 = vmatpush1.bf16.msra.mxu0 0
    %9158 = vmatprep.subr.bf16.mxu0 0
    %9159 = vmatpush1.bf16.msra.mxu0 0
    %9160 = vmatprep.subr.bf16.mxu0 0
    %9161 = vmatpush1.bf16.msra.mxu0 0
    %9162 = vmatprep.subr.bf16.mxu0 0
    %9163 = vmatpush1.bf16.msra.mxu0 0
    %9164 = vmatprep.subr.bf16.mxu0 0
    %9165 = vmatpush1.bf16.msra.mxu0 0
    %9166 = vmatprep.mubr.bf16.mxu0 0
    %9167 = vmatmul.mubr.bf16.gmra.mrb[0].mxu0 %v8932
    %v9168 = vpop.f32.mrb[0].mxu0
    %v9169 = vadd.f32 0.0, %v9168
    %v9170 = vpop.f32.mrb[0].mxu0
    %v9171 = vadd.f32 0.0, %v9170
    %v9172 = vpop.f32.mrb[0].mxu0
    %v9173 = vpop.f32.mrb[0].mxu0
    %9174 = vdwg.mxu0
    %9175 = vmatprep.subr.bf16.mxu0 %v8968
    %9176 = vmatpush1.bf16.msra.mxu0 %v8965
    %9177 = vmatprep.subr.bf16.mxu0 0
    %9178 = vmatpush1.bf16.msra.mxu0 0
    %9179 = vmatprep.subr.bf16.mxu0 0
    %9180 = vmatpush1.bf16.msra.mxu0 0
    %9181 = vmatprep.subr.bf16.mxu0 0
    %9182 = vmatpush1.bf16.msra.mxu0 0
    %9183 = vmatprep.subr.bf16.mxu0 0
    %9184 = vmatpush1.bf16.msra.mxu0 0
    %9185 = vmatprep.subr.bf16.mxu0 0
    %9186 = vmatpush1.bf16.msra.mxu0 0
    %9187 = vmatprep.subr.bf16.mxu0 0
    %9188 = vmatpush1.bf16.msra.mxu0 0
    %9189 = vmatprep.subr.bf16.mxu0 0
    %9190 = vmatpush1.bf16.msra.mxu0 0
    %9191 = vmatprep.subr.bf16.mxu0 0
    %9192 = vmatpush1.bf16.msra.mxu0 0
    %9193 = vmatprep.subr.bf16.mxu0 0
    %9194 = vmatpush1.bf16.msra.mxu0 0
    %9195 = vmatprep.subr.bf16.mxu0 0
    %9196 = vmatpush1.bf16.msra.mxu0 0
    %9197 = vmatprep.subr.bf16.mxu0 0
    %9198 = vmatpush1.bf16.msra.mxu0 0
    %9199 = vmatprep.subr.bf16.mxu0 0
    %9200 = vmatpush1.bf16.msra.mxu0 0
    %9201 = vmatprep.subr.bf16.mxu0 0
    %9202 = vmatpush1.bf16.msra.mxu0 0
    %9203 = vmatprep.subr.bf16.mxu0 0
    %9204 = vmatpush1.bf16.msra.mxu0 0
    %9205 = vmatprep.subr.bf16.mxu0 0
    %9206 = vmatpush1.bf16.msra.mxu0 0
    %9207 = vmatprep.mubr.bf16.mxu0 0
    %9208 = vmatmul.mubr.bf16.gmra.mrb[0].mxu0 %v8932
    %v9209 = vpop.f32.mrb[0].mxu0
    %v9210 = vadd.f32 0.0, %v9209
    %v9211 = vpop.f32.mrb[0].mxu0
    %v9212 = vadd.f32 0.0, %v9211
    %v9213 = vpop.f32.mrb[0].mxu0
    %v9214 = vpop.f32.mrb[0].mxu0
    %9215 = vdwg.mxu0
    %v9216 = vadd.f32 %v8825, %v9005
    %v9217 = vadd.f32 %v8826, %v9007
    %v9218 = vadd.f32 %v8827, %v9046
    %v9219 = vadd.f32 %v8828, %v9048
    %v9220 = vadd.f32 %v8829, %v9087
    %v9221 = vadd.f32 %v8830, %v9089
    %v9222 = vadd.f32 %v8831, %v9128
    %v9223 = vadd.f32 %v8832, %v9130
    %v9224 = vadd.f32 %v8833, %v9169
    %v9225 = vadd.f32 %v8834, %v9171
    %v9226 = vadd.f32 %v8835, %v9210
    %v9227 = vadd.f32 %v8836, %v9212
    %s9228 = scalar_lea.vmem [#allocation3], 198
    %v9229 = vld [vmem:[%s9228] ss:$8 sm:$0xf]
    %v9230 = vld [vmem:[%s9228] ss:$8 sm:$0xf0]
    %v9231 = vor.u32 %v9229, %v9230
    %s9232 = scalar_lea.vmem [#allocation3], 262
    %v9233 = vld [vmem:[%s9232] ss:$8 sm:$0xf]
    %v9236 = vlaneseq
    %v9237 = vshrl.u32 %v9236, 7
    %v9238 = vsub.s32 0, %v9237
    %v9239 = vrot.slane %v9231, %v9238
    %v9240 = vlaneseq
    %v9241 = vshrl.u32 %v9240, 7
    %v9242 = vsub.s32 1, %v9241
    %v9243 = vrot.slane %v9231, %v9242
    %v9244 = vlaneseq
    %v9245 = vshrl.u32 %v9244, 7
    %v9246 = vsub.s32 2, %v9245
    %v9247 = vrot.slane %v9231, %v9246
    %v9248 = vlaneseq
    %v9249 = vshrl.u32 %v9248, 7
    %v9250 = vsub.s32 3, %v9249
    %v9251 = vrot.slane %v9231, %v9250
    %v9252 = vlaneseq
    %v9253 = vshrl.u32 %v9252, 7
    %v9254 = vsub.s32 4, %v9253
    %v9255 = vrot.slane %v9231, %v9254
    %v9256 = vlaneseq
    %v9257 = vshrl.u32 %v9256, 7
    %v9258 = vsub.s32 5, %v9257
    %v9259 = vrot.slane %v9231, %v9258
    %v9260 = vlaneseq
    %v9261 = vshrl.u32 %v9260, 7
    %v9262 = vsub.s32 6, %v9261
    %v9263 = vrot.slane %v9231, %v9262
    %v9264 = vlaneseq
    %v9265 = vshrl.u32 %v9264, 7
    %v9266 = vsub.s32 7, %v9265
    %v9267 = vrot.slane %v9231, %v9266
    %v9268 = vlaneseq
    %v9269 = vshrl.u32 %v9268, 7
    %v9270 = vsub.s32 0, %v9269
    %v9271 = vrot.slane %v9233, %v9270
    %v9272 = vlaneseq
    %v9273 = vshrl.u32 %v9272, 7
    %v9274 = vsub.s32 1, %v9273
    %v9275 = vrot.slane %v9233, %v9274
    %v9276 = vlaneseq
    %v9277 = vshrl.u32 %v9276, 7
    %v9278 = vsub.s32 2, %v9277
    %v9279 = vrot.slane %v9233, %v9278
    %v9280 = vlaneseq
    %v9281 = vshrl.u32 %v9280, 7
    %v9282 = vsub.s32 3, %v9281
    %v9283 = vrot.slane %v9233, %v9282
    %v9296 = vmul.f32 %v1824, %v9239
    %v9297 = vmul.f32 %v1823, %v9243
    %v9298 = vmul.f32 %v1822, %v9247
    %v9299 = vmul.f32 %v1821, %v9251
    %v9300 = vmul.f32 %v1820, %v9255
    %v9301 = vmul.f32 %v1819, %v9259
    %v9302 = vmul.f32 %v1818, %v9263
    %v9303 = vmul.f32 %v1817, %v9267
    %v9304 = vmul.f32 %v1816, %v9271
    %v9305 = vmul.f32 %v1815, %v9275
    %v9306 = vmul.f32 %v1814, %v9279
    %v9307 = vmul.f32 %v1825, %v9283
    %s9308 = scalar_lea.vmem %s1, 88
    %v9309 = vld [vmem:[%s9308] sm:$0xf]
    %v9310 = vpack.c.bf16 %v9296, %v9296
    %v9311 = vpack.c.bf16 %v9297, %v9297
    %v9312 = vpack.c.bf16 %v9298, %v9298
    %v9313 = vpack.c.bf16 %v9299, %v9299
    %v9314 = vpack.c.bf16 %v9300, %v9300
    %v9315 = vpack.c.bf16 %v9301, %v9301
    %v9316 = vpack.c.bf16 %v9302, %v9302
    %v9317 = vpack.c.bf16 %v9303, %v9303
    %v9318 = vpack.c.bf16 %v9304, %v9304
    %v9319 = vpack.c.bf16 %v9305, %v9305
    %v9320 = vpack.c.bf16 %v9306, %v9306
    %v9321 = vpack.c.bf16 %v9307, %v9307
    %v9323 = vsel %vm361, %v9309, 0
    %v9326 = vsel %vm365, %v9310, 0
    %v9329 = vsel %vm365, %v9311, 0
    %v9332 = vsel %vm365, %v9312, 0
    %v9335 = vsel %vm365, %v9313, 0
    %v9338 = vsel %vm365, %v9314, 0
    %v9341 = vsel %vm365, %v9315, 0
    %v9344 = vsel %vm365, %v9316, 0
    %v9347 = vsel %vm365, %v9317, 0
    %v9350 = vsel %vm365, %v9318, 0
    %v9353 = vsel %vm365, %v9319, 0
    %v9356 = vsel %vm365, %v9320, 0
    %v9359 = vsel %vm365, %v9321, 0
    %9361 = vmatprep.subr.bf16.mxu0 %v9329
    %9362 = vmatpush1.bf16.msra.mxu0 %v9326
    %9363 = vmatprep.subr.bf16.mxu0 0
    %9364 = vmatpush1.bf16.msra.mxu0 0
    %9365 = vmatprep.subr.bf16.mxu0 0
    %9366 = vmatpush1.bf16.msra.mxu0 0
    %9367 = vmatprep.subr.bf16.mxu0 0
    %9368 = vmatpush1.bf16.msra.mxu0 0
    %9369 = vmatprep.subr.bf16.mxu0 0
    %9370 = vmatpush1.bf16.msra.mxu0 0
    %9371 = vmatprep.subr.bf16.mxu0 0
    %9372 = vmatpush1.bf16.msra.mxu0 0
    %9373 = vmatprep.subr.bf16.mxu0 0
    %9374 = vmatpush1.bf16.msra.mxu0 0
    %9375 = vmatprep.subr.bf16.mxu0 0
    %9376 = vmatpush1.bf16.msra.mxu0 0
    %9377 = vmatprep.subr.bf16.mxu0 0
    %9378 = vmatpush1.bf16.msra.mxu0 0
    %9379 = vmatprep.subr.bf16.mxu0 0
    %9380 = vmatpush1.bf16.msra.mxu0 0
    %9381 = vmatprep.subr.bf16.mxu0 0
    %9382 = vmatpush1.bf16.msra.mxu0 0
    %9383 = vmatprep.subr.bf16.mxu0 0
    %9384 = vmatpush1.bf16.msra.mxu0 0
    %9385 = vmatprep.subr.bf16.mxu0 0
    %9386 = vmatpush1.bf16.msra.mxu0 0
    %9387 = vmatprep.subr.bf16.mxu0 0
    %9388 = vmatpush1.bf16.msra.mxu0 0
    %9389 = vmatprep.subr.bf16.mxu0 0
    %9390 = vmatpush1.bf16.msra.mxu0 0
    %9391 = vmatprep.subr.bf16.mxu0 0
    %9392 = vmatpush1.bf16.msra.mxu0 0
    %9393 = vmatprep.mubr.bf16.mxu0 0
    %9394 = vmatmul.mubr.bf16.gmra.mrb[0].mxu0 %v9323
    %v9395 = vpop.f32.mrb[0].mxu0
    %v9396 = vadd.f32 0.0, %v9395
    %v9397 = vpop.f32.mrb[0].mxu0
    %v9398 = vadd.f32 0.0, %v9397
    %v9399 = vpop.f32.mrb[0].mxu0
    %v9400 = vpop.f32.mrb[0].mxu0
    %9401 = vdwg.mxu0
    %9402 = vmatprep.subr.bf16.mxu0 %v9335
    %9403 = vmatpush1.bf16.msra.mxu0 %v9332
    %9404 = vmatprep.subr.bf16.mxu0 0
    %9405 = vmatpush1.bf16.msra.mxu0 0
    %9406 = vmatprep.subr.bf16.mxu0 0
    %9407 = vmatpush1.bf16.msra.mxu0 0
    %9408 = vmatprep.subr.bf16.mxu0 0
    %9409 = vmatpush1.bf16.msra.mxu0 0
    %9410 = vmatprep.subr.bf16.mxu0 0
    %9411 = vmatpush1.bf16.msra.mxu0 0
    %9412 = vmatprep.subr.bf16.mxu0 0
    %9413 = vmatpush1.bf16.msra.mxu0 0
    %9414 = vmatprep.subr.bf16.mxu0 0
    %9415 = vmatpush1.bf16.msra.mxu0 0
    %9416 = vmatprep.subr.bf16.mxu0 0
    %9417 = vmatpush1.bf16.msra.mxu0 0
    %9418 = vmatprep.subr.bf16.mxu0 0
    %9419 = vmatpush1.bf16.msra.mxu0 0
    %9420 = vmatprep.subr.bf16.mxu0 0
    %9421 = vmatpush1.bf16.msra.mxu0 0
    %9422 = vmatprep.subr.bf16.mxu0 0
    %9423 = vmatpush1.bf16.msra.mxu0 0
    %9424 = vmatprep.subr.bf16.mxu0 0
    %9425 = vmatpush1.bf16.msra.mxu0 0
    %9426 = vmatprep.subr.bf16.mxu0 0
    %9427 = vmatpush1.bf16.msra.mxu0 0
    %9428 = vmatprep.subr.bf16.mxu0 0
    %9429 = vmatpush1.bf16.msra.mxu0 0
    %9430 = vmatprep.subr.bf16.mxu0 0
    %9431 = vmatpush1.bf16.msra.mxu0 0
    %9432 = vmatprep.subr.bf16.mxu0 0
    %9433 = vmatpush1.bf16.msra.mxu0 0
    %9434 = vmatprep.mubr.bf16.mxu0 0
    %9435 = vmatmul.mubr.bf16.gmra.mrb[0].mxu0 %v9323
    %v9436 = vpop.f32.mrb[0].mxu0
    %v9437 = vadd.f32 0.0, %v9436
    %v9438 = vpop.f32.mrb[0].mxu0
    %v9439 = vadd.f32 0.0, %v9438
    %v9440 = vpop.f32.mrb[0].mxu0
    %v9441 = vpop.f32.mrb[0].mxu0
    %9442 = vdwg.mxu0
    %9443 = vmatprep.subr.bf16.mxu0 %v9341
    %9444 = vmatpush1.bf16.msra.mxu0 %v9338
    %9445 = vmatprep.subr.bf16.mxu0 0
    %9446 = vmatpush1.bf16.msra.mxu0 0
    %9447 = vmatprep.subr.bf16.mxu0 0
    %9448 = vmatpush1.bf16.msra.mxu0 0
    %9449 = vmatprep.subr.bf16.mxu0 0
    %9450 = vmatpush1.bf16.msra.mxu0 0
    %9451 = vmatprep.subr.bf16.mxu0 0
    %9452 = vmatpush1.bf16.msra.mxu0 0
    %9453 = vmatprep.subr.bf16.mxu0 0
    %9454 = vmatpush1.bf16.msra.mxu0 0
    %9455 = vmatprep.subr.bf16.mxu0 0
    %9456 = vmatpush1.bf16.msra.mxu0 0
    %9457 = vmatprep.subr.bf16.mxu0 0
    %9458 = vmatpush1.bf16.msra.mxu0 0
    %9459 = vmatprep.subr.bf16.mxu0 0
    %9460 = vmatpush1.bf16.msra.mxu0 0
    %9461 = vmatprep.subr.bf16.mxu0 0
    %9462 = vmatpush1.bf16.msra.mxu0 0
    %9463 = vmatprep.subr.bf16.mxu0 0
    %9464 = vmatpush1.bf16.msra.mxu0 0
    %9465 = vmatprep.subr.bf16.mxu0 0
    %9466 = vmatpush1.bf16.msra.mxu0 0
    %9467 = vmatprep.subr.bf16.mxu0 0
    %9468 = vmatpush1.bf16.msra.mxu0 0
    %9469 = vmatprep.subr.bf16.mxu0 0
    %9470 = vmatpush1.bf16.msra.mxu0 0
    %9471 = vmatprep.subr.bf16.mxu0 0
    %9472 = vmatpush1.bf16.msra.mxu0 0
    %9473 = vmatprep.subr.bf16.mxu0 0
    %9474 = vmatpush1.bf16.msra.mxu0 0
    %9475 = vmatprep.mubr.bf16.mxu0 0
    %9476 = vmatmul.mubr.bf16.gmra.mrb[0].mxu0 %v9323
    %v9477 = vpop.f32.mrb[0].mxu0
    %v9478 = vadd.f32 0.0, %v9477
    %v9479 = vpop.f32.mrb[0].mxu0
    %v9480 = vadd.f32 0.0, %v9479
    %v9481 = vpop.f32.mrb[0].mxu0
    %v9482 = vpop.f32.mrb[0].mxu0
    %9483 = vdwg.mxu0
    %9484 = vmatprep.subr.bf16.mxu0 %v9347
    %9485 = vmatpush1.bf16.msra.mxu0 %v9344
    %9486 = vmatprep.subr.bf16.mxu0 0
    %9487 = vmatpush1.bf16.msra.mxu0 0
    %9488 = vmatprep.subr.bf16.mxu0 0
    %9489 = vmatpush1.bf16.msra.mxu0 0
    %9490 = vmatprep.subr.bf16.mxu0 0
    %9491 = vmatpush1.bf16.msra.mxu0 0
    %9492 = vmatprep.subr.bf16.mxu0 0
    %9493 = vmatpush1.bf16.msra.mxu0 0
    %9494 = vmatprep.subr.bf16.mxu0 0
    %9495 = vmatpush1.bf16.msra.mxu0 0
    %9496 = vmatprep.subr.bf16.mxu0 0
    %9497 = vmatpush1.bf16.msra.mxu0 0
    %9498 = vmatprep.subr.bf16.mxu0 0
    %9499 = vmatpush1.bf16.msra.mxu0 0
    %9500 = vmatprep.subr.bf16.mxu0 0
    %9501 = vmatpush1.bf16.msra.mxu0 0
    %9502 = vmatprep.subr.bf16.mxu0 0
    %9503 = vmatpush1.bf16.msra.mxu0 0
    %9504 = vmatprep.subr.bf16.mxu0 0
    %9505 = vmatpush1.bf16.msra.mxu0 0
    %9506 = vmatprep.subr.bf16.mxu0 0
    %9507 = vmatpush1.bf16.msra.mxu0 0
    %9508 = vmatprep.subr.bf16.mxu0 0
    %9509 = vmatpush1.bf16.msra.mxu0 0
    %9510 = vmatprep.subr.bf16.mxu0 0
    %9511 = vmatpush1.bf16.msra.mxu0 0
    %9512 = vmatprep.subr.bf16.mxu0 0
    %9513 = vmatpush1.bf16.msra.mxu0 0
    %9514 = vmatprep.subr.bf16.mxu0 0
    %9515 = vmatpush1.bf16.msra.mxu0 0
    %9516 = vmatprep.mubr.bf16.mxu0 0
    %9517 = vmatmul.mubr.bf16.gmra.mrb[0].mxu0 %v9323
    %v9518 = vpop.f32.mrb[0].mxu0
    %v9519 = vadd.f32 0.0, %v9518
    %v9520 = vpop.f32.mrb[0].mxu0
    %v9521 = vadd.f32 0.0, %v9520
    %v9522 = vpop.f32.mrb[0].mxu0
    %v9523 = vpop.f32.mrb[0].mxu0
    %9524 = vdwg.mxu0
    %9525 = vmatprep.subr.bf16.mxu0 %v9353
    %9526 = vmatpush1.bf16.msra.mxu0 %v9350
    %9527 = vmatprep.subr.bf16.mxu0 0
    %9528 = vmatpush1.bf16.msra.mxu0 0
    %9529 = vmatprep.subr.bf16.mxu0 0
    %9530 = vmatpush1.bf16.msra.mxu0 0
    %9531 = vmatprep.subr.bf16.mxu0 0
    %9532 = vmatpush1.bf16.msra.mxu0 0
    %9533 = vmatprep.subr.bf16.mxu0 0
    %9534 = vmatpush1.bf16.msra.mxu0 0
    %9535 = vmatprep.subr.bf16.mxu0 0
    %9536 = vmatpush1.bf16.msra.mxu0 0
    %9537 = vmatprep.subr.bf16.mxu0 0
    %9538 = vmatpush1.bf16.msra.mxu0 0
    %9539 = vmatprep.subr.bf16.mxu0 0
    %9540 = vmatpush1.bf16.msra.mxu0 0
    %9541 = vmatprep.subr.bf16.mxu0 0
    %9542 = vmatpush1.bf16.msra.mxu0 0
    %9543 = vmatprep.subr.bf16.mxu0 0
    %9544 = vmatpush1.bf16.msra.mxu0 0
    %9545 = vmatprep.subr.bf16.mxu0 0
    %9546 = vmatpush1.bf16.msra.mxu0 0
    %9547 = vmatprep.subr.bf16.mxu0 0
    %9548 = vmatpush1.bf16.msra.mxu0 0
    %9549 = vmatprep.subr.bf16.mxu0 0
    %9550 = vmatpush1.bf16.msra.mxu0 0
    %9551 = vmatprep.subr.bf16.mxu0 0
    %9552 = vmatpush1.bf16.msra.mxu0 0
    %9553 = vmatprep.subr.bf16.mxu0 0
    %9554 = vmatpush1.bf16.msra.mxu0 0
    %9555 = vmatprep.subr.bf16.mxu0 0
    %9556 = vmatpush1.bf16.msra.mxu0 0
    %9557 = vmatprep.mubr.bf16.mxu0 0
    %9558 = vmatmul.mubr.bf16.gmra.mrb[0].mxu0 %v9323
    %v9559 = vpop.f32.mrb[0].mxu0
    %v9560 = vadd.f32 0.0, %v9559
    %v9561 = vpop.f32.mrb[0].mxu0
    %v9562 = vadd.f32 0.0, %v9561
    %v9563 = vpop.f32.mrb[0].mxu0
    %v9564 = vpop.f32.mrb[0].mxu0
    %9565 = vdwg.mxu0
    %9566 = vmatprep.subr.bf16.mxu0 %v9359
    %9567 = vmatpush1.bf16.msra.mxu0 %v9356
    %9568 = vmatprep.subr.bf16.mxu0 0
    %9569 = vmatpush1.bf16.msra.mxu0 0
    %9570 = vmatprep.subr.bf16.mxu0 0
    %9571 = vmatpush1.bf16.msra.mxu0 0
    %9572 = vmatprep.subr.bf16.mxu0 0
    %9573 = vmatpush1.bf16.msra.mxu0 0
    %9574 = vmatprep.subr.bf16.mxu0 0
    %9575 = vmatpush1.bf16.msra.mxu0 0
    %9576 = vmatprep.subr.bf16.mxu0 0
    %9577 = vmatpush1.bf16.msra.mxu0 0
    %9578 = vmatprep.subr.bf16.mxu0 0
    %9579 = vmatpush1.bf16.msra.mxu0 0
    %9580 = vmatprep.subr.bf16.mxu0 0
    %9581 = vmatpush1.bf16.msra.mxu0 0
    %9582 = vmatprep.subr.bf16.mxu0 0
    %9583 = vmatpush1.bf16.msra.mxu0 0
    %9584 = vmatprep.subr.bf16.mxu0 0
    %9585 = vmatpush1.bf16.msra.mxu0 0
    %9586 = vmatprep.subr.bf16.mxu0 0
    %9587 = vmatpush1.bf16.msra.mxu0 0
    %9588 = vmatprep.subr.bf16.mxu0 0
    %9589 = vmatpush1.bf16.msra.mxu0 0
    %9590 = vmatprep.subr.bf16.mxu0 0
    %9591 = vmatpush1.bf16.msra.mxu0 0
    %9592 = vmatprep.subr.bf16.mxu0 0
    %9593 = vmatpush1.bf16.msra.mxu0 0
    %9594 = vmatprep.subr.bf16.mxu0 0
    %9595 = vmatpush1.bf16.msra.mxu0 0
    %9596 = vmatprep.subr.bf16.mxu0 0
    %9597 = vmatpush1.bf16.msra.mxu0 0
    %9598 = vmatprep.mubr.bf16.mxu0 0
    %9599 = vmatmul.mubr.bf16.gmra.mrb[0].mxu0 %v9323
    %v9600 = vpop.f32.mrb[0].mxu0
    %v9601 = vadd.f32 0.0, %v9600
    %v9602 = vpop.f32.mrb[0].mxu0
    %v9603 = vadd.f32 0.0, %v9602
    %v9604 = vpop.f32.mrb[0].mxu0
    %v9605 = vpop.f32.mrb[0].mxu0
    %9606 = vdwg.mxu0
    %v9607 = vadd.f32 %v9216, %v9396
    %v9608 = vadd.f32 %v9217, %v9398
    %v9609 = vadd.f32 %v9218, %v9437
    %v9610 = vadd.f32 %v9219, %v9439
    %v9611 = vadd.f32 %v9220, %v9478
    %v9612 = vadd.f32 %v9221, %v9480
    %v9613 = vadd.f32 %v9222, %v9519
    %v9614 = vadd.f32 %v9223, %v9521
    %v9615 = vadd.f32 %v9224, %v9560
    %v9616 = vadd.f32 %v9225, %v9562
    %v9617 = vadd.f32 %v9226, %v9601
    %v9618 = vadd.f32 %v9227, %v9603
    %s9619 = scalar_lea.vmem [#allocation3], 199
    %v9620 = vld [vmem:[%s9619] ss:$8 sm:$0xf]
    %v9621 = vld [vmem:[%s9619] ss:$8 sm:$0xf0]
    %v9622 = vor.u32 %v9620, %v9621
    %s9623 = scalar_lea.vmem [#allocation3], 263
    %v9624 = vld [vmem:[%s9623] ss:$8 sm:$0xf]
    %v9627 = vlaneseq
    %v9628 = vshrl.u32 %v9627, 7
    %v9629 = vsub.s32 0, %v9628
    %v9630 = vrot.slane %v9622, %v9629
    %v9631 = vlaneseq
    %v9632 = vshrl.u32 %v9631, 7
    %v9633 = vsub.s32 1, %v9632
    %v9634 = vrot.slane %v9622, %v9633
    %v9635 = vlaneseq
    %v9636 = vshrl.u32 %v9635, 7
    %v9637 = vsub.s32 2, %v9636
    %v9638 = vrot.slane %v9622, %v9637
    %v9639 = vlaneseq
    %v9640 = vshrl.u32 %v9639, 7
    %v9641 = vsub.s32 3, %v9640
    %v9642 = vrot.slane %v9622, %v9641
    %v9643 = vlaneseq
    %v9644 = vshrl.u32 %v9643, 7
    %v9645 = vsub.s32 4, %v9644
    %v9646 = vrot.slane %v9622, %v9645
    %v9647 = vlaneseq
    %v9648 = vshrl.u32 %v9647, 7
    %v9649 = vsub.s32 5, %v9648
    %v9650 = vrot.slane %v9622, %v9649
    %v9651 = vlaneseq
    %v9652 = vshrl.u32 %v9651, 7
    %v9653 = vsub.s32 6, %v9652
    %v9654 = vrot.slane %v9622, %v9653
    %v9655 = vlaneseq
    %v9656 = vshrl.u32 %v9655, 7
    %v9657 = vsub.s32 7, %v9656
    %v9658 = vrot.slane %v9622, %v9657
    %v9659 = vlaneseq
    %v9660 = vshrl.u32 %v9659, 7
    %v9661 = vsub.s32 0, %v9660
    %v9662 = vrot.slane %v9624, %v9661
    %v9663 = vlaneseq
    %v9664 = vshrl.u32 %v9663, 7
    %v9665 = vsub.s32 1, %v9664
    %v9666 = vrot.slane %v9624, %v9665
    %v9667 = vlaneseq
    %v9668 = vshrl.u32 %v9667, 7
    %v9669 = vsub.s32 2, %v9668
    %v9670 = vrot.slane %v9624, %v9669
    %v9671 = vlaneseq
    %v9672 = vshrl.u32 %v9671, 7
    %v9673 = vsub.s32 3, %v9672
    %v9674 = vrot.slane %v9624, %v9673
    %v9687 = vmul.f32 %v2252, %v9630
    %v9688 = vmul.f32 %v2251, %v9634
    %v9689 = vmul.f32 %v2250, %v9638
    %v9690 = vmul.f32 %v2249, %v9642
    %v9691 = vmul.f32 %v2248, %v9646
    %v9692 = vmul.f32 %v2247, %v9650
    %v9693 = vmul.f32 %v2246, %v9654
    %v9694 = vmul.f32 %v2245, %v9658
    %v9695 = vmul.f32 %v2244, %v9662
    %v9696 = vmul.f32 %v2243, %v9666
    %v9697 = vmul.f32 %v2242, %v9670
    %v9698 = vmul.f32 %v2253, %v9674
    %s9699 = scalar_lea.vmem %s1, 92
    %v9700 = vld [vmem:[%s9699] sm:$0xf]
    %v9701 = vpack.c.bf16 %v9687, %v9687
    %v9702 = vpack.c.bf16 %v9688, %v9688
    %v9703 = vpack.c.bf16 %v9689, %v9689
    %v9704 = vpack.c.bf16 %v9690, %v9690
    %v9705 = vpack.c.bf16 %v9691, %v9691
    %v9706 = vpack.c.bf16 %v9692, %v9692
    %v9707 = vpack.c.bf16 %v9693, %v9693
    %v9708 = vpack.c.bf16 %v9694, %v9694
    %v9709 = vpack.c.bf16 %v9695, %v9695
    %v9710 = vpack.c.bf16 %v9696, %v9696
    %v9711 = vpack.c.bf16 %v9697, %v9697
    %v9712 = vpack.c.bf16 %v9698, %v9698
    %v9714 = vsel %vm361, %v9700, 0
    %v9717 = vsel %vm365, %v9701, 0
    %v9720 = vsel %vm365, %v9702, 0
    %v9723 = vsel %vm365, %v9703, 0
    %v9726 = vsel %vm365, %v9704, 0
    %v9729 = vsel %vm365, %v9705, 0
    %v9732 = vsel %vm365, %v9706, 0
    %v9735 = vsel %vm365, %v9707, 0
    %v9738 = vsel %vm365, %v9708, 0
    %v9741 = vsel %vm365, %v9709, 0
    %v9744 = vsel %vm365, %v9710, 0
    %v9747 = vsel %vm365, %v9711, 0
    %v9750 = vsel %vm365, %v9712, 0
    %9752 = vmatprep.subr.bf16.mxu0 %v9720
    %9753 = vmatpush1.bf16.msra.mxu0 %v9717
    %9754 = vmatprep.subr.bf16.mxu0 0
    %9755 = vmatpush1.bf16.msra.mxu0 0
    %9756 = vmatprep.subr.bf16.mxu0 0
    %9757 = vmatpush1.bf16.msra.mxu0 0
    %9758 = vmatprep.subr.bf16.mxu0 0
    %9759 = vmatpush1.bf16.msra.mxu0 0
    %9760 = vmatprep.subr.bf16.mxu0 0
    %9761 = vmatpush1.bf16.msra.mxu0 0
    %9762 = vmatprep.subr.bf16.mxu0 0
    %9763 = vmatpush1.bf16.msra.mxu0 0
    %9764 = vmatprep.subr.bf16.mxu0 0
    %9765 = vmatpush1.bf16.msra.mxu0 0
    %9766 = vmatprep.subr.bf16.mxu0 0
    %9767 = vmatpush1.bf16.msra.mxu0 0
    %9768 = vmatprep.subr.bf16.mxu0 0
    %9769 = vmatpush1.bf16.msra.mxu0 0
    %9770 = vmatprep.subr.bf16.mxu0 0
    %9771 = vmatpush1.bf16.msra.mxu0 0
    %9772 = vmatprep.subr.bf16.mxu0 0
    %9773 = vmatpush1.bf16.msra.mxu0 0
    %9774 = vmatprep.subr.bf16.mxu0 0
    %9775 = vmatpush1.bf16.msra.mxu0 0
    %9776 = vmatprep.subr.bf16.mxu0 0
    %9777 = vmatpush1.bf16.msra.mxu0 0
    %9778 = vmatprep.subr.bf16.mxu0 0
    %9779 = vmatpush1.bf16.msra.mxu0 0
    %9780 = vmatprep.subr.bf16.mxu0 0
    %9781 = vmatpush1.bf16.msra.mxu0 0
    %9782 = vmatprep.subr.bf16.mxu0 0
    %9783 = vmatpush1.bf16.msra.mxu0 0
    %9784 = vmatprep.mubr.bf16.mxu0 0
    %9785 = vmatmul.mubr.bf16.gmra.mrb[0].mxu0 %v9714
    %v9786 = vpop.f32.mrb[0].mxu0
    %v9787 = vadd.f32 0.0, %v9786
    %v9788 = vpop.f32.mrb[0].mxu0
    %v9789 = vadd.f32 0.0, %v9788
    %v9790 = vpop.f32.mrb[0].mxu0
    %v9791 = vpop.f32.mrb[0].mxu0
    %9792 = vdwg.mxu0
    %9793 = vmatprep.subr.bf16.mxu0 %v9726
    %9794 = vmatpush1.bf16.msra.mxu0 %v9723
    %9795 = vmatprep.subr.bf16.mxu0 0
    %9796 = vmatpush1.bf16.msra.mxu0 0
    %9797 = vmatprep.subr.bf16.mxu0 0
    %9798 = vmatpush1.bf16.msra.mxu0 0
    %9799 = vmatprep.subr.bf16.mxu0 0
    %9800 = vmatpush1.bf16.msra.mxu0 0
    %9801 = vmatprep.subr.bf16.mxu0 0
    %9802 = vmatpush1.bf16.msra.mxu0 0
    %9803 = vmatprep.subr.bf16.mxu0 0
    %9804 = vmatpush1.bf16.msra.mxu0 0
    %9805 = vmatprep.subr.bf16.mxu0 0
    %9806 = vmatpush1.bf16.msra.mxu0 0
    %9807 = vmatprep.subr.bf16.mxu0 0
    %9808 = vmatpush1.bf16.msra.mxu0 0
    %9809 = vmatprep.subr.bf16.mxu0 0
    %9810 = vmatpush1.bf16.msra.mxu0 0
    %9811 = vmatprep.subr.bf16.mxu0 0
    %9812 = vmatpush1.bf16.msra.mxu0 0
    %9813 = vmatprep.subr.bf16.mxu0 0
    %9814 = vmatpush1.bf16.msra.mxu0 0
    %9815 = vmatprep.subr.bf16.mxu0 0
    %9816 = vmatpush1.bf16.msra.mxu0 0
    %9817 = vmatprep.subr.bf16.mxu0 0
    %9818 = vmatpush1.bf16.msra.mxu0 0
    %9819 = vmatprep.subr.bf16.mxu0 0
    %9820 = vmatpush1.bf16.msra.mxu0 0
    %9821 = vmatprep.subr.bf16.mxu0 0
    %9822 = vmatpush1.bf16.msra.mxu0 0
    %9823 = vmatprep.subr.bf16.mxu0 0
    %9824 = vmatpush1.bf16.msra.mxu0 0
    %9825 = vmatprep.mubr.bf16.mxu0 0
    %9826 = vmatmul.mubr.bf16.gmra.mrb[0].mxu0 %v9714
    %v9827 = vpop.f32.mrb[0].mxu0
    %v9828 = vadd.f32 0.0, %v9827
    %v9829 = vpop.f32.mrb[0].mxu0
    %v9830 = vadd.f32 0.0, %v9829
    %v9831 = vpop.f32.mrb[0].mxu0
    %v9832 = vpop.f32.mrb[0].mxu0
    %9833 = vdwg.mxu0
    %9834 = vmatprep.subr.bf16.mxu0 %v9732
    %9835 = vmatpush1.bf16.msra.mxu0 %v9729
    %9836 = vmatprep.subr.bf16.mxu0 0
    %9837 = vmatpush1.bf16.msra.mxu0 0
    %9838 = vmatprep.subr.bf16.mxu0 0
    %9839 = vmatpush1.bf16.msra.mxu0 0
    %9840 = vmatprep.subr.bf16.mxu0 0
    %9841 = vmatpush1.bf16.msra.mxu0 0
    %9842 = vmatprep.subr.bf16.mxu0 0
    %9843 = vmatpush1.bf16.msra.mxu0 0
    %9844 = vmatprep.subr.bf16.mxu0 0
    %9845 = vmatpush1.bf16.msra.mxu0 0
    %9846 = vmatprep.subr.bf16.mxu0 0
    %9847 = vmatpush1.bf16.msra.mxu0 0
    %9848 = vmatprep.subr.bf16.mxu0 0
    %9849 = vmatpush1.bf16.msra.mxu0 0
    %9850 = vmatprep.subr.bf16.mxu0 0
    %9851 = vmatpush1.bf16.msra.mxu0 0
    %9852 = vmatprep.subr.bf16.mxu0 0
    %9853 = vmatpush1.bf16.msra.mxu0 0
    %9854 = vmatprep.subr.bf16.mxu0 0
    %9855 = vmatpush1.bf16.msra.mxu0 0
    %9856 = vmatprep.subr.bf16.mxu0 0
    %9857 = vmatpush1.bf16.msra.mxu0 0
    %9858 = vmatprep.subr.bf16.mxu0 0
    %9859 = vmatpush1.bf16.msra.mxu0 0
    %9860 = vmatprep.subr.bf16.mxu0 0
    %9861 = vmatpush1.bf16.msra.mxu0 0
    %9862 = vmatprep.subr.bf16.mxu0 0
    %9863 = vmatpush1.bf16.msra.mxu0 0
    %9864 = vmatprep.subr.bf16.mxu0 0
    %9865 = vmatpush1.bf16.msra.mxu0 0
    %9866 = vmatprep.mubr.bf16.mxu0 0
    %9867 = vmatmul.mubr.bf16.gmra.mrb[0].mxu0 %v9714
    %v9868 = vpop.f32.mrb[0].mxu0
    %v9869 = vadd.f32 0.0, %v9868
    %v9870 = vpop.f32.mrb[0].mxu0
    %v9871 = vadd.f32 0.0, %v9870
    %v9872 = vpop.f32.mrb[0].mxu0
    %v9873 = vpop.f32.mrb[0].mxu0
    %9874 = vdwg.mxu0
    %9875 = vmatprep.subr.bf16.mxu0 %v9738
    %9876 = vmatpush1.bf16.msra.mxu0 %v9735
    %9877 = vmatprep.subr.bf16.mxu0 0
    %9878 = vmatpush1.bf16.msra.mxu0 0
    %9879 = vmatprep.subr.bf16.mxu0 0
    %9880 = vmatpush1.bf16.msra.mxu0 0
    %9881 = vmatprep.subr.bf16.mxu0 0
    %9882 = vmatpush1.bf16.msra.mxu0 0
    %9883 = vmatprep.subr.bf16.mxu0 0
    %9884 = vmatpush1.bf16.msra.mxu0 0
    %9885 = vmatprep.subr.bf16.mxu0 0
    %9886 = vmatpush1.bf16.msra.mxu0 0
    %9887 = vmatprep.subr.bf16.mxu0 0
    %9888 = vmatpush1.bf16.msra.mxu0 0
    %9889 = vmatprep.subr.bf16.mxu0 0
    %9890 = vmatpush1.bf16.msra.mxu0 0
    %9891 = vmatprep.subr.bf16.mxu0 0
    %9892 = vmatpush1.bf16.msra.mxu0 0
    %9893 = vmatprep.subr.bf16.mxu0 0
    %9894 = vmatpush1.bf16.msra.mxu0 0
    %9895 = vmatprep.subr.bf16.mxu0 0
    %9896 = vmatpush1.bf16.msra.mxu0 0
    %9897 = vmatprep.subr.bf16.mxu0 0
    %9898 = vmatpush1.bf16.msra.mxu0 0
    %9899 = vmatprep.subr.bf16.mxu0 0
    %9900 = vmatpush1.bf16.msra.mxu0 0
    %9901 = vmatprep.subr.bf16.mxu0 0
    %9902 = vmatpush1.bf16.msra.mxu0 0
    %9903 = vmatprep.subr.bf16.mxu0 0
    %9904 = vmatpush1.bf16.msra.mxu0 0
    %9905 = vmatprep.subr.bf16.mxu0 0
    %9906 = vmatpush1.bf16.msra.mxu0 0
    %9907 = vmatprep.mubr.bf16.mxu0 0
    %9908 = vmatmul.mubr.bf16.gmra.mrb[0].mxu0 %v9714
    %v9909 = vpop.f32.mrb[0].mxu0
    %v9910 = vadd.f32 0.0, %v9909
    %v9911 = vpop.f32.mrb[0].mxu0
    %v9912 = vadd.f32 0.0, %v9911
    %v9913 = vpop.f32.mrb[0].mxu0
    %v9914 = vpop.f32.mrb[0].mxu0
    %9915 = vdwg.mxu0
    %9916 = vmatprep.subr.bf16.mxu0 %v9744
    %9917 = vmatpush1.bf16.msra.mxu0 %v9741
    %9918 = vmatprep.subr.bf16.mxu0 0
    %9919 = vmatpush1.bf16.msra.mxu0 0
    %9920 = vmatprep.subr.bf16.mxu0 0
    %9921 = vmatpush1.bf16.msra.mxu0 0
    %9922 = vmatprep.subr.bf16.mxu0 0
    %9923 = vmatpush1.bf16.msra.mxu0 0
    %9924 = vmatprep.subr.bf16.mxu0 0
    %9925 = vmatpush1.bf16.msra.mxu0 0
    %9926 = vmatprep.subr.bf16.mxu0 0
    %9927 = vmatpush1.bf16.msra.mxu0 0
    %9928 = vmatprep.subr.bf16.mxu0 0
    %9929 = vmatpush1.bf16.msra.mxu0 0
    %9930 = vmatprep.subr.bf16.mxu0 0
    %9931 = vmatpush1.bf16.msra.mxu0 0
    %9932 = vmatprep.subr.bf16.mxu0 0
    %9933 = vmatpush1.bf16.msra.mxu0 0
    %9934 = vmatprep.subr.bf16.mxu0 0
    %9935 = vmatpush1.bf16.msra.mxu0 0
    %9936 = vmatprep.subr.bf16.mxu0 0
    %9937 = vmatpush1.bf16.msra.mxu0 0
    %9938 = vmatprep.subr.bf16.mxu0 0
    %9939 = vmatpush1.bf16.msra.mxu0 0
    %9940 = vmatprep.subr.bf16.mxu0 0
    %9941 = vmatpush1.bf16.msra.mxu0 0
    %9942 = vmatprep.subr.bf16.mxu0 0
    %9943 = vmatpush1.bf16.msra.mxu0 0
    %9944 = vmatprep.subr.bf16.mxu0 0
    %9945 = vmatpush1.bf16.msra.mxu0 0
    %9946 = vmatprep.subr.bf16.mxu0 0
    %9947 = vmatpush1.bf16.msra.mxu0 0
    %9948 = vmatprep.mubr.bf16.mxu0 0
    %9949 = vmatmul.mubr.bf16.gmra.mrb[0].mxu0 %v9714
    %v9950 = vpop.f32.mrb[0].mxu0
    %v9951 = vadd.f32 0.0, %v9950
    %v9952 = vpop.f32.mrb[0].mxu0
    %v9953 = vadd.f32 0.0, %v9952
    %v9954 = vpop.f32.mrb[0].mxu0
    %v9955 = vpop.f32.mrb[0].mxu0
    %9956 = vdwg.mxu0
    %9957 = vmatprep.subr.bf16.mxu0 %v9750
    %9958 = vmatpush1.bf16.msra.mxu0 %v9747
    %9959 = vmatprep.subr.bf16.mxu0 0
    %9960 = vmatpush1.bf16.msra.mxu0 0
    %9961 = vmatprep.subr.bf16.mxu0 0
    %9962 = vmatpush1.bf16.msra.mxu0 0
    %9963 = vmatprep.subr.bf16.mxu0 0
    %9964 = vmatpush1.bf16.msra.mxu0 0
    %9965 = vmatprep.subr.bf16.mxu0 0
    %9966 = vmatpush1.bf16.msra.mxu0 0
    %9967 = vmatprep.subr.bf16.mxu0 0
    %9968 = vmatpush1.bf16.msra.mxu0 0
    %9969 = vmatprep.subr.bf16.mxu0 0
    %9970 = vmatpush1.bf16.msra.mxu0 0
    %9971 = vmatprep.subr.bf16.mxu0 0
    %9972 = vmatpush1.bf16.msra.mxu0 0
    %9973 = vmatprep.subr.bf16.mxu0 0
    %9974 = vmatpush1.bf16.msra.mxu0 0
    %9975 = vmatprep.subr.bf16.mxu0 0
    %9976 = vmatpush1.bf16.msra.mxu0 0
    %9977 = vmatprep.subr.bf16.mxu0 0
    %9978 = vmatpush1.bf16.msra.mxu0 0
    %9979 = vmatprep.subr.bf16.mxu0 0
    %9980 = vmatpush1.bf16.msra.mxu0 0
    %9981 = vmatprep.subr.bf16.mxu0 0
    %9982 = vmatpush1.bf16.msra.mxu0 0
    %9983 = vmatprep.subr.bf16.mxu0 0
    %9984 = vmatpush1.bf16.msra.mxu0 0
    %9985 = vmatprep.subr.bf16.mxu0 0
    %9986 = vmatpush1.bf16.msra.mxu0 0
    %9987 = vmatprep.subr.bf16.mxu0 0
    %9988 = vmatpush1.bf16.msra.mxu0 0
    %9989 = vmatprep.mubr.bf16.mxu0 0
    %9990 = vmatmul.mubr.bf16.gmra.mrb[0].mxu0 %v9714
    %v9991 = vpop.f32.mrb[0].mxu0
    %v9992 = vadd.f32 0.0, %v9991
    %v9993 = vpop.f32.mrb[0].mxu0
    %v9994 = vadd.f32 0.0, %v9993
    %v9995 = vpop.f32.mrb[0].mxu0
    %v9996 = vpop.f32.mrb[0].mxu0
    %9997 = vdwg.mxu0
    %v9998 = vadd.f32 %v9607, %v9787
    %v9999 = vadd.f32 %v9608, %v9789
    %v10000 = vadd.f32 %v9609, %v9828
    %v10001 = vadd.f32 %v9610, %v9830
    %v10002 = vadd.f32 %v9611, %v9869
    %v10003 = vadd.f32 %v9612, %v9871
    %v10004 = vadd.f32 %v9613, %v9910
    %v10005 = vadd.f32 %v9614, %v9912
    %v10006 = vadd.f32 %v9615, %v9951
    %v10007 = vadd.f32 %v9616, %v9953
    %v10008 = vadd.f32 %v9617, %v9992
    %v10009 = vadd.f32 %v9618, %v9994
    %s10010 = scalar_lea.vmem [#allocation3], 288
    %v10011 = vld [vmem:[%s10010] ss:$8 sm:$0xf]
    %v10012 = vld [vmem:[%s10010] ss:$8 sm:$0xf0]
    %v10013 = vor.u32 %v10011, %v10012
    %s10014 = scalar_lea.vmem [#allocation3], 352
    %v10015 = vld [vmem:[%s10014] ss:$8 sm:$0xf]
    %v10018 = vlaneseq
    %v10019 = vshrl.u32 %v10018, 7
    %v10020 = vsub.s32 0, %v10019
    %v10021 = vrot.slane %v10013, %v10020
    %v10022 = vlaneseq
    %v10023 = vshrl.u32 %v10022, 7
    %v10024 = vsub.s32 1, %v10023
    %v10025 = vrot.slane %v10013, %v10024
    %v10026 = vlaneseq
    %v10027 = vshrl.u32 %v10026, 7
    %v10028 = vsub.s32 2, %v10027
    %v10029 = vrot.slane %v10013, %v10028
    %v10030 = vlaneseq
    %v10031 = vshrl.u32 %v10030, 7
    %v10032 = vsub.s32 3, %v10031
    %v10033 = vrot.slane %v10013, %v10032
    %v10034 = vlaneseq
    %v10035 = vshrl.u32 %v10034, 7
    %v10036 = vsub.s32 4, %v10035
    %v10037 = vrot.slane %v10013, %v10036
    %v10038 = vlaneseq
    %v10039 = vshrl.u32 %v10038, 7
    %v10040 = vsub.s32 5, %v10039
    %v10041 = vrot.slane %v10013, %v10040
    %v10042 = vlaneseq
    %v10043 = vshrl.u32 %v10042, 7
    %v10044 = vsub.s32 6, %v10043
    %v10045 = vrot.slane %v10013, %v10044
    %v10046 = vlaneseq
    %v10047 = vshrl.u32 %v10046, 7
    %v10048 = vsub.s32 7, %v10047
    %v10049 = vrot.slane %v10013, %v10048
    %v10050 = vlaneseq
    %v10051 = vshrl.u32 %v10050, 7
    %v10052 = vsub.s32 0, %v10051
    %v10053 = vrot.slane %v10015, %v10052
    %v10054 = vlaneseq
    %v10055 = vshrl.u32 %v10054, 7
    %v10056 = vsub.s32 1, %v10055
    %v10057 = vrot.slane %v10015, %v10056
    %v10058 = vlaneseq
    %v10059 = vshrl.u32 %v10058, 7
    %v10060 = vsub.s32 2, %v10059
    %v10061 = vrot.slane %v10015, %v10060
    %v10062 = vlaneseq
    %v10063 = vshrl.u32 %v10062, 7
    %v10064 = vsub.s32 3, %v10063
    %v10065 = vrot.slane %v10015, %v10064
    %v10078 = vmul.f32 %v2680, %v10021
    %v10079 = vmul.f32 %v2679, %v10025
    %v10080 = vmul.f32 %v2678, %v10029
    %v10081 = vmul.f32 %v2677, %v10033
    %v10082 = vmul.f32 %v2676, %v10037
    %v10083 = vmul.f32 %v2675, %v10041
    %v10084 = vmul.f32 %v2674, %v10045
    %v10085 = vmul.f32 %v2673, %v10049
    %v10086 = vmul.f32 %v2672, %v10053
    %v10087 = vmul.f32 %v2671, %v10057
    %v10088 = vmul.f32 %v2670, %v10061
    %v10089 = vmul.f32 %v2681, %v10065
    %s10090 = scalar_lea.vmem %s1, 96
    %v10091 = vld [vmem:[%s10090] sm:$0xf]
    %v10092 = vpack.c.bf16 %v10078, %v10078
    %v10093 = vpack.c.bf16 %v10079, %v10079
    %v10094 = vpack.c.bf16 %v10080, %v10080
    %v10095 = vpack.c.bf16 %v10081, %v10081
    %v10096 = vpack.c.bf16 %v10082, %v10082
    %v10097 = vpack.c.bf16 %v10083, %v10083
    %v10098 = vpack.c.bf16 %v10084, %v10084
    %v10099 = vpack.c.bf16 %v10085, %v10085
    %v10100 = vpack.c.bf16 %v10086, %v10086
    %v10101 = vpack.c.bf16 %v10087, %v10087
    %v10102 = vpack.c.bf16 %v10088, %v10088
    %v10103 = vpack.c.bf16 %v10089, %v10089
    %v10105 = vsel %vm361, %v10091, 0
    %v10108 = vsel %vm365, %v10092, 0
    %v10111 = vsel %vm365, %v10093, 0
    %v10114 = vsel %vm365, %v10094, 0
    %v10117 = vsel %vm365, %v10095, 0
    %v10120 = vsel %vm365, %v10096, 0
    %v10123 = vsel %vm365, %v10097, 0
    %v10126 = vsel %vm365, %v10098, 0
    %v10129 = vsel %vm365, %v10099, 0
    %v10132 = vsel %vm365, %v10100, 0
    %v10135 = vsel %vm365, %v10101, 0
    %v10138 = vsel %vm365, %v10102, 0
    %v10141 = vsel %vm365, %v10103, 0
    %10143 = vmatprep.subr.bf16.mxu0 %v10111
    %10144 = vmatpush1.bf16.msra.mxu0 %v10108
    %10145 = vmatprep.subr.bf16.mxu0 0
    %10146 = vmatpush1.bf16.msra.mxu0 0
    %10147 = vmatprep.subr.bf16.mxu0 0
    %10148 = vmatpush1.bf16.msra.mxu0 0
    %10149 = vmatprep.subr.bf16.mxu0 0
    %10150 = vmatpush1.bf16.msra.mxu0 0
    %10151 = vmatprep.subr.bf16.mxu0 0
    %10152 = vmatpush1.bf16.msra.mxu0 0
    %10153 = vmatprep.subr.bf16.mxu0 0
    %10154 = vmatpush1.bf16.msra.mxu0 0
    %10155 = vmatprep.subr.bf16.mxu0 0
    %10156 = vmatpush1.bf16.msra.mxu0 0
    %10157 = vmatprep.subr.bf16.mxu0 0
    %10158 = vmatpush1.bf16.msra.mxu0 0
    %10159 = vmatprep.subr.bf16.mxu0 0
    %10160 = vmatpush1.bf16.msra.mxu0 0
    %10161 = vmatprep.subr.bf16.mxu0 0
    %10162 = vmatpush1.bf16.msra.mxu0 0
    %10163 = vmatprep.subr.bf16.mxu0 0
    %10164 = vmatpush1.bf16.msra.mxu0 0
    %10165 = vmatprep.subr.bf16.mxu0 0
    %10166 = vmatpush1.bf16.msra.mxu0 0
    %10167 = vmatprep.subr.bf16.mxu0 0
    %10168 = vmatpush1.bf16.msra.mxu0 0
    %10169 = vmatprep.subr.bf16.mxu0 0
    %10170 = vmatpush1.bf16.msra.mxu0 0
    %10171 = vmatprep.subr.bf16.mxu0 0
    %10172 = vmatpush1.bf16.msra.mxu0 0
    %10173 = vmatprep.subr.bf16.mxu0 0
    %10174 = vmatpush1.bf16.msra.mxu0 0
    %10175 = vmatprep.mubr.bf16.mxu0 0
    %10176 = vmatmul.mubr.bf16.gmra.mrb[0].mxu0 %v10105
    %v10177 = vpop.f32.mrb[0].mxu0
    %v10178 = vadd.f32 0.0, %v10177
    %v10179 = vpop.f32.mrb[0].mxu0
    %v10180 = vadd.f32 0.0, %v10179
    %v10181 = vpop.f32.mrb[0].mxu0
    %v10182 = vpop.f32.mrb[0].mxu0
    %10183 = vdwg.mxu0
    %10184 = vmatprep.subr.bf16.mxu0 %v10117
    %10185 = vmatpush1.bf16.msra.mxu0 %v10114
    %10186 = vmatprep.subr.bf16.mxu0 0
    %10187 = vmatpush1.bf16.msra.mxu0 0
    %10188 = vmatprep.subr.bf16.mxu0 0
    %10189 = vmatpush1.bf16.msra.mxu0 0
    %10190 = vmatprep.subr.bf16.mxu0 0
    %10191 = vmatpush1.bf16.msra.mxu0 0
    %10192 = vmatprep.subr.bf16.mxu0 0
    %10193 = vmatpush1.bf16.msra.mxu0 0
    %10194 = vmatprep.subr.bf16.mxu0 0
    %10195 = vmatpush1.bf16.msra.mxu0 0
    %10196 = vmatprep.subr.bf16.mxu0 0
    %10197 = vmatpush1.bf16.msra.mxu0 0
    %10198 = vmatprep.subr.bf16.mxu0 0
    %10199 = vmatpush1.bf16.msra.mxu0 0
    %10200 = vmatprep.subr.bf16.mxu0 0
    %10201 = vmatpush1.bf16.msra.mxu0 0
    %10202 = vmatprep.subr.bf16.mxu0 0
    %10203 = vmatpush1.bf16.msra.mxu0 0
    %10204 = vmatprep.subr.bf16.mxu0 0
    %10205 = vmatpush1.bf16.msra.mxu0 0
    %10206 = vmatprep.subr.bf16.mxu0 0
    %10207 = vmatpush1.bf16.msra.mxu0 0
    %10208 = vmatprep.subr.bf16.mxu0 0
    %10209 = vmatpush1.bf16.msra.mxu0 0
    %10210 = vmatprep.subr.bf16.mxu0 0
    %10211 = vmatpush1.bf16.msra.mxu0 0
    %10212 = vmatprep.subr.bf16.mxu0 0
    %10213 = vmatpush1.bf16.msra.mxu0 0
    %10214 = vmatprep.subr.bf16.mxu0 0
    %10215 = vmatpush1.bf16.msra.mxu0 0
    %10216 = vmatprep.mubr.bf16.mxu0 0
    %10217 = vmatmul.mubr.bf16.gmra.mrb[0].mxu0 %v10105
    %v10218 = vpop.f32.mrb[0].mxu0
    %v10219 = vadd.f32 0.0, %v10218
    %v10220 = vpop.f32.mrb[0].mxu0
    %v10221 = vadd.f32 0.0, %v10220
    %v10222 = vpop.f32.mrb[0].mxu0
    %v10223 = vpop.f32.mrb[0].mxu0
    %10224 = vdwg.mxu0
    %10225 = vmatprep.subr.bf16.mxu0 %v10123
    %10226 = vmatpush1.bf16.msra.mxu0 %v10120
    %10227 = vmatprep.subr.bf16.mxu0 0
    %10228 = vmatpush1.bf16.msra.mxu0 0
    %10229 = vmatprep.subr.bf16.mxu0 0
    %10230 = vmatpush1.bf16.msra.mxu0 0
    %10231 = vmatprep.subr.bf16.mxu0 0
    %10232 = vmatpush1.bf16.msra.mxu0 0
    %10233 = vmatprep.subr.bf16.mxu0 0
    %10234 = vmatpush1.bf16.msra.mxu0 0
    %10235 = vmatprep.subr.bf16.mxu0 0
    %10236 = vmatpush1.bf16.msra.mxu0 0
    %10237 = vmatprep.subr.bf16.mxu0 0
    %10238 = vmatpush1.bf16.msra.mxu0 0
    %10239 = vmatprep.subr.bf16.mxu0 0
    %10240 = vmatpush1.bf16.msra.mxu0 0
    %10241 = vmatprep.subr.bf16.mxu0 0
    %10242 = vmatpush1.bf16.msra.mxu0 0
    %10243 = vmatprep.subr.bf16.mxu0 0
    %10244 = vmatpush1.bf16.msra.mxu0 0
    %10245 = vmatprep.subr.bf16.mxu0 0
    %10246 = vmatpush1.bf16.msra.mxu0 0
    %10247 = vmatprep.subr.bf16.mxu0 0
    %10248 = vmatpush1.bf16.msra.mxu0 0
    %10249 = vmatprep.subr.bf16.mxu0 0
    %10250 = vmatpush1.bf16.msra.mxu0 0
    %10251 = vmatprep.subr.bf16.mxu0 0
    %10252 = vmatpush1.bf16.msra.mxu0 0
    %10253 = vmatprep.subr.bf16.mxu0 0
    %10254 = vmatpush1.bf16.msra.mxu0 0
    %10255 = vmatprep.subr.bf16.mxu0 0
    %10256 = vmatpush1.bf16.msra.mxu0 0
    %10257 = vmatprep.mubr.bf16.mxu0 0
    %10258 = vmatmul.mubr.bf16.gmra.mrb[0].mxu0 %v10105
    %v10259 = vpop.f32.mrb[0].mxu0
    %v10260 = vadd.f32 0.0, %v10259
    %v10261 = vpop.f32.mrb[0].mxu0
    %v10262 = vadd.f32 0.0, %v10261
    %v10263 = vpop.f32.mrb[0].mxu0
    %v10264 = vpop.f32.mrb[0].mxu0
    %10265 = vdwg.mxu0
    %10266 = vmatprep.subr.bf16.mxu0 %v10129
    %10267 = vmatpush1.bf16.msra.mxu0 %v10126
    %10268 = vmatprep.subr.bf16.mxu0 0
    %10269 = vmatpush1.bf16.msra.mxu0 0
    %10270 = vmatprep.subr.bf16.mxu0 0
    %10271 = vmatpush1.bf16.msra.mxu0 0
    %10272 = vmatprep.subr.bf16.mxu0 0
    %10273 = vmatpush1.bf16.msra.mxu0 0
    %10274 = vmatprep.subr.bf16.mxu0 0
    %10275 = vmatpush1.bf16.msra.mxu0 0
    %10276 = vmatprep.subr.bf16.mxu0 0
    %10277 = vmatpush1.bf16.msra.mxu0 0
    %10278 = vmatprep.subr.bf16.mxu0 0
    %10279 = vmatpush1.bf16.msra.mxu0 0
    %10280 = vmatprep.subr.bf16.mxu0 0
    %10281 = vmatpush1.bf16.msra.mxu0 0
    %10282 = vmatprep.subr.bf16.mxu0 0
    %10283 = vmatpush1.bf16.msra.mxu0 0
    %10284 = vmatprep.subr.bf16.mxu0 0
    %10285 = vmatpush1.bf16.msra.mxu0 0
    %10286 = vmatprep.subr.bf16.mxu0 0
    %10287 = vmatpush1.bf16.msra.mxu0 0
    %10288 = vmatprep.subr.bf16.mxu0 0
    %10289 = vmatpush1.bf16.msra.mxu0 0
    %10290 = vmatprep.subr.bf16.mxu0 0
    %10291 = vmatpush1.bf16.msra.mxu0 0
    %10292 = vmatprep.subr.bf16.mxu0 0
    %10293 = vmatpush1.bf16.msra.mxu0 0
    %10294 = vmatprep.subr.bf16.mxu0 0
    %10295 = vmatpush1.bf16.msra.mxu0 0
    %10296 = vmatprep.subr.bf16.mxu0 0
    %10297 = vmatpush1.bf16.msra.mxu0 0
    %10298 = vmatprep.mubr.bf16.mxu0 0
    %10299 = vmatmul.mubr.bf16.gmra.mrb[0].mxu0 %v10105
    %v10300 = vpop.f32.mrb[0].mxu0
    %v10301 = vadd.f32 0.0, %v10300
    %v10302 = vpop.f32.mrb[0].mxu0
    %v10303 = vadd.f32 0.0, %v10302
    %v10304 = vpop.f32.mrb[0].mxu0
    %v10305 = vpop.f32.mrb[0].mxu0
    %10306 = vdwg.mxu0
    %10307 = vmatprep.subr.bf16.mxu0 %v10135
    %10308 = vmatpush1.bf16.msra.mxu0 %v10132
    %10309 = vmatprep.subr.bf16.mxu0 0
    %10310 = vmatpush1.bf16.msra.mxu0 0
    %10311 = vmatprep.subr.bf16.mxu0 0
    %10312 = vmatpush1.bf16.msra.mxu0 0
    %10313 = vmatprep.subr.bf16.mxu0 0
    %10314 = vmatpush1.bf16.msra.mxu0 0
    %10315 = vmatprep.subr.bf16.mxu0 0
    %10316 = vmatpush1.bf16.msra.mxu0 0
    %10317 = vmatprep.subr.bf16.mxu0 0
    %10318 = vmatpush1.bf16.msra.mxu0 0
    %10319 = vmatprep.subr.bf16.mxu0 0
    %10320 = vmatpush1.bf16.msra.mxu0 0
    %10321 = vmatprep.subr.bf16.mxu0 0
    %10322 = vmatpush1.bf16.msra.mxu0 0
    %10323 = vmatprep.subr.bf16.mxu0 0
    %10324 = vmatpush1.bf16.msra.mxu0 0
    %10325 = vmatprep.subr.bf16.mxu0 0
    %10326 = vmatpush1.bf16.msra.mxu0 0
    %10327 = vmatprep.subr.bf16.mxu0 0
    %10328 = vmatpush1.bf16.msra.mxu0 0
    %10329 = vmatprep.subr.bf16.mxu0 0
    %10330 = vmatpush1.bf16.msra.mxu0 0
    %10331 = vmatprep.subr.bf16.mxu0 0
    %10332 = vmatpush1.bf16.msra.mxu0 0
    %10333 = vmatprep.subr.bf16.mxu0 0
    %10334 = vmatpush1.bf16.msra.mxu0 0
    %10335 = vmatprep.subr.bf16.mxu0 0
    %10336 = vmatpush1.bf16.msra.mxu0 0
    %10337 = vmatprep.subr.bf16.mxu0 0
    %10338 = vmatpush1.bf16.msra.mxu0 0
    %10339 = vmatprep.mubr.bf16.mxu0 0
    %10340 = vmatmul.mubr.bf16.gmra.mrb[0].mxu0 %v10105
    %v10341 = vpop.f32.mrb[0].mxu0
    %v10342 = vadd.f32 0.0, %v10341
    %v10343 = vpop.f32.mrb[0].mxu0
    %v10344 = vadd.f32 0.0, %v10343
    %v10345 = vpop.f32.mrb[0].mxu0
    %v10346 = vpop.f32.mrb[0].mxu0
    %10347 = vdwg.mxu0
    %10348 = vmatprep.subr.bf16.mxu0 %v10141
    %10349 = vmatpush1.bf16.msra.mxu0 %v10138
    %10350 = vmatprep.subr.bf16.mxu0 0
    %10351 = vmatpush1.bf16.msra.mxu0 0
    %10352 = vmatprep.subr.bf16.mxu0 0
    %10353 = vmatpush1.bf16.msra.mxu0 0
    %10354 = vmatprep.subr.bf16.mxu0 0
    %10355 = vmatpush1.bf16.msra.mxu0 0
    %10356 = vmatprep.subr.bf16.mxu0 0
    %10357 = vmatpush1.bf16.msra.mxu0 0
    %10358 = vmatprep.subr.bf16.mxu0 0
    %10359 = vmatpush1.bf16.msra.mxu0 0
    %10360 = vmatprep.subr.bf16.mxu0 0
    %10361 = vmatpush1.bf16.msra.mxu0 0
    %10362 = vmatprep.subr.bf16.mxu0 0
    %10363 = vmatpush1.bf16.msra.mxu0 0
    %10364 = vmatprep.subr.bf16.mxu0 0
    %10365 = vmatpush1.bf16.msra.mxu0 0
    %10366 = vmatprep.subr.bf16.mxu0 0
    %10367 = vmatpush1.bf16.msra.mxu0 0
    %10368 = vmatprep.subr.bf16.mxu0 0
    %10369 = vmatpush1.bf16.msra.mxu0 0
    %10370 = vmatprep.subr.bf16.mxu0 0
    %10371 = vmatpush1.bf16.msra.mxu0 0
    %10372 = vmatprep.subr.bf16.mxu0 0
    %10373 = vmatpush1.bf16.msra.mxu0 0
    %10374 = vmatprep.subr.bf16.mxu0 0
    %10375 = vmatpush1.bf16.msra.mxu0 0
    %10376 = vmatprep.subr.bf16.mxu0 0
    %10377 = vmatpush1.bf16.msra.mxu0 0
    %10378 = vmatprep.subr.bf16.mxu0 0
    %10379 = vmatpush1.bf16.msra.mxu0 0
    %10380 = vmatprep.mubr.bf16.mxu0 0
    %10381 = vmatmul.mubr.bf16.gmra.mrb[0].mxu0 %v10105
    %v10382 = vpop.f32.mrb[0].mxu0
    %v10383 = vadd.f32 0.0, %v10382
    %v10384 = vpop.f32.mrb[0].mxu0
    %v10385 = vadd.f32 0.0, %v10384
    %v10386 = vpop.f32.mrb[0].mxu0
    %v10387 = vpop.f32.mrb[0].mxu0
    %10388 = vdwg.mxu0
    %v10389 = vadd.f32 %v9998, %v10178
    %v10390 = vadd.f32 %v9999, %v10180
    %v10391 = vadd.f32 %v10000, %v10219
    %v10392 = vadd.f32 %v10001, %v10221
    %v10393 = vadd.f32 %v10002, %v10260
    %v10394 = vadd.f32 %v10003, %v10262
    %v10395 = vadd.f32 %v10004, %v10301
    %v10396 = vadd.f32 %v10005, %v10303
    %v10397 = vadd.f32 %v10006, %v10342
    %v10398 = vadd.f32 %v10007, %v10344
    %v10399 = vadd.f32 %v10008, %v10383
    %v10400 = vadd.f32 %v10009, %v10385
    %s10401 = scalar_lea.vmem [#allocation3], 289
    %v10402 = vld [vmem:[%s10401] ss:$8 sm:$0xf]
    %v10403 = vld [vmem:[%s10401] ss:$8 sm:$0xf0]
    %v10404 = vor.u32 %v10402, %v10403
    %s10405 = scalar_lea.vmem [#allocation3], 353
    %v10406 = vld [vmem:[%s10405] ss:$8 sm:$0xf]
    %v10409 = vlaneseq
    %v10410 = vshrl.u32 %v10409, 7
    %v10411 = vsub.s32 0, %v10410
    %v10412 = vrot.slane %v10404, %v10411
    %v10413 = vlaneseq
    %v10414 = vshrl.u32 %v10413, 7
    %v10415 = vsub.s32 1, %v10414
    %v10416 = vrot.slane %v10404, %v10415
    %v10417 = vlaneseq
    %v10418 = vshrl.u32 %v10417, 7
    %v10419 = vsub.s32 2, %v10418
    %v10420 = vrot.slane %v10404, %v10419
    %v10421 = vlaneseq
    %v10422 = vshrl.u32 %v10421, 7
    %v10423 = vsub.s32 3, %v10422
    %v10424 = vrot.slane %v10404, %v10423
    %v10425 = vlaneseq
    %v10426 = vshrl.u32 %v10425, 7
    %v10427 = vsub.s32 4, %v10426
    %v10428 = vrot.slane %v10404, %v10427
    %v10429 = vlaneseq
    %v10430 = vshrl.u32 %v10429, 7
    %v10431 = vsub.s32 5, %v10430
    %v10432 = vrot.slane %v10404, %v10431
    %v10433 = vlaneseq
    %v10434 = vshrl.u32 %v10433, 7
    %v10435 = vsub.s32 6, %v10434
    %v10436 = vrot.slane %v10404, %v10435
    %v10437 = vlaneseq
    %v10438 = vshrl.u32 %v10437, 7
    %v10439 = vsub.s32 7, %v10438
    %v10440 = vrot.slane %v10404, %v10439
    %v10441 = vlaneseq
    %v10442 = vshrl.u32 %v10441, 7
    %v10443 = vsub.s32 0, %v10442
    %v10444 = vrot.slane %v10406, %v10443
    %v10445 = vlaneseq
    %v10446 = vshrl.u32 %v10445, 7
    %v10447 = vsub.s32 1, %v10446
    %v10448 = vrot.slane %v10406, %v10447
    %v10449 = vlaneseq
    %v10450 = vshrl.u32 %v10449, 7
    %v10451 = vsub.s32 2, %v10450
    %v10452 = vrot.slane %v10406, %v10451
    %v10453 = vlaneseq
    %v10454 = vshrl.u32 %v10453, 7
    %v10455 = vsub.s32 3, %v10454
    %v10456 = vrot.slane %v10406, %v10455
    %v10469 = vmul.f32 %v3108, %v10412
    %v10470 = vmul.f32 %v3107, %v10416
    %v10471 = vmul.f32 %v3106, %v10420
    %v10472 = vmul.f32 %v3105, %v10424
    %v10473 = vmul.f32 %v3104, %v10428
    %v10474 = vmul.f32 %v3103, %v10432
    %v10475 = vmul.f32 %v3102, %v10436
    %v10476 = vmul.f32 %v3101, %v10440
    %v10477 = vmul.f32 %v3100, %v10444
    %v10478 = vmul.f32 %v3099, %v10448
    %v10479 = vmul.f32 %v3098, %v10452
    %v10480 = vmul.f32 %v3109, %v10456
    %s10481 = scalar_lea.vmem %s1, 100
    %v10482 = vld [vmem:[%s10481] sm:$0xf]
    %v10483 = vpack.c.bf16 %v10469, %v10469
    %v10484 = vpack.c.bf16 %v10470, %v10470
    %v10485 = vpack.c.bf16 %v10471, %v10471
    %v10486 = vpack.c.bf16 %v10472, %v10472
    %v10487 = vpack.c.bf16 %v10473, %v10473
    %v10488 = vpack.c.bf16 %v10474, %v10474
    %v10489 = vpack.c.bf16 %v10475, %v10475
    %v10490 = vpack.c.bf16 %v10476, %v10476
    %v10491 = vpack.c.bf16 %v10477, %v10477
    %v10492 = vpack.c.bf16 %v10478, %v10478
    %v10493 = vpack.c.bf16 %v10479, %v10479
    %v10494 = vpack.c.bf16 %v10480, %v10480
    %v10496 = vsel %vm361, %v10482, 0
    %v10499 = vsel %vm365, %v10483, 0
    %v10502 = vsel %vm365, %v10484, 0
    %v10505 = vsel %vm365, %v10485, 0
    %v10508 = vsel %vm365, %v10486, 0
    %v10511 = vsel %vm365, %v10487, 0
    %v10514 = vsel %vm365, %v10488, 0
    %v10517 = vsel %vm365, %v10489, 0
    %v10520 = vsel %vm365, %v10490, 0
    %v10523 = vsel %vm365, %v10491, 0
    %v10526 = vsel %vm365, %v10492, 0
    %v10529 = vsel %vm365, %v10493, 0
    %v10532 = vsel %vm365, %v10494, 0
    %10534 = vmatprep.subr.bf16.mxu0 %v10502
    %10535 = vmatpush1.bf16.msra.mxu0 %v10499
    %10536 = vmatprep.subr.bf16.mxu0 0
    %10537 = vmatpush1.bf16.msra.mxu0 0
    %10538 = vmatprep.subr.bf16.mxu0 0
    %10539 = vmatpush1.bf16.msra.mxu0 0
    %10540 = vmatprep.subr.bf16.mxu0 0
    %10541 = vmatpush1.bf16.msra.mxu0 0
    %10542 = vmatprep.subr.bf16.mxu0 0
    %10543 = vmatpush1.bf16.msra.mxu0 0
    %10544 = vmatprep.subr.bf16.mxu0 0
    %10545 = vmatpush1.bf16.msra.mxu0 0
    %10546 = vmatprep.subr.bf16.mxu0 0
    %10547 = vmatpush1.bf16.msra.mxu0 0
    %10548 = vmatprep.subr.bf16.mxu0 0
    %10549 = vmatpush1.bf16.msra.mxu0 0
    %10550 = vmatprep.subr.bf16.mxu0 0
    %10551 = vmatpush1.bf16.msra.mxu0 0
    %10552 = vmatprep.subr.bf16.mxu0 0
    %10553 = vmatpush1.bf16.msra.mxu0 0
    %10554 = vmatprep.subr.bf16.mxu0 0
    %10555 = vmatpush1.bf16.msra.mxu0 0
    %10556 = vmatprep.subr.bf16.mxu0 0
    %10557 = vmatpush1.bf16.msra.mxu0 0
    %10558 = vmatprep.subr.bf16.mxu0 0
    %10559 = vmatpush1.bf16.msra.mxu0 0
    %10560 = vmatprep.subr.bf16.mxu0 0
    %10561 = vmatpush1.bf16.msra.mxu0 0
    %10562 = vmatprep.subr.bf16.mxu0 0
    %10563 = vmatpush1.bf16.msra.mxu0 0
    %10564 = vmatprep.subr.bf16.mxu0 0
    %10565 = vmatpush1.bf16.msra.mxu0 0
    %10566 = vmatprep.mubr.bf16.mxu0 0
    %10567 = vmatmul.mubr.bf16.gmra.mrb[0].mxu0 %v10496
    %v10568 = vpop.f32.mrb[0].mxu0
    %v10569 = vadd.f32 0.0, %v10568
    %v10570 = vpop.f32.mrb[0].mxu0
    %v10571 = vadd.f32 0.0, %v10570
    %v10572 = vpop.f32.mrb[0].mxu0
    %v10573 = vpop.f32.mrb[0].mxu0
    %10574 = vdwg.mxu0
    %10575 = vmatprep.subr.bf16.mxu0 %v10508
    %10576 = vmatpush1.bf16.msra.mxu0 %v10505
    %10577 = vmatprep.subr.bf16.mxu0 0
    %10578 = vmatpush1.bf16.msra.mxu0 0
    %10579 = vmatprep.subr.bf16.mxu0 0
    %10580 = vmatpush1.bf16.msra.mxu0 0
    %10581 = vmatprep.subr.bf16.mxu0 0
    %10582 = vmatpush1.bf16.msra.mxu0 0
    %10583 = vmatprep.subr.bf16.mxu0 0
    %10584 = vmatpush1.bf16.msra.mxu0 0
    %10585 = vmatprep.subr.bf16.mxu0 0
    %10586 = vmatpush1.bf16.msra.mxu0 0
    %10587 = vmatprep.subr.bf16.mxu0 0
    %10588 = vmatpush1.bf16.msra.mxu0 0
    %10589 = vmatprep.subr.bf16.mxu0 0
    %10590 = vmatpush1.bf16.msra.mxu0 0
    %10591 = vmatprep.subr.bf16.mxu0 0
    %10592 = vmatpush1.bf16.msra.mxu0 0
    %10593 = vmatprep.subr.bf16.mxu0 0
    %10594 = vmatpush1.bf16.msra.mxu0 0
    %10595 = vmatprep.subr.bf16.mxu0 0
    %10596 = vmatpush1.bf16.msra.mxu0 0
    %10597 = vmatprep.subr.bf16.mxu0 0
    %10598 = vmatpush1.bf16.msra.mxu0 0
    %10599 = vmatprep.subr.bf16.mxu0 0
    %10600 = vmatpush1.bf16.msra.mxu0 0
    %10601 = vmatprep.subr.bf16.mxu0 0
    %10602 = vmatpush1.bf16.msra.mxu0 0
    %10603 = vmatprep.subr.bf16.mxu0 0
    %10604 = vmatpush1.bf16.msra.mxu0 0
    %10605 = vmatprep.subr.bf16.mxu0 0
    %10606 = vmatpush1.bf16.msra.mxu0 0
    %10607 = vmatprep.mubr.bf16.mxu0 0
    %10608 = vmatmul.mubr.bf16.gmra.mrb[0].mxu0 %v10496
    %v10609 = vpop.f32.mrb[0].mxu0
    %v10610 = vadd.f32 0.0, %v10609
    %v10611 = vpop.f32.mrb[0].mxu0
    %v10612 = vadd.f32 0.0, %v10611
    %v10613 = vpop.f32.mrb[0].mxu0
    %v10614 = vpop.f32.mrb[0].mxu0
    %10615 = vdwg.mxu0
    %10616 = vmatprep.subr.bf16.mxu0 %v10514
    %10617 = vmatpush1.bf16.msra.mxu0 %v10511
    %10618 = vmatprep.subr.bf16.mxu0 0
    %10619 = vmatpush1.bf16.msra.mxu0 0
    %10620 = vmatprep.subr.bf16.mxu0 0
    %10621 = vmatpush1.bf16.msra.mxu0 0
    %10622 = vmatprep.subr.bf16.mxu0 0
    %10623 = vmatpush1.bf16.msra.mxu0 0
    %10624 = vmatprep.subr.bf16.mxu0 0
    %10625 = vmatpush1.bf16.msra.mxu0 0
    %10626 = vmatprep.subr.bf16.mxu0 0
    %10627 = vmatpush1.bf16.msra.mxu0 0
    %10628 = vmatprep.subr.bf16.mxu0 0
    %10629 = vmatpush1.bf16.msra.mxu0 0
    %10630 = vmatprep.subr.bf16.mxu0 0
    %10631 = vmatpush1.bf16.msra.mxu0 0
    %10632 = vmatprep.subr.bf16.mxu0 0
    %10633 = vmatpush1.bf16.msra.mxu0 0
    %10634 = vmatprep.subr.bf16.mxu0 0
    %10635 = vmatpush1.bf16.msra.mxu0 0
    %10636 = vmatprep.subr.bf16.mxu0 0
    %10637 = vmatpush1.bf16.msra.mxu0 0
    %10638 = vmatprep.subr.bf16.mxu0 0
    %10639 = vmatpush1.bf16.msra.mxu0 0
    %10640 = vmatprep.subr.bf16.mxu0 0
    %10641 = vmatpush1.bf16.msra.mxu0 0
    %10642 = vmatprep.subr.bf16.mxu0 0
    %10643 = vmatpush1.bf16.msra.mxu0 0
    %10644 = vmatprep.subr.bf16.mxu0 0
    %10645 = vmatpush1.bf16.msra.mxu0 0
    %10646 = vmatprep.subr.bf16.mxu0 0
    %10647 = vmatpush1.bf16.msra.mxu0 0
    %10648 = vmatprep.mubr.bf16.mxu0 0
    %10649 = vmatmul.mubr.bf16.gmra.mrb[0].mxu0 %v10496
    %v10650 = vpop.f32.mrb[0].mxu0
    %v10651 = vadd.f32 0.0, %v10650
    %v10652 = vpop.f32.mrb[0].mxu0
    %v10653 = vadd.f32 0.0, %v10652
    %v10654 = vpop.f32.mrb[0].mxu0
    %v10655 = vpop.f32.mrb[0].mxu0
    %10656 = vdwg.mxu0
    %10657 = vmatprep.subr.bf16.mxu0 %v10520
    %10658 = vmatpush1.bf16.msra.mxu0 %v10517
    %10659 = vmatprep.subr.bf16.mxu0 0
    %10660 = vmatpush1.bf16.msra.mxu0 0
    %10661 = vmatprep.subr.bf16.mxu0 0
    %10662 = vmatpush1.bf16.msra.mxu0 0
    %10663 = vmatprep.subr.bf16.mxu0 0
    %10664 = vmatpush1.bf16.msra.mxu0 0
    %10665 = vmatprep.subr.bf16.mxu0 0
    %10666 = vmatpush1.bf16.msra.mxu0 0
    %10667 = vmatprep.subr.bf16.mxu0 0
    %10668 = vmatpush1.bf16.msra.mxu0 0
    %10669 = vmatprep.subr.bf16.mxu0 0
    %10670 = vmatpush1.bf16.msra.mxu0 0
    %10671 = vmatprep.subr.bf16.mxu0 0
    %10672 = vmatpush1.bf16.msra.mxu0 0
    %10673 = vmatprep.subr.bf16.mxu0 0
    %10674 = vmatpush1.bf16.msra.mxu0 0
    %10675 = vmatprep.subr.bf16.mxu0 0
    %10676 = vmatpush1.bf16.msra.mxu0 0
    %10677 = vmatprep.subr.bf16.mxu0 0
    %10678 = vmatpush1.bf16.msra.mxu0 0
    %10679 = vmatprep.subr.bf16.mxu0 0
    %10680 = vmatpush1.bf16.msra.mxu0 0
    %10681 = vmatprep.subr.bf16.mxu0 0
    %10682 = vmatpush1.bf16.msra.mxu0 0
    %10683 = vmatprep.subr.bf16.mxu0 0
    %10684 = vmatpush1.bf16.msra.mxu0 0
    %10685 = vmatprep.subr.bf16.mxu0 0
    %10686 = vmatpush1.bf16.msra.mxu0 0
    %10687 = vmatprep.subr.bf16.mxu0 0
    %10688 = vmatpush1.bf16.msra.mxu0 0
    %10689 = vmatprep.mubr.bf16.mxu0 0
    %10690 = vmatmul.mubr.bf16.gmra.mrb[0].mxu0 %v10496
    %v10691 = vpop.f32.mrb[0].mxu0
    %v10692 = vadd.f32 0.0, %v10691
    %v10693 = vpop.f32.mrb[0].mxu0
    %v10694 = vadd.f32 0.0, %v10693
    %v10695 = vpop.f32.mrb[0].mxu0
    %v10696 = vpop.f32.mrb[0].mxu0
    %10697 = vdwg.mxu0
    %10698 = vmatprep.subr.bf16.mxu0 %v10526
    %10699 = vmatpush1.bf16.msra.mxu0 %v10523
    %10700 = vmatprep.subr.bf16.mxu0 0
    %10701 = vmatpush1.bf16.msra.mxu0 0
    %10702 = vmatprep.subr.bf16.mxu0 0
    %10703 = vmatpush1.bf16.msra.mxu0 0
    %10704 = vmatprep.subr.bf16.mxu0 0
    %10705 = vmatpush1.bf16.msra.mxu0 0
    %10706 = vmatprep.subr.bf16.mxu0 0
    %10707 = vmatpush1.bf16.msra.mxu0 0
    %10708 = vmatprep.subr.bf16.mxu0 0
    %10709 = vmatpush1.bf16.msra.mxu0 0
    %10710 = vmatprep.subr.bf16.mxu0 0
    %10711 = vmatpush1.bf16.msra.mxu0 0
    %10712 = vmatprep.subr.bf16.mxu0 0
    %10713 = vmatpush1.bf16.msra.mxu0 0
    %10714 = vmatprep.subr.bf16.mxu0 0
    %10715 = vmatpush1.bf16.msra.mxu0 0
    %10716 = vmatprep.subr.bf16.mxu0 0
    %10717 = vmatpush1.bf16.msra.mxu0 0
    %10718 = vmatprep.subr.bf16.mxu0 0
    %10719 = vmatpush1.bf16.msra.mxu0 0
    %10720 = vmatprep.subr.bf16.mxu0 0
    %10721 = vmatpush1.bf16.msra.mxu0 0
    %10722 = vmatprep.subr.bf16.mxu0 0
    %10723 = vmatpush1.bf16.msra.mxu0 0
    %10724 = vmatprep.subr.bf16.mxu0 0
    %10725 = vmatpush1.bf16.msra.mxu0 0
    %10726 = vmatprep.subr.bf16.mxu0 0
    %10727 = vmatpush1.bf16.msra.mxu0 0
    %10728 = vmatprep.subr.bf16.mxu0 0
    %10729 = vmatpush1.bf16.msra.mxu0 0
    %10730 = vmatprep.mubr.bf16.mxu0 0
    %10731 = vmatmul.mubr.bf16.gmra.mrb[0].mxu0 %v10496
    %v10732 = vpop.f32.mrb[0].mxu0
    %v10733 = vadd.f32 0.0, %v10732
    %v10734 = vpop.f32.mrb[0].mxu0
    %v10735 = vadd.f32 0.0, %v10734
    %v10736 = vpop.f32.mrb[0].mxu0
    %v10737 = vpop.f32.mrb[0].mxu0
    %10738 = vdwg.mxu0
    %10739 = vmatprep.subr.bf16.mxu0 %v10532
    %10740 = vmatpush1.bf16.msra.mxu0 %v10529
    %10741 = vmatprep.subr.bf16.mxu0 0
    %10742 = vmatpush1.bf16.msra.mxu0 0
    %10743 = vmatprep.subr.bf16.mxu0 0
    %10744 = vmatpush1.bf16.msra.mxu0 0
    %10745 = vmatprep.subr.bf16.mxu0 0
    %10746 = vmatpush1.bf16.msra.mxu0 0
    %10747 = vmatprep.subr.bf16.mxu0 0
    %10748 = vmatpush1.bf16.msra.mxu0 0
    %10749 = vmatprep.subr.bf16.mxu0 0
    %10750 = vmatpush1.bf16.msra.mxu0 0
    %10751 = vmatprep.subr.bf16.mxu0 0
    %10752 = vmatpush1.bf16.msra.mxu0 0
    %10753 = vmatprep.subr.bf16.mxu0 0
    %10754 = vmatpush1.bf16.msra.mxu0 0
    %10755 = vmatprep.subr.bf16.mxu0 0
    %10756 = vmatpush1.bf16.msra.mxu0 0
    %10757 = vmatprep.subr.bf16.mxu0 0
    %10758 = vmatpush1.bf16.msra.mxu0 0
    %10759 = vmatprep.subr.bf16.mxu0 0
    %10760 = vmatpush1.bf16.msra.mxu0 0
    %10761 = vmatprep.subr.bf16.mxu0 0
    %10762 = vmatpush1.bf16.msra.mxu0 0
    %10763 = vmatprep.subr.bf16.mxu0 0
    %10764 = vmatpush1.bf16.msra.mxu0 0
    %10765 = vmatprep.subr.bf16.mxu0 0
    %10766 = vmatpush1.bf16.msra.mxu0 0
    %10767 = vmatprep.subr.bf16.mxu0 0
    %10768 = vmatpush1.bf16.msra.mxu0 0
    %10769 = vmatprep.subr.bf16.mxu0 0
    %10770 = vmatpush1.bf16.msra.mxu0 0
    %10771 = vmatprep.mubr.bf16.mxu0 0
    %10772 = vmatmul.mubr.bf16.gmra.mrb[0].mxu0 %v10496
    %v10773 = vpop.f32.mrb[0].mxu0
    %v10774 = vadd.f32 0.0, %v10773
    %v10775 = vpop.f32.mrb[0].mxu0
    %v10776 = vadd.f32 0.0, %v10775
    %v10777 = vpop.f32.mrb[0].mxu0
    %v10778 = vpop.f32.mrb[0].mxu0
    %10779 = vdwg.mxu0
    %v10780 = vadd.f32 %v10389, %v10569
    %v10781 = vadd.f32 %v10390, %v10571
    %v10782 = vadd.f32 %v10391, %v10610
    %v10783 = vadd.f32 %v10392, %v10612
    %v10784 = vadd.f32 %v10393, %v10651
    %v10785 = vadd.f32 %v10394, %v10653
    %v10786 = vadd.f32 %v10395, %v10692
    %v10787 = vadd.f32 %v10396, %v10694
    %v10788 = vadd.f32 %v10397, %v10733
    %v10789 = vadd.f32 %v10398, %v10735
    %v10790 = vadd.f32 %v10399, %v10774
    %v10791 = vadd.f32 %v10400, %v10776
    %s10792 = scalar_lea.vmem [#allocation3], 290
    %v10793 = vld [vmem:[%s10792] ss:$8 sm:$0xf]
    %v10794 = vld [vmem:[%s10792] ss:$8 sm:$0xf0]
    %v10795 = vor.u32 %v10793, %v10794
    %s10796 = scalar_lea.vmem [#allocation3], 354
    %v10797 = vld [vmem:[%s10796] ss:$8 sm:$0xf]
    %v10800 = vlaneseq
    %v10801 = vshrl.u32 %v10800, 7
    %v10802 = vsub.s32 0, %v10801
    %v10803 = vrot.slane %v10795, %v10802
    %v10804 = vlaneseq
    %v10805 = vshrl.u32 %v10804, 7
    %v10806 = vsub.s32 1, %v10805
    %v10807 = vrot.slane %v10795, %v10806
    %v10808 = vlaneseq
    %v10809 = vshrl.u32 %v10808, 7
    %v10810 = vsub.s32 2, %v10809
    %v10811 = vrot.slane %v10795, %v10810
    %v10812 = vlaneseq
    %v10813 = vshrl.u32 %v10812, 7
    %v10814 = vsub.s32 3, %v10813
    %v10815 = vrot.slane %v10795, %v10814
    %v10816 = vlaneseq
    %v10817 = vshrl.u32 %v10816, 7
    %v10818 = vsub.s32 4, %v10817
    %v10819 = vrot.slane %v10795, %v10818
    %v10820 = vlaneseq
    %v10821 = vshrl.u32 %v10820, 7
    %v10822 = vsub.s32 5, %v10821
    %v10823 = vrot.slane %v10795, %v10822
    %v10824 = vlaneseq
    %v10825 = vshrl.u32 %v10824, 7
    %v10826 = vsub.s32 6, %v10825
    %v10827 = vrot.slane %v10795, %v10826
    %v10828 = vlaneseq
    %v10829 = vshrl.u32 %v10828, 7
    %v10830 = vsub.s32 7, %v10829
    %v10831 = vrot.slane %v10795, %v10830
    %v10832 = vlaneseq
    %v10833 = vshrl.u32 %v10832, 7
    %v10834 = vsub.s32 0, %v10833
    %v10835 = vrot.slane %v10797, %v10834
    %v10836 = vlaneseq
    %v10837 = vshrl.u32 %v10836, 7
    %v10838 = vsub.s32 1, %v10837
    %v10839 = vrot.slane %v10797, %v10838
    %v10840 = vlaneseq
    %v10841 = vshrl.u32 %v10840, 7
    %v10842 = vsub.s32 2, %v10841
    %v10843 = vrot.slane %v10797, %v10842
    %v10844 = vlaneseq
    %v10845 = vshrl.u32 %v10844, 7
    %v10846 = vsub.s32 3, %v10845
    %v10847 = vrot.slane %v10797, %v10846
    %v10860 = vmul.f32 %v3536, %v10803
    %v10861 = vmul.f32 %v3535, %v10807
    %v10862 = vmul.f32 %v3534, %v10811
    %v10863 = vmul.f32 %v3533, %v10815
    %v10864 = vmul.f32 %v3532, %v10819
    %v10865 = vmul.f32 %v3531, %v10823
    %v10866 = vmul.f32 %v3530, %v10827
    %v10867 = vmul.f32 %v3529, %v10831
    %v10868 = vmul.f32 %v3528, %v10835
    %v10869 = vmul.f32 %v3527, %v10839
    %v10870 = vmul.f32 %v3526, %v10843
    %v10871 = vmul.f32 %v3537, %v10847
    %s10872 = scalar_lea.vmem %s1, 104
    %v10873 = vld [vmem:[%s10872] sm:$0xf]
    %v10874 = vpack.c.bf16 %v10860, %v10860
    %v10875 = vpack.c.bf16 %v10861, %v10861
    %v10876 = vpack.c.bf16 %v10862, %v10862
    %v10877 = vpack.c.bf16 %v10863, %v10863
    %v10878 = vpack.c.bf16 %v10864, %v10864
    %v10879 = vpack.c.bf16 %v10865, %v10865
    %v10880 = vpack.c.bf16 %v10866, %v10866
    %v10881 = vpack.c.bf16 %v10867, %v10867
    %v10882 = vpack.c.bf16 %v10868, %v10868
    %v10883 = vpack.c.bf16 %v10869, %v10869
    %v10884 = vpack.c.bf16 %v10870, %v10870
    %v10885 = vpack.c.bf16 %v10871, %v10871
    %v10887 = vsel %vm361, %v10873, 0
    %v10890 = vsel %vm365, %v10874, 0
    %v10893 = vsel %vm365, %v10875, 0
    %v10896 = vsel %vm365, %v10876, 0
    %v10899 = vsel %vm365, %v10877, 0
    %v10902 = vsel %vm365, %v10878, 0
    %v10905 = vsel %vm365, %v10879, 0
    %v10908 = vsel %vm365, %v10880, 0
    %v10911 = vsel %vm365, %v10881, 0
    %v10914 = vsel %vm365, %v10882, 0
    %v10917 = vsel %vm365, %v10883, 0
    %v10920 = vsel %vm365, %v10884, 0
    %v10923 = vsel %vm365, %v10885, 0
    %10925 = vmatprep.subr.bf16.mxu0 %v10893
    %10926 = vmatpush1.bf16.msra.mxu0 %v10890
    %10927 = vmatprep.subr.bf16.mxu0 0
    %10928 = vmatpush1.bf16.msra.mxu0 0
    %10929 = vmatprep.subr.bf16.mxu0 0
    %10930 = vmatpush1.bf16.msra.mxu0 0
    %10931 = vmatprep.subr.bf16.mxu0 0
    %10932 = vmatpush1.bf16.msra.mxu0 0
    %10933 = vmatprep.subr.bf16.mxu0 0
    %10934 = vmatpush1.bf16.msra.mxu0 0
    %10935 = vmatprep.subr.bf16.mxu0 0
    %10936 = vmatpush1.bf16.msra.mxu0 0
    %10937 = vmatprep.subr.bf16.mxu0 0
    %10938 = vmatpush1.bf16.msra.mxu0 0
    %10939 = vmatprep.subr.bf16.mxu0 0
    %10940 = vmatpush1.bf16.msra.mxu0 0
    %10941 = vmatprep.subr.bf16.mxu0 0
    %10942 = vmatpush1.bf16.msra.mxu0 0
    %10943 = vmatprep.subr.bf16.mxu0 0
    %10944 = vmatpush1.bf16.msra.mxu0 0
    %10945 = vmatprep.subr.bf16.mxu0 0
    %10946 = vmatpush1.bf16.msra.mxu0 0
    %10947 = vmatprep.subr.bf16.mxu0 0
    %10948 = vmatpush1.bf16.msra.mxu0 0
    %10949 = vmatprep.subr.bf16.mxu0 0
    %10950 = vmatpush1.bf16.msra.mxu0 0
    %10951 = vmatprep.subr.bf16.mxu0 0
    %10952 = vmatpush1.bf16.msra.mxu0 0
    %10953 = vmatprep.subr.bf16.mxu0 0
    %10954 = vmatpush1.bf16.msra.mxu0 0
    %10955 = vmatprep.subr.bf16.mxu0 0
    %10956 = vmatpush1.bf16.msra.mxu0 0
    %10957 = vmatprep.mubr.bf16.mxu0 0
    %10958 = vmatmul.mubr.bf16.gmra.mrb[0].mxu0 %v10887
    %v10959 = vpop.f32.mrb[0].mxu0
    %v10960 = vadd.f32 0.0, %v10959
    %v10961 = vpop.f32.mrb[0].mxu0
    %v10962 = vadd.f32 0.0, %v10961
    %v10963 = vpop.f32.mrb[0].mxu0
    %v10964 = vpop.f32.mrb[0].mxu0
    %10965 = vdwg.mxu0
    %10966 = vmatprep.subr.bf16.mxu0 %v10899
    %10967 = vmatpush1.bf16.msra.mxu0 %v10896
    %10968 = vmatprep.subr.bf16.mxu0 0
    %10969 = vmatpush1.bf16.msra.mxu0 0
    %10970 = vmatprep.subr.bf16.mxu0 0
    %10971 = vmatpush1.bf16.msra.mxu0 0
    %10972 = vmatprep.subr.bf16.mxu0 0
    %10973 = vmatpush1.bf16.msra.mxu0 0
    %10974 = vmatprep.subr.bf16.mxu0 0
    %10975 = vmatpush1.bf16.msra.mxu0 0
    %10976 = vmatprep.subr.bf16.mxu0 0
    %10977 = vmatpush1.bf16.msra.mxu0 0
    %10978 = vmatprep.subr.bf16.mxu0 0
    %10979 = vmatpush1.bf16.msra.mxu0 0
    %10980 = vmatprep.subr.bf16.mxu0 0
    %10981 = vmatpush1.bf16.msra.mxu0 0
    %10982 = vmatprep.subr.bf16.mxu0 0
    %10983 = vmatpush1.bf16.msra.mxu0 0
    %10984 = vmatprep.subr.bf16.mxu0 0
    %10985 = vmatpush1.bf16.msra.mxu0 0
    %10986 = vmatprep.subr.bf16.mxu0 0
    %10987 = vmatpush1.bf16.msra.mxu0 0
    %10988 = vmatprep.subr.bf16.mxu0 0
    %10989 = vmatpush1.bf16.msra.mxu0 0
    %10990 = vmatprep.subr.bf16.mxu0 0
    %10991 = vmatpush1.bf16.msra.mxu0 0
    %10992 = vmatprep.subr.bf16.mxu0 0
    %10993 = vmatpush1.bf16.msra.mxu0 0
    %10994 = vmatprep.subr.bf16.mxu0 0
    %10995 = vmatpush1.bf16.msra.mxu0 0
    %10996 = vmatprep.subr.bf16.mxu0 0
    %10997 = vmatpush1.bf16.msra.mxu0 0
    %10998 = vmatprep.mubr.bf16.mxu0 0
    %10999 = vmatmul.mubr.bf16.gmra.mrb[0].mxu0 %v10887
    %v11000 = vpop.f32.mrb[0].mxu0
    %v11001 = vadd.f32 0.0, %v11000
    %v11002 = vpop.f32.mrb[0].mxu0
    %v11003 = vadd.f32 0.0, %v11002
    %v11004 = vpop.f32.mrb[0].mxu0
    %v11005 = vpop.f32.mrb[0].mxu0
    %11006 = vdwg.mxu0
    %11007 = vmatprep.subr.bf16.mxu0 %v10905
    %11008 = vmatpush1.bf16.msra.mxu0 %v10902
    %11009 = vmatprep.subr.bf16.mxu0 0
    %11010 = vmatpush1.bf16.msra.mxu0 0
    %11011 = vmatprep.subr.bf16.mxu0 0
    %11012 = vmatpush1.bf16.msra.mxu0 0
    %11013 = vmatprep.subr.bf16.mxu0 0
    %11014 = vmatpush1.bf16.msra.mxu0 0
    %11015 = vmatprep.subr.bf16.mxu0 0
    %11016 = vmatpush1.bf16.msra.mxu0 0
    %11017 = vmatprep.subr.bf16.mxu0 0
    %11018 = vmatpush1.bf16.msra.mxu0 0
    %11019 = vmatprep.subr.bf16.mxu0 0
    %11020 = vmatpush1.bf16.msra.mxu0 0
    %11021 = vmatprep.subr.bf16.mxu0 0
    %11022 = vmatpush1.bf16.msra.mxu0 0
    %11023 = vmatprep.subr.bf16.mxu0 0
    %11024 = vmatpush1.bf16.msra.mxu0 0
    %11025 = vmatprep.subr.bf16.mxu0 0
    %11026 = vmatpush1.bf16.msra.mxu0 0
    %11027 = vmatprep.subr.bf16.mxu0 0
    %11028 = vmatpush1.bf16.msra.mxu0 0
    %11029 = vmatprep.subr.bf16.mxu0 0
    %11030 = vmatpush1.bf16.msra.mxu0 0
    %11031 = vmatprep.subr.bf16.mxu0 0
    %11032 = vmatpush1.bf16.msra.mxu0 0
    %11033 = vmatprep.subr.bf16.mxu0 0
    %11034 = vmatpush1.bf16.msra.mxu0 0
    %11035 = vmatprep.subr.bf16.mxu0 0
    %11036 = vmatpush1.bf16.msra.mxu0 0
    %11037 = vmatprep.subr.bf16.mxu0 0
    %11038 = vmatpush1.bf16.msra.mxu0 0
    %11039 = vmatprep.mubr.bf16.mxu0 0
    %11040 = vmatmul.mubr.bf16.gmra.mrb[0].mxu0 %v10887
    %v11041 = vpop.f32.mrb[0].mxu0
    %v11042 = vadd.f32 0.0, %v11041
    %v11043 = vpop.f32.mrb[0].mxu0
    %v11044 = vadd.f32 0.0, %v11043
    %v11045 = vpop.f32.mrb[0].mxu0
    %v11046 = vpop.f32.mrb[0].mxu0
    %11047 = vdwg.mxu0
    %11048 = vmatprep.subr.bf16.mxu0 %v10911
    %11049 = vmatpush1.bf16.msra.mxu0 %v10908
    %11050 = vmatprep.subr.bf16.mxu0 0
    %11051 = vmatpush1.bf16.msra.mxu0 0
    %11052 = vmatprep.subr.bf16.mxu0 0
    %11053 = vmatpush1.bf16.msra.mxu0 0
    %11054 = vmatprep.subr.bf16.mxu0 0
    %11055 = vmatpush1.bf16.msra.mxu0 0
    %11056 = vmatprep.subr.bf16.mxu0 0
    %11057 = vmatpush1.bf16.msra.mxu0 0
    %11058 = vmatprep.subr.bf16.mxu0 0
    %11059 = vmatpush1.bf16.msra.mxu0 0
    %11060 = vmatprep.subr.bf16.mxu0 0
    %11061 = vmatpush1.bf16.msra.mxu0 0
    %11062 = vmatprep.subr.bf16.mxu0 0
    %11063 = vmatpush1.bf16.msra.mxu0 0
    %11064 = vmatprep.subr.bf16.mxu0 0
    %11065 = vmatpush1.bf16.msra.mxu0 0
    %11066 = vmatprep.subr.bf16.mxu0 0
    %11067 = vmatpush1.bf16.msra.mxu0 0
    %11068 = vmatprep.subr.bf16.mxu0 0
    %11069 = vmatpush1.bf16.msra.mxu0 0
    %11070 = vmatprep.subr.bf16.mxu0 0
    %11071 = vmatpush1.bf16.msra.mxu0 0
    %11072 = vmatprep.subr.bf16.mxu0 0
    %11073 = vmatpush1.bf16.msra.mxu0 0
    %11074 = vmatprep.subr.bf16.mxu0 0
    %11075 = vmatpush1.bf16.msra.mxu0 0
    %11076 = vmatprep.subr.bf16.mxu0 0
    %11077 = vmatpush1.bf16.msra.mxu0 0
    %11078 = vmatprep.subr.bf16.mxu0 0
    %11079 = vmatpush1.bf16.msra.mxu0 0
    %11080 = vmatprep.mubr.bf16.mxu0 0
    %11081 = vmatmul.mubr.bf16.gmra.mrb[0].mxu0 %v10887
    %v11082 = vpop.f32.mrb[0].mxu0
    %v11083 = vadd.f32 0.0, %v11082
    %v11084 = vpop.f32.mrb[0].mxu0
    %v11085 = vadd.f32 0.0, %v11084
    %v11086 = vpop.f32.mrb[0].mxu0
    %v11087 = vpop.f32.mrb[0].mxu0
    %11088 = vdwg.mxu0
    %11089 = vmatprep.subr.bf16.mxu0 %v10917
    %11090 = vmatpush1.bf16.msra.mxu0 %v10914
    %11091 = vmatprep.subr.bf16.mxu0 0
    %11092 = vmatpush1.bf16.msra.mxu0 0
    %11093 = vmatprep.subr.bf16.mxu0 0
    %11094 = vmatpush1.bf16.msra.mxu0 0
    %11095 = vmatprep.subr.bf16.mxu0 0
    %11096 = vmatpush1.bf16.msra.mxu0 0
    %11097 = vmatprep.subr.bf16.mxu0 0
    %11098 = vmatpush1.bf16.msra.mxu0 0
    %11099 = vmatprep.subr.bf16.mxu0 0
    %11100 = vmatpush1.bf16.msra.mxu0 0
    %11101 = vmatprep.subr.bf16.mxu0 0
    %11102 = vmatpush1.bf16.msra.mxu0 0
    %11103 = vmatprep.subr.bf16.mxu0 0
    %11104 = vmatpush1.bf16.msra.mxu0 0
    %11105 = vmatprep.subr.bf16.mxu0 0
    %11106 = vmatpush1.bf16.msra.mxu0 0
    %11107 = vmatprep.subr.bf16.mxu0 0
    %11108 = vmatpush1.bf16.msra.mxu0 0
    %11109 = vmatprep.subr.bf16.mxu0 0
    %11110 = vmatpush1.bf16.msra.mxu0 0
    %11111 = vmatprep.subr.bf16.mxu0 0
    %11112 = vmatpush1.bf16.msra.mxu0 0
    %11113 = vmatprep.subr.bf16.mxu0 0
    %11114 = vmatpush1.bf16.msra.mxu0 0
    %11115 = vmatprep.subr.bf16.mxu0 0
    %11116 = vmatpush1.bf16.msra.mxu0 0
    %11117 = vmatprep.subr.bf16.mxu0 0
    %11118 = vmatpush1.bf16.msra.mxu0 0
    %11119 = vmatprep.subr.bf16.mxu0 0
    %11120 = vmatpush1.bf16.msra.mxu0 0
    %11121 = vmatprep.mubr.bf16.mxu0 0
    %11122 = vmatmul.mubr.bf16.gmra.mrb[0].mxu0 %v10887
    %v11123 = vpop.f32.mrb[0].mxu0
    %v11124 = vadd.f32 0.0, %v11123
    %v11125 = vpop.f32.mrb[0].mxu0
    %v11126 = vadd.f32 0.0, %v11125
    %v11127 = vpop.f32.mrb[0].mxu0
    %v11128 = vpop.f32.mrb[0].mxu0
    %11129 = vdwg.mxu0
    %11130 = vmatprep.subr.bf16.mxu0 %v10923
    %11131 = vmatpush1.bf16.msra.mxu0 %v10920
    %11132 = vmatprep.subr.bf16.mxu0 0
    %11133 = vmatpush1.bf16.msra.mxu0 0
    %11134 = vmatprep.subr.bf16.mxu0 0
    %11135 = vmatpush1.bf16.msra.mxu0 0
    %11136 = vmatprep.subr.bf16.mxu0 0
    %11137 = vmatpush1.bf16.msra.mxu0 0
    %11138 = vmatprep.subr.bf16.mxu0 0
    %11139 = vmatpush1.bf16.msra.mxu0 0
    %11140 = vmatprep.subr.bf16.mxu0 0
    %11141 = vmatpush1.bf16.msra.mxu0 0
    %11142 = vmatprep.subr.bf16.mxu0 0
    %11143 = vmatpush1.bf16.msra.mxu0 0
    %11144 = vmatprep.subr.bf16.mxu0 0
    %11145 = vmatpush1.bf16.msra.mxu0 0
    %11146 = vmatprep.subr.bf16.mxu0 0
    %11147 = vmatpush1.bf16.msra.mxu0 0
    %11148 = vmatprep.subr.bf16.mxu0 0
    %11149 = vmatpush1.bf16.msra.mxu0 0
    %11150 = vmatprep.subr.bf16.mxu0 0
    %11151 = vmatpush1.bf16.msra.mxu0 0
    %11152 = vmatprep.subr.bf16.mxu0 0
    %11153 = vmatpush1.bf16.msra.mxu0 0
    %11154 = vmatprep.subr.bf16.mxu0 0
    %11155 = vmatpush1.bf16.msra.mxu0 0
    %11156 = vmatprep.subr.bf16.mxu0 0
    %11157 = vmatpush1.bf16.msra.mxu0 0
    %11158 = vmatprep.subr.bf16.mxu0 0
    %11159 = vmatpush1.bf16.msra.mxu0 0
    %11160 = vmatprep.subr.bf16.mxu0 0
    %11161 = vmatpush1.bf16.msra.mxu0 0
    %11162 = vmatprep.mubr.bf16.mxu0 0
    %11163 = vmatmul.mubr.bf16.gmra.mrb[0].mxu0 %v10887
    %v11164 = vpop.f32.mrb[0].mxu0
    %v11165 = vadd.f32 0.0, %v11164
    %v11166 = vpop.f32.mrb[0].mxu0
    %v11167 = vadd.f32 0.0, %v11166
    %v11168 = vpop.f32.mrb[0].mxu0
    %v11169 = vpop.f32.mrb[0].mxu0
    %11170 = vdwg.mxu0
    %v11171 = vadd.f32 %v10780, %v10960
    %v11172 = vadd.f32 %v10781, %v10962
    %v11173 = vadd.f32 %v10782, %v11001
    %v11174 = vadd.f32 %v10783, %v11003
    %v11175 = vadd.f32 %v10784, %v11042
    %v11176 = vadd.f32 %v10785, %v11044
    %v11177 = vadd.f32 %v10786, %v11083
    %v11178 = vadd.f32 %v10787, %v11085
    %v11179 = vadd.f32 %v10788, %v11124
    %v11180 = vadd.f32 %v10789, %v11126
    %v11181 = vadd.f32 %v10790, %v11165
    %v11182 = vadd.f32 %v10791, %v11167
    %v11183 = vld [vmem:[%s2] sm:$0xff]
    %v11184 = vld [vmem:[%s3] sm:$0xff]
    %v11185 = vld [vmem:[%s4] sm:$0x7]
    %11187 = vset.pattern.permute.xlu0 0
    %11188 = vperm.xlu0 %11187, %v11183
    %v11189 = vpop.permute.xlu0 %11188
    %v11191 = vadd.f32 %v11171, %v11189
    %v11192 = vadd.f32 %v11172, %v11189
    %v11193 = vadd.f32 %v11173, %v11189
    %v11194 = vadd.f32 %v11174, %v11189
    %v11195 = vadd.f32 %v11175, %v11189
    %v11196 = vadd.f32 %v11176, %v11189
    %v11197 = vadd.f32 %v11191, %v11192
    %v11198 = vadd.f32 %v11197, %v11193
    %v11199 = vadd.f32 %v11198, %v11194
    %v11200 = vadd.f32 %v11199, %v11195
    %v11201 = vadd.f32 %v11200, %v11196
    %11202 = vadd.xlane.f32.xlu0 %v11201
    %v11203 = vpop.xlane.xlu0 %11202
    %v11204 = vrcp.pop 768.0
    %v11205 = vmul.f32 %v11203, %v11204
    %v11206 = vsub.f32 %v11191, %v11205
    %v11207 = vsub.f32 %v11192, %v11205
    %v11208 = vsub.f32 %v11193, %v11205
    %v11209 = vsub.f32 %v11194, %v11205
    %v11210 = vsub.f32 %v11195, %v11205
    %v11211 = vsub.f32 %v11196, %v11205
    %v11212 = vmul.f32 %v11206, %v11206
    %v11213 = vmul.f32 %v11207, %v11207
    %v11214 = vmul.f32 %v11208, %v11208
    %v11215 = vmul.f32 %v11209, %v11209
    %v11216 = vmul.f32 %v11210, %v11210
    %v11217 = vmul.f32 %v11211, %v11211
    %v11218 = vadd.f32 %v11212, %v11213
    %v11219 = vadd.f32 %v11218, %v11214
    %v11220 = vadd.f32 %v11219, %v11215
    %v11221 = vadd.f32 %v11220, %v11216
    %v11222 = vadd.f32 %v11221, %v11217
    %11223 = vadd.xlane.f32.xlu0 %v11222
    %v11224 = vpop.xlane.xlu0 %11223
    %v11225 = vmul.f32 %v11224, %v11204
    %v11226 = vadd.f32 %v11225, 1e-05
    %v11227 = vrsqrt.pop %v11226
    %v11228 = vmul.f32 %v11206, %v11227
    %v11229 = vmul.f32 %v11207, %v11227
    %v11230 = vmul.f32 %v11208, %v11227
    %v11231 = vmul.f32 %v11209, %v11227
    %v11232 = vmul.f32 %v11210, %v11227
    %v11233 = vmul.f32 %v11211, %v11227
    %v11234 = vmax.f32 %v11228, 0.0
    %v11235 = vmax.f32 %v11229, 0.0
    %v11236 = vmax.f32 %v11230, 0.0
    %v11237 = vmax.f32 %v11231, 0.0
    %v11238 = vmax.f32 %v11232, 0.0
    %v11239 = vmax.f32 %v11233, 0.0
    %v11241 = vsel %vm361, %v11184, 0
    %11243 = vmatprep.subr.mxu0 %v11235
    %11244 = vmatpush1.msra.mxu0 %v11234
    %11245 = vmatprep.subr.mxu0 0.0
    %11246 = vmatpush1.msra.mxu0 0.0
    %11247 = vmatprep.subr.mxu0 0.0
    %11248 = vmatpush1.msra.mxu0 0.0
    %11249 = vmatprep.subr.mxu0 0.0
    %11250 = vmatpush1.msra.mxu0 0.0
    %11251 = vmatprep.subr.mxu0 0.0
    %11252 = vmatpush1.msra.mxu0 0.0
    %11253 = vmatprep.subr.mxu0 0.0
    %11254 = vmatpush1.msra.mxu0 0.0
    %11255 = vmatprep.subr.mxu0 0.0
    %11256 = vmatpush1.msra.mxu0 0.0
    %11257 = vmatprep.subr.mxu0 0.0
    %11258 = vmatpush1.msra.mxu0 0.0
    %11259 = vmatprep.subr.mxu0 0.0
    %11260 = vmatpush1.msra.mxu0 0.0
    %11261 = vmatprep.subr.mxu0 0.0
    %11262 = vmatpush1.msra.mxu0 0.0
    %11263 = vmatprep.subr.mxu0 0.0
    %11264 = vmatpush1.msra.mxu0 0.0
    %11265 = vmatprep.subr.mxu0 0.0
    %11266 = vmatpush1.msra.mxu0 0.0
    %11267 = vmatprep.subr.mxu0 0.0
    %11268 = vmatpush1.msra.mxu0 0.0
    %11269 = vmatprep.subr.mxu0 0.0
    %11270 = vmatpush1.msra.mxu0 0.0
    %11271 = vmatprep.subr.mxu0 0.0
    %11272 = vmatpush1.msra.mxu0 0.0
    %11273 = vmatprep.subr.mxu0 0.0
    %11274 = vmatpush1.msra.mxu0 0.0
    %11275 = vmatprep.subr.mxu0 0.0
    %11276 = vmatpush1.msra.mxu0 0.0
    %11277 = vmatprep.subr.mxu0 0.0
    %11278 = vmatpush1.msra.mxu0 0.0
    %11279 = vmatprep.subr.mxu0 0.0
    %11280 = vmatpush1.msra.mxu0 0.0
    %11281 = vmatprep.subr.mxu0 0.0
    %11282 = vmatpush1.msra.mxu0 0.0
    %11283 = vmatprep.subr.mxu0 0.0
    %11284 = vmatpush1.msra.mxu0 0.0
    %11285 = vmatprep.subr.mxu0 0.0
    %11286 = vmatpush1.msra.mxu0 0.0
    %11287 = vmatprep.subr.mxu0 0.0
    %11288 = vmatpush1.msra.mxu0 0.0
    %11289 = vmatprep.subr.mxu0 0.0
    %11290 = vmatpush1.msra.mxu0 0.0
    %11291 = vmatprep.subr.mxu0 0.0
    %11292 = vmatpush1.msra.mxu0 0.0
    %11293 = vmatprep.subr.mxu0 0.0
    %11294 = vmatpush1.msra.mxu0 0.0
    %11295 = vmatprep.subr.mxu0 0.0
    %11296 = vmatpush1.msra.mxu0 0.0
    %11297 = vmatprep.subr.mxu0 0.0
    %11298 = vmatpush1.msra.mxu0 0.0
    %11299 = vmatprep.subr.mxu0 0.0
    %11300 = vmatpush1.msra.mxu0 0.0
    %11301 = vmatprep.subr.mxu0 0.0
    %11302 = vmatpush1.msra.mxu0 0.0
    %11303 = vmatprep.subr.mxu0 0.0
    %11304 = vmatpush1.msra.mxu0 0.0
    %11305 = vmatprep.subr.mxu0 0.0
    %11306 = vmatpush1.msra.mxu0 0.0
    %11307 = vmatprep.mubr.f32.mxu0 0.0
    %11308 = vmatmul.mubr.f32.gmra.mrb[0].mxu0 %v11241
    %v11309 = vpop.f32.mrb[0].mxu0
    %v11310 = vadd.f32 0.0, %v11309
    %v11311 = vpop.f32.mrb[0].mxu0
    %v11312 = vadd.f32 0.0, %v11311
    %11313 = vdwg.mxu0
    %11314 = vmatprep.subr.mxu0 %v11237
    %11315 = vmatpush1.msra.mxu0 %v11236
    %11316 = vmatprep.subr.mxu0 0.0
    %11317 = vmatpush1.msra.mxu0 0.0
    %11318 = vmatprep.subr.mxu0 0.0
    %11319 = vmatpush1.msra.mxu0 0.0
    %11320 = vmatprep.subr.mxu0 0.0
    %11321 = vmatpush1.msra.mxu0 0.0
    %11322 = vmatprep.subr.mxu0 0.0
    %11323 = vmatpush1.msra.mxu0 0.0
    %11324 = vmatprep.subr.mxu0 0.0
    %11325 = vmatpush1.msra.mxu0 0.0
    %11326 = vmatprep.subr.mxu0 0.0
    %11327 = vmatpush1.msra.mxu0 0.0
    %11328 = vmatprep.subr.mxu0 0.0
    %11329 = vmatpush1.msra.mxu0 0.0
    %11330 = vmatprep.subr.mxu0 0.0
    %11331 = vmatpush1.msra.mxu0 0.0
    %11332 = vmatprep.subr.mxu0 0.0
    %11333 = vmatpush1.msra.mxu0 0.0
    %11334 = vmatprep.subr.mxu0 0.0
    %11335 = vmatpush1.msra.mxu0 0.0
    %11336 = vmatprep.subr.mxu0 0.0
    %11337 = vmatpush1.msra.mxu0 0.0
    %11338 = vmatprep.subr.mxu0 0.0
    %11339 = vmatpush1.msra.mxu0 0.0
    %11340 = vmatprep.subr.mxu0 0.0
    %11341 = vmatpush1.msra.mxu0 0.0
    %11342 = vmatprep.subr.mxu0 0.0
    %11343 = vmatpush1.msra.mxu0 0.0
    %11344 = vmatprep.subr.mxu0 0.0
    %11345 = vmatpush1.msra.mxu0 0.0
    %11346 = vmatprep.subr.mxu0 0.0
    %11347 = vmatpush1.msra.mxu0 0.0
    %11348 = vmatprep.subr.mxu0 0.0
    %11349 = vmatpush1.msra.mxu0 0.0
    %11350 = vmatprep.subr.mxu0 0.0
    %11351 = vmatpush1.msra.mxu0 0.0
    %11352 = vmatprep.subr.mxu0 0.0
    %11353 = vmatpush1.msra.mxu0 0.0
    %11354 = vmatprep.subr.mxu0 0.0
    %11355 = vmatpush1.msra.mxu0 0.0
    %11356 = vmatprep.subr.mxu0 0.0
    %11357 = vmatpush1.msra.mxu0 0.0
    %11358 = vmatprep.subr.mxu0 0.0
    %11359 = vmatpush1.msra.mxu0 0.0
    %11360 = vmatprep.subr.mxu0 0.0
    %11361 = vmatpush1.msra.mxu0 0.0
    %11362 = vmatprep.subr.mxu0 0.0
    %11363 = vmatpush1.msra.mxu0 0.0
    %11364 = vmatprep.subr.mxu0 0.0
    %11365 = vmatpush1.msra.mxu0 0.0
    %11366 = vmatprep.subr.mxu0 0.0
    %11367 = vmatpush1.msra.mxu0 0.0
    %11368 = vmatprep.subr.mxu0 0.0
    %11369 = vmatpush1.msra.mxu0 0.0
    %11370 = vmatprep.subr.mxu0 0.0
    %11371 = vmatpush1.msra.mxu0 0.0
    %11372 = vmatprep.subr.mxu0 0.0
    %11373 = vmatpush1.msra.mxu0 0.0
    %11374 = vmatprep.subr.mxu0 0.0
    %11375 = vmatpush1.msra.mxu0 0.0
    %11376 = vmatprep.subr.mxu0 0.0
    %11377 = vmatpush1.msra.mxu0 0.0
    %11378 = vmatprep.mubr.f32.mxu0 0.0
    %11379 = vmatmul.mubr.f32.gmra.mrb[0].mxu0 %v11241
    %v11380 = vpop.f32.mrb[0].mxu0
    %v11381 = vadd.f32 0.0, %v11380
    %v11382 = vpop.f32.mrb[0].mxu0
    %v11383 = vadd.f32 0.0, %v11382
    %11384 = vdwg.mxu0
    %11385 = vmatprep.subr.mxu0 %v11239
    %11386 = vmatpush1.msra.mxu0 %v11238
    %11387 = vmatprep.subr.mxu0 0.0
    %11388 = vmatpush1.msra.mxu0 0.0
    %11389 = vmatprep.subr.mxu0 0.0
    %11390 = vmatpush1.msra.mxu0 0.0
    %11391 = vmatprep.subr.mxu0 0.0
    %11392 = vmatpush1.msra.mxu0 0.0
    %11393 = vmatprep.subr.mxu0 0.0
    %11394 = vmatpush1.msra.mxu0 0.0
    %11395 = vmatprep.subr.mxu0 0.0
    %11396 = vmatpush1.msra.mxu0 0.0
    %11397 = vmatprep.subr.mxu0 0.0
    %11398 = vmatpush1.msra.mxu0 0.0
    %11399 = vmatprep.subr.mxu0 0.0
    %11400 = vmatpush1.msra.mxu0 0.0
    %11401 = vmatprep.subr.mxu0 0.0
    %11402 = vmatpush1.msra.mxu0 0.0
    %11403 = vmatprep.subr.mxu0 0.0
    %11404 = vmatpush1.msra.mxu0 0.0
    %11405 = vmatprep.subr.mxu0 0.0
    %11406 = vmatpush1.msra.mxu0 0.0
    %11407 = vmatprep.subr.mxu0 0.0
    %11408 = vmatpush1.msra.mxu0 0.0
    %11409 = vmatprep.subr.mxu0 0.0
    %11410 = vmatpush1.msra.mxu0 0.0
    %11411 = vmatprep.subr.mxu0 0.0
    %11412 = vmatpush1.msra.mxu0 0.0
    %11413 = vmatprep.subr.mxu0 0.0
    %11414 = vmatpush1.msra.mxu0 0.0
    %11415 = vmatprep.subr.mxu0 0.0
    %11416 = vmatpush1.msra.mxu0 0.0
    %11417 = vmatprep.subr.mxu0 0.0
    %11418 = vmatpush1.msra.mxu0 0.0
    %11419 = vmatprep.subr.mxu0 0.0
    %11420 = vmatpush1.msra.mxu0 0.0
    %11421 = vmatprep.subr.mxu0 0.0
    %11422 = vmatpush1.msra.mxu0 0.0
    %11423 = vmatprep.subr.mxu0 0.0
    %11424 = vmatpush1.msra.mxu0 0.0
    %11425 = vmatprep.subr.mxu0 0.0
    %11426 = vmatpush1.msra.mxu0 0.0
    %11427 = vmatprep.subr.mxu0 0.0
    %11428 = vmatpush1.msra.mxu0 0.0
    %11429 = vmatprep.subr.mxu0 0.0
    %11430 = vmatpush1.msra.mxu0 0.0
    %11431 = vmatprep.subr.mxu0 0.0
    %11432 = vmatpush1.msra.mxu0 0.0
    %11433 = vmatprep.subr.mxu0 0.0
    %11434 = vmatpush1.msra.mxu0 0.0
    %11435 = vmatprep.subr.mxu0 0.0
    %11436 = vmatpush1.msra.mxu0 0.0
    %11437 = vmatprep.subr.mxu0 0.0
    %11438 = vmatpush1.msra.mxu0 0.0
    %11439 = vmatprep.subr.mxu0 0.0
    %11440 = vmatpush1.msra.mxu0 0.0
    %11441 = vmatprep.subr.mxu0 0.0
    %11442 = vmatpush1.msra.mxu0 0.0
    %11443 = vmatprep.subr.mxu0 0.0
    %11444 = vmatpush1.msra.mxu0 0.0
    %11445 = vmatprep.subr.mxu0 0.0
    %11446 = vmatpush1.msra.mxu0 0.0
    %11447 = vmatprep.subr.mxu0 0.0
    %11448 = vmatpush1.msra.mxu0 0.0
    %11449 = vmatprep.mubr.f32.mxu0 0.0
    %11450 = vmatmul.mubr.f32.gmra.mrb[0].mxu0 %v11241
    %v11451 = vpop.f32.mrb[0].mxu0
    %v11452 = vadd.f32 0.0, %v11451
    %v11453 = vpop.f32.mrb[0].mxu0
    %v11454 = vadd.f32 0.0, %v11453
    %11455 = vdwg.mxu0
    %11457 = vset.pattern.permute.xlu0 0
    %11458 = vperm.xlu0 %11457, %v11185
    %v11459 = vpop.permute.xlu0 %11458
    %v11461 = vadd.f32 %v11310, %v11459
    %v11462 = vadd.f32 %v11312, %v11459
    %v11463 = vadd.f32 %v11381, %v11459
    %v11464 = vadd.f32 %v11383, %v11459
    %v11465 = vadd.f32 %v11452, %v11459
    %v11466 = vadd.f32 %v11454, %v11459
    %vm11467 = vcmask 1042432
    %v11468 = vsel %vm11467, %v11461, -inf
    %v11469 = vrot.slane %v11468, 4
    %v11470 = vmax.f32 %v11468, %v11469
    %v11471 = vrot.slane %v11470, 2
    %v11472 = vmax.f32 %v11470, %v11471
    %v11473 = vrot.slane %v11472, 1
    %v11474 = vmax.f32 %v11472, %v11473
    %v11475 = vsel %vm11467, %v11462, -inf
    %v11476 = vrot.slane %v11475, 4
    %v11477 = vmax.f32 %v11475, %v11476
    %v11478 = vrot.slane %v11477, 2
    %v11479 = vmax.f32 %v11477, %v11478
    %v11480 = vrot.slane %v11479, 1
    %v11481 = vmax.f32 %v11479, %v11480
    %v11482 = vsel %vm11467, %v11463, -inf
    %v11483 = vrot.slane %v11482, 4
    %v11484 = vmax.f32 %v11482, %v11483
    %v11485 = vrot.slane %v11484, 2
    %v11486 = vmax.f32 %v11484, %v11485
    %v11487 = vrot.slane %v11486, 1
    %v11488 = vmax.f32 %v11486, %v11487
    %v11489 = vsel %vm11467, %v11464, -inf
    %v11490 = vrot.slane %v11489, 4
    %v11491 = vmax.f32 %v11489, %v11490
    %v11492 = vrot.slane %v11491, 2
    %v11493 = vmax.f32 %v11491, %v11492
    %v11494 = vrot.slane %v11493, 1
    %v11495 = vmax.f32 %v11493, %v11494
    %v11496 = vsel %vm11467, %v11465, -inf
    %v11497 = vrot.slane %v11496, 4
    %v11498 = vmax.f32 %v11496, %v11497
    %v11499 = vrot.slane %v11498, 2
    %v11500 = vmax.f32 %v11498, %v11499
    %v11501 = vrot.slane %v11500, 1
    %v11502 = vmax.f32 %v11500, %v11501
    %v11503 = vsel %vm11467, %v11466, -inf
    %v11504 = vrot.slane %v11503, 4
    %v11505 = vmax.f32 %v11503, %v11504
    %v11506 = vrot.slane %v11505, 2
    %v11507 = vmax.f32 %v11505, %v11506
    %v11508 = vrot.slane %v11507, 1
    %v11509 = vmax.f32 %v11507, %v11508
    %v11510 = vsub.f32 %v11461, %v11474
    %v11511 = vsub.f32 %v11462, %v11481
    %v11512 = vsub.f32 %v11463, %v11488
    %v11513 = vsub.f32 %v11464, %v11495
    %v11514 = vsub.f32 %v11465, %v11502
    %v11515 = vsub.f32 %v11466, %v11509
    %v11516 = vmul.f32 %v11510, 1.442695
    %v11517 = vpow.pop %v11516
    %v11518 = vmul.f32 %v11511, 1.442695
    %v11519 = vpow.pop %v11518
    %v11520 = vmul.f32 %v11512, 1.442695
    %v11521 = vpow.pop %v11520
    %v11522 = vmul.f32 %v11513, 1.442695
    %v11523 = vpow.pop %v11522
    %v11524 = vmul.f32 %v11514, 1.442695
    %v11525 = vpow.pop %v11524
    %v11526 = vmul.f32 %v11515, 1.442695
    %v11527 = vpow.pop %v11526
    %v11528 = vsel %vm11467, %v11517, 0.0
    %v11529 = vrot.slane %v11528, 4
    %v11530 = vadd.f32 %v11528, %v11529
    %v11531 = vrot.slane %v11530, 2
    %v11532 = vadd.f32 %v11530, %v11531
    %v11533 = vrot.slane %v11532, 1
    %v11534 = vadd.f32 %v11532, %v11533
    %v11535 = vsel %vm11467, %v11519, 0.0
    %v11536 = vrot.slane %v11535, 4
    %v11537 = vadd.f32 %v11535, %v11536
    %v11538 = vrot.slane %v11537, 2
    %v11539 = vadd.f32 %v11537, %v11538
    %v11540 = vrot.slane %v11539, 1
    %v11541 = vadd.f32 %v11539, %v11540
    %v11542 = vsel %vm11467, %v11521, 0.0
    %v11543 = vrot.slane %v11542, 4
    %v11544 = vadd.f32 %v11542, %v11543
    %v11545 = vrot.slane %v11544, 2
    %v11546 = vadd.f32 %v11544, %v11545
    %v11547 = vrot.slane %v11546, 1
    %v11548 = vadd.f32 %v11546, %v11547
    %v11549 = vsel %vm11467, %v11523, 0.0
    %v11550 = vrot.slane %v11549, 4
    %v11551 = vadd.f32 %v11549, %v11550
    %v11552 = vrot.slane %v11551, 2
    %v11553 = vadd.f32 %v11551, %v11552
    %v11554 = vrot.slane %v11553, 1
    %v11555 = vadd.f32 %v11553, %v11554
    %v11556 = vsel %vm11467, %v11525, 0.0
    %v11557 = vrot.slane %v11556, 4
    %v11558 = vadd.f32 %v11556, %v11557
    %v11559 = vrot.slane %v11558, 2
    %v11560 = vadd.f32 %v11558, %v11559
    %v11561 = vrot.slane %v11560, 1
    %v11562 = vadd.f32 %v11560, %v11561
    %v11563 = vsel %vm11467, %v11527, 0.0
    %v11564 = vrot.slane %v11563, 4
    %v11565 = vadd.f32 %v11563, %v11564
    %v11566 = vrot.slane %v11565, 2
    %v11567 = vadd.f32 %v11565, %v11566
    %v11568 = vrot.slane %v11567, 1
    %v11569 = vadd.f32 %v11567, %v11568
    %v11570 = vrcp.pop %v11534
    %v11571 = vrcp.pop %v11541
    %v11572 = vrcp.pop %v11548
    %v11573 = vrcp.pop %v11555
    %v11574 = vrcp.pop %v11562
    %v11575 = vrcp.pop %v11569
    %v11576 = vmul.f32 %v11534, %v11570
    %v11577 = vmul.f32 %v11541, %v11571
    %v11578 = vmul.f32 %v11548, %v11572
    %v11579 = vmul.f32 %v11555, %v11573
    %v11580 = vmul.f32 %v11562, %v11574
    %v11581 = vmul.f32 %v11569, %v11575
    %v11582 = vsub.f32 2.0, %v11576
    %v11583 = vsub.f32 2.0, %v11577
    %v11584 = vsub.f32 2.0, %v11578
    %v11585 = vsub.f32 2.0, %v11579
    %v11586 = vsub.f32 2.0, %v11580
    %v11587 = vsub.f32 2.0, %v11581
    %v11588 = vmul.f32 %v11570, %v11582
    %v11589 = vmul.f32 %v11571, %v11583
    %v11590 = vmul.f32 %v11572, %v11584
    %v11591 = vmul.f32 %v11573, %v11585
    %v11592 = vmul.f32 %v11574, %v11586
    %v11593 = vmul.f32 %v11575, %v11587
    %v11594 = vmul.f32 %v11517, %v11588
    %v11595 = vmul.f32 %v11519, %v11589
    %v11596 = vmul.f32 %v11521, %v11590
    %v11597 = vmul.f32 %v11523, %v11591
    %v11598 = vmul.f32 %v11525, %v11592
    %v11599 = vmul.f32 %v11527, %v11593
    %v11600 = vmul.f32 %v87, %v11594
    %v11601 = vmul.f32 %v88, %v11595
    %v11602 = vmul.f32 %v89, %v11596
    %v11603 = vmul.f32 %v90, %v11597
    %v11604 = vadd.f32 %v11600, %v11602
    %v11605 = vadd.f32 %v11601, %v11603
    %v11606 = vmul.f32 %v91, %v11598
    %v11607 = vmul.f32 %v92, %v11599
    %v11608 = vadd.f32 %v11604, %v11606
    %v11609 = vadd.f32 %v11605, %v11607
    %v11612 = vcombine.low %v11608, %v11609
    %11614 = vst [vmem:[#allocation6] sm:$0x77] %v11612
    %v11615 = vadd.f32 %v11177, %v11189
    %v11616 = vadd.f32 %v11178, %v11189
    %v11617 = vadd.f32 %v11179, %v11189
    %v11618 = vadd.f32 %v11180, %v11189
    %v11619 = vadd.f32 %v11181, %v11189
    %v11620 = vadd.f32 %v11182, %v11189
    %v11621 = vadd.f32 %v11615, %v11616
    %v11622 = vadd.f32 %v11621, %v11617
    %v11623 = vadd.f32 %v11622, %v11618
    %v11624 = vadd.f32 %v11623, %v11619
    %v11625 = vadd.f32 %v11624, %v11620
    %11626 = vadd.xlane.f32.xlu0 %v11625
    %v11627 = vpop.xlane.xlu0 %11626
    %v11628 = vmul.f32 %v11627, %v11204
    %v11629 = vsub.f32 %v11615, %v11628
    %v11630 = vsub.f32 %v11616, %v11628
    %v11631 = vsub.f32 %v11617, %v11628
    %v11632 = vsub.f32 %v11618, %v11628
    %v11633 = vsub.f32 %v11619, %v11628
    %v11634 = vsub.f32 %v11620, %v11628
    %v11635 = vmul.f32 %v11629, %v11629
    %v11636 = vmul.f32 %v11630, %v11630
    %v11637 = vmul.f32 %v11631, %v11631
    %v11638 = vmul.f32 %v11632, %v11632
    %v11639 = vmul.f32 %v11633, %v11633
    %v11640 = vmul.f32 %v11634, %v11634
    %v11641 = vadd.f32 %v11635, %v11636
    %v11642 = vadd.f32 %v11641, %v11637
    %v11643 = vadd.f32 %v11642, %v11638
    %v11644 = vadd.f32 %v11643, %v11639
    %v11645 = vadd.f32 %v11644, %v11640
    %11646 = vadd.xlane.f32.xlu0 %v11645
    %v11647 = vpop.xlane.xlu0 %11646
    %v11648 = vmul.f32 %v11647, %v11204
    %v11649 = vadd.f32 %v11648, 1e-05
    %v11650 = vrsqrt.pop %v11649
    %v11651 = vmul.f32 %v11629, %v11650
    %v11652 = vmul.f32 %v11630, %v11650
    %v11653 = vmul.f32 %v11631, %v11650
    %v11654 = vmul.f32 %v11632, %v11650
    %v11655 = vmul.f32 %v11633, %v11650
    %v11656 = vmul.f32 %v11634, %v11650
    %v11657 = vmax.f32 %v11651, 0.0
    %v11658 = vmax.f32 %v11652, 0.0
    %v11659 = vmax.f32 %v11653, 0.0
    %v11660 = vmax.f32 %v11654, 0.0
    %v11661 = vmax.f32 %v11655, 0.0
    %v11662 = vmax.f32 %v11656, 0.0
    %11663 = vmatprep.subr.mxu0 %v11658
    %11664 = vmatpush1.msra.mxu0 %v11657
    %11665 = vmatprep.subr.mxu0 0.0
    %11666 = vmatpush1.msra.mxu0 0.0
    %11667 = vmatprep.subr.mxu0 0.0
    %11668 = vmatpush1.msra.mxu0 0.0
    %11669 = vmatprep.subr.mxu0 0.0
    %11670 = vmatpush1.msra.mxu0 0.0
    %11671 = vmatprep.subr.mxu0 0.0
    %11672 = vmatpush1.msra.mxu0 0.0
    %11673 = vmatprep.subr.mxu0 0.0
    %11674 = vmatpush1.msra.mxu0 0.0
    %11675 = vmatprep.subr.mxu0 0.0
    %11676 = vmatpush1.msra.mxu0 0.0
    %11677 = vmatprep.subr.mxu0 0.0
    %11678 = vmatpush1.msra.mxu0 0.0
    %11679 = vmatprep.subr.mxu0 0.0
    %11680 = vmatpush1.msra.mxu0 0.0
    %11681 = vmatprep.subr.mxu0 0.0
    %11682 = vmatpush1.msra.mxu0 0.0
    %11683 = vmatprep.subr.mxu0 0.0
    %11684 = vmatpush1.msra.mxu0 0.0
    %11685 = vmatprep.subr.mxu0 0.0
    %11686 = vmatpush1.msra.mxu0 0.0
    %11687 = vmatprep.subr.mxu0 0.0
    %11688 = vmatpush1.msra.mxu0 0.0
    %11689 = vmatprep.subr.mxu0 0.0
    %11690 = vmatpush1.msra.mxu0 0.0
    %11691 = vmatprep.subr.mxu0 0.0
    %11692 = vmatpush1.msra.mxu0 0.0
    %11693 = vmatprep.subr.mxu0 0.0
    %11694 = vmatpush1.msra.mxu0 0.0
    %11695 = vmatprep.subr.mxu0 0.0
    %11696 = vmatpush1.msra.mxu0 0.0
    %11697 = vmatprep.subr.mxu0 0.0
    %11698 = vmatpush1.msra.mxu0 0.0
    %11699 = vmatprep.subr.mxu0 0.0
    %11700 = vmatpush1.msra.mxu0 0.0
    %11701 = vmatprep.subr.mxu0 0.0
    %11702 = vmatpush1.msra.mxu0 0.0
    %11703 = vmatprep.subr.mxu0 0.0
    %11704 = vmatpush1.msra.mxu0 0.0
    %11705 = vmatprep.subr.mxu0 0.0
    %11706 = vmatpush1.msra.mxu0 0.0
    %11707 = vmatprep.subr.mxu0 0.0
    %11708 = vmatpush1.msra.mxu0 0.0
    %11709 = vmatprep.subr.mxu0 0.0
    %11710 = vmatpush1.msra.mxu0 0.0
    %11711 = vmatprep.subr.mxu0 0.0
    %11712 = vmatpush1.msra.mxu0 0.0
    %11713 = vmatprep.subr.mxu0 0.0
    %11714 = vmatpush1.msra.mxu0 0.0
    %11715 = vmatprep.subr.mxu0 0.0
    %11716 = vmatpush1.msra.mxu0 0.0
    %11717 = vmatprep.subr.mxu0 0.0
    %11718 = vmatpush1.msra.mxu0 0.0
    %11719 = vmatprep.subr.mxu0 0.0
    %11720 = vmatpush1.msra.mxu0 0.0
    %11721 = vmatprep.subr.mxu0 0.0
    %11722 = vmatpush1.msra.mxu0 0.0
    %11723 = vmatprep.subr.mxu0 0.0
    %11724 = vmatpush1.msra.mxu0 0.0
    %11725 = vmatprep.subr.mxu0 0.0
    %11726 = vmatpush1.msra.mxu0 0.0
    %11727 = vmatprep.mubr.f32.mxu0 0.0
    %11728 = vmatmul.mubr.f32.gmra.mrb[0].mxu0 %v11241
    %v11729 = vpop.f32.mrb[0].mxu0
    %v11730 = vadd.f32 0.0, %v11729
    %v11731 = vpop.f32.mrb[0].mxu0
    %v11732 = vadd.f32 0.0, %v11731
    %11733 = vdwg.mxu0
    %11734 = vmatprep.subr.mxu0 %v11660
    %11735 = vmatpush1.msra.mxu0 %v11659
    %11736 = vmatprep.subr.mxu0 0.0
    %11737 = vmatpush1.msra.mxu0 0.0
    %11738 = vmatprep.subr.mxu0 0.0
    %11739 = vmatpush1.msra.mxu0 0.0
    %11740 = vmatprep.subr.mxu0 0.0
    %11741 = vmatpush1.msra.mxu0 0.0
    %11742 = vmatprep.subr.mxu0 0.0
    %11743 = vmatpush1.msra.mxu0 0.0
    %11744 = vmatprep.subr.mxu0 0.0
    %11745 = vmatpush1.msra.mxu0 0.0
    %11746 = vmatprep.subr.mxu0 0.0
    %11747 = vmatpush1.msra.mxu0 0.0
    %11748 = vmatprep.subr.mxu0 0.0
    %11749 = vmatpush1.msra.mxu0 0.0
    %11750 = vmatprep.subr.mxu0 0.0
    %11751 = vmatpush1.msra.mxu0 0.0
    %11752 = vmatprep.subr.mxu0 0.0
    %11753 = vmatpush1.msra.mxu0 0.0
    %11754 = vmatprep.subr.mxu0 0.0
    %11755 = vmatpush1.msra.mxu0 0.0
    %11756 = vmatprep.subr.mxu0 0.0
    %11757 = vmatpush1.msra.mxu0 0.0
    %11758 = vmatprep.subr.mxu0 0.0
    %11759 = vmatpush1.msra.mxu0 0.0
    %11760 = vmatprep.subr.mxu0 0.0
    %11761 = vmatpush1.msra.mxu0 0.0
    %11762 = vmatprep.subr.mxu0 0.0
    %11763 = vmatpush1.msra.mxu0 0.0
    %11764 = vmatprep.subr.mxu0 0.0
    %11765 = vmatpush1.msra.mxu0 0.0
    %11766 = vmatprep.subr.mxu0 0.0
    %11767 = vmatpush1.msra.mxu0 0.0
    %11768 = vmatprep.subr.mxu0 0.0
    %11769 = vmatpush1.msra.mxu0 0.0
    %11770 = vmatprep.subr.mxu0 0.0
    %11771 = vmatpush1.msra.mxu0 0.0
    %11772 = vmatprep.subr.mxu0 0.0
    %11773 = vmatpush1.msra.mxu0 0.0
    %11774 = vmatprep.subr.mxu0 0.0
    %11775 = vmatpush1.msra.mxu0 0.0
    %11776 = vmatprep.subr.mxu0 0.0
    %11777 = vmatpush1.msra.mxu0 0.0
    %11778 = vmatprep.subr.mxu0 0.0
    %11779 = vmatpush1.msra.mxu0 0.0
    %11780 = vmatprep.subr.mxu0 0.0
    %11781 = vmatpush1.msra.mxu0 0.0
    %11782 = vmatprep.subr.mxu0 0.0
    %11783 = vmatpush1.msra.mxu0 0.0
    %11784 = vmatprep.subr.mxu0 0.0
    %11785 = vmatpush1.msra.mxu0 0.0
    %11786 = vmatprep.subr.mxu0 0.0
    %11787 = vmatpush1.msra.mxu0 0.0
    %11788 = vmatprep.subr.mxu0 0.0
    %11789 = vmatpush1.msra.mxu0 0.0
    %11790 = vmatprep.subr.mxu0 0.0
    %11791 = vmatpush1.msra.mxu0 0.0
    %11792 = vmatprep.subr.mxu0 0.0
    %11793 = vmatpush1.msra.mxu0 0.0
    %11794 = vmatprep.subr.mxu0 0.0
    %11795 = vmatpush1.msra.mxu0 0.0
    %11796 = vmatprep.subr.mxu0 0.0
    %11797 = vmatpush1.msra.mxu0 0.0
    %11798 = vmatprep.mubr.f32.mxu0 0.0
    %11799 = vmatmul.mubr.f32.gmra.mrb[0].mxu0 %v11241
    %v11800 = vpop.f32.mrb[0].mxu0
    %v11801 = vadd.f32 0.0, %v11800
    %v11802 = vpop.f32.mrb[0].mxu0
    %v11803 = vadd.f32 0.0, %v11802
    %11804 = vdwg.mxu0
    %11805 = vmatprep.subr.mxu0 %v11662
    %11806 = vmatpush1.msra.mxu0 %v11661
    %11807 = vmatprep.subr.mxu0 0.0
    %11808 = vmatpush1.msra.mxu0 0.0
    %11809 = vmatprep.subr.mxu0 0.0
    %11810 = vmatpush1.msra.mxu0 0.0
    %11811 = vmatprep.subr.mxu0 0.0
    %11812 = vmatpush1.msra.mxu0 0.0
    %11813 = vmatprep.subr.mxu0 0.0
    %11814 = vmatpush1.msra.mxu0 0.0
    %11815 = vmatprep.subr.mxu0 0.0
    %11816 = vmatpush1.msra.mxu0 0.0
    %11817 = vmatprep.subr.mxu0 0.0
    %11818 = vmatpush1.msra.mxu0 0.0
    %11819 = vmatprep.subr.mxu0 0.0
    %11820 = vmatpush1.msra.mxu0 0.0
    %11821 = vmatprep.subr.mxu0 0.0
    %11822 = vmatpush1.msra.mxu0 0.0
    %11823 = vmatprep.subr.mxu0 0.0
    %11824 = vmatpush1.msra.mxu0 0.0
    %11825 = vmatprep.subr.mxu0 0.0
    %11826 = vmatpush1.msra.mxu0 0.0
    %11827 = vmatprep.subr.mxu0 0.0
    %11828 = vmatpush1.msra.mxu0 0.0
    %11829 = vmatprep.subr.mxu0 0.0
    %11830 = vmatpush1.msra.mxu0 0.0
    %11831 = vmatprep.subr.mxu0 0.0
    %11832 = vmatpush1.msra.mxu0 0.0
    %11833 = vmatprep.subr.mxu0 0.0
    %11834 = vmatpush1.msra.mxu0 0.0
    %11835 = vmatprep.subr.mxu0 0.0
    %11836 = vmatpush1.msra.mxu0 0.0
    %11837 = vmatprep.subr.mxu0 0.0
    %11838 = vmatpush1.msra.mxu0 0.0
    %11839 = vmatprep.subr.mxu0 0.0
    %11840 = vmatpush1.msra.mxu0 0.0
    %11841 = vmatprep.subr.mxu0 0.0
    %11842 = vmatpush1.msra.mxu0 0.0
    %11843 = vmatprep.subr.mxu0 0.0
    %11844 = vmatpush1.msra.mxu0 0.0
    %11845 = vmatprep.subr.mxu0 0.0
    %11846 = vmatpush1.msra.mxu0 0.0
    %11847 = vmatprep.subr.mxu0 0.0
    %11848 = vmatpush1.msra.mxu0 0.0
    %11849 = vmatprep.subr.mxu0 0.0
    %11850 = vmatpush1.msra.mxu0 0.0
    %11851 = vmatprep.subr.mxu0 0.0
    %11852 = vmatpush1.msra.mxu0 0.0
    %11853 = vmatprep.subr.mxu0 0.0
    %11854 = vmatpush1.msra.mxu0 0.0
    %11855 = vmatprep.subr.mxu0 0.0
    %11856 = vmatpush1.msra.mxu0 0.0
    %11857 = vmatprep.subr.mxu0 0.0
    %11858 = vmatpush1.msra.mxu0 0.0
    %11859 = vmatprep.subr.mxu0 0.0
    %11860 = vmatpush1.msra.mxu0 0.0
    %11861 = vmatprep.subr.mxu0 0.0
    %11862 = vmatpush1.msra.mxu0 0.0
    %11863 = vmatprep.subr.mxu0 0.0
    %11864 = vmatpush1.msra.mxu0 0.0
    %11865 = vmatprep.subr.mxu0 0.0
    %11866 = vmatpush1.msra.mxu0 0.0
    %11867 = vmatprep.subr.mxu0 0.0
    %11868 = vmatpush1.msra.mxu0 0.0
    %11869 = vmatprep.mubr.f32.mxu0 0.0
    %11870 = vmatmul.mubr.f32.gmra.mrb[0].mxu0 %v11241
    %v11871 = vpop.f32.mrb[0].mxu0
    %v11872 = vadd.f32 0.0, %v11871
    %v11873 = vpop.f32.mrb[0].mxu0
    %v11874 = vadd.f32 0.0, %v11873
    %11875 = vdwg.mxu0
    %v11876 = vadd.f32 %v11730, %v11459
    %v11877 = vadd.f32 %v11732, %v11459
    %v11878 = vadd.f32 %v11801, %v11459
    %v11879 = vadd.f32 %v11803, %v11459
    %v11880 = vadd.f32 %v11872, %v11459
    %v11881 = vadd.f32 %v11874, %v11459
    %v11882 = vsel %vm11467, %v11876, -inf
    %v11883 = vrot.slane %v11882, 4
    %v11884 = vmax.f32 %v11882, %v11883
    %v11885 = vrot.slane %v11884, 2
    %v11886 = vmax.f32 %v11884, %v11885
    %v11887 = vrot.slane %v11886, 1
    %v11888 = vmax.f32 %v11886, %v11887
    %v11889 = vsel %vm11467, %v11877, -inf
    %v11890 = vrot.slane %v11889, 4
    %v11891 = vmax.f32 %v11889, %v11890
    %v11892 = vrot.slane %v11891, 2
    %v11893 = vmax.f32 %v11891, %v11892
    %v11894 = vrot.slane %v11893, 1
    %v11895 = vmax.f32 %v11893, %v11894
    %v11896 = vsel %vm11467, %v11878, -inf
    %v11897 = vrot.slane %v11896, 4
    %v11898 = vmax.f32 %v11896, %v11897
    %v11899 = vrot.slane %v11898, 2
    %v11900 = vmax.f32 %v11898, %v11899
    %v11901 = vrot.slane %v11900, 1
    %v11902 = vmax.f32 %v11900, %v11901
    %v11903 = vsel %vm11467, %v11879, -inf
    %v11904 = vrot.slane %v11903, 4
    %v11905 = vmax.f32 %v11903, %v11904
    %v11906 = vrot.slane %v11905, 2
    %v11907 = vmax.f32 %v11905, %v11906
    %v11908 = vrot.slane %v11907, 1
    %v11909 = vmax.f32 %v11907, %v11908
    %v11910 = vsel %vm11467, %v11880, -inf
    %v11911 = vrot.slane %v11910, 4
    %v11912 = vmax.f32 %v11910, %v11911
    %v11913 = vrot.slane %v11912, 2
    %v11914 = vmax.f32 %v11912, %v11913
    %v11915 = vrot.slane %v11914, 1
    %v11916 = vmax.f32 %v11914, %v11915
    %v11917 = vsel %vm11467, %v11881, -inf
    %v11918 = vrot.slane %v11917, 4
    %v11919 = vmax.f32 %v11917, %v11918
    %v11920 = vrot.slane %v11919, 2
    %v11921 = vmax.f32 %v11919, %v11920
    %v11922 = vrot.slane %v11921, 1
    %v11923 = vmax.f32 %v11921, %v11922
    %v11924 = vsub.f32 %v11876, %v11888
    %v11925 = vsub.f32 %v11877, %v11895
    %v11926 = vsub.f32 %v11878, %v11902
    %v11927 = vsub.f32 %v11879, %v11909
    %v11928 = vsub.f32 %v11880, %v11916
    %v11929 = vsub.f32 %v11881, %v11923
    %v11930 = vmul.f32 %v11924, 1.442695
    %v11931 = vpow.pop %v11930
    %v11932 = vmul.f32 %v11925, 1.442695
    %v11933 = vpow.pop %v11932
    %v11934 = vmul.f32 %v11926, 1.442695
    %v11935 = vpow.pop %v11934
    %v11936 = vmul.f32 %v11927, 1.442695
    %v11937 = vpow.pop %v11936
    %v11938 = vmul.f32 %v11928, 1.442695
    %v11939 = vpow.pop %v11938
    %v11940 = vmul.f32 %v11929, 1.442695
    %v11941 = vpow.pop %v11940
    %v11942 = vsel %vm11467, %v11931, 0.0
    %v11943 = vrot.slane %v11942, 4
    %v11944 = vadd.f32 %v11942, %v11943
    %v11945 = vrot.slane %v11944, 2
    %v11946 = vadd.f32 %v11944, %v11945
    %v11947 = vrot.slane %v11946, 1
    %v11948 = vadd.f32 %v11946, %v11947
    %v11949 = vsel %vm11467, %v11933, 0.0
    %v11950 = vrot.slane %v11949, 4
    %v11951 = vadd.f32 %v11949, %v11950
    %v11952 = vrot.slane %v11951, 2
    %v11953 = vadd.f32 %v11951, %v11952
    %v11954 = vrot.slane %v11953, 1
    %v11955 = vadd.f32 %v11953, %v11954
    %v11956 = vsel %vm11467, %v11935, 0.0
    %v11957 = vrot.slane %v11956, 4
    %v11958 = vadd.f32 %v11956, %v11957
    %v11959 = vrot.slane %v11958, 2
    %v11960 = vadd.f32 %v11958, %v11959
    %v11961 = vrot.slane %v11960, 1
    %v11962 = vadd.f32 %v11960, %v11961
    %v11963 = vsel %vm11467, %v11937, 0.0
    %v11964 = vrot.slane %v11963, 4
    %v11965 = vadd.f32 %v11963, %v11964
    %v11966 = vrot.slane %v11965, 2
    %v11967 = vadd.f32 %v11965, %v11966
    %v11968 = vrot.slane %v11967, 1
    %v11969 = vadd.f32 %v11967, %v11968
    %v11970 = vsel %vm11467, %v11939, 0.0
    %v11971 = vrot.slane %v11970, 4
    %v11972 = vadd.f32 %v11970, %v11971
    %v11973 = vrot.slane %v11972, 2
    %v11974 = vadd.f32 %v11972, %v11973
    %v11975 = vrot.slane %v11974, 1
    %v11976 = vadd.f32 %v11974, %v11975
    %v11977 = vsel %vm11467, %v11941, 0.0
    %v11978 = vrot.slane %v11977, 4
    %v11979 = vadd.f32 %v11977, %v11978
    %v11980 = vrot.slane %v11979, 2
    %v11981 = vadd.f32 %v11979, %v11980
    %v11982 = vrot.slane %v11981, 1
    %v11983 = vadd.f32 %v11981, %v11982
    %v11984 = vrcp.pop %v11948
    %v11985 = vrcp.pop %v11955
    %v11986 = vrcp.pop %v11962
    %v11987 = vrcp.pop %v11969
    %v11988 = vrcp.pop %v11976
    %v11989 = vrcp.pop %v11983
    %v11990 = vmul.f32 %v11948, %v11984
    %v11991 = vmul.f32 %v11955, %v11985
    %v11992 = vmul.f32 %v11962, %v11986
    %v11993 = vmul.f32 %v11969, %v11987
    %v11994 = vmul.f32 %v11976, %v11988
    %v11995 = vmul.f32 %v11983, %v11989
    %v11996 = vsub.f32 2.0, %v11990
    %v11997 = vsub.f32 2.0, %v11991
    %v11998 = vsub.f32 2.0, %v11992
    %v11999 = vsub.f32 2.0, %v11993
    %v12000 = vsub.f32 2.0, %v11994
    %v12001 = vsub.f32 2.0, %v11995
    %v12002 = vmul.f32 %v11984, %v11996
    %v12003 = vmul.f32 %v11985, %v11997
    %v12004 = vmul.f32 %v11986, %v11998
    %v12005 = vmul.f32 %v11987, %v11999
    %v12006 = vmul.f32 %v11988, %v12000
    %v12007 = vmul.f32 %v11989, %v12001
    %v12008 = vmul.f32 %v11931, %v12002
    %v12009 = vmul.f32 %v11933, %v12003
    %v12010 = vmul.f32 %v11935, %v12004
    %v12011 = vmul.f32 %v11937, %v12005
    %v12012 = vmul.f32 %v11939, %v12006
    %v12013 = vmul.f32 %v11941, %v12007
    %v12014 = vmul.f32 %v93, %v12008
    %v12015 = vmul.f32 %v94, %v12009
    %v12016 = vmul.f32 %v95, %v12010
    %v12017 = vmul.f32 %v96, %v12011
    %v12018 = vadd.f32 %v12014, %v12016
    %v12019 = vadd.f32 %v12015, %v12017
    %v12020 = vmul.f32 %v97, %v12012
    %v12021 = vmul.f32 %v98, %v12013
    %v12022 = vadd.f32 %v12018, %v12020
    %v12023 = vadd.f32 %v12019, %v12021
    %v12026 = vcombine.low %v12022, %v12023
    %12028 = vst [vmem:[#allocation6 + $0x8] sm:$0x77] %v12026
    // Predicated region
    $region30: #{tpu_custom_call.1} parent=1 // pred_check
      _
    $region31: #{tpu_custom_call.1} parent=1 // pred_check_branch
      %12030 = sbr.rel (0) target = $region33
    $region32: #{tpu_custom_call.1} parent=1 // pred_region
      %s12032 = ssub.s32 256, 256
      %12033 = vsyncadd [#allocation5], %s12032
      %s12035 = sshll.u32 [#allocation6], 4
      %s12036 = int_to_ptr.vmem [resolvable:$true] %s12035
      %12038 = dma.vmem_to_hbm [thread:$0]  %s12036, 256, %s6, [#allocation5]
    $region33: #{tpu_custom_call.1} parent=1 // pred_fallthru
      _
    // Predicated region
    $region34: #{tpu_custom_call.1} parent=1 // pred_check
      _
    $region35: #{tpu_custom_call.1} parent=1 // pred_check_branch
      %12040 = sbr.rel (0) target = $region37
    $region36: #{tpu_custom_call.1} parent=1 // pred_region
      %12041 = dma.done [#allocation5], 256
    $region37: #{tpu_custom_call.1} parent=1 // pred_fallthru
      _
    %12042 = vsyncpa [#allocation4], 1
    %12043 = vsyncpa [#allocation5], 1

</llo_original>
